<compile_context>
chip_gen: v5e
topology: v5e:2x2
jax: 0.10.0
libtpu: 0.0.40
codegen_flags: <defaults>
</compile_context>

<pallas_src>
import functools

import jax
import jax.numpy as jnp
from jax.experimental import pallas as pl
from jax.experimental.pallas import tpu as pltpu


# PhysicalAttention hyper-parameters (module defaults).
L_ATTN, D_ATTN, D_DOWN, BOTTLENECK, EMB = 196, 512, 16, 3, 10
MLP_HIDDEN = 512
L_PAD = 256          # 128-aligned per-pedestrian lane block inside the scratch

# bf16 inputs / f32 accumulation for the big matmuls + bf16 elementwise h path.
USE_BF16_MXU = True


# ---------------------------------------------------------------------------
# Fused Pallas kernel: PhysicalAttention + 1x1 conv + graph contraction
# ---------------------------------------------------------------------------
def _gcn_fused_kernel(x_ref, a_bd_ref, vgg_ref, proj_w_ref, w1fc_ref, w2_ref,
                      attn_w3_ref, bvec_ref, misc_ref, o_ref, h_scr, *, T, V):
    """Entire ConvTemporalGraphical forward on VMEM-resident tiles.

    Layout: features on sublanes, scene cells L / pedestrians V / time*node
    columns on lanes, so PyTorch (out, in) weights apply directly and all
    softmax / pooling reductions run along lanes.
    """
    L, LP, B = L_ATTN, L_PAD, BOTTLENECK
    C_out = o_ref.shape[0]
    C_in = x_ref.shape[0]
    cdt = w1fc_ref.dtype                       # bf16 (or f32 reference path)
    f32 = jnp.float32

    # ------------------- PhysicalAttention ----------------------------------
    # Scene feature projection (hoisted, shared by all pedestrians):
    #   feat[d_down, l] = sum_d proj_w[d_down, d] * vgg[l, d]   (rhs-transposed)
    feat = jax.lax.dot_general(proj_w_ref[...], vgg_ref[...],
                               (((1,), (1,)), ((), ())),
                               preferred_element_type=f32)        # (D_DOWN, L)

    w1f = w1fc_ref[:, :D_DOWN]                                    # (512, D_DOWN)
    w1c = w1fc_ref[:, D_DOWN:]                                    # (512, 2)  == W1_curr @ se_w
    b1 = bvec_ref[:MLP_HIDDEN, :]                                 # (512, 1)  proj_b / se_b folded in
    b2 = bvec_ref[MLP_HIDDEN:, :]                                 # (B, 1)

    # mlp_pre_attn[0]: shared feature half + per-pedestrian position half.
    f1 = (jnp.dot(w1f, feat.astype(cdt), preferred_element_type=f32)
          + b1).astype(cdt)                                       # (512, L)
    ep = x_ref[:, (T - 1) * V:]                                   # (2, V) last-frame positions
    c1 = (w1c[:, 0:1].astype(f32) * ep[0:1, :]
          + w1c[:, 1:2].astype(f32) * ep[1:2, :]).astype(cdt)     # (512, V), K=2 on VPU

    # Pre-activation + ReLU per pedestrian, written to 128-aligned lane blocks.
    for v in range(V):                                            # V tiny -> static unroll
        h_scr[:, v * LP:v * LP + L] = jnp.maximum(f1 + c1[:, v:v + 1], 0)

    # mlp_pre_attn[2] + ReLU for ALL pedestrians in one MXU call.
    ah = jnp.maximum(jnp.dot(w2_ref[...], h_scr[...],
                             preferred_element_type=f32) + b2, 0.0)   # (B, V*LP)

    # attn Linear: logits[v, l_out] = sum_{l,b} ah_v[b, l] * W[l_out, l*B + b]
    # (padded lane blocks are never read; only the real L columns are gathered.)
    rows = [jnp.concatenate([ah[b:b + 1, v * LP:v * LP + L] for v in range(V)],
                            axis=0) for b in range(B)]            # B x (V, L)
    logits = misc_ref[C_out:C_out + 1, :]                         # attn bias (1, L)
    for b in range(B):
        logits = logits + jnp.dot(rows[b].astype(cdt), attn_w3_ref[b],
                                  preferred_element_type=f32)     # (V, L)

    # Softmax over L (lanes) + weighted pooling of ah over L (lane reductions).
    m = jnp.max(logits, axis=1, keepdims=True)
    e = jnp.exp(logits - m)
    wgt = e * pl.reciprocal(jnp.sum(e, axis=1, keepdims=True), approx=True)
    ssa_vb = jnp.concatenate(
        [jnp.sum(rows[b] * wgt, axis=1, keepdims=True) for b in range(B)],
        axis=1)                                                   # (V, B) scene attention

    # -------- 1x1 conv (x block + scene block + bias) + graph contraction ----
    # TODO(synk): only the module's t_kernel_size/stride/padding/dilation=1/1/0/1
    # configuration (the one SceneAttentionShare uses) is implemented.
    convp = misc_ref[:C_out, :C_in + B + 1]                       # (C_out, 6) = [wx | ws | b]
    wx = convp[:, :C_in]
    ws = convp[:, C_in:C_in + B]
    cb = convp[:, C_in + B:]
    x_all = x_ref[...]                                            # (C_in, T*V)
    y = wx[:, 0:1] * x_all[0:1, :] + wx[:, 1:2] * x_all[1:2, :] + cb   # (C_out, T*V)
    ys = jax.lax.dot_general(ws, ssa_vb, (((1,), (1,)), ((), ())),
                             preferred_element_type=f32)          # (C_out, V)
    y = y + jnp.concatenate([ys] * T, axis=1)                     # scene part is t-invariant
    # einsum('nctv,tvw->nctw') == one matmul against the block-diagonal A.
    o_ref[...] = jnp.dot(y, a_bd_ref[...],
                         preferred_element_type=f32).astype(o_ref.dtype)


# ---------------------------------------------------------------------------
# Parameters (deterministic synthetic init; shapes/layout from module __init__)
# ---------------------------------------------------------------------------
def init_params(key, in_channels=2, out_channels=32):
    assert in_channels == 2, "spatial_embedding is nn.Linear(2, embedding_dim)"
    cdt = jnp.bfloat16 if USE_BF16_MXU else jnp.float32
    ks = jax.random.split(key, 12)

    def linear(kw, kb, fan_in, fan_out):
        # PyTorch nn.Linear / nn.Conv2d default init; weight stored (out, in).
        bound = 1.0 / jnp.sqrt(jnp.float32(fan_in))
        w = jax.random.uniform(kw, (fan_out, fan_in), jnp.float32, -bound, bound)
        b = jax.random.uniform(kb, (fan_out,), jnp.float32, -bound, bound)
        return w, b

    se_w, se_b = linear(ks[0], ks[1], 2, EMB)                        # spatial_embedding
    proj_w, proj_b = linear(ks[2], ks[3], D_ATTN, D_DOWN)            # pre_att_proj
    w1, b1 = linear(ks[4], ks[5], D_DOWN + EMB, MLP_HIDDEN)          # mlp_pre_attn[0]
    w2, b2 = linear(ks[6], ks[7], MLP_HIDDEN, BOTTLENECK)            # mlp_pre_attn[2]
    wa, ba = linear(ks[8], ks[9], L_ATTN * BOTTLENECK, L_ATTN)       # attn Linear
    wc, bc = linear(ks[10], ks[11], in_channels + BOTTLENECK, out_channels)  # 1x1 Conv2d

    # mlp_pre_attn[0] input is cat([features_proj, curr_rel_embedding]).
    w1_feat, w1_curr = w1[:, :D_DOWN], w1[:, D_DOWN:]
    # Exact algebraic folds (no nonlinearity between the chained Linears):
    w1c_se = w1_curr @ se_w                                          # (512, 2)
    b1_eff = b1 + w1_feat @ proj_b + w1_curr @ se_b                  # (512,)

    p = {}
    p["proj_w"] = proj_w.astype(cdt)                                 # (16, 512)
    p["w1fc"] = jnp.concatenate([w1_feat, w1c_se], axis=1).astype(cdt)   # (512, 18)
    p["w2"] = w2.astype(cdt)                                         # (3, 512)
    # wa[l_out, l*B + b] -> attn_w3[b, l, l_out]: B clean (V,L)@(L,L) matmuls.
    p["attn_w3"] = jnp.transpose(
        wa.reshape(L_ATTN, L_ATTN, BOTTLENECK), (2, 1, 0)).astype(cdt)   # (B, L, L)
    # f32 bias pack: [b1_eff ; b2] as a column.
    p["bvec"] = jnp.concatenate([b1_eff, b2]).reshape(-1, 1)         # (515, 1)
    # f32 misc pack: rows [0:C_out] = [conv_wx | conv_ws | conv_b], row C_out = attn bias.
    conv_pack = jnp.concatenate([wc[:, :in_channels], wc[:, in_channels:],
                                 bc[:, None]], axis=1)               # (C_out, 6)
    misc = jnp.zeros((out_channels + 1, L_ATTN), jnp.float32)
    misc = misc.at[:out_channels, :conv_pack.shape[1]].set(conv_pack)
    misc = misc.at[out_channels, :].set(ba)
    p["misc"] = misc
    return p


# ---------------------------------------------------------------------------
# Forward pass: one fused pallas_call + tiny host-side layout prep
# ---------------------------------------------------------------------------
def conv_temporal_graphical_forward(p, x, A, vgg):
    N, C_in, T, V = x.shape
    assert N == 1 and C_in == 2
    Tk, Va, W = A.shape
    assert Tk == T and Va == V == W          # module asserts A.size(0) == kernel_size (== T)
    assert vgg.size == L_ATTN * D_ATTN
    C_out = p["misc"].shape[0] - 1
    cdt = p["w1fc"].dtype

    x_flat = x[0].reshape(C_in, T * V)                               # free view
    vgg2 = vgg.reshape(L_ATTN, D_ATTN).astype(cdt)                   # no transpose, one cast
    eye_T = jnp.eye(T, dtype=A.dtype)
    a_bd = (eye_T[:, None, :, None] * A[:, :, None, :]).reshape(T * V, T * W)  # block-diag A

    operands = (x_flat, a_bd, vgg2, p["proj_w"], p["w1fc"], p["w2"],
                p["attn_w3"], p["bvec"], p["misc"])

    vmem = pl.BlockSpec(memory_space=pltpu.MemorySpace.VMEM)
    out_flat = pl.pallas_call(
        functools.partial(_gcn_fused_kernel, T=T, V=V),
        out_shape=jax.ShapeDtypeStruct((C_out, T * W), jnp.float32),
        in_specs=[vmem] * len(operands),
        out_specs=vmem,
        scratch_shapes=[pltpu.VMEM((MLP_HIDDEN, V * L_PAD), cdt)],
    )(*operands)

    out = out_flat.reshape(C_out, T, W)[None]                        # (1, C_out, T, W), pure view
    return out, A


# ---------------------------------------------------------------------------
if __name__ == "__main__":
    key = jax.random.PRNGKey(0)
    k_p, k_x, k_a, k_v = jax.random.split(key, 4)

    in_channels, out_channels = 2, 32   # x must have 2 channels (spatial_embedding is Linear(2, .))
    T, V = 8, 4                          # kernel_size == T == A.shape[0]

    params = init_params(k_p, in_channels=in_channels, out_channels=out_channels)
    x = jax.random.normal(k_x, (1, in_channels, T, V), jnp.float32)
    A = jax.random.normal(k_a, (T, V, V), jnp.float32)
    vgg = jax.random.normal(k_v, (1, 14, 14, 512), jnp.float32)

    fwd = jax.jit(conv_temporal_graphical_forward)
    out, A_out = fwd(params, x, A, vgg)
    jax.block_until_ready(out)

    assert out.shape == (1, out_channels, T, V), out.shape
    assert A_out.shape == A.shape
    print("KERNEL_OK")
</pallas_src>

<mosaic_0001>
module attributes {stable_mosaic.version = 11 : i64} {
  func.func @_gcn_fused_kernel(%arg0: memref<2x32xf32, #tpu.memory_space<vmem>>, %arg1: memref<32x32xf32, #tpu.memory_space<vmem>>, %arg2: memref<196x512xbf16, #tpu.memory_space<vmem>>, %arg3: memref<16x512xbf16, #tpu.memory_space<vmem>>, %arg4: memref<512x18xbf16, #tpu.memory_space<vmem>>, %arg5: memref<3x512xbf16, #tpu.memory_space<vmem>>, %arg6: memref<3x196x196xbf16, #tpu.memory_space<vmem>>, %arg7: memref<515x1xf32, #tpu.memory_space<vmem>>, %arg8: memref<33x196xf32, #tpu.memory_space<vmem>>, %arg9: memref<32x32xf32, #tpu.memory_space<vmem>>, %arg10: memref<512x1024xbf16, #tpu.memory_space<vmem>>) attributes {dimension_semantics = [], scalar_prefetch = 0 : i64, scratch_operands = 1 : i64, tpu.core_type = #tpu.core_type<tc>} {
    %c0 = arith.constant 0 : index
    %c0_0 = arith.constant 0 : index
    %0 = vector.load %arg3[%c0, %c0_0] : memref<16x512xbf16, #tpu.memory_space<vmem>>, vector<16x512xbf16>
    %c0_1 = arith.constant 0 : index
    %c0_2 = arith.constant 0 : index
    %1 = vector.load %arg2[%c0_1, %c0_2] : memref<196x512xbf16, #tpu.memory_space<vmem>>, vector<196x512xbf16>
    %cst = arith.constant dense<0.000000e+00> : vector<16x196xf32>
    %2 = tpu.matmul %0, %1, %cst {dimension_numbers = #tpu.dot_dimension_numbers<[1], [1], [0], [0], [0, 0, 1, 0], [], []>} : vector<16x512xbf16>, vector<196x512xbf16>, vector<16x196xf32> -> vector<16x196xf32>
    %c0_3 = arith.constant 0 : index
    %c0_4 = arith.constant 0 : index
    %3 = vector.load %arg4[%c0_3, %c0_4] : memref<512x18xbf16, #tpu.memory_space<vmem>>, vector<512x16xbf16>
    %c0_5 = arith.constant 0 : index
    %c16 = arith.constant 16 : index
    %4 = vector.load %arg4[%c0_5, %c16] : memref<512x18xbf16, #tpu.memory_space<vmem>>, vector<512x2xbf16>
    %c0_6 = arith.constant 0 : index
    %c0_7 = arith.constant 0 : index
    %5 = vector.load %arg7[%c0_6, %c0_7] : memref<515x1xf32, #tpu.memory_space<vmem>>, vector<512x1xf32>
    %c512 = arith.constant 512 : index
    %c0_8 = arith.constant 0 : index
    %6 = vector.load %arg7[%c512, %c0_8] : memref<515x1xf32, #tpu.memory_space<vmem>>, vector<3x1xf32>
    %7 = arith.truncf %2 : vector<16x196xf32> to vector<16x196xbf16>
    %cst_9 = arith.constant dense<0.000000e+00> : vector<512x196xf32>
    %8 = tpu.matmul %3, %7, %cst_9 {dimension_numbers = #tpu.dot_dimension_numbers<[1], [0], [0], [1], [0, 0, 1, 1], [], []>} : vector<512x16xbf16>, vector<16x196xbf16>, vector<512x196xf32> -> vector<512x196xf32>
    %9 = vector.broadcast %5 : vector<512x1xf32> to vector<512x196xf32>
    %10 = arith.addf %8, %9 : vector<512x196xf32>
    %11 = arith.truncf %10 : vector<512x196xf32> to vector<512x196xbf16>
    %c0_10 = arith.constant 0 : index
    %c28 = arith.constant 28 : index
    %12 = vector.load %arg0[%c0_10, %c28] : memref<2x32xf32, #tpu.memory_space<vmem>>, vector<2x4xf32>
    %13 = vector.extract_strided_slice %4 {offsets = [0, 0], sizes = [512, 1], strides = [1, 1]} : vector<512x2xbf16> to vector<512x1xbf16>
    %14 = arith.extf %13 : vector<512x1xbf16> to vector<512x1xf32>
    %15 = vector.extract_strided_slice %12 {offsets = [0, 0], sizes = [1, 4], strides = [1, 1]} : vector<2x4xf32> to vector<1x4xf32>
    %16 = vector.broadcast %14 : vector<512x1xf32> to vector<512x4xf32>
    %17 = vector.broadcast %15 : vector<1x4xf32> to vector<512x4xf32>
    %18 = arith.mulf %16, %17 : vector<512x4xf32>
    %19 = vector.extract_strided_slice %4 {offsets = [0, 1], sizes = [512, 1], strides = [1, 1]} : vector<512x2xbf16> to vector<512x1xbf16>
    %20 = arith.extf %19 : vector<512x1xbf16> to vector<512x1xf32>
    %21 = vector.extract_strided_slice %12 {offsets = [1, 0], sizes = [1, 4], strides = [1, 1]} : vector<2x4xf32> to vector<1x4xf32>
    %22 = vector.broadcast %20 : vector<512x1xf32> to vector<512x4xf32>
    %23 = vector.broadcast %21 : vector<1x4xf32> to vector<512x4xf32>
    %24 = arith.mulf %22, %23 : vector<512x4xf32>
    %25 = arith.addf %18, %24 : vector<512x4xf32>
    %26 = arith.truncf %25 : vector<512x4xf32> to vector<512x4xbf16>
    %27 = vector.extract_strided_slice %26 {offsets = [0, 0], sizes = [512, 1], strides = [1, 1]} : vector<512x4xbf16> to vector<512x1xbf16>
    %28 = vector.broadcast %27 : vector<512x1xbf16> to vector<512x196xbf16>
    %29 = arith.addf %11, %28 : vector<512x196xbf16>
    %cst_11 = arith.constant 0.000000e+00 : bf16
    %30 = vector.broadcast %cst_11 : bf16 to vector<512x196xbf16>
    %31 = arith.maximumf %29, %30 : vector<512x196xbf16>
    %c0_12 = arith.constant 0 : index
    %c0_13 = arith.constant 0 : index
    %32 = vector.load %arg10[%c0_12, %c0_13] : memref<512x1024xbf16, #tpu.memory_space<vmem>>, vector<512x196xbf16>
    tpu.vector_store %arg10[%c0_12, %c0_13], %31 {strides = array<i32>} : memref<512x1024xbf16, #tpu.memory_space<vmem>>, vector<512x196xbf16>,
    %33 = vector.extract_strided_slice %26 {offsets = [0, 1], sizes = [512, 1], strides = [1, 1]} : vector<512x4xbf16> to vector<512x1xbf16>
    %34 = vector.broadcast %33 : vector<512x1xbf16> to vector<512x196xbf16>
    %35 = arith.addf %11, %34 : vector<512x196xbf16>
    %cst_14 = arith.constant 0.000000e+00 : bf16
    %36 = vector.broadcast %cst_14 : bf16 to vector<512x196xbf16>
    %37 = arith.maximumf %35, %36 : vector<512x196xbf16>
    %c0_15 = arith.constant 0 : index
    %c256 = arith.constant 256 : index
    %38 = vector.load %arg10[%c0_15, %c256] : memref<512x1024xbf16, #tpu.memory_space<vmem>>, vector<512x196xbf16>
    tpu.vector_store %arg10[%c0_15, %c256], %37 {strides = array<i32>} : memref<512x1024xbf16, #tpu.memory_space<vmem>>, vector<512x196xbf16>,
    %39 = vector.extract_strided_slice %26 {offsets = [0, 2], sizes = [512, 1], strides = [1, 1]} : vector<512x4xbf16> to vector<512x1xbf16>
    %40 = vector.broadcast %39 : vector<512x1xbf16> to vector<512x196xbf16>
    %41 = arith.addf %11, %40 : vector<512x196xbf16>
    %cst_16 = arith.constant 0.000000e+00 : bf16
    %42 = vector.broadcast %cst_16 : bf16 to vector<512x196xbf16>
    %43 = arith.maximumf %41, %42 : vector<512x196xbf16>
    %c0_17 = arith.constant 0 : index
    %c512_18 = arith.constant 512 : index
    %44 = vector.load %arg10[%c0_17, %c512_18] : memref<512x1024xbf16, #tpu.memory_space<vmem>>, vector<512x196xbf16>
    tpu.vector_store %arg10[%c0_17, %c512_18], %43 {strides = array<i32>} : memref<512x1024xbf16, #tpu.memory_space<vmem>>, vector<512x196xbf16>,
    %45 = vector.extract_strided_slice %26 {offsets = [0, 3], sizes = [512, 1], strides = [1, 1]} : vector<512x4xbf16> to vector<512x1xbf16>
    %46 = vector.broadcast %45 : vector<512x1xbf16> to vector<512x196xbf16>
    %47 = arith.addf %11, %46 : vector<512x196xbf16>
    %cst_19 = arith.constant 0.000000e+00 : bf16
    %48 = vector.broadcast %cst_19 : bf16 to vector<512x196xbf16>
    %49 = arith.maximumf %47, %48 : vector<512x196xbf16>
    %c0_20 = arith.constant 0 : index
    %c768 = arith.constant 768 : index
    %50 = vector.load %arg10[%c0_20, %c768] : memref<512x1024xbf16, #tpu.memory_space<vmem>>, vector<512x196xbf16>
    tpu.vector_store %arg10[%c0_20, %c768], %49 {strides = array<i32>} : memref<512x1024xbf16, #tpu.memory_space<vmem>>, vector<512x196xbf16>,
    %c0_21 = arith.constant 0 : index
    %c0_22 = arith.constant 0 : index
    %51 = vector.load %arg5[%c0_21, %c0_22] : memref<3x512xbf16, #tpu.memory_space<vmem>>, vector<3x512xbf16>
    %c0_23 = arith.constant 0 : index
    %c0_24 = arith.constant 0 : index
    %52 = vector.load %arg10[%c0_23, %c0_24] : memref<512x1024xbf16, #tpu.memory_space<vmem>>, vector<512x1024xbf16>
    %cst_25 = arith.constant dense<0.000000e+00> : vector<3x1024xf32>
    %53 = tpu.matmul %51, %52, %cst_25 {dimension_numbers = #tpu.dot_dimension_numbers<[1], [0], [0], [1], [0, 0, 1, 1], [], []>} : vector<3x512xbf16>, vector<512x1024xbf16>, vector<3x1024xf32> -> vector<3x1024xf32>
    %54 = vector.broadcast %6 : vector<3x1xf32> to vector<3x1024xf32>
    %55 = arith.addf %53, %54 : vector<3x1024xf32>
    %cst_26 = arith.constant 0.000000e+00 : f32
    %56 = vector.broadcast %cst_26 : f32 to vector<3x1024xf32>
    %57 = arith.maximumf %55, %56 : vector<3x1024xf32>
    %58 = vector.extract_strided_slice %57 {offsets = [0, 0], sizes = [1, 196], strides = [1, 1]} : vector<3x1024xf32> to vector<1x196xf32>
    %59 = vector.extract_strided_slice %57 {offsets = [0, 256], sizes = [1, 196], strides = [1, 1]} : vector<3x1024xf32> to vector<1x196xf32>
    %60 = vector.extract_strided_slice %57 {offsets = [0, 512], sizes = [1, 196], strides = [1, 1]} : vector<3x1024xf32> to vector<1x196xf32>
    %61 = vector.extract_strided_slice %57 {offsets = [0, 768], sizes = [1, 196], strides = [1, 1]} : vector<3x1024xf32> to vector<1x196xf32>
    %62 = tpu.concatenate %58, %59, %60, %61 in 0 : vector<1x196xf32>, vector<1x196xf32>, vector<1x196xf32>, vector<1x196xf32> -> vector<4x196xf32>
    %63 = vector.extract_strided_slice %57 {offsets = [1, 0], sizes = [1, 196], strides = [1, 1]} : vector<3x1024xf32> to vector<1x196xf32>
    %64 = vector.extract_strided_slice %57 {offsets = [1, 256], sizes = [1, 196], strides = [1, 1]} : vector<3x1024xf32> to vector<1x196xf32>
    %65 = vector.extract_strided_slice %57 {offsets = [1, 512], sizes = [1, 196], strides = [1, 1]} : vector<3x1024xf32> to vector<1x196xf32>
    %66 = vector.extract_strided_slice %57 {offsets = [1, 768], sizes = [1, 196], strides = [1, 1]} : vector<3x1024xf32> to vector<1x196xf32>
    %67 = tpu.concatenate %63, %64, %65, %66 in 0 : vector<1x196xf32>, vector<1x196xf32>, vector<1x196xf32>, vector<1x196xf32> -> vector<4x196xf32>
    %68 = vector.extract_strided_slice %57 {offsets = [2, 0], sizes = [1, 196], strides = [1, 1]} : vector<3x1024xf32> to vector<1x196xf32>
    %69 = vector.extract_strided_slice %57 {offsets = [2, 256], sizes = [1, 196], strides = [1, 1]} : vector<3x1024xf32> to vector<1x196xf32>
    %70 = vector.extract_strided_slice %57 {offsets = [2, 512], sizes = [1, 196], strides = [1, 1]} : vector<3x1024xf32> to vector<1x196xf32>
    %71 = vector.extract_strided_slice %57 {offsets = [2, 768], sizes = [1, 196], strides = [1, 1]} : vector<3x1024xf32> to vector<1x196xf32>
    %72 = tpu.concatenate %68, %69, %70, %71 in 0 : vector<1x196xf32>, vector<1x196xf32>, vector<1x196xf32>, vector<1x196xf32> -> vector<4x196xf32>
    %c32 = arith.constant 32 : index
    %c0_27 = arith.constant 0 : index
    %73 = vector.load %arg8[%c32, %c0_27] : memref<33x196xf32, #tpu.memory_space<vmem>>, vector<1x196xf32>
    %74 = arith.truncf %62 : vector<4x196xf32> to vector<4x196xbf16>
    %c0_28 = arith.constant 0 : index
    %c0_29 = arith.constant 0 : index
    %c0_30 = arith.constant 0 : index
    %75 = vector.load %arg6[%c0_28, %c0_29, %c0_30] : memref<3x196x196xbf16, #tpu.memory_space<vmem>>, vector<1x196x196xbf16>
    %76 = vector.shape_cast %75 : vector<1x196x196xbf16> to vector<196x196xbf16>
    %cst_31 = arith.constant dense<0.000000e+00> : vector<4x196xf32>
    %77 = tpu.matmul %74, %76, %cst_31 {dimension_numbers = #tpu.dot_dimension_numbers<[1], [0], [0], [1], [0, 0, 1, 1], [], []>} : vector<4x196xbf16>, vector<196x196xbf16>, vector<4x196xf32> -> vector<4x196xf32>
    %78 = vector.broadcast %73 : vector<1x196xf32> to vector<4x196xf32>
    %79 = arith.addf %78, %77 : vector<4x196xf32>
    %80 = arith.truncf %67 : vector<4x196xf32> to vector<4x196xbf16>
    %c1 = arith.constant 1 : index
    %c0_32 = arith.constant 0 : index
    %c0_33 = arith.constant 0 : index
    %81 = vector.load %arg6[%c1, %c0_32, %c0_33] : memref<3x196x196xbf16, #tpu.memory_space<vmem>>, vector<1x196x196xbf16>
    %82 = vector.shape_cast %81 : vector<1x196x196xbf16> to vector<196x196xbf16>
    %cst_34 = arith.constant dense<0.000000e+00> : vector<4x196xf32>
    %83 = tpu.matmul %80, %82, %cst_34 {dimension_numbers = #tpu.dot_dimension_numbers<[1], [0], [0], [1], [0, 0, 1, 1], [], []>} : vector<4x196xbf16>, vector<196x196xbf16>, vector<4x196xf32> -> vector<4x196xf32>
    %84 = arith.addf %79, %83 : vector<4x196xf32>
    %85 = arith.truncf %72 : vector<4x196xf32> to vector<4x196xbf16>
    %c2 = arith.constant 2 : index
    %c0_35 = arith.constant 0 : index
    %c0_36 = arith.constant 0 : index
    %86 = vector.load %arg6[%c2, %c0_35, %c0_36] : memref<3x196x196xbf16, #tpu.memory_space<vmem>>, vector<1x196x196xbf16>
    %87 = vector.shape_cast %86 : vector<1x196x196xbf16> to vector<196x196xbf16>
    %cst_37 = arith.constant dense<0.000000e+00> : vector<4x196xf32>
    %88 = tpu.matmul %85, %87, %cst_37 {dimension_numbers = #tpu.dot_dimension_numbers<[1], [0], [0], [1], [0, 0, 1, 1], [], []>} : vector<4x196xbf16>, vector<196x196xbf16>, vector<4x196xf32> -> vector<4x196xf32>
    %89 = arith.addf %84, %88 : vector<4x196xf32>
    %cst_38 = arith.constant dense<0xFF800000> : vector<4xf32>
    %90 = vector.multi_reduction <maximumf>, %89, %cst_38 [1] : vector<4x196xf32> to vector<4xf32>
    %91 = vector.shape_cast %90 : vector<4xf32> to vector<4x1xf32>
    %92 = vector.broadcast %91 : vector<4x1xf32> to vector<4x196xf32>
    %93 = arith.subf %89, %92 : vector<4x196xf32>
    %94 = math.exp %93 : vector<4x196xf32>
    %cst_39 = arith.constant dense<0.000000e+00> : vector<4xf32>
    %95 = vector.multi_reduction <add>, %94, %cst_39 [1] : vector<4x196xf32> to vector<4xf32>
    %96 = vector.shape_cast %95 : vector<4xf32> to vector<4x1xf32>
    %97 = tpu.reciprocal %96 {approx = true} : vector<4x1xf32> -> vector<4x1xf32>
    %98 = vector.broadcast %97 : vector<4x1xf32> to vector<4x196xf32>
    %99 = arith.mulf %94, %98 : vector<4x196xf32>
    %100 = arith.mulf %62, %99 : vector<4x196xf32>
    %cst_40 = arith.constant dense<0.000000e+00> : vector<4xf32>
    %101 = vector.multi_reduction <add>, %100, %cst_40 [1] : vector<4x196xf32> to vector<4xf32>
    %102 = vector.shape_cast %101 : vector<4xf32> to vector<4x1xf32>
    %103 = arith.mulf %67, %99 : vector<4x196xf32>
    %cst_41 = arith.constant dense<0.000000e+00> : vector<4xf32>
    %104 = vector.multi_reduction <add>, %103, %cst_41 [1] : vector<4x196xf32> to vector<4xf32>
    %105 = vector.shape_cast %104 : vector<4xf32> to vector<4x1xf32>
    %106 = arith.mulf %72, %99 : vector<4x196xf32>
    %cst_42 = arith.constant dense<0.000000e+00> : vector<4xf32>
    %107 = vector.multi_reduction <add>, %106, %cst_42 [1] : vector<4x196xf32> to vector<4xf32>
    %108 = vector.shape_cast %107 : vector<4xf32> to vector<4x1xf32>
    %109 = tpu.concatenate %102, %105, %108 in 1 : vector<4x1xf32>, vector<4x1xf32>, vector<4x1xf32> -> vector<4x3xf32>
    %c0_43 = arith.constant 0 : index
    %c0_44 = arith.constant 0 : index
    %110 = vector.load %arg8[%c0_43, %c0_44] : memref<33x196xf32, #tpu.memory_space<vmem>>, vector<32x6xf32>
    %111 = vector.extract_strided_slice %110 {offsets = [0, 0], sizes = [32, 2], strides = [1, 1]} : vector<32x6xf32> to vector<32x2xf32>
    %112 = vector.extract_strided_slice %110 {offsets = [0, 2], sizes = [32, 3], strides = [1, 1]} : vector<32x6xf32> to vector<32x3xf32>
    %113 = vector.extract_strided_slice %110 {offsets = [0, 5], sizes = [32, 1], strides = [1, 1]} : vector<32x6xf32> to vector<32x1xf32>
    %c0_45 = arith.constant 0 : index
    %c0_46 = arith.constant 0 : index
    %114 = vector.load %arg0[%c0_45, %c0_46] : memref<2x32xf32, #tpu.memory_space<vmem>>, vector<2x32xf32>
    %115 = vector.extract_strided_slice %111 {offsets = [0, 0], sizes = [32, 1], strides = [1, 1]} : vector<32x2xf32> to vector<32x1xf32>
    %116 = vector.extract_strided_slice %114 {offsets = [0, 0], sizes = [1, 32], strides = [1, 1]} : vector<2x32xf32> to vector<1x32xf32>
    %117 = vector.broadcast %115 : vector<32x1xf32> to vector<32x32xf32>
    %118 = vector.broadcast %116 : vector<1x32xf32> to vector<32x32xf32>
    %119 = arith.mulf %117, %118 : vector<32x32xf32>
    %120 = vector.extract_strided_slice %111 {offsets = [0, 1], sizes = [32, 1], strides = [1, 1]} : vector<32x2xf32> to vector<32x1xf32>
    %121 = vector.extract_strided_slice %114 {offsets = [1, 0], sizes = [1, 32], strides = [1, 1]} : vector<2x32xf32> to vector<1x32xf32>
    %122 = vector.broadcast %120 : vector<32x1xf32> to vector<32x32xf32>
    %123 = vector.broadcast %121 : vector<1x32xf32> to vector<32x32xf32>
    %124 = arith.mulf %122, %123 : vector<32x32xf32>
    %125 = arith.addf %119, %124 : vector<32x32xf32>
    %126 = vector.broadcast %113 : vector<32x1xf32> to vector<32x32xf32>
    %127 = arith.addf %125, %126 : vector<32x32xf32>
    %cst_47 = arith.constant dense<0.000000e+00> : vector<32x4xf32>
    %128 = tpu.matmul %112, %109, %cst_47 {dimension_numbers = #tpu.dot_dimension_numbers<[1], [1], [0], [0], [0, 0, 1, 0], [], []>} : vector<32x3xf32>, vector<4x3xf32>, vector<32x4xf32> -> vector<32x4xf32>
    %129 = tpu.concatenate %128, %128, %128, %128, %128, %128, %128, %128 in 1 : vector<32x4xf32>, vector<32x4xf32>, vector<32x4xf32>, vector<32x4xf32>, vector<32x4xf32>, vector<32x4xf32>, vector<32x4xf32>, vector<32x4xf32> -> vector<32x32xf32>
    %130 = arith.addf %127, %129 : vector<32x32xf32>
    %c0_48 = arith.constant 0 : index
    %c0_49 = arith.constant 0 : index
    %131 = vector.load %arg1[%c0_48, %c0_49] : memref<32x32xf32, #tpu.memory_space<vmem>>, vector<32x32xf32>
    %cst_50 = arith.constant dense<0.000000e+00> : vector<32x32xf32>
    %132 = tpu.matmul %130, %131, %cst_50 {dimension_numbers = #tpu.dot_dimension_numbers<[1], [0], [0], [1], [0, 0, 1, 1], [], []>} : vector<32x32xf32>, vector<32x32xf32>, vector<32x32xf32> -> vector<32x32xf32>
    %c0_51 = arith.constant 0 : index
    %c0_52 = arith.constant 0 : index
    %133 = vector.load %arg9[%c0_51, %c0_52] : memref<32x32xf32, #tpu.memory_space<vmem>>, vector<32x32xf32>
    tpu.vector_store %arg9[%c0_51, %c0_52], %132 {strides = array<i32>} : memref<32x32xf32, #tpu.memory_space<vmem>>, vector<32x32xf32>,
    return
  }
}

</mosaic_0001>

<llo_original>
// kernel: squeeze.1
$region0: #{squeeze.1}
  %s0 = inlined_call_operand.vmem [shape: f32[1,2,8,4], index: 0, kind: input, shape index: {}]
  %s1 = inlined_call_operand.vmem [shape: f32[2,32], index: 1, kind: output, shape index: {}]
  $region1: #{squeeze.1} parent=0
    #allocation0 [shape = 'u8[4096]{0}', space=vmem, size = 0x1000, scoped, tag = 'scoped mem for output reshape']
    %s2 = smov 3
    %v3 = vld [vmem:[%s0] ss:$8 sm:%s2]
    %vm4 = vcmask 31744
    %5 = vst.msk [vmem:[#allocation0] sm:$0x3] %vm4, %v3
    %s6 = scalar_lea.vmem %s0, 7
    %s7 = smov 3
    %v8 = vld [vmem:[%s6] ss:$8 sm:%s7]
    %9 = vrot.lane.b32.xlu0 %v8, 28
    %v10 = vpop.permute.xlu0 %9
    %vm11 = vcmask 261344
    %12 = vst.msk [vmem:[#allocation0] sm:$0x3] %vm11, %v10
    %s13 = scalar_lea.vmem %s0, 6
    %s14 = smov 3
    %v15 = vld [vmem:[%s13] ss:$8 sm:%s14]
    %16 = vrot.lane.b32.xlu0 %v15, 24
    %v17 = vpop.permute.xlu0 %16
    %vm18 = vcmask 228544
    %19 = vst.msk [vmem:[#allocation0] sm:$0x3] %vm18, %v17
    %s20 = scalar_lea.vmem %s0, 5
    %s21 = smov 3
    %v22 = vld [vmem:[%s20] ss:$8 sm:%s21]
    %23 = vrot.lane.b32.xlu0 %v22, 20
    %v24 = vpop.permute.xlu0 %23
    %vm25 = vcmask 195744
    %26 = vst.msk [vmem:[#allocation0] sm:$0x3] %vm25, %v24
    %s27 = scalar_lea.vmem %s0, 4
    %s28 = smov 3
    %v29 = vld [vmem:[%s27] ss:$8 sm:%s28]
    %30 = vrot.lane.b32.xlu0 %v29, 16
    %v31 = vpop.permute.xlu0 %30
    %vm32 = vcmask 162944
    %33 = vst.msk [vmem:[#allocation0] sm:$0x3] %vm32, %v31
    %s34 = scalar_lea.vmem %s0, 3
    %s35 = smov 3
    %v36 = vld [vmem:[%s34] ss:$8 sm:%s35]
    %37 = vrot.lane.b32.xlu0 %v36, 12
    %v38 = vpop.permute.xlu0 %37
    %vm39 = vcmask 130144
    %40 = vst.msk [vmem:[#allocation0] sm:$0x3] %vm39, %v38
    %s41 = scalar_lea.vmem %s0, 2
    %s42 = smov 3
    %v43 = vld [vmem:[%s41] ss:$8 sm:%s42]
    %44 = vrot.lane.b32.xlu0 %v43, 8
    %v45 = vpop.permute.xlu0 %44
    %vm46 = vcmask 97344
    %47 = vst.msk [vmem:[#allocation0] sm:$0x3] %vm46, %v45
    %s48 = scalar_lea.vmem %s0, 1
    %s49 = smov 3
    %v50 = vld [vmem:[%s48] ss:$8 sm:%s49]
    %51 = vrot.lane.b32.xlu0 %v50, 4
    %v52 = vpop.permute.xlu0 %51
    %vm53 = vcmask 64544
    %54 = vst.msk [vmem:[#allocation0] sm:$0x3] %vm53, %v52
    %s56 = ssub.s32 4, 1
    %v57 = vld [vmem:[#allocation0] sm:%s56]
    %s59 = ssub.s32 4, 1
    %60 = vst [vmem:[%s1] sm:%s59] %v57

// kernel: conv_temporal_graphical_forward.1
$region0: #{conv_temporal_graphical_forward.1}
  #allocation0 [shape = 'u32[]', space=smem, size = 0x4, offset = 0x4, fixed_abs, tag = 'smem constant byte address 0x4 - core index']
  #allocation1 [shape = 'u32[72,128]{1,0:T(1,128)}', space=vmem, size = 0x9000, scoped, tag = 'internal scratch']
  #allocation2 [shape = 'bf16[512,1024]{1,0:T(8,128)(2,1)}', space=vmem, size = 0x100000, scoped, tag = 'scratch operand']
  %s0 = inlined_call_operand.vmem [shape: f32[2,32], index: 0, kind: input, shape index: {}]
  %s1 = inlined_call_operand.vmem [shape: f32[32,32], index: 1, kind: input, shape index: {}]
  %s2 = inlined_call_operand.vmem [shape: bf16[196,512], index: 2, kind: input, shape index: {}]
  %s3 = inlined_call_operand.vmem [shape: bf16[16,512], index: 3, kind: input, shape index: {}]
  %s4 = inlined_call_operand.vmem [shape: bf16[512,18], index: 4, kind: input, shape index: {}]
  %s5 = inlined_call_operand.vmem [shape: bf16[3,512], index: 5, kind: input, shape index: {}]
  %s6 = inlined_call_operand.vmem [shape: bf16[3,196,196], index: 6, kind: input, shape index: {}]
  %s7 = inlined_call_operand.vmem [shape: f32[515,1], index: 7, kind: input, shape index: {}]
  %s8 = inlined_call_operand.vmem [shape: f32[33,196], index: 8, kind: input, shape index: {}]
  %s9 = inlined_call_operand.vmem [shape: f32[32,32], index: 9, kind: output, shape index: {}]
  %s10 = sld [smem:[#allocation0]]
  $region46: #{conv_temporal_graphical_forward.1} parent=0
    _
  %s12 = ssub.s32 1, %s10
  %s13 = scalar_select 0, %s12, %s10
  // Predicated region
  $region2: #{conv_temporal_graphical_forward.1} parent=0 // pred_check
    _
  $region3: #{conv_temporal_graphical_forward.1} parent=0 // pred_check_branch
    %15 = sbr.rel (0) target = $region5
  $region4: #{conv_temporal_graphical_forward.1} parent=0 // pred_region
    _
  $region5: #{conv_temporal_graphical_forward.1} parent=0 // pred_fallthru
    _
  // Predicated region
  $region6: #{conv_temporal_graphical_forward.1} parent=0 // pred_check
    _
  $region7: #{conv_temporal_graphical_forward.1} parent=0 // pred_check_branch
    %17 = sbr.rel (0) target = $region9
  $region8: #{conv_temporal_graphical_forward.1} parent=0 // pred_region
    _
  $region9: #{conv_temporal_graphical_forward.1} parent=0 // pred_fallthru
    _
  // Predicated region
  $region10: #{conv_temporal_graphical_forward.1} parent=0 // pred_check
    _
  $region11: #{conv_temporal_graphical_forward.1} parent=0 // pred_check_branch
    %19 = sbr.rel (0) target = $region13
  $region12: #{conv_temporal_graphical_forward.1} parent=0 // pred_region
    _
  $region13: #{conv_temporal_graphical_forward.1} parent=0 // pred_fallthru
    _
  // Predicated region
  $region14: #{conv_temporal_graphical_forward.1} parent=0 // pred_check
    _
  $region15: #{conv_temporal_graphical_forward.1} parent=0 // pred_check_branch
    %21 = sbr.rel (0) target = $region17
  $region16: #{conv_temporal_graphical_forward.1} parent=0 // pred_region
    _
  $region17: #{conv_temporal_graphical_forward.1} parent=0 // pred_fallthru
    _
  // Predicated region
  $region18: #{conv_temporal_graphical_forward.1} parent=0 // pred_check
    _
  $region19: #{conv_temporal_graphical_forward.1} parent=0 // pred_check_branch
    %23 = sbr.rel (0) target = $region21
  $region20: #{conv_temporal_graphical_forward.1} parent=0 // pred_region
    _
  $region21: #{conv_temporal_graphical_forward.1} parent=0 // pred_fallthru
    _
  // Predicated region
  $region22: #{conv_temporal_graphical_forward.1} parent=0 // pred_check
    _
  $region23: #{conv_temporal_graphical_forward.1} parent=0 // pred_check_branch
    %25 = sbr.rel (0) target = $region25
  $region24: #{conv_temporal_graphical_forward.1} parent=0 // pred_region
    _
  $region25: #{conv_temporal_graphical_forward.1} parent=0 // pred_fallthru
    _
  // Predicated region
  $region26: #{conv_temporal_graphical_forward.1} parent=0 // pred_check
    _
  $region27: #{conv_temporal_graphical_forward.1} parent=0 // pred_check_branch
    %27 = sbr.rel (0) target = $region29
  $region28: #{conv_temporal_graphical_forward.1} parent=0 // pred_region
    _
  $region29: #{conv_temporal_graphical_forward.1} parent=0 // pred_fallthru
    _
  // Predicated region
  $region30: #{conv_temporal_graphical_forward.1} parent=0 // pred_check
    _
  $region31: #{conv_temporal_graphical_forward.1} parent=0 // pred_check_branch
    %29 = sbr.rel (0) target = $region33
  $region32: #{conv_temporal_graphical_forward.1} parent=0 // pred_region
    _
  $region33: #{conv_temporal_graphical_forward.1} parent=0 // pred_fallthru
    _
  // Predicated region
  $region34: #{conv_temporal_graphical_forward.1} parent=0 // pred_check
    _
  $region35: #{conv_temporal_graphical_forward.1} parent=0 // pred_check_branch
    %31 = sbr.rel (0) target = $region37
  $region36: #{conv_temporal_graphical_forward.1} parent=0 // pred_region
    _
  $region37: #{conv_temporal_graphical_forward.1} parent=0 // pred_fallthru
    _
  %v33 = vld [vmem:[%s3] sm:$0xff]
  %v34 = vld [vmem:[%s3 + $0x8] sm:$0xff]
  %v35 = vld [vmem:[%s3 + $0x10] sm:$0xff]
  %v36 = vld [vmem:[%s3 + $0x18] sm:$0xff]
  %v37 = vld [vmem:[%s2] sm:$0xff]
  %v38 = vld [vmem:[%s2 + $0x8] sm:$0xff]
  %v39 = vld [vmem:[%s2 + $0x10] sm:$0xff]
  %v40 = vld [vmem:[%s2 + $0x18] sm:$0xff]
  %v41 = vld [vmem:[%s2 + $0x20] sm:$0xff]
  %v42 = vld [vmem:[%s2 + $0x28] sm:$0xff]
  %v43 = vld [vmem:[%s2 + $0x30] sm:$0xff]
  %v44 = vld [vmem:[%s2 + $0x38] sm:$0xff]
  %v45 = vld [vmem:[%s2 + $0x40] sm:$0xff]
  %v46 = vld [vmem:[%s2 + $0x48] sm:$0xff]
  %v47 = vld [vmem:[%s2 + $0x50] sm:$0xff]
  %v48 = vld [vmem:[%s2 + $0x58] sm:$0xff]
  %v49 = vld [vmem:[%s2 + $0x60] sm:$0xff]
  %v50 = vld [vmem:[%s2 + $0x68] sm:$0xff]
  %v51 = vld [vmem:[%s2 + $0x70] sm:$0xff]
  %v52 = vld [vmem:[%s2 + $0x78] sm:$0xff]
  %v53 = vld [vmem:[%s2 + $0x80] sm:$0xff]
  %v54 = vld [vmem:[%s2 + $0x88] sm:$0xff]
  %v55 = vld [vmem:[%s2 + $0x90] sm:$0xff]
  %v56 = vld [vmem:[%s2 + $0x98] sm:$0xff]
  %v57 = vld [vmem:[%s2 + $0xa0] sm:$0xff]
  %v58 = vld [vmem:[%s2 + $0xa8] sm:$0xff]
  %v59 = vld [vmem:[%s2 + $0xb0] sm:$0xff]
  %v60 = vld [vmem:[%s2 + $0xb8] sm:$0xff]
  %v61 = vld [vmem:[%s2 + $0xc0] sm:$0xff]
  %v62 = vld [vmem:[%s2 + $0xc8] sm:$0xff]
  %v63 = vld [vmem:[%s2 + $0xd0] sm:$0xff]
  %v64 = vld [vmem:[%s2 + $0xd8] sm:$0xff]
  %v65 = vld [vmem:[%s2 + $0xe0] sm:$0xff]
  %v66 = vld [vmem:[%s2 + $0xe8] sm:$0xff]
  %v67 = vld [vmem:[%s2 + $0xf0] sm:$0xff]
  %v68 = vld [vmem:[%s2 + $0xf8] sm:$0xff]
  %v69 = vld [vmem:[%s2 + $0x100] sm:$0xff]
  %v70 = vld [vmem:[%s2 + $0x108] sm:$0xff]
  %v71 = vld [vmem:[%s2 + $0x110] sm:$0xff]
  %v72 = vld [vmem:[%s2 + $0x118] sm:$0xff]
  %v73 = vld [vmem:[%s2 + $0x120] sm:$0xff]
  %v74 = vld [vmem:[%s2 + $0x128] sm:$0xff]
  %v75 = vld [vmem:[%s2 + $0x130] sm:$0xff]
  %v76 = vld [vmem:[%s2 + $0x138] sm:$0xff]
  %v77 = vld [vmem:[%s2 + $0x140] sm:$0xff]
  %v78 = vld [vmem:[%s2 + $0x148] sm:$0xff]
  %v79 = vld [vmem:[%s2 + $0x150] sm:$0xff]
  %v80 = vld [vmem:[%s2 + $0x158] sm:$0xff]
  %v81 = vld [vmem:[%s2 + $0x160] sm:$0xff]
  %v82 = vld [vmem:[%s2 + $0x168] sm:$0xff]
  %v83 = vld [vmem:[%s2 + $0x170] sm:$0xff]
  %v84 = vld [vmem:[%s2 + $0x178] sm:$0xff]
  %v85 = vld [vmem:[%s2 + $0x180] sm:$0x33]
  %v86 = vld [vmem:[%s2 + $0x188] sm:$0x33]
  %v91 = vunpack.c.l.b16 %v33
  %v92 = vunpack.c.h.b16 %v33
  %v93 = vunpack.c.l.b16 %v34
  %v94 = vunpack.c.h.b16 %v34
  %v95 = vunpack.c.l.b16 %v35
  %v96 = vunpack.c.h.b16 %v35
  %v97 = vunpack.c.l.b16 %v36
  %v98 = vunpack.c.h.b16 %v36
  %v99 = vpack.c.b16 %v95, %v91
  %v100 = vpack.c.b16 %v96, %v92
  %v101 = vpack.c.b16 %v97, %v93
  %v102 = vpack.c.b16 %v98, %v94
  %v157 = vunpack.c.l.b16 %v37
  %v158 = vunpack.c.h.b16 %v37
  %v159 = vunpack.c.l.b16 %v38
  %v160 = vunpack.c.h.b16 %v38
  %v161 = vunpack.c.l.b16 %v39
  %v162 = vunpack.c.h.b16 %v39
  %v163 = vunpack.c.l.b16 %v40
  %v164 = vunpack.c.h.b16 %v40
  %v165 = vunpack.c.l.b16 %v41
  %v166 = vunpack.c.h.b16 %v41
  %v167 = vunpack.c.l.b16 %v42
  %v168 = vunpack.c.h.b16 %v42
  %v169 = vunpack.c.l.b16 %v43
  %v170 = vunpack.c.h.b16 %v43
  %v171 = vunpack.c.l.b16 %v44
  %v172 = vunpack.c.h.b16 %v44
  %v173 = vunpack.c.l.b16 %v45
  %v174 = vunpack.c.h.b16 %v45
  %v175 = vunpack.c.l.b16 %v46
  %v176 = vunpack.c.h.b16 %v46
  %v177 = vunpack.c.l.b16 %v47
  %v178 = vunpack.c.h.b16 %v47
  %v179 = vunpack.c.l.b16 %v48
  %v180 = vunpack.c.h.b16 %v48
  %v181 = vunpack.c.l.b16 %v49
  %v182 = vunpack.c.h.b16 %v49
  %v183 = vunpack.c.l.b16 %v50
  %v184 = vunpack.c.h.b16 %v50
  %v185 = vunpack.c.l.b16 %v51
  %v186 = vunpack.c.h.b16 %v51
  %v187 = vunpack.c.l.b16 %v52
  %v188 = vunpack.c.h.b16 %v52
  %v189 = vunpack.c.l.b16 %v53
  %v190 = vunpack.c.h.b16 %v53
  %v191 = vunpack.c.l.b16 %v54
  %v192 = vunpack.c.h.b16 %v54
  %v193 = vunpack.c.l.b16 %v55
  %v194 = vunpack.c.h.b16 %v55
  %v195 = vunpack.c.l.b16 %v56
  %v196 = vunpack.c.h.b16 %v56
  %v197 = vunpack.c.l.b16 %v57
  %v198 = vunpack.c.h.b16 %v57
  %v199 = vunpack.c.l.b16 %v58
  %v200 = vunpack.c.h.b16 %v58
  %v201 = vunpack.c.l.b16 %v59
  %v202 = vunpack.c.h.b16 %v59
  %v203 = vunpack.c.l.b16 %v60
  %v204 = vunpack.c.h.b16 %v60
  %v205 = vunpack.c.l.b16 %v61
  %v206 = vunpack.c.h.b16 %v61
  %v207 = vunpack.c.l.b16 %v62
  %v208 = vunpack.c.h.b16 %v62
  %v209 = vunpack.c.l.b16 %v63
  %v210 = vunpack.c.h.b16 %v63
  %v211 = vunpack.c.l.b16 %v64
  %v212 = vunpack.c.h.b16 %v64
  %v213 = vunpack.c.l.b16 %v65
  %v214 = vunpack.c.h.b16 %v65
  %v215 = vunpack.c.l.b16 %v66
  %v216 = vunpack.c.h.b16 %v66
  %v217 = vunpack.c.l.b16 %v67
  %v218 = vunpack.c.h.b16 %v67
  %v219 = vunpack.c.l.b16 %v68
  %v220 = vunpack.c.h.b16 %v68
  %v221 = vunpack.c.l.b16 %v69
  %v222 = vunpack.c.h.b16 %v69
  %v223 = vunpack.c.l.b16 %v70
  %v224 = vunpack.c.h.b16 %v70
  %v225 = vunpack.c.l.b16 %v71
  %v226 = vunpack.c.h.b16 %v71
  %v227 = vunpack.c.l.b16 %v72
  %v228 = vunpack.c.h.b16 %v72
  %v229 = vunpack.c.l.b16 %v73
  %v230 = vunpack.c.h.b16 %v73
  %v231 = vunpack.c.l.b16 %v74
  %v232 = vunpack.c.h.b16 %v74
  %v233 = vunpack.c.l.b16 %v75
  %v234 = vunpack.c.h.b16 %v75
  %v235 = vunpack.c.l.b16 %v76
  %v236 = vunpack.c.h.b16 %v76
  %v237 = vunpack.c.l.b16 %v77
  %v238 = vunpack.c.h.b16 %v77
  %v239 = vunpack.c.l.b16 %v78
  %v240 = vunpack.c.h.b16 %v78
  %v241 = vunpack.c.l.b16 %v79
  %v242 = vunpack.c.h.b16 %v79
  %v243 = vunpack.c.l.b16 %v80
  %v244 = vunpack.c.h.b16 %v80
  %v245 = vunpack.c.l.b16 %v81
  %v246 = vunpack.c.h.b16 %v81
  %v247 = vunpack.c.l.b16 %v82
  %v248 = vunpack.c.h.b16 %v82
  %v249 = vunpack.c.l.b16 %v83
  %v250 = vunpack.c.h.b16 %v83
  %v251 = vunpack.c.l.b16 %v84
  %v252 = vunpack.c.h.b16 %v84
  %v253 = vunpack.c.l.b16 %v85
  %v254 = vunpack.c.h.b16 %v85
  %v255 = vunpack.c.l.b16 %v86
  %v256 = vunpack.c.h.b16 %v86
  %v257 = vpack.c.b16 %v161, %v157
  %v258 = vpack.c.b16 %v162, %v158
  %v259 = vpack.c.b16 %v163, %v159
  %v260 = vpack.c.b16 %v164, %v160
  %v261 = vpack.c.b16 %v169, %v165
  %v262 = vpack.c.b16 %v170, %v166
  %v263 = vpack.c.b16 %v171, %v167
  %v264 = vpack.c.b16 %v172, %v168
  %v265 = vpack.c.b16 %v177, %v173
  %v266 = vpack.c.b16 %v178, %v174
  %v267 = vpack.c.b16 %v179, %v175
  %v268 = vpack.c.b16 %v180, %v176
  %v269 = vpack.c.b16 %v185, %v181
  %v270 = vpack.c.b16 %v186, %v182
  %v271 = vpack.c.b16 %v187, %v183
  %v272 = vpack.c.b16 %v188, %v184
  %v273 = vpack.c.b16 %v193, %v189
  %v274 = vpack.c.b16 %v194, %v190
  %v275 = vpack.c.b16 %v195, %v191
  %v276 = vpack.c.b16 %v196, %v192
  %v277 = vpack.c.b16 %v201, %v197
  %v278 = vpack.c.b16 %v202, %v198
  %v279 = vpack.c.b16 %v203, %v199
  %v280 = vpack.c.b16 %v204, %v200
  %v281 = vpack.c.b16 %v209, %v205
  %v282 = vpack.c.b16 %v210, %v206
  %v283 = vpack.c.b16 %v211, %v207
  %v284 = vpack.c.b16 %v212, %v208
  %v285 = vpack.c.b16 %v217, %v213
  %v286 = vpack.c.b16 %v218, %v214
  %v287 = vpack.c.b16 %v219, %v215
  %v288 = vpack.c.b16 %v220, %v216
  %v289 = vpack.c.b16 %v225, %v221
  %v290 = vpack.c.b16 %v226, %v222
  %v291 = vpack.c.b16 %v227, %v223
  %v292 = vpack.c.b16 %v228, %v224
  %v293 = vpack.c.b16 %v233, %v229
  %v294 = vpack.c.b16 %v234, %v230
  %v295 = vpack.c.b16 %v235, %v231
  %v296 = vpack.c.b16 %v236, %v232
  %v297 = vpack.c.b16 %v241, %v237
  %v298 = vpack.c.b16 %v242, %v238
  %v299 = vpack.c.b16 %v243, %v239
  %v300 = vpack.c.b16 %v244, %v240
  %v301 = vpack.c.b16 %v249, %v245
  %v302 = vpack.c.b16 %v250, %v246
  %v303 = vpack.c.b16 %v251, %v247
  %v304 = vpack.c.b16 %v252, %v248
  %v305 = vpack.c.b16 %v253, %v253
  %v306 = vpack.c.b16 %v254, %v254
  %v307 = vpack.c.b16 %v255, %v255
  %v308 = vpack.c.b16 %v256, %v256
  %361 = vmatpush.bf16.xpose.msra.mxu0 %v285
  %362 = vmatpush.bf16.xpose.msra.mxu0 %v281
  %363 = vmatpush.bf16.xpose.msra.mxu0 %v277
  %364 = vmatpush.bf16.xpose.msra.mxu0 %v273
  %365 = vmatpush.bf16.xpose.msra.mxu0 %v269
  %366 = vmatpush.bf16.xpose.msra.mxu0 %v265
  %367 = vmatpush.bf16.xpose.msra.mxu0 %v261
  %368 = vmatpush.bf16.xpose.msra.mxu0 %v257
  %369 = vmatmul.bf16.gmra.mxu0 %v99
  %v370 = vpop.f32.mrf.mxu0
  %v371 = vadd.f32 0.0, %v370
  %v372 = vpop.f32.mrf.mxu0
  %v373 = vadd.f32 0.0, %v372
  %374 = vdwg.mxu0
  %375 = vmatpush.bf16.xpose.msra.mxu0 %v286
  %376 = vmatpush.bf16.xpose.msra.mxu0 %v282
  %377 = vmatpush.bf16.xpose.msra.mxu0 %v278
  %378 = vmatpush.bf16.xpose.msra.mxu0 %v274
  %379 = vmatpush.bf16.xpose.msra.mxu0 %v270
  %380 = vmatpush.bf16.xpose.msra.mxu0 %v266
  %381 = vmatpush.bf16.xpose.msra.mxu0 %v262
  %382 = vmatpush.bf16.xpose.msra.mxu0 %v258
  %383 = vmatmul.bf16.gmra.mxu0 %v100
  %v384 = vpop.f32.mrf.mxu0
  %v385 = vadd.f32 %v371, %v384
  %v386 = vpop.f32.mrf.mxu0
  %v387 = vadd.f32 %v373, %v386
  %388 = vdwg.mxu0
  %389 = vmatpush.bf16.xpose.msra.mxu0 %v287
  %390 = vmatpush.bf16.xpose.msra.mxu0 %v283
  %391 = vmatpush.bf16.xpose.msra.mxu0 %v279
  %392 = vmatpush.bf16.xpose.msra.mxu0 %v275
  %393 = vmatpush.bf16.xpose.msra.mxu0 %v271
  %394 = vmatpush.bf16.xpose.msra.mxu0 %v267
  %395 = vmatpush.bf16.xpose.msra.mxu0 %v263
  %396 = vmatpush.bf16.xpose.msra.mxu0 %v259
  %397 = vmatmul.bf16.gmra.mxu0 %v101
  %v398 = vpop.f32.mrf.mxu0
  %v399 = vadd.f32 %v385, %v398
  %v400 = vpop.f32.mrf.mxu0
  %v401 = vadd.f32 %v387, %v400
  %402 = vdwg.mxu0
  %403 = vmatpush.bf16.xpose.msra.mxu0 %v288
  %404 = vmatpush.bf16.xpose.msra.mxu0 %v284
  %405 = vmatpush.bf16.xpose.msra.mxu0 %v280
  %406 = vmatpush.bf16.xpose.msra.mxu0 %v276
  %407 = vmatpush.bf16.xpose.msra.mxu0 %v272
  %408 = vmatpush.bf16.xpose.msra.mxu0 %v268
  %409 = vmatpush.bf16.xpose.msra.mxu0 %v264
  %410 = vmatpush.bf16.xpose.msra.mxu0 %v260
  %411 = vmatmul.bf16.gmra.mxu0 %v102
  %v412 = vpop.f32.mrf.mxu0
  %v413 = vadd.f32 %v399, %v412
  %v414 = vpop.f32.mrf.mxu0
  %v415 = vadd.f32 %v401, %v414
  %416 = vdwg.mxu0
  %417 = vmatpush.bf16.xpose.msra.mxu0 0
  %418 = vmatpush.bf16.xpose.msra.mxu0 0
  %419 = vmatpush.bf16.xpose.msra.mxu0 0
  %420 = vmatpush.bf16.xpose.msra.mxu0 %v305
  %421 = vmatpush.bf16.xpose.msra.mxu0 %v301
  %422 = vmatpush.bf16.xpose.msra.mxu0 %v297
  %423 = vmatpush.bf16.xpose.msra.mxu0 %v293
  %424 = vmatpush.bf16.xpose.msra.mxu0 %v289
  %425 = vmatmul.bf16.gmra.mxu0 %v99
  %v426 = vpop.f32.mrf.mxu0
  %v427 = vadd.f32 0.0, %v426
  %v428 = vpop.f32.mrf.mxu0
  %v429 = vadd.f32 0.0, %v428
  %430 = vdwg.mxu0
  %431 = vmatpush.bf16.xpose.msra.mxu0 0
  %432 = vmatpush.bf16.xpose.msra.mxu0 0
  %433 = vmatpush.bf16.xpose.msra.mxu0 0
  %434 = vmatpush.bf16.xpose.msra.mxu0 %v306
  %435 = vmatpush.bf16.xpose.msra.mxu0 %v302
  %436 = vmatpush.bf16.xpose.msra.mxu0 %v298
  %437 = vmatpush.bf16.xpose.msra.mxu0 %v294
  %438 = vmatpush.bf16.xpose.msra.mxu0 %v290
  %439 = vmatmul.bf16.gmra.mxu0 %v100
  %v440 = vpop.f32.mrf.mxu0
  %v441 = vadd.f32 %v427, %v440
  %v442 = vpop.f32.mrf.mxu0
  %v443 = vadd.f32 %v429, %v442
  %444 = vdwg.mxu0
  %445 = vmatpush.bf16.xpose.msra.mxu0 0
  %446 = vmatpush.bf16.xpose.msra.mxu0 0
  %447 = vmatpush.bf16.xpose.msra.mxu0 0
  %448 = vmatpush.bf16.xpose.msra.mxu0 %v307
  %449 = vmatpush.bf16.xpose.msra.mxu0 %v303
  %450 = vmatpush.bf16.xpose.msra.mxu0 %v299
  %451 = vmatpush.bf16.xpose.msra.mxu0 %v295
  %452 = vmatpush.bf16.xpose.msra.mxu0 %v291
  %453 = vmatmul.bf16.gmra.mxu0 %v101
  %v454 = vpop.f32.mrf.mxu0
  %v455 = vadd.f32 %v441, %v454
  %v456 = vpop.f32.mrf.mxu0
  %v457 = vadd.f32 %v443, %v456
  %458 = vdwg.mxu0
  %459 = vmatpush.bf16.xpose.msra.mxu0 0
  %460 = vmatpush.bf16.xpose.msra.mxu0 0
  %461 = vmatpush.bf16.xpose.msra.mxu0 0
  %462 = vmatpush.bf16.xpose.msra.mxu0 %v308
  %463 = vmatpush.bf16.xpose.msra.mxu0 %v304
  %464 = vmatpush.bf16.xpose.msra.mxu0 %v300
  %465 = vmatpush.bf16.xpose.msra.mxu0 %v296
  %466 = vmatpush.bf16.xpose.msra.mxu0 %v292
  %467 = vmatmul.bf16.gmra.mxu0 %v102
  %v468 = vpop.f32.mrf.mxu0
  %v469 = vadd.f32 %v455, %v468
  %v470 = vpop.f32.mrf.mxu0
  %v471 = vadd.f32 %v457, %v470
  %472 = vdwg.mxu0
  %v473 = vld [vmem:[%s4] sm:$0xf]
  %v474 = vld [vmem:[%s4 + $0x4] sm:$0xf]
  %v475 = vld [vmem:[%s4 + $0x8] sm:$0xf]
  %v476 = vld [vmem:[%s4 + $0xc] sm:$0xf]
  %v477 = vld [vmem:[%s4 + $0x10] sm:$0xf]
  %v478 = vld [vmem:[%s4 + $0x14] sm:$0xf]
  %v479 = vld [vmem:[%s4 + $0x18] sm:$0xf]
  %v480 = vld [vmem:[%s4 + $0x1c] sm:$0xf]
  %v481 = vld [vmem:[%s4 + $0x20] sm:$0xf]
  %v482 = vld [vmem:[%s4 + $0x24] sm:$0xf]
  %v483 = vld [vmem:[%s4 + $0x28] sm:$0xf]
  %v484 = vld [vmem:[%s4 + $0x2c] sm:$0xf]
  %v485 = vld [vmem:[%s4 + $0x30] sm:$0xf]
  %v486 = vld [vmem:[%s4 + $0x34] sm:$0xf]
  %v487 = vld [vmem:[%s4 + $0x38] sm:$0xf]
  %v488 = vld [vmem:[%s4 + $0x3c] sm:$0xf]
  %v489 = vld [vmem:[%s4 + $0x40] sm:$0xf]
  %v490 = vld [vmem:[%s4 + $0x44] sm:$0xf]
  %v491 = vld [vmem:[%s4 + $0x48] sm:$0xf]
  %v492 = vld [vmem:[%s4 + $0x4c] sm:$0xf]
  %v493 = vld [vmem:[%s4 + $0x50] sm:$0xf]
  %v494 = vld [vmem:[%s4 + $0x54] sm:$0xf]
  %v495 = vld [vmem:[%s4 + $0x58] sm:$0xf]
  %v496 = vld [vmem:[%s4 + $0x5c] sm:$0xf]
  %v497 = vld [vmem:[%s4 + $0x60] sm:$0xf]
  %v498 = vld [vmem:[%s4 + $0x64] sm:$0xf]
  %v499 = vld [vmem:[%s4 + $0x68] sm:$0xf]
  %v500 = vld [vmem:[%s4 + $0x6c] sm:$0xf]
  %v501 = vld [vmem:[%s4 + $0x70] sm:$0xf]
  %v502 = vld [vmem:[%s4 + $0x74] sm:$0xf]
  %v503 = vld [vmem:[%s4 + $0x78] sm:$0xf]
  %v504 = vld [vmem:[%s4 + $0x7c] sm:$0xf]
  %v505 = vld [vmem:[%s4 + $0x80] sm:$0xf]
  %v506 = vld [vmem:[%s4 + $0x84] sm:$0xf]
  %v507 = vld [vmem:[%s4 + $0x88] sm:$0xf]
  %v508 = vld [vmem:[%s4 + $0x8c] sm:$0xf]
  %v509 = vld [vmem:[%s4 + $0x90] sm:$0xf]
  %v510 = vld [vmem:[%s4 + $0x94] sm:$0xf]
  %v511 = vld [vmem:[%s4 + $0x98] sm:$0xf]
  %v512 = vld [vmem:[%s4 + $0x9c] sm:$0xf]
  %v513 = vld [vmem:[%s4 + $0xa0] sm:$0xf]
  %v514 = vld [vmem:[%s4 + $0xa4] sm:$0xf]
  %v515 = vld [vmem:[%s4 + $0xa8] sm:$0xf]
  %v516 = vld [vmem:[%s4 + $0xac] sm:$0xf]
  %v517 = vld [vmem:[%s4 + $0xb0] sm:$0xf]
  %v518 = vld [vmem:[%s4 + $0xb4] sm:$0xf]
  %v519 = vld [vmem:[%s4 + $0xb8] sm:$0xf]
  %v520 = vld [vmem:[%s4 + $0xbc] sm:$0xf]
  %v521 = vld [vmem:[%s4 + $0xc0] sm:$0xf]
  %v522 = vld [vmem:[%s4 + $0xc4] sm:$0xf]
  %v523 = vld [vmem:[%s4 + $0xc8] sm:$0xf]
  %v524 = vld [vmem:[%s4 + $0xcc] sm:$0xf]
  %v525 = vld [vmem:[%s4 + $0xd0] sm:$0xf]
  %v526 = vld [vmem:[%s4 + $0xd4] sm:$0xf]
  %v527 = vld [vmem:[%s4 + $0xd8] sm:$0xf]
  %v528 = vld [vmem:[%s4 + $0xdc] sm:$0xf]
  %v529 = vld [vmem:[%s4 + $0xe0] sm:$0xf]
  %v530 = vld [vmem:[%s4 + $0xe4] sm:$0xf]
  %v531 = vld [vmem:[%s4 + $0xe8] sm:$0xf]
  %v532 = vld [vmem:[%s4 + $0xec] sm:$0xf]
  %v533 = vld [vmem:[%s4 + $0xf0] sm:$0xf]
  %v534 = vld [vmem:[%s4 + $0xf4] sm:$0xf]
  %v535 = vld [vmem:[%s4 + $0xf8] sm:$0xf]
  %v536 = vld [vmem:[%s4 + $0xfc] sm:$0xf]
  %v537 = vld [vmem:[%s7] sm:$0xff]
  %v538 = vld [vmem:[%s7 + $0x8] sm:$0xff]
  %v539 = vld [vmem:[%s7 + $0x10] sm:$0xff]
  %v540 = vld [vmem:[%s7 + $0x18] sm:$0xff]
  %v541 = vld [vmem:[%s7 + $0x20] sm:$0xff]
  %v542 = vld [vmem:[%s7 + $0x28] sm:$0xff]
  %v543 = vld [vmem:[%s7 + $0x30] sm:$0xff]
  %v544 = vld [vmem:[%s7 + $0x38] sm:$0xff]
  %v545 = vld [vmem:[%s7 + $0x40] sm:$0xff]
  %v546 = vld [vmem:[%s7 + $0x48] sm:$0xff]
  %v547 = vld [vmem:[%s7 + $0x50] sm:$0xff]
  %v548 = vld [vmem:[%s7 + $0x58] sm:$0xff]
  %v549 = vld [vmem:[%s7 + $0x60] sm:$0xff]
  %v550 = vld [vmem:[%s7 + $0x68] sm:$0xff]
  %v551 = vld [vmem:[%s7 + $0x70] sm:$0xff]
  %v552 = vld [vmem:[%s7 + $0x78] sm:$0xff]
  %v553 = vld [vmem:[%s7 + $0x80] sm:$0xff]
  %v554 = vld [vmem:[%s7 + $0x88] sm:$0xff]
  %v555 = vld [vmem:[%s7 + $0x90] sm:$0xff]
  %v556 = vld [vmem:[%s7 + $0x98] sm:$0xff]
  %v557 = vld [vmem:[%s7 + $0xa0] sm:$0xff]
  %v558 = vld [vmem:[%s7 + $0xa8] sm:$0xff]
  %v559 = vld [vmem:[%s7 + $0xb0] sm:$0xff]
  %v560 = vld [vmem:[%s7 + $0xb8] sm:$0xff]
  %v561 = vld [vmem:[%s7 + $0xc0] sm:$0xff]
  %v562 = vld [vmem:[%s7 + $0xc8] sm:$0xff]
  %v563 = vld [vmem:[%s7 + $0xd0] sm:$0xff]
  %v564 = vld [vmem:[%s7 + $0xd8] sm:$0xff]
  %v565 = vld [vmem:[%s7 + $0xe0] sm:$0xff]
  %v566 = vld [vmem:[%s7 + $0xe8] sm:$0xff]
  %v567 = vld [vmem:[%s7 + $0xf0] sm:$0xff]
  %v568 = vld [vmem:[%s7 + $0xf8] sm:$0xff]
  %v569 = vld [vmem:[%s7 + $0x100] sm:$0xff]
  %v570 = vld [vmem:[%s7 + $0x108] sm:$0xff]
  %v571 = vld [vmem:[%s7 + $0x110] sm:$0xff]
  %v572 = vld [vmem:[%s7 + $0x118] sm:$0xff]
  %v573 = vld [vmem:[%s7 + $0x120] sm:$0xff]
  %v574 = vld [vmem:[%s7 + $0x128] sm:$0xff]
  %v575 = vld [vmem:[%s7 + $0x130] sm:$0xff]
  %v576 = vld [vmem:[%s7 + $0x138] sm:$0xff]
  %v577 = vld [vmem:[%s7 + $0x140] sm:$0xff]
  %v578 = vld [vmem:[%s7 + $0x148] sm:$0xff]
  %v579 = vld [vmem:[%s7 + $0x150] sm:$0xff]
  %v580 = vld [vmem:[%s7 + $0x158] sm:$0xff]
  %v581 = vld [vmem:[%s7 + $0x160] sm:$0xff]
  %v582 = vld [vmem:[%s7 + $0x168] sm:$0xff]
  %v583 = vld [vmem:[%s7 + $0x170] sm:$0xff]
  %v584 = vld [vmem:[%s7 + $0x178] sm:$0xff]
  %v585 = vld [vmem:[%s7 + $0x180] sm:$0xff]
  %v586 = vld [vmem:[%s7 + $0x188] sm:$0xff]
  %v587 = vld [vmem:[%s7 + $0x190] sm:$0xff]
  %v588 = vld [vmem:[%s7 + $0x198] sm:$0xff]
  %v589 = vld [vmem:[%s7 + $0x1a0] sm:$0xff]
  %v590 = vld [vmem:[%s7 + $0x1a8] sm:$0xff]
  %v591 = vld [vmem:[%s7 + $0x1b0] sm:$0xff]
  %v592 = vld [vmem:[%s7 + $0x1b8] sm:$0xff]
  %v593 = vld [vmem:[%s7 + $0x1c0] sm:$0xff]
  %v594 = vld [vmem:[%s7 + $0x1c8] sm:$0xff]
  %v595 = vld [vmem:[%s7 + $0x1d0] sm:$0xff]
  %v596 = vld [vmem:[%s7 + $0x1d8] sm:$0xff]
  %v597 = vld [vmem:[%s7 + $0x1e0] sm:$0xff]
  %v598 = vld [vmem:[%s7 + $0x1e8] sm:$0xff]
  %v599 = vld [vmem:[%s7 + $0x1f0] sm:$0xff]
  %v600 = vld [vmem:[%s7 + $0x1f8] sm:$0xff]
  %v601 = vld [vmem:[%s7 + $0x200] sm:$0x7]
  %v602 = vpack.c.bf16 %v415, %v413
  %v603 = vpack.c.bf16 %v471, %v469
  %605 = vset.pattern.permute.xlu0 0
  %606 = vperm.xlu0 %605, %v537
  %v607 = vpop.permute.xlu0 %606
  %610 = vset.pattern.permute.xlu0 0
  %611 = vperm.xlu0 %610, %v538
  %v612 = vpop.permute.xlu0 %611
  %615 = vset.pattern.permute.xlu0 0
  %616 = vperm.xlu0 %615, %v539
  %v617 = vpop.permute.xlu0 %616
  %620 = vset.pattern.permute.xlu0 0
  %621 = vperm.xlu0 %620, %v540
  %v622 = vpop.permute.xlu0 %621
  %625 = vset.pattern.permute.xlu0 0
  %626 = vperm.xlu0 %625, %v541
  %v627 = vpop.permute.xlu0 %626
  %630 = vset.pattern.permute.xlu0 0
  %631 = vperm.xlu0 %630, %v542
  %v632 = vpop.permute.xlu0 %631
  %635 = vset.pattern.permute.xlu0 0
  %636 = vperm.xlu0 %635, %v543
  %v637 = vpop.permute.xlu0 %636
  %640 = vset.pattern.permute.xlu0 0
  %641 = vperm.xlu0 %640, %v544
  %v642 = vpop.permute.xlu0 %641
  %645 = vset.pattern.permute.xlu0 0
  %646 = vperm.xlu0 %645, %v545
  %v647 = vpop.permute.xlu0 %646
  %650 = vset.pattern.permute.xlu0 0
  %651 = vperm.xlu0 %650, %v546
  %v652 = vpop.permute.xlu0 %651
  %655 = vset.pattern.permute.xlu0 0
  %656 = vperm.xlu0 %655, %v547
  %v657 = vpop.permute.xlu0 %656
  %660 = vset.pattern.permute.xlu0 0
  %661 = vperm.xlu0 %660, %v548
  %v662 = vpop.permute.xlu0 %661
  %665 = vset.pattern.permute.xlu0 0
  %666 = vperm.xlu0 %665, %v549
  %v667 = vpop.permute.xlu0 %666
  %670 = vset.pattern.permute.xlu0 0
  %671 = vperm.xlu0 %670, %v550
  %v672 = vpop.permute.xlu0 %671
  %675 = vset.pattern.permute.xlu0 0
  %676 = vperm.xlu0 %675, %v551
  %v677 = vpop.permute.xlu0 %676
  %680 = vset.pattern.permute.xlu0 0
  %681 = vperm.xlu0 %680, %v552
  %v682 = vpop.permute.xlu0 %681
  %685 = vset.pattern.permute.xlu0 0
  %686 = vperm.xlu0 %685, %v553
  %v687 = vpop.permute.xlu0 %686
  %690 = vset.pattern.permute.xlu0 0
  %691 = vperm.xlu0 %690, %v554
  %v692 = vpop.permute.xlu0 %691
  %695 = vset.pattern.permute.xlu0 0
  %696 = vperm.xlu0 %695, %v555
  %v697 = vpop.permute.xlu0 %696
  %700 = vset.pattern.permute.xlu0 0
  %701 = vperm.xlu0 %700, %v556
  %v702 = vpop.permute.xlu0 %701
  %705 = vset.pattern.permute.xlu0 0
  %706 = vperm.xlu0 %705, %v557
  %v707 = vpop.permute.xlu0 %706
  %710 = vset.pattern.permute.xlu0 0
  %711 = vperm.xlu0 %710, %v558
  %v712 = vpop.permute.xlu0 %711
  %715 = vset.pattern.permute.xlu0 0
  %716 = vperm.xlu0 %715, %v559
  %v717 = vpop.permute.xlu0 %716
  %720 = vset.pattern.permute.xlu0 0
  %721 = vperm.xlu0 %720, %v560
  %v722 = vpop.permute.xlu0 %721
  %725 = vset.pattern.permute.xlu0 0
  %726 = vperm.xlu0 %725, %v561
  %v727 = vpop.permute.xlu0 %726
  %730 = vset.pattern.permute.xlu0 0
  %731 = vperm.xlu0 %730, %v562
  %v732 = vpop.permute.xlu0 %731
  %735 = vset.pattern.permute.xlu0 0
  %736 = vperm.xlu0 %735, %v563
  %v737 = vpop.permute.xlu0 %736
  %740 = vset.pattern.permute.xlu0 0
  %741 = vperm.xlu0 %740, %v564
  %v742 = vpop.permute.xlu0 %741
  %745 = vset.pattern.permute.xlu0 0
  %746 = vperm.xlu0 %745, %v565
  %v747 = vpop.permute.xlu0 %746
  %750 = vset.pattern.permute.xlu0 0
  %751 = vperm.xlu0 %750, %v566
  %v752 = vpop.permute.xlu0 %751
  %755 = vset.pattern.permute.xlu0 0
  %756 = vperm.xlu0 %755, %v567
  %v757 = vpop.permute.xlu0 %756
  %760 = vset.pattern.permute.xlu0 0
  %761 = vperm.xlu0 %760, %v568
  %v762 = vpop.permute.xlu0 %761
  %765 = vset.pattern.permute.xlu0 0
  %766 = vperm.xlu0 %765, %v569
  %v767 = vpop.permute.xlu0 %766
  %770 = vset.pattern.permute.xlu0 0
  %771 = vperm.xlu0 %770, %v570
  %v772 = vpop.permute.xlu0 %771
  %775 = vset.pattern.permute.xlu0 0
  %776 = vperm.xlu0 %775, %v571
  %v777 = vpop.permute.xlu0 %776
  %780 = vset.pattern.permute.xlu0 0
  %781 = vperm.xlu0 %780, %v572
  %v782 = vpop.permute.xlu0 %781
  %785 = vset.pattern.permute.xlu0 0
  %786 = vperm.xlu0 %785, %v573
  %v787 = vpop.permute.xlu0 %786
  %790 = vset.pattern.permute.xlu0 0
  %791 = vperm.xlu0 %790, %v574
  %v792 = vpop.permute.xlu0 %791
  %795 = vset.pattern.permute.xlu0 0
  %796 = vperm.xlu0 %795, %v575
  %v797 = vpop.permute.xlu0 %796
  %800 = vset.pattern.permute.xlu0 0
  %801 = vperm.xlu0 %800, %v576
  %v802 = vpop.permute.xlu0 %801
  %805 = vset.pattern.permute.xlu0 0
  %806 = vperm.xlu0 %805, %v577
  %v807 = vpop.permute.xlu0 %806
  %810 = vset.pattern.permute.xlu0 0
  %811 = vperm.xlu0 %810, %v578
  %v812 = vpop.permute.xlu0 %811
  %815 = vset.pattern.permute.xlu0 0
  %816 = vperm.xlu0 %815, %v579
  %v817 = vpop.permute.xlu0 %816
  %820 = vset.pattern.permute.xlu0 0
  %821 = vperm.xlu0 %820, %v580
  %v822 = vpop.permute.xlu0 %821
  %825 = vset.pattern.permute.xlu0 0
  %826 = vperm.xlu0 %825, %v581
  %v827 = vpop.permute.xlu0 %826
  %830 = vset.pattern.permute.xlu0 0
  %831 = vperm.xlu0 %830, %v582
  %v832 = vpop.permute.xlu0 %831
  %835 = vset.pattern.permute.xlu0 0
  %836 = vperm.xlu0 %835, %v583
  %v837 = vpop.permute.xlu0 %836
  %840 = vset.pattern.permute.xlu0 0
  %841 = vperm.xlu0 %840, %v584
  %v842 = vpop.permute.xlu0 %841
  %845 = vset.pattern.permute.xlu0 0
  %846 = vperm.xlu0 %845, %v585
  %v847 = vpop.permute.xlu0 %846
  %850 = vset.pattern.permute.xlu0 0
  %851 = vperm.xlu0 %850, %v586
  %v852 = vpop.permute.xlu0 %851
  %855 = vset.pattern.permute.xlu0 0
  %856 = vperm.xlu0 %855, %v587
  %v857 = vpop.permute.xlu0 %856
  %860 = vset.pattern.permute.xlu0 0
  %861 = vperm.xlu0 %860, %v588
  %v862 = vpop.permute.xlu0 %861
  %865 = vset.pattern.permute.xlu0 0
  %866 = vperm.xlu0 %865, %v589
  %v867 = vpop.permute.xlu0 %866
  %870 = vset.pattern.permute.xlu0 0
  %871 = vperm.xlu0 %870, %v590
  %v872 = vpop.permute.xlu0 %871
  %875 = vset.pattern.permute.xlu0 0
  %876 = vperm.xlu0 %875, %v591
  %v877 = vpop.permute.xlu0 %876
  %880 = vset.pattern.permute.xlu0 0
  %881 = vperm.xlu0 %880, %v592
  %v882 = vpop.permute.xlu0 %881
  %885 = vset.pattern.permute.xlu0 0
  %886 = vperm.xlu0 %885, %v593
  %v887 = vpop.permute.xlu0 %886
  %890 = vset.pattern.permute.xlu0 0
  %891 = vperm.xlu0 %890, %v594
  %v892 = vpop.permute.xlu0 %891
  %895 = vset.pattern.permute.xlu0 0
  %896 = vperm.xlu0 %895, %v595
  %v897 = vpop.permute.xlu0 %896
  %900 = vset.pattern.permute.xlu0 0
  %901 = vperm.xlu0 %900, %v596
  %v902 = vpop.permute.xlu0 %901
  %905 = vset.pattern.permute.xlu0 0
  %906 = vperm.xlu0 %905, %v597
  %v907 = vpop.permute.xlu0 %906
  %910 = vset.pattern.permute.xlu0 0
  %911 = vperm.xlu0 %910, %v598
  %v912 = vpop.permute.xlu0 %911
  %915 = vset.pattern.permute.xlu0 0
  %916 = vperm.xlu0 %915, %v599
  %v917 = vpop.permute.xlu0 %916
  %920 = vset.pattern.permute.xlu0 0
  %921 = vperm.xlu0 %920, %v600
  %v922 = vpop.permute.xlu0 %921
  %v988 = vunpack.c.l.b16 %v473
  %v989 = vunpack.c.l.b16 %v474
  %v990 = vunpack.c.l.b16 %v475
  %v991 = vunpack.c.l.b16 %v476
  %v992 = vunpack.c.l.b16 %v477
  %v993 = vunpack.c.l.b16 %v478
  %v994 = vunpack.c.l.b16 %v479
  %v995 = vunpack.c.l.b16 %v480
  %v996 = vunpack.c.l.b16 %v481
  %v997 = vunpack.c.l.b16 %v482
  %v998 = vunpack.c.l.b16 %v483
  %v999 = vunpack.c.l.b16 %v484
  %v1000 = vunpack.c.l.b16 %v485
  %v1001 = vunpack.c.l.b16 %v486
  %v1002 = vunpack.c.l.b16 %v487
  %v1003 = vunpack.c.l.b16 %v488
  %v1004 = vunpack.c.l.b16 %v489
  %v1005 = vunpack.c.l.b16 %v490
  %v1006 = vunpack.c.l.b16 %v491
  %v1007 = vunpack.c.l.b16 %v492
  %v1008 = vunpack.c.l.b16 %v493
  %v1009 = vunpack.c.l.b16 %v494
  %v1010 = vunpack.c.l.b16 %v495
  %v1011 = vunpack.c.l.b16 %v496
  %v1012 = vunpack.c.l.b16 %v497
  %v1013 = vunpack.c.l.b16 %v498
  %v1014 = vunpack.c.l.b16 %v499
  %v1015 = vunpack.c.l.b16 %v500
  %v1016 = vunpack.c.l.b16 %v501
  %v1017 = vunpack.c.l.b16 %v502
  %v1018 = vunpack.c.l.b16 %v503
  %v1019 = vunpack.c.l.b16 %v504
  %v1020 = vunpack.c.l.b16 %v505
  %v1021 = vunpack.c.l.b16 %v506
  %v1022 = vunpack.c.l.b16 %v507
  %v1023 = vunpack.c.l.b16 %v508
  %v1024 = vunpack.c.l.b16 %v509
  %v1025 = vunpack.c.l.b16 %v510
  %v1026 = vunpack.c.l.b16 %v511
  %v1027 = vunpack.c.l.b16 %v512
  %v1028 = vunpack.c.l.b16 %v513
  %v1029 = vunpack.c.l.b16 %v514
  %v1030 = vunpack.c.l.b16 %v515
  %v1031 = vunpack.c.l.b16 %v516
  %v1032 = vunpack.c.l.b16 %v517
  %v1033 = vunpack.c.l.b16 %v518
  %v1034 = vunpack.c.l.b16 %v519
  %v1035 = vunpack.c.l.b16 %v520
  %v1036 = vunpack.c.l.b16 %v521
  %v1037 = vunpack.c.l.b16 %v522
  %v1038 = vunpack.c.l.b16 %v523
  %v1039 = vunpack.c.l.b16 %v524
  %v1040 = vunpack.c.l.b16 %v525
  %v1041 = vunpack.c.l.b16 %v526
  %v1042 = vunpack.c.l.b16 %v527
  %v1043 = vunpack.c.l.b16 %v528
  %v1044 = vunpack.c.l.b16 %v529
  %v1045 = vunpack.c.l.b16 %v530
  %v1046 = vunpack.c.l.b16 %v531
  %v1047 = vunpack.c.l.b16 %v532
  %v1048 = vunpack.c.l.b16 %v533
  %v1049 = vunpack.c.l.b16 %v534
  %v1050 = vunpack.c.l.b16 %v535
  %v1051 = vunpack.c.l.b16 %v536
  %v1052 = vpack.c.b16 %v989, %v988
  %v1053 = vpack.c.b16 %v991, %v990
  %v1054 = vpack.c.b16 %v993, %v992
  %v1055 = vpack.c.b16 %v995, %v994
  %v1056 = vpack.c.b16 %v997, %v996
  %v1057 = vpack.c.b16 %v999, %v998
  %v1058 = vpack.c.b16 %v1001, %v1000
  %v1059 = vpack.c.b16 %v1003, %v1002
  %v1060 = vpack.c.b16 %v1005, %v1004
  %v1061 = vpack.c.b16 %v1007, %v1006
  %v1062 = vpack.c.b16 %v1009, %v1008
  %v1063 = vpack.c.b16 %v1011, %v1010
  %v1064 = vpack.c.b16 %v1013, %v1012
  %v1065 = vpack.c.b16 %v1015, %v1014
  %v1066 = vpack.c.b16 %v1017, %v1016
  %v1067 = vpack.c.b16 %v1019, %v1018
  %v1068 = vpack.c.b16 %v1021, %v1020
  %v1069 = vpack.c.b16 %v1023, %v1022
  %v1070 = vpack.c.b16 %v1025, %v1024
  %v1071 = vpack.c.b16 %v1027, %v1026
  %v1072 = vpack.c.b16 %v1029, %v1028
  %v1073 = vpack.c.b16 %v1031, %v1030
  %v1074 = vpack.c.b16 %v1033, %v1032
  %v1075 = vpack.c.b16 %v1035, %v1034
  %v1076 = vpack.c.b16 %v1037, %v1036
  %v1077 = vpack.c.b16 %v1039, %v1038
  %v1078 = vpack.c.b16 %v1041, %v1040
  %v1079 = vpack.c.b16 %v1043, %v1042
  %v1080 = vpack.c.b16 %v1045, %v1044
  %v1081 = vpack.c.b16 %v1047, %v1046
  %v1082 = vpack.c.b16 %v1049, %v1048
  %v1083 = vpack.c.b16 %v1051, %v1050
  %vm1084 = vcmask 130048
  %v1086 = vsel %vm1084, %v1052, 0
  %v1089 = vsel %vm1084, %v1053, 0
  %v1092 = vsel %vm1084, %v1054, 0
  %v1095 = vsel %vm1084, %v1055, 0
  %v1098 = vsel %vm1084, %v1056, 0
  %v1101 = vsel %vm1084, %v1057, 0
  %v1104 = vsel %vm1084, %v1058, 0
  %v1107 = vsel %vm1084, %v1059, 0
  %v1110 = vsel %vm1084, %v1060, 0
  %v1113 = vsel %vm1084, %v1061, 0
  %v1116 = vsel %vm1084, %v1062, 0
  %v1119 = vsel %vm1084, %v1063, 0
  %v1122 = vsel %vm1084, %v1064, 0
  %v1125 = vsel %vm1084, %v1065, 0
  %v1128 = vsel %vm1084, %v1066, 0
  %v1131 = vsel %vm1084, %v1067, 0
  %v1134 = vsel %vm1084, %v1068, 0
  %v1137 = vsel %vm1084, %v1069, 0
  %v1140 = vsel %vm1084, %v1070, 0
  %v1143 = vsel %vm1084, %v1071, 0
  %v1146 = vsel %vm1084, %v1072, 0
  %v1149 = vsel %vm1084, %v1073, 0
  %v1152 = vsel %vm1084, %v1074, 0
  %v1155 = vsel %vm1084, %v1075, 0
  %v1158 = vsel %vm1084, %v1076, 0
  %v1161 = vsel %vm1084, %v1077, 0
  %v1164 = vsel %vm1084, %v1078, 0
  %v1167 = vsel %vm1084, %v1079, 0
  %v1170 = vsel %vm1084, %v1080, 0
  %v1173 = vsel %vm1084, %v1081, 0
  %v1176 = vsel %vm1084, %v1082, 0
  %v1179 = vsel %vm1084, %v1083, 0
  %1181 = vmatpush.bf16.msra.mxu0 0
  %1182 = vmatpush.bf16.msra.mxu0 0
  %1183 = vmatpush.bf16.msra.mxu0 0
  %1184 = vmatpush.bf16.msra.mxu0 0
  %1185 = vmatpush.bf16.msra.mxu0 0
  %1186 = vmatpush.bf16.msra.mxu0 0
  %1187 = vmatpush.bf16.msra.mxu0 0
  %1188 = vmatpush.bf16.msra.mxu0 %v602
  %1189 = vmatmul.bf16.gmra.mxu0 %v1086
  %v1190 = vpop.f32.mrf.mxu0
  %v1191 = vadd.f32 %v607, %v1190
  %v1192 = vpop.f32.mrf.mxu0
  %v1193 = vadd.f32 %v612, %v1192
  %1194 = vmatmul.bf16.gmra.mxu0 %v1089
  %v1195 = vpop.f32.mrf.mxu0
  %v1196 = vadd.f32 %v617, %v1195
  %v1197 = vpop.f32.mrf.mxu0
  %v1198 = vadd.f32 %v622, %v1197
  %1199 = vmatmul.bf16.gmra.mxu0 %v1092
  %v1200 = vpop.f32.mrf.mxu0
  %v1201 = vadd.f32 %v627, %v1200
  %v1202 = vpop.f32.mrf.mxu0
  %v1203 = vadd.f32 %v632, %v1202
  %1204 = vmatmul.bf16.gmra.mxu0 %v1095
  %v1205 = vpop.f32.mrf.mxu0
  %v1206 = vadd.f32 %v637, %v1205
  %v1207 = vpop.f32.mrf.mxu0
  %v1208 = vadd.f32 %v642, %v1207
  %1209 = vmatmul.bf16.gmra.mxu0 %v1098
  %v1210 = vpop.f32.mrf.mxu0
  %v1211 = vadd.f32 %v647, %v1210
  %v1212 = vpop.f32.mrf.mxu0
  %v1213 = vadd.f32 %v652, %v1212
  %1214 = vmatmul.bf16.gmra.mxu0 %v1101
  %v1215 = vpop.f32.mrf.mxu0
  %v1216 = vadd.f32 %v657, %v1215
  %v1217 = vpop.f32.mrf.mxu0
  %v1218 = vadd.f32 %v662, %v1217
  %1219 = vmatmul.bf16.gmra.mxu0 %v1104
  %v1220 = vpop.f32.mrf.mxu0
  %v1221 = vadd.f32 %v667, %v1220
  %v1222 = vpop.f32.mrf.mxu0
  %v1223 = vadd.f32 %v672, %v1222
  %1224 = vmatmul.bf16.gmra.mxu0 %v1107
  %v1225 = vpop.f32.mrf.mxu0
  %v1226 = vadd.f32 %v677, %v1225
  %v1227 = vpop.f32.mrf.mxu0
  %v1228 = vadd.f32 %v682, %v1227
  %1229 = vmatmul.bf16.gmra.mxu0 %v1110
  %v1230 = vpop.f32.mrf.mxu0
  %v1231 = vadd.f32 %v687, %v1230
  %v1232 = vpop.f32.mrf.mxu0
  %v1233 = vadd.f32 %v692, %v1232
  %1234 = vmatmul.bf16.gmra.mxu0 %v1113
  %v1235 = vpop.f32.mrf.mxu0
  %v1236 = vadd.f32 %v697, %v1235
  %v1237 = vpop.f32.mrf.mxu0
  %v1238 = vadd.f32 %v702, %v1237
  %1239 = vmatmul.bf16.gmra.mxu0 %v1116
  %v1240 = vpop.f32.mrf.mxu0
  %v1241 = vadd.f32 %v707, %v1240
  %v1242 = vpop.f32.mrf.mxu0
  %v1243 = vadd.f32 %v712, %v1242
  %1244 = vmatmul.bf16.gmra.mxu0 %v1119
  %v1245 = vpop.f32.mrf.mxu0
  %v1246 = vadd.f32 %v717, %v1245
  %v1247 = vpop.f32.mrf.mxu0
  %v1248 = vadd.f32 %v722, %v1247
  %1249 = vmatmul.bf16.gmra.mxu0 %v1122
  %v1250 = vpop.f32.mrf.mxu0
  %v1251 = vadd.f32 %v727, %v1250
  %v1252 = vpop.f32.mrf.mxu0
  %v1253 = vadd.f32 %v732, %v1252
  %1254 = vmatmul.bf16.gmra.mxu0 %v1125
  %v1255 = vpop.f32.mrf.mxu0
  %v1256 = vadd.f32 %v737, %v1255
  %v1257 = vpop.f32.mrf.mxu0
  %v1258 = vadd.f32 %v742, %v1257
  %1259 = vmatmul.bf16.gmra.mxu0 %v1128
  %v1260 = vpop.f32.mrf.mxu0
  %v1261 = vadd.f32 %v747, %v1260
  %v1262 = vpop.f32.mrf.mxu0
  %v1263 = vadd.f32 %v752, %v1262
  %1264 = vmatmul.bf16.gmra.mxu0 %v1131
  %v1265 = vpop.f32.mrf.mxu0
  %v1266 = vadd.f32 %v757, %v1265
  %v1267 = vpop.f32.mrf.mxu0
  %v1268 = vadd.f32 %v762, %v1267
  %1269 = vmatmul.bf16.gmra.mxu0 %v1134
  %v1270 = vpop.f32.mrf.mxu0
  %v1271 = vadd.f32 %v767, %v1270
  %v1272 = vpop.f32.mrf.mxu0
  %v1273 = vadd.f32 %v772, %v1272
  %1274 = vmatmul.bf16.gmra.mxu0 %v1137
  %v1275 = vpop.f32.mrf.mxu0
  %v1276 = vadd.f32 %v777, %v1275
  %v1277 = vpop.f32.mrf.mxu0
  %v1278 = vadd.f32 %v782, %v1277
  %1279 = vmatmul.bf16.gmra.mxu0 %v1140
  %v1280 = vpop.f32.mrf.mxu0
  %v1281 = vadd.f32 %v787, %v1280
  %v1282 = vpop.f32.mrf.mxu0
  %v1283 = vadd.f32 %v792, %v1282
  %1284 = vmatmul.bf16.gmra.mxu0 %v1143
  %v1285 = vpop.f32.mrf.mxu0
  %v1286 = vadd.f32 %v797, %v1285
  %v1287 = vpop.f32.mrf.mxu0
  %v1288 = vadd.f32 %v802, %v1287
  %1289 = vmatmul.bf16.gmra.mxu0 %v1146
  %v1290 = vpop.f32.mrf.mxu0
  %v1291 = vadd.f32 %v807, %v1290
  %v1292 = vpop.f32.mrf.mxu0
  %v1293 = vadd.f32 %v812, %v1292
  %1294 = vmatmul.bf16.gmra.mxu0 %v1149
  %v1295 = vpop.f32.mrf.mxu0
  %v1296 = vadd.f32 %v817, %v1295
  %v1297 = vpop.f32.mrf.mxu0
  %v1298 = vadd.f32 %v822, %v1297
  %1299 = vmatmul.bf16.gmra.mxu0 %v1152
  %v1300 = vpop.f32.mrf.mxu0
  %v1301 = vadd.f32 %v827, %v1300
  %v1302 = vpop.f32.mrf.mxu0
  %v1303 = vadd.f32 %v832, %v1302
  %1304 = vmatmul.bf16.gmra.mxu0 %v1155
  %v1305 = vpop.f32.mrf.mxu0
  %v1306 = vadd.f32 %v837, %v1305
  %v1307 = vpop.f32.mrf.mxu0
  %v1308 = vadd.f32 %v842, %v1307
  %1309 = vmatmul.bf16.gmra.mxu0 %v1158
  %v1310 = vpop.f32.mrf.mxu0
  %v1311 = vadd.f32 %v847, %v1310
  %v1312 = vpop.f32.mrf.mxu0
  %v1313 = vadd.f32 %v852, %v1312
  %1314 = vmatmul.bf16.gmra.mxu0 %v1161
  %v1315 = vpop.f32.mrf.mxu0
  %v1316 = vadd.f32 %v857, %v1315
  %v1317 = vpop.f32.mrf.mxu0
  %v1318 = vadd.f32 %v862, %v1317
  %1319 = vmatmul.bf16.gmra.mxu0 %v1164
  %v1320 = vpop.f32.mrf.mxu0
  %v1321 = vadd.f32 %v867, %v1320
  %v1322 = vpop.f32.mrf.mxu0
  %v1323 = vadd.f32 %v872, %v1322
  %1324 = vmatmul.bf16.gmra.mxu0 %v1167
  %v1325 = vpop.f32.mrf.mxu0
  %v1326 = vadd.f32 %v877, %v1325
  %v1327 = vpop.f32.mrf.mxu0
  %v1328 = vadd.f32 %v882, %v1327
  %1329 = vmatmul.bf16.gmra.mxu0 %v1170
  %v1330 = vpop.f32.mrf.mxu0
  %v1331 = vadd.f32 %v887, %v1330
  %v1332 = vpop.f32.mrf.mxu0
  %v1333 = vadd.f32 %v892, %v1332
  %1334 = vmatmul.bf16.gmra.mxu0 %v1173
  %v1335 = vpop.f32.mrf.mxu0
  %v1336 = vadd.f32 %v897, %v1335
  %v1337 = vpop.f32.mrf.mxu0
  %v1338 = vadd.f32 %v902, %v1337
  %1339 = vmatmul.bf16.gmra.mxu0 %v1176
  %v1340 = vpop.f32.mrf.mxu0
  %v1341 = vadd.f32 %v907, %v1340
  %v1342 = vpop.f32.mrf.mxu0
  %v1343 = vadd.f32 %v912, %v1342
  %1344 = vmatmul.bf16.gmra.mxu0 %v1179
  %v1345 = vpop.f32.mrf.mxu0
  %v1346 = vadd.f32 %v917, %v1345
  %v1347 = vpop.f32.mrf.mxu0
  %v1348 = vadd.f32 %v922, %v1347
  %1349 = vdwg.mxu0
  %1350 = vmatpush.bf16.msra.mxu0 0
  %1351 = vmatpush.bf16.msra.mxu0 0
  %1352 = vmatpush.bf16.msra.mxu0 0
  %1353 = vmatpush.bf16.msra.mxu0 0
  %1354 = vmatpush.bf16.msra.mxu0 0
  %1355 = vmatpush.bf16.msra.mxu0 0
  %1356 = vmatpush.bf16.msra.mxu0 0
  %1357 = vmatpush.bf16.msra.mxu0 %v603
  %1358 = vmatmul.bf16.gmra.mxu0 %v1086
  %v1359 = vpop.f32.mrf.mxu0
  %v1360 = vadd.f32 %v607, %v1359
  %v1361 = vpop.f32.mrf.mxu0
  %v1362 = vadd.f32 %v612, %v1361
  %1363 = vmatmul.bf16.gmra.mxu0 %v1089
  %v1364 = vpop.f32.mrf.mxu0
  %v1365 = vadd.f32 %v617, %v1364
  %v1366 = vpop.f32.mrf.mxu0
  %v1367 = vadd.f32 %v622, %v1366
  %1368 = vmatmul.bf16.gmra.mxu0 %v1092
  %v1369 = vpop.f32.mrf.mxu0
  %v1370 = vadd.f32 %v627, %v1369
  %v1371 = vpop.f32.mrf.mxu0
  %v1372 = vadd.f32 %v632, %v1371
  %1373 = vmatmul.bf16.gmra.mxu0 %v1095
  %v1374 = vpop.f32.mrf.mxu0
  %v1375 = vadd.f32 %v637, %v1374
  %v1376 = vpop.f32.mrf.mxu0
  %v1377 = vadd.f32 %v642, %v1376
  %1378 = vmatmul.bf16.gmra.mxu0 %v1098
  %v1379 = vpop.f32.mrf.mxu0
  %v1380 = vadd.f32 %v647, %v1379
  %v1381 = vpop.f32.mrf.mxu0
  %v1382 = vadd.f32 %v652, %v1381
  %1383 = vmatmul.bf16.gmra.mxu0 %v1101
  %v1384 = vpop.f32.mrf.mxu0
  %v1385 = vadd.f32 %v657, %v1384
  %v1386 = vpop.f32.mrf.mxu0
  %v1387 = vadd.f32 %v662, %v1386
  %1388 = vmatmul.bf16.gmra.mxu0 %v1104
  %v1389 = vpop.f32.mrf.mxu0
  %v1390 = vadd.f32 %v667, %v1389
  %v1391 = vpop.f32.mrf.mxu0
  %v1392 = vadd.f32 %v672, %v1391
  %1393 = vmatmul.bf16.gmra.mxu0 %v1107
  %v1394 = vpop.f32.mrf.mxu0
  %v1395 = vadd.f32 %v677, %v1394
  %v1396 = vpop.f32.mrf.mxu0
  %v1397 = vadd.f32 %v682, %v1396
  %1398 = vmatmul.bf16.gmra.mxu0 %v1110
  %v1399 = vpop.f32.mrf.mxu0
  %v1400 = vadd.f32 %v687, %v1399
  %v1401 = vpop.f32.mrf.mxu0
  %v1402 = vadd.f32 %v692, %v1401
  %1403 = vmatmul.bf16.gmra.mxu0 %v1113
  %v1404 = vpop.f32.mrf.mxu0
  %v1405 = vadd.f32 %v697, %v1404
  %v1406 = vpop.f32.mrf.mxu0
  %v1407 = vadd.f32 %v702, %v1406
  %1408 = vmatmul.bf16.gmra.mxu0 %v1116
  %v1409 = vpop.f32.mrf.mxu0
  %v1410 = vadd.f32 %v707, %v1409
  %v1411 = vpop.f32.mrf.mxu0
  %v1412 = vadd.f32 %v712, %v1411
  %1413 = vmatmul.bf16.gmra.mxu0 %v1119
  %v1414 = vpop.f32.mrf.mxu0
  %v1415 = vadd.f32 %v717, %v1414
  %v1416 = vpop.f32.mrf.mxu0
  %v1417 = vadd.f32 %v722, %v1416
  %1418 = vmatmul.bf16.gmra.mxu0 %v1122
  %v1419 = vpop.f32.mrf.mxu0
  %v1420 = vadd.f32 %v727, %v1419
  %v1421 = vpop.f32.mrf.mxu0
  %v1422 = vadd.f32 %v732, %v1421
  %1423 = vmatmul.bf16.gmra.mxu0 %v1125
  %v1424 = vpop.f32.mrf.mxu0
  %v1425 = vadd.f32 %v737, %v1424
  %v1426 = vpop.f32.mrf.mxu0
  %v1427 = vadd.f32 %v742, %v1426
  %1428 = vmatmul.bf16.gmra.mxu0 %v1128
  %v1429 = vpop.f32.mrf.mxu0
  %v1430 = vadd.f32 %v747, %v1429
  %v1431 = vpop.f32.mrf.mxu0
  %v1432 = vadd.f32 %v752, %v1431
  %1433 = vmatmul.bf16.gmra.mxu0 %v1131
  %v1434 = vpop.f32.mrf.mxu0
  %v1435 = vadd.f32 %v757, %v1434
  %v1436 = vpop.f32.mrf.mxu0
  %v1437 = vadd.f32 %v762, %v1436
  %1438 = vmatmul.bf16.gmra.mxu0 %v1134
  %v1439 = vpop.f32.mrf.mxu0
  %v1440 = vadd.f32 %v767, %v1439
  %v1441 = vpop.f32.mrf.mxu0
  %v1442 = vadd.f32 %v772, %v1441
  %1443 = vmatmul.bf16.gmra.mxu0 %v1137
  %v1444 = vpop.f32.mrf.mxu0
  %v1445 = vadd.f32 %v777, %v1444
  %v1446 = vpop.f32.mrf.mxu0
  %v1447 = vadd.f32 %v782, %v1446
  %1448 = vmatmul.bf16.gmra.mxu0 %v1140
  %v1449 = vpop.f32.mrf.mxu0
  %v1450 = vadd.f32 %v787, %v1449
  %v1451 = vpop.f32.mrf.mxu0
  %v1452 = vadd.f32 %v792, %v1451
  %1453 = vmatmul.bf16.gmra.mxu0 %v1143
  %v1454 = vpop.f32.mrf.mxu0
  %v1455 = vadd.f32 %v797, %v1454
  %v1456 = vpop.f32.mrf.mxu0
  %v1457 = vadd.f32 %v802, %v1456
  %1458 = vmatmul.bf16.gmra.mxu0 %v1146
  %v1459 = vpop.f32.mrf.mxu0
  %v1460 = vadd.f32 %v807, %v1459
  %v1461 = vpop.f32.mrf.mxu0
  %v1462 = vadd.f32 %v812, %v1461
  %1463 = vmatmul.bf16.gmra.mxu0 %v1149
  %v1464 = vpop.f32.mrf.mxu0
  %v1465 = vadd.f32 %v817, %v1464
  %v1466 = vpop.f32.mrf.mxu0
  %v1467 = vadd.f32 %v822, %v1466
  %1468 = vmatmul.bf16.gmra.mxu0 %v1152
  %v1469 = vpop.f32.mrf.mxu0
  %v1470 = vadd.f32 %v827, %v1469
  %v1471 = vpop.f32.mrf.mxu0
  %v1472 = vadd.f32 %v832, %v1471
  %1473 = vmatmul.bf16.gmra.mxu0 %v1155
  %v1474 = vpop.f32.mrf.mxu0
  %v1475 = vadd.f32 %v837, %v1474
  %v1476 = vpop.f32.mrf.mxu0
  %v1477 = vadd.f32 %v842, %v1476
  %1478 = vmatmul.bf16.gmra.mxu0 %v1158
  %v1479 = vpop.f32.mrf.mxu0
  %v1480 = vadd.f32 %v847, %v1479
  %v1481 = vpop.f32.mrf.mxu0
  %v1482 = vadd.f32 %v852, %v1481
  %1483 = vmatmul.bf16.gmra.mxu0 %v1161
  %v1484 = vpop.f32.mrf.mxu0
  %v1485 = vadd.f32 %v857, %v1484
  %v1486 = vpop.f32.mrf.mxu0
  %v1487 = vadd.f32 %v862, %v1486
  %1488 = vmatmul.bf16.gmra.mxu0 %v1164
  %v1489 = vpop.f32.mrf.mxu0
  %v1490 = vadd.f32 %v867, %v1489
  %v1491 = vpop.f32.mrf.mxu0
  %v1492 = vadd.f32 %v872, %v1491
  %1493 = vmatmul.bf16.gmra.mxu0 %v1167
  %v1494 = vpop.f32.mrf.mxu0
  %v1495 = vadd.f32 %v877, %v1494
  %v1496 = vpop.f32.mrf.mxu0
  %v1497 = vadd.f32 %v882, %v1496
  %1498 = vmatmul.bf16.gmra.mxu0 %v1170
  %v1499 = vpop.f32.mrf.mxu0
  %v1500 = vadd.f32 %v887, %v1499
  %v1501 = vpop.f32.mrf.mxu0
  %v1502 = vadd.f32 %v892, %v1501
  %1503 = vmatmul.bf16.gmra.mxu0 %v1173
  %v1504 = vpop.f32.mrf.mxu0
  %v1505 = vadd.f32 %v897, %v1504
  %v1506 = vpop.f32.mrf.mxu0
  %v1507 = vadd.f32 %v902, %v1506
  %1508 = vmatmul.bf16.gmra.mxu0 %v1176
  %v1509 = vpop.f32.mrf.mxu0
  %v1510 = vadd.f32 %v907, %v1509
  %v1511 = vpop.f32.mrf.mxu0
  %v1512 = vadd.f32 %v912, %v1511
  %1513 = vmatmul.bf16.gmra.mxu0 %v1179
  %v1514 = vpop.f32.mrf.mxu0
  %v1515 = vadd.f32 %v917, %v1514
  %v1516 = vpop.f32.mrf.mxu0
  %v1517 = vadd.f32 %v922, %v1516
  %1518 = vdwg.mxu0
  %v1519 = vpack.c.bf16 %v1360, %v1191
  %v1520 = vpack.c.bf16 %v1362, %v1193
  %v1521 = vpack.c.bf16 %v1365, %v1196
  %v1522 = vpack.c.bf16 %v1367, %v1198
  %v1523 = vpack.c.bf16 %v1370, %v1201
  %v1524 = vpack.c.bf16 %v1372, %v1203
  %v1525 = vpack.c.bf16 %v1375, %v1206
  %v1526 = vpack.c.bf16 %v1377, %v1208
  %v1527 = vpack.c.bf16 %v1380, %v1211
  %v1528 = vpack.c.bf16 %v1382, %v1213
  %v1529 = vpack.c.bf16 %v1385, %v1216
  %v1530 = vpack.c.bf16 %v1387, %v1218
  %v1531 = vpack.c.bf16 %v1390, %v1221
  %v1532 = vpack.c.bf16 %v1392, %v1223
  %v1533 = vpack.c.bf16 %v1395, %v1226
  %v1534 = vpack.c.bf16 %v1397, %v1228
  %v1535 = vpack.c.bf16 %v1400, %v1231
  %v1536 = vpack.c.bf16 %v1402, %v1233
  %v1537 = vpack.c.bf16 %v1405, %v1236
  %v1538 = vpack.c.bf16 %v1407, %v1238
  %v1539 = vpack.c.bf16 %v1410, %v1241
  %v1540 = vpack.c.bf16 %v1412, %v1243
  %v1541 = vpack.c.bf16 %v1415, %v1246
  %v1542 = vpack.c.bf16 %v1417, %v1248
  %v1543 = vpack.c.bf16 %v1420, %v1251
  %v1544 = vpack.c.bf16 %v1422, %v1253
  %v1545 = vpack.c.bf16 %v1425, %v1256
  %v1546 = vpack.c.bf16 %v1427, %v1258
  %v1547 = vpack.c.bf16 %v1430, %v1261
  %v1548 = vpack.c.bf16 %v1432, %v1263
  %v1549 = vpack.c.bf16 %v1435, %v1266
  %v1550 = vpack.c.bf16 %v1437, %v1268
  %v1551 = vpack.c.bf16 %v1440, %v1271
  %v1552 = vpack.c.bf16 %v1442, %v1273
  %v1553 = vpack.c.bf16 %v1445, %v1276
  %v1554 = vpack.c.bf16 %v1447, %v1278
  %v1555 = vpack.c.bf16 %v1450, %v1281
  %v1556 = vpack.c.bf16 %v1452, %v1283
  %v1557 = vpack.c.bf16 %v1455, %v1286
  %v1558 = vpack.c.bf16 %v1457, %v1288
  %v1559 = vpack.c.bf16 %v1460, %v1291
  %v1560 = vpack.c.bf16 %v1462, %v1293
  %v1561 = vpack.c.bf16 %v1465, %v1296
  %v1562 = vpack.c.bf16 %v1467, %v1298
  %v1563 = vpack.c.bf16 %v1470, %v1301
  %v1564 = vpack.c.bf16 %v1472, %v1303
  %v1565 = vpack.c.bf16 %v1475, %v1306
  %v1566 = vpack.c.bf16 %v1477, %v1308
  %v1567 = vpack.c.bf16 %v1480, %v1311
  %v1568 = vpack.c.bf16 %v1482, %v1313
  %v1569 = vpack.c.bf16 %v1485, %v1316
  %v1570 = vpack.c.bf16 %v1487, %v1318
  %v1571 = vpack.c.bf16 %v1490, %v1321
  %v1572 = vpack.c.bf16 %v1492, %v1323
  %v1573 = vpack.c.bf16 %v1495, %v1326
  %v1574 = vpack.c.bf16 %v1497, %v1328
  %v1575 = vpack.c.bf16 %v1500, %v1331
  %v1576 = vpack.c.bf16 %v1502, %v1333
  %v1577 = vpack.c.bf16 %v1505, %v1336
  %v1578 = vpack.c.bf16 %v1507, %v1338
  %v1579 = vpack.c.bf16 %v1510, %v1341
  %v1580 = vpack.c.bf16 %v1512, %v1343
  %v1581 = vpack.c.bf16 %v1515, %v1346
  %v1582 = vpack.c.bf16 %v1517, %v1348
  %v1583 = vld [vmem:[%s0] sm:$0x3]
  %v1584 = vunpack.c.l.bf16 %v473
  %v1585 = vunpack.c.l.bf16 %v474
  %v1586 = vunpack.c.l.bf16 %v475
  %v1587 = vunpack.c.l.bf16 %v476
  %v1588 = vunpack.c.l.bf16 %v477
  %v1589 = vunpack.c.l.bf16 %v478
  %v1590 = vunpack.c.l.bf16 %v479
  %v1591 = vunpack.c.l.bf16 %v480
  %v1592 = vunpack.c.l.bf16 %v481
  %v1593 = vunpack.c.l.bf16 %v482
  %v1594 = vunpack.c.l.bf16 %v483
  %v1595 = vunpack.c.l.bf16 %v484
  %v1596 = vunpack.c.l.bf16 %v485
  %v1597 = vunpack.c.l.bf16 %v486
  %v1598 = vunpack.c.l.bf16 %v487
  %v1599 = vunpack.c.l.bf16 %v488
  %v1600 = vunpack.c.l.bf16 %v489
  %v1601 = vunpack.c.l.bf16 %v490
  %v1602 = vunpack.c.l.bf16 %v491
  %v1603 = vunpack.c.l.bf16 %v492
  %v1604 = vunpack.c.l.bf16 %v493
  %v1605 = vunpack.c.l.bf16 %v494
  %v1606 = vunpack.c.l.bf16 %v495
  %v1607 = vunpack.c.l.bf16 %v496
  %v1608 = vunpack.c.l.bf16 %v497
  %v1609 = vunpack.c.l.bf16 %v498
  %v1610 = vunpack.c.l.bf16 %v499
  %v1611 = vunpack.c.l.bf16 %v500
  %v1612 = vunpack.c.l.bf16 %v501
  %v1613 = vunpack.c.l.bf16 %v502
  %v1614 = vunpack.c.l.bf16 %v503
  %v1615 = vunpack.c.l.bf16 %v504
  %v1616 = vunpack.c.l.bf16 %v505
  %v1617 = vunpack.c.l.bf16 %v506
  %v1618 = vunpack.c.l.bf16 %v507
  %v1619 = vunpack.c.l.bf16 %v508
  %v1620 = vunpack.c.l.bf16 %v509
  %v1621 = vunpack.c.l.bf16 %v510
  %v1622 = vunpack.c.l.bf16 %v511
  %v1623 = vunpack.c.l.bf16 %v512
  %v1624 = vunpack.c.l.bf16 %v513
  %v1625 = vunpack.c.l.bf16 %v514
  %v1626 = vunpack.c.l.bf16 %v515
  %v1627 = vunpack.c.l.bf16 %v516
  %v1628 = vunpack.c.l.bf16 %v517
  %v1629 = vunpack.c.l.bf16 %v518
  %v1630 = vunpack.c.l.bf16 %v519
  %v1631 = vunpack.c.l.bf16 %v520
  %v1632 = vunpack.c.l.bf16 %v521
  %v1633 = vunpack.c.l.bf16 %v522
  %v1634 = vunpack.c.l.bf16 %v523
  %v1635 = vunpack.c.l.bf16 %v524
  %v1636 = vunpack.c.l.bf16 %v525
  %v1637 = vunpack.c.l.bf16 %v526
  %v1638 = vunpack.c.l.bf16 %v527
  %v1639 = vunpack.c.l.bf16 %v528
  %v1640 = vunpack.c.l.bf16 %v529
  %v1641 = vunpack.c.l.bf16 %v530
  %v1642 = vunpack.c.l.bf16 %v531
  %v1643 = vunpack.c.l.bf16 %v532
  %v1644 = vunpack.c.l.bf16 %v533
  %v1645 = vunpack.c.l.bf16 %v534
  %v1646 = vunpack.c.l.bf16 %v535
  %v1647 = vunpack.c.l.bf16 %v536
  %1649 = vset.pattern.permute.xlu0 16
  %1650 = vperm.xlu0 %1649, %v1584
  %v1651 = vpop.permute.xlu0 %1650
  %1654 = vset.pattern.permute.xlu0 16
  %1655 = vperm.xlu0 %1654, %v1585
  %v1656 = vpop.permute.xlu0 %1655
  %1659 = vset.pattern.permute.xlu0 16
  %1660 = vperm.xlu0 %1659, %v1586
  %v1661 = vpop.permute.xlu0 %1660
  %1664 = vset.pattern.permute.xlu0 16
  %1665 = vperm.xlu0 %1664, %v1587
  %v1666 = vpop.permute.xlu0 %1665
  %1669 = vset.pattern.permute.xlu0 16
  %1670 = vperm.xlu0 %1669, %v1588
  %v1671 = vpop.permute.xlu0 %1670
  %1674 = vset.pattern.permute.xlu0 16
  %1675 = vperm.xlu0 %1674, %v1589
  %v1676 = vpop.permute.xlu0 %1675
  %1679 = vset.pattern.permute.xlu0 16
  %1680 = vperm.xlu0 %1679, %v1590
  %v1681 = vpop.permute.xlu0 %1680
  %1684 = vset.pattern.permute.xlu0 16
  %1685 = vperm.xlu0 %1684, %v1591
  %v1686 = vpop.permute.xlu0 %1685
  %1689 = vset.pattern.permute.xlu0 16
  %1690 = vperm.xlu0 %1689, %v1592
  %v1691 = vpop.permute.xlu0 %1690
  %1694 = vset.pattern.permute.xlu0 16
  %1695 = vperm.xlu0 %1694, %v1593
  %v1696 = vpop.permute.xlu0 %1695
  %1699 = vset.pattern.permute.xlu0 16
  %1700 = vperm.xlu0 %1699, %v1594
  %v1701 = vpop.permute.xlu0 %1700
  %1704 = vset.pattern.permute.xlu0 16
  %1705 = vperm.xlu0 %1704, %v1595
  %v1706 = vpop.permute.xlu0 %1705
  %1709 = vset.pattern.permute.xlu0 16
  %1710 = vperm.xlu0 %1709, %v1596
  %v1711 = vpop.permute.xlu0 %1710
  %1714 = vset.pattern.permute.xlu0 16
  %1715 = vperm.xlu0 %1714, %v1597
  %v1716 = vpop.permute.xlu0 %1715
  %1719 = vset.pattern.permute.xlu0 16
  %1720 = vperm.xlu0 %1719, %v1598
  %v1721 = vpop.permute.xlu0 %1720
  %1724 = vset.pattern.permute.xlu0 16
  %1725 = vperm.xlu0 %1724, %v1599
  %v1726 = vpop.permute.xlu0 %1725
  %1729 = vset.pattern.permute.xlu0 16
  %1730 = vperm.xlu0 %1729, %v1600
  %v1731 = vpop.permute.xlu0 %1730
  %1734 = vset.pattern.permute.xlu0 16
  %1735 = vperm.xlu0 %1734, %v1601
  %v1736 = vpop.permute.xlu0 %1735
  %1739 = vset.pattern.permute.xlu0 16
  %1740 = vperm.xlu0 %1739, %v1602
  %v1741 = vpop.permute.xlu0 %1740
  %1744 = vset.pattern.permute.xlu0 16
  %1745 = vperm.xlu0 %1744, %v1603
  %v1746 = vpop.permute.xlu0 %1745
  %1749 = vset.pattern.permute.xlu0 16
  %1750 = vperm.xlu0 %1749, %v1604
  %v1751 = vpop.permute.xlu0 %1750
  %1754 = vset.pattern.permute.xlu0 16
  %1755 = vperm.xlu0 %1754, %v1605
  %v1756 = vpop.permute.xlu0 %1755
  %1759 = vset.pattern.permute.xlu0 16
  %1760 = vperm.xlu0 %1759, %v1606
  %v1761 = vpop.permute.xlu0 %1760
  %1764 = vset.pattern.permute.xlu0 16
  %1765 = vperm.xlu0 %1764, %v1607
  %v1766 = vpop.permute.xlu0 %1765
  %1769 = vset.pattern.permute.xlu0 16
  %1770 = vperm.xlu0 %1769, %v1608
  %v1771 = vpop.permute.xlu0 %1770
  %1774 = vset.pattern.permute.xlu0 16
  %1775 = vperm.xlu0 %1774, %v1609
  %v1776 = vpop.permute.xlu0 %1775
  %1779 = vset.pattern.permute.xlu0 16
  %1780 = vperm.xlu0 %1779, %v1610
  %v1781 = vpop.permute.xlu0 %1780
  %1784 = vset.pattern.permute.xlu0 16
  %1785 = vperm.xlu0 %1784, %v1611
  %v1786 = vpop.permute.xlu0 %1785
  %1789 = vset.pattern.permute.xlu0 16
  %1790 = vperm.xlu0 %1789, %v1612
  %v1791 = vpop.permute.xlu0 %1790
  %1794 = vset.pattern.permute.xlu0 16
  %1795 = vperm.xlu0 %1794, %v1613
  %v1796 = vpop.permute.xlu0 %1795
  %1799 = vset.pattern.permute.xlu0 16
  %1800 = vperm.xlu0 %1799, %v1614
  %v1801 = vpop.permute.xlu0 %1800
  %1804 = vset.pattern.permute.xlu0 16
  %1805 = vperm.xlu0 %1804, %v1615
  %v1806 = vpop.permute.xlu0 %1805
  %1809 = vset.pattern.permute.xlu0 16
  %1810 = vperm.xlu0 %1809, %v1616
  %v1811 = vpop.permute.xlu0 %1810
  %1814 = vset.pattern.permute.xlu0 16
  %1815 = vperm.xlu0 %1814, %v1617
  %v1816 = vpop.permute.xlu0 %1815
  %1819 = vset.pattern.permute.xlu0 16
  %1820 = vperm.xlu0 %1819, %v1618
  %v1821 = vpop.permute.xlu0 %1820
  %1824 = vset.pattern.permute.xlu0 16
  %1825 = vperm.xlu0 %1824, %v1619
  %v1826 = vpop.permute.xlu0 %1825
  %1829 = vset.pattern.permute.xlu0 16
  %1830 = vperm.xlu0 %1829, %v1620
  %v1831 = vpop.permute.xlu0 %1830
  %1834 = vset.pattern.permute.xlu0 16
  %1835 = vperm.xlu0 %1834, %v1621
  %v1836 = vpop.permute.xlu0 %1835
  %1839 = vset.pattern.permute.xlu0 16
  %1840 = vperm.xlu0 %1839, %v1622
  %v1841 = vpop.permute.xlu0 %1840
  %1844 = vset.pattern.permute.xlu0 16
  %1845 = vperm.xlu0 %1844, %v1623
  %v1846 = vpop.permute.xlu0 %1845
  %1849 = vset.pattern.permute.xlu0 16
  %1850 = vperm.xlu0 %1849, %v1624
  %v1851 = vpop.permute.xlu0 %1850
  %1854 = vset.pattern.permute.xlu0 16
  %1855 = vperm.xlu0 %1854, %v1625
  %v1856 = vpop.permute.xlu0 %1855
  %1859 = vset.pattern.permute.xlu0 16
  %1860 = vperm.xlu0 %1859, %v1626
  %v1861 = vpop.permute.xlu0 %1860
  %1864 = vset.pattern.permute.xlu0 16
  %1865 = vperm.xlu0 %1864, %v1627
  %v1866 = vpop.permute.xlu0 %1865
  %1869 = vset.pattern.permute.xlu0 16
  %1870 = vperm.xlu0 %1869, %v1628
  %v1871 = vpop.permute.xlu0 %1870
  %1874 = vset.pattern.permute.xlu0 16
  %1875 = vperm.xlu0 %1874, %v1629
  %v1876 = vpop.permute.xlu0 %1875
  %1879 = vset.pattern.permute.xlu0 16
  %1880 = vperm.xlu0 %1879, %v1630
  %v1881 = vpop.permute.xlu0 %1880
  %1884 = vset.pattern.permute.xlu0 16
  %1885 = vperm.xlu0 %1884, %v1631
  %v1886 = vpop.permute.xlu0 %1885
  %1889 = vset.pattern.permute.xlu0 16
  %1890 = vperm.xlu0 %1889, %v1632
  %v1891 = vpop.permute.xlu0 %1890
  %1894 = vset.pattern.permute.xlu0 16
  %1895 = vperm.xlu0 %1894, %v1633
  %v1896 = vpop.permute.xlu0 %1895
  %1899 = vset.pattern.permute.xlu0 16
  %1900 = vperm.xlu0 %1899, %v1634
  %v1901 = vpop.permute.xlu0 %1900
  %1904 = vset.pattern.permute.xlu0 16
  %1905 = vperm.xlu0 %1904, %v1635
  %v1906 = vpop.permute.xlu0 %1905
  %1909 = vset.pattern.permute.xlu0 16
  %1910 = vperm.xlu0 %1909, %v1636
  %v1911 = vpop.permute.xlu0 %1910
  %1914 = vset.pattern.permute.xlu0 16
  %1915 = vperm.xlu0 %1914, %v1637
  %v1916 = vpop.permute.xlu0 %1915
  %1919 = vset.pattern.permute.xlu0 16
  %1920 = vperm.xlu0 %1919, %v1638
  %v1921 = vpop.permute.xlu0 %1920
  %1924 = vset.pattern.permute.xlu0 16
  %1925 = vperm.xlu0 %1924, %v1639
  %v1926 = vpop.permute.xlu0 %1925
  %1929 = vset.pattern.permute.xlu0 16
  %1930 = vperm.xlu0 %1929, %v1640
  %v1931 = vpop.permute.xlu0 %1930
  %1934 = vset.pattern.permute.xlu0 16
  %1935 = vperm.xlu0 %1934, %v1641
  %v1936 = vpop.permute.xlu0 %1935
  %1939 = vset.pattern.permute.xlu0 16
  %1940 = vperm.xlu0 %1939, %v1642
  %v1941 = vpop.permute.xlu0 %1940
  %1944 = vset.pattern.permute.xlu0 16
  %1945 = vperm.xlu0 %1944, %v1643
  %v1946 = vpop.permute.xlu0 %1945
  %1949 = vset.pattern.permute.xlu0 16
  %1950 = vperm.xlu0 %1949, %v1644
  %v1951 = vpop.permute.xlu0 %1950
  %1954 = vset.pattern.permute.xlu0 16
  %1955 = vperm.xlu0 %1954, %v1645
  %v1956 = vpop.permute.xlu0 %1955
  %1959 = vset.pattern.permute.xlu0 16
  %1960 = vperm.xlu0 %1959, %v1646
  %v1961 = vpop.permute.xlu0 %1960
  %1964 = vset.pattern.permute.xlu0 16
  %1965 = vperm.xlu0 %1964, %v1647
  %v1966 = vpop.permute.xlu0 %1965
  %v1968 = vperm.slane %v1583, 0
  %v1969 = vmul.f32 %v1651, %v1968
  %v1970 = vmul.f32 %v1656, %v1968
  %v1971 = vmul.f32 %v1661, %v1968
  %v1972 = vmul.f32 %v1666, %v1968
  %v1973 = vmul.f32 %v1671, %v1968
  %v1974 = vmul.f32 %v1676, %v1968
  %v1975 = vmul.f32 %v1681, %v1968
  %v1976 = vmul.f32 %v1686, %v1968
  %v1977 = vmul.f32 %v1691, %v1968
  %v1978 = vmul.f32 %v1696, %v1968
  %v1979 = vmul.f32 %v1701, %v1968
  %v1980 = vmul.f32 %v1706, %v1968
  %v1981 = vmul.f32 %v1711, %v1968
  %v1982 = vmul.f32 %v1716, %v1968
  %v1983 = vmul.f32 %v1721, %v1968
  %v1984 = vmul.f32 %v1726, %v1968
  %v1985 = vmul.f32 %v1731, %v1968
  %v1986 = vmul.f32 %v1736, %v1968
  %v1987 = vmul.f32 %v1741, %v1968
  %v1988 = vmul.f32 %v1746, %v1968
  %v1989 = vmul.f32 %v1751, %v1968
  %v1990 = vmul.f32 %v1756, %v1968
  %v1991 = vmul.f32 %v1761, %v1968
  %v1992 = vmul.f32 %v1766, %v1968
  %v1993 = vmul.f32 %v1771, %v1968
  %v1994 = vmul.f32 %v1776, %v1968
  %v1995 = vmul.f32 %v1781, %v1968
  %v1996 = vmul.f32 %v1786, %v1968
  %v1997 = vmul.f32 %v1791, %v1968
  %v1998 = vmul.f32 %v1796, %v1968
  %v1999 = vmul.f32 %v1801, %v1968
  %v2000 = vmul.f32 %v1806, %v1968
  %v2001 = vmul.f32 %v1811, %v1968
  %v2002 = vmul.f32 %v1816, %v1968
  %v2003 = vmul.f32 %v1821, %v1968
  %v2004 = vmul.f32 %v1826, %v1968
  %v2005 = vmul.f32 %v1831, %v1968
  %v2006 = vmul.f32 %v1836, %v1968
  %v2007 = vmul.f32 %v1841, %v1968
  %v2008 = vmul.f32 %v1846, %v1968
  %v2009 = vmul.f32 %v1851, %v1968
  %v2010 = vmul.f32 %v1856, %v1968
  %v2011 = vmul.f32 %v1861, %v1968
  %v2012 = vmul.f32 %v1866, %v1968
  %v2013 = vmul.f32 %v1871, %v1968
  %v2014 = vmul.f32 %v1876, %v1968
  %v2015 = vmul.f32 %v1881, %v1968
  %v2016 = vmul.f32 %v1886, %v1968
  %v2017 = vmul.f32 %v1891, %v1968
  %v2018 = vmul.f32 %v1896, %v1968
  %v2019 = vmul.f32 %v1901, %v1968
  %v2020 = vmul.f32 %v1906, %v1968
  %v2021 = vmul.f32 %v1911, %v1968
  %v2022 = vmul.f32 %v1916, %v1968
  %v2023 = vmul.f32 %v1921, %v1968
  %v2024 = vmul.f32 %v1926, %v1968
  %v2025 = vmul.f32 %v1931, %v1968
  %v2026 = vmul.f32 %v1936, %v1968
  %v2027 = vmul.f32 %v1941, %v1968
  %v2028 = vmul.f32 %v1946, %v1968
  %v2029 = vmul.f32 %v1951, %v1968
  %v2030 = vmul.f32 %v1956, %v1968
  %v2031 = vmul.f32 %v1961, %v1968
  %v2032 = vmul.f32 %v1966, %v1968
  %2033 = vset.pattern.permute.xlu0 17
  %2034 = vperm.xlu0 %2033, %v1584
  %v2035 = vpop.permute.xlu0 %2034
  %2037 = vset.pattern.permute.xlu0 17
  %2038 = vperm.xlu0 %2037, %v1585
  %v2039 = vpop.permute.xlu0 %2038
  %2041 = vset.pattern.permute.xlu0 17
  %2042 = vperm.xlu0 %2041, %v1586
  %v2043 = vpop.permute.xlu0 %2042
  %2045 = vset.pattern.permute.xlu0 17
  %2046 = vperm.xlu0 %2045, %v1587
  %v2047 = vpop.permute.xlu0 %2046
  %2049 = vset.pattern.permute.xlu0 17
  %2050 = vperm.xlu0 %2049, %v1588
  %v2051 = vpop.permute.xlu0 %2050
  %2053 = vset.pattern.permute.xlu0 17
  %2054 = vperm.xlu0 %2053, %v1589
  %v2055 = vpop.permute.xlu0 %2054
  %2057 = vset.pattern.permute.xlu0 17
  %2058 = vperm.xlu0 %2057, %v1590
  %v2059 = vpop.permute.xlu0 %2058
  %2061 = vset.pattern.permute.xlu0 17
  %2062 = vperm.xlu0 %2061, %v1591
  %v2063 = vpop.permute.xlu0 %2062
  %2065 = vset.pattern.permute.xlu0 17
  %2066 = vperm.xlu0 %2065, %v1592
  %v2067 = vpop.permute.xlu0 %2066
  %2069 = vset.pattern.permute.xlu0 17
  %2070 = vperm.xlu0 %2069, %v1593
  %v2071 = vpop.permute.xlu0 %2070
  %2073 = vset.pattern.permute.xlu0 17
  %2074 = vperm.xlu0 %2073, %v1594
  %v2075 = vpop.permute.xlu0 %2074
  %2077 = vset.pattern.permute.xlu0 17
  %2078 = vperm.xlu0 %2077, %v1595
  %v2079 = vpop.permute.xlu0 %2078
  %2081 = vset.pattern.permute.xlu0 17
  %2082 = vperm.xlu0 %2081, %v1596
  %v2083 = vpop.permute.xlu0 %2082
  %2085 = vset.pattern.permute.xlu0 17
  %2086 = vperm.xlu0 %2085, %v1597
  %v2087 = vpop.permute.xlu0 %2086
  %2089 = vset.pattern.permute.xlu0 17
  %2090 = vperm.xlu0 %2089, %v1598
  %v2091 = vpop.permute.xlu0 %2090
  %2093 = vset.pattern.permute.xlu0 17
  %2094 = vperm.xlu0 %2093, %v1599
  %v2095 = vpop.permute.xlu0 %2094
  %2097 = vset.pattern.permute.xlu0 17
  %2098 = vperm.xlu0 %2097, %v1600
  %v2099 = vpop.permute.xlu0 %2098
  %2101 = vset.pattern.permute.xlu0 17
  %2102 = vperm.xlu0 %2101, %v1601
  %v2103 = vpop.permute.xlu0 %2102
  %2105 = vset.pattern.permute.xlu0 17
  %2106 = vperm.xlu0 %2105, %v1602
  %v2107 = vpop.permute.xlu0 %2106
  %2109 = vset.pattern.permute.xlu0 17
  %2110 = vperm.xlu0 %2109, %v1603
  %v2111 = vpop.permute.xlu0 %2110
  %2113 = vset.pattern.permute.xlu0 17
  %2114 = vperm.xlu0 %2113, %v1604
  %v2115 = vpop.permute.xlu0 %2114
  %2117 = vset.pattern.permute.xlu0 17
  %2118 = vperm.xlu0 %2117, %v1605
  %v2119 = vpop.permute.xlu0 %2118
  %2121 = vset.pattern.permute.xlu0 17
  %2122 = vperm.xlu0 %2121, %v1606
  %v2123 = vpop.permute.xlu0 %2122
  %2125 = vset.pattern.permute.xlu0 17
  %2126 = vperm.xlu0 %2125, %v1607
  %v2127 = vpop.permute.xlu0 %2126
  %2129 = vset.pattern.permute.xlu0 17
  %2130 = vperm.xlu0 %2129, %v1608
  %v2131 = vpop.permute.xlu0 %2130
  %2133 = vset.pattern.permute.xlu0 17
  %2134 = vperm.xlu0 %2133, %v1609
  %v2135 = vpop.permute.xlu0 %2134
  %2137 = vset.pattern.permute.xlu0 17
  %2138 = vperm.xlu0 %2137, %v1610
  %v2139 = vpop.permute.xlu0 %2138
  %2141 = vset.pattern.permute.xlu0 17
  %2142 = vperm.xlu0 %2141, %v1611
  %v2143 = vpop.permute.xlu0 %2142
  %2145 = vset.pattern.permute.xlu0 17
  %2146 = vperm.xlu0 %2145, %v1612
  %v2147 = vpop.permute.xlu0 %2146
  %2149 = vset.pattern.permute.xlu0 17
  %2150 = vperm.xlu0 %2149, %v1613
  %v2151 = vpop.permute.xlu0 %2150
  %2153 = vset.pattern.permute.xlu0 17
  %2154 = vperm.xlu0 %2153, %v1614
  %v2155 = vpop.permute.xlu0 %2154
  %2157 = vset.pattern.permute.xlu0 17
  %2158 = vperm.xlu0 %2157, %v1615
  %v2159 = vpop.permute.xlu0 %2158
  %2161 = vset.pattern.permute.xlu0 17
  %2162 = vperm.xlu0 %2161, %v1616
  %v2163 = vpop.permute.xlu0 %2162
  %2165 = vset.pattern.permute.xlu0 17
  %2166 = vperm.xlu0 %2165, %v1617
  %v2167 = vpop.permute.xlu0 %2166
  %2169 = vset.pattern.permute.xlu0 17
  %2170 = vperm.xlu0 %2169, %v1618
  %v2171 = vpop.permute.xlu0 %2170
  %2173 = vset.pattern.permute.xlu0 17
  %2174 = vperm.xlu0 %2173, %v1619
  %v2175 = vpop.permute.xlu0 %2174
  %2177 = vset.pattern.permute.xlu0 17
  %2178 = vperm.xlu0 %2177, %v1620
  %v2179 = vpop.permute.xlu0 %2178
  %2181 = vset.pattern.permute.xlu0 17
  %2182 = vperm.xlu0 %2181, %v1621
  %v2183 = vpop.permute.xlu0 %2182
  %2185 = vset.pattern.permute.xlu0 17
  %2186 = vperm.xlu0 %2185, %v1622
  %v2187 = vpop.permute.xlu0 %2186
  %2189 = vset.pattern.permute.xlu0 17
  %2190 = vperm.xlu0 %2189, %v1623
  %v2191 = vpop.permute.xlu0 %2190
  %2193 = vset.pattern.permute.xlu0 17
  %2194 = vperm.xlu0 %2193, %v1624
  %v2195 = vpop.permute.xlu0 %2194
  %2197 = vset.pattern.permute.xlu0 17
  %2198 = vperm.xlu0 %2197, %v1625
  %v2199 = vpop.permute.xlu0 %2198
  %2201 = vset.pattern.permute.xlu0 17
  %2202 = vperm.xlu0 %2201, %v1626
  %v2203 = vpop.permute.xlu0 %2202
  %2205 = vset.pattern.permute.xlu0 17
  %2206 = vperm.xlu0 %2205, %v1627
  %v2207 = vpop.permute.xlu0 %2206
  %2209 = vset.pattern.permute.xlu0 17
  %2210 = vperm.xlu0 %2209, %v1628
  %v2211 = vpop.permute.xlu0 %2210
  %2213 = vset.pattern.permute.xlu0 17
  %2214 = vperm.xlu0 %2213, %v1629
  %v2215 = vpop.permute.xlu0 %2214
  %2217 = vset.pattern.permute.xlu0 17
  %2218 = vperm.xlu0 %2217, %v1630
  %v2219 = vpop.permute.xlu0 %2218
  %2221 = vset.pattern.permute.xlu0 17
  %2222 = vperm.xlu0 %2221, %v1631
  %v2223 = vpop.permute.xlu0 %2222
  %2225 = vset.pattern.permute.xlu0 17
  %2226 = vperm.xlu0 %2225, %v1632
  %v2227 = vpop.permute.xlu0 %2226
  %2229 = vset.pattern.permute.xlu0 17
  %2230 = vperm.xlu0 %2229, %v1633
  %v2231 = vpop.permute.xlu0 %2230
  %2233 = vset.pattern.permute.xlu0 17
  %2234 = vperm.xlu0 %2233, %v1634
  %v2235 = vpop.permute.xlu0 %2234
  %2237 = vset.pattern.permute.xlu0 17
  %2238 = vperm.xlu0 %2237, %v1635
  %v2239 = vpop.permute.xlu0 %2238
  %2241 = vset.pattern.permute.xlu0 17
  %2242 = vperm.xlu0 %2241, %v1636
  %v2243 = vpop.permute.xlu0 %2242
  %2245 = vset.pattern.permute.xlu0 17
  %2246 = vperm.xlu0 %2245, %v1637
  %v2247 = vpop.permute.xlu0 %2246
  %2249 = vset.pattern.permute.xlu0 17
  %2250 = vperm.xlu0 %2249, %v1638
  %v2251 = vpop.permute.xlu0 %2250
  %2253 = vset.pattern.permute.xlu0 17
  %2254 = vperm.xlu0 %2253, %v1639
  %v2255 = vpop.permute.xlu0 %2254
  %2257 = vset.pattern.permute.xlu0 17
  %2258 = vperm.xlu0 %2257, %v1640
  %v2259 = vpop.permute.xlu0 %2258
  %2261 = vset.pattern.permute.xlu0 17
  %2262 = vperm.xlu0 %2261, %v1641
  %v2263 = vpop.permute.xlu0 %2262
  %2265 = vset.pattern.permute.xlu0 17
  %2266 = vperm.xlu0 %2265, %v1642
  %v2267 = vpop.permute.xlu0 %2266
  %2269 = vset.pattern.permute.xlu0 17
  %2270 = vperm.xlu0 %2269, %v1643
  %v2271 = vpop.permute.xlu0 %2270
  %2273 = vset.pattern.permute.xlu0 17
  %2274 = vperm.xlu0 %2273, %v1644
  %v2275 = vpop.permute.xlu0 %2274
  %2277 = vset.pattern.permute.xlu0 17
  %2278 = vperm.xlu0 %2277, %v1645
  %v2279 = vpop.permute.xlu0 %2278
  %2281 = vset.pattern.permute.xlu0 17
  %2282 = vperm.xlu0 %2281, %v1646
  %v2283 = vpop.permute.xlu0 %2282
  %2285 = vset.pattern.permute.xlu0 17
  %2286 = vperm.xlu0 %2285, %v1647
  %v2287 = vpop.permute.xlu0 %2286
  %v2289 = vperm.slane %v1583, 1
  %v2290 = vmul.f32 %v2035, %v2289
  %v2291 = vmul.f32 %v2039, %v2289
  %v2292 = vmul.f32 %v2043, %v2289
  %v2293 = vmul.f32 %v2047, %v2289
  %v2294 = vmul.f32 %v2051, %v2289
  %v2295 = vmul.f32 %v2055, %v2289
  %v2296 = vmul.f32 %v2059, %v2289
  %v2297 = vmul.f32 %v2063, %v2289
  %v2298 = vmul.f32 %v2067, %v2289
  %v2299 = vmul.f32 %v2071, %v2289
  %v2300 = vmul.f32 %v2075, %v2289
  %v2301 = vmul.f32 %v2079, %v2289
  %v2302 = vmul.f32 %v2083, %v2289
  %v2303 = vmul.f32 %v2087, %v2289
  %v2304 = vmul.f32 %v2091, %v2289
  %v2305 = vmul.f32 %v2095, %v2289
  %v2306 = vmul.f32 %v2099, %v2289
  %v2307 = vmul.f32 %v2103, %v2289
  %v2308 = vmul.f32 %v2107, %v2289
  %v2309 = vmul.f32 %v2111, %v2289
  %v2310 = vmul.f32 %v2115, %v2289
  %v2311 = vmul.f32 %v2119, %v2289
  %v2312 = vmul.f32 %v2123, %v2289
  %v2313 = vmul.f32 %v2127, %v2289
  %v2314 = vmul.f32 %v2131, %v2289
  %v2315 = vmul.f32 %v2135, %v2289
  %v2316 = vmul.f32 %v2139, %v2289
  %v2317 = vmul.f32 %v2143, %v2289
  %v2318 = vmul.f32 %v2147, %v2289
  %v2319 = vmul.f32 %v2151, %v2289
  %v2320 = vmul.f32 %v2155, %v2289
  %v2321 = vmul.f32 %v2159, %v2289
  %v2322 = vmul.f32 %v2163, %v2289
  %v2323 = vmul.f32 %v2167, %v2289
  %v2324 = vmul.f32 %v2171, %v2289
  %v2325 = vmul.f32 %v2175, %v2289
  %v2326 = vmul.f32 %v2179, %v2289
  %v2327 = vmul.f32 %v2183, %v2289
  %v2328 = vmul.f32 %v2187, %v2289
  %v2329 = vmul.f32 %v2191, %v2289
  %v2330 = vmul.f32 %v2195, %v2289
  %v2331 = vmul.f32 %v2199, %v2289
  %v2332 = vmul.f32 %v2203, %v2289
  %v2333 = vmul.f32 %v2207, %v2289
  %v2334 = vmul.f32 %v2211, %v2289
  %v2335 = vmul.f32 %v2215, %v2289
  %v2336 = vmul.f32 %v2219, %v2289
  %v2337 = vmul.f32 %v2223, %v2289
  %v2338 = vmul.f32 %v2227, %v2289
  %v2339 = vmul.f32 %v2231, %v2289
  %v2340 = vmul.f32 %v2235, %v2289
  %v2341 = vmul.f32 %v2239, %v2289
  %v2342 = vmul.f32 %v2243, %v2289
  %v2343 = vmul.f32 %v2247, %v2289
  %v2344 = vmul.f32 %v2251, %v2289
  %v2345 = vmul.f32 %v2255, %v2289
  %v2346 = vmul.f32 %v2259, %v2289
  %v2347 = vmul.f32 %v2263, %v2289
  %v2348 = vmul.f32 %v2267, %v2289
  %v2349 = vmul.f32 %v2271, %v2289
  %v2350 = vmul.f32 %v2275, %v2289
  %v2351 = vmul.f32 %v2279, %v2289
  %v2352 = vmul.f32 %v2283, %v2289
  %v2353 = vmul.f32 %v2287, %v2289
  %v2354 = vadd.f32 %v1969, %v2290
  %v2355 = vadd.f32 %v1970, %v2291
  %v2356 = vadd.f32 %v1971, %v2292
  %v2357 = vadd.f32 %v1972, %v2293
  %v2358 = vadd.f32 %v1973, %v2294
  %v2359 = vadd.f32 %v1974, %v2295
  %v2360 = vadd.f32 %v1975, %v2296
  %v2361 = vadd.f32 %v1976, %v2297
  %v2362 = vadd.f32 %v1977, %v2298
  %v2363 = vadd.f32 %v1978, %v2299
  %v2364 = vadd.f32 %v1979, %v2300
  %v2365 = vadd.f32 %v1980, %v2301
  %v2366 = vadd.f32 %v1981, %v2302
  %v2367 = vadd.f32 %v1982, %v2303
  %v2368 = vadd.f32 %v1983, %v2304
  %v2369 = vadd.f32 %v1984, %v2305
  %v2370 = vadd.f32 %v1985, %v2306
  %v2371 = vadd.f32 %v1986, %v2307
  %v2372 = vadd.f32 %v1987, %v2308
  %v2373 = vadd.f32 %v1988, %v2309
  %v2374 = vadd.f32 %v1989, %v2310
  %v2375 = vadd.f32 %v1990, %v2311
  %v2376 = vadd.f32 %v1991, %v2312
  %v2377 = vadd.f32 %v1992, %v2313
  %v2378 = vadd.f32 %v1993, %v2314
  %v2379 = vadd.f32 %v1994, %v2315
  %v2380 = vadd.f32 %v1995, %v2316
  %v2381 = vadd.f32 %v1996, %v2317
  %v2382 = vadd.f32 %v1997, %v2318
  %v2383 = vadd.f32 %v1998, %v2319
  %v2384 = vadd.f32 %v1999, %v2320
  %v2385 = vadd.f32 %v2000, %v2321
  %v2386 = vadd.f32 %v2001, %v2322
  %v2387 = vadd.f32 %v2002, %v2323
  %v2388 = vadd.f32 %v2003, %v2324
  %v2389 = vadd.f32 %v2004, %v2325
  %v2390 = vadd.f32 %v2005, %v2326
  %v2391 = vadd.f32 %v2006, %v2327
  %v2392 = vadd.f32 %v2007, %v2328
  %v2393 = vadd.f32 %v2008, %v2329
  %v2394 = vadd.f32 %v2009, %v2330
  %v2395 = vadd.f32 %v2010, %v2331
  %v2396 = vadd.f32 %v2011, %v2332
  %v2397 = vadd.f32 %v2012, %v2333
  %v2398 = vadd.f32 %v2013, %v2334
  %v2399 = vadd.f32 %v2014, %v2335
  %v2400 = vadd.f32 %v2015, %v2336
  %v2401 = vadd.f32 %v2016, %v2337
  %v2402 = vadd.f32 %v2017, %v2338
  %v2403 = vadd.f32 %v2018, %v2339
  %v2404 = vadd.f32 %v2019, %v2340
  %v2405 = vadd.f32 %v2020, %v2341
  %v2406 = vadd.f32 %v2021, %v2342
  %v2407 = vadd.f32 %v2022, %v2343
  %v2408 = vadd.f32 %v2023, %v2344
  %v2409 = vadd.f32 %v2024, %v2345
  %v2410 = vadd.f32 %v2025, %v2346
  %v2411 = vadd.f32 %v2026, %v2347
  %v2412 = vadd.f32 %v2027, %v2348
  %v2413 = vadd.f32 %v2028, %v2349
  %v2414 = vadd.f32 %v2029, %v2350
  %v2415 = vadd.f32 %v2030, %v2351
  %v2416 = vadd.f32 %v2031, %v2352
  %v2417 = vadd.f32 %v2032, %v2353
  %v2418 = vpack.c.bf16 %v2354, %v2354
  %v2419 = vpack.c.bf16 %v2355, %v2355
  %v2420 = vpack.c.bf16 %v2356, %v2356
  %v2421 = vpack.c.bf16 %v2357, %v2357
  %v2422 = vpack.c.bf16 %v2358, %v2358
  %v2423 = vpack.c.bf16 %v2359, %v2359
  %v2424 = vpack.c.bf16 %v2360, %v2360
  %v2425 = vpack.c.bf16 %v2361, %v2361
  %v2426 = vpack.c.bf16 %v2362, %v2362
  %v2427 = vpack.c.bf16 %v2363, %v2363
  %v2428 = vpack.c.bf16 %v2364, %v2364
  %v2429 = vpack.c.bf16 %v2365, %v2365
  %v2430 = vpack.c.bf16 %v2366, %v2366
  %v2431 = vpack.c.bf16 %v2367, %v2367
  %v2432 = vpack.c.bf16 %v2368, %v2368
  %v2433 = vpack.c.bf16 %v2369, %v2369
  %v2434 = vpack.c.bf16 %v2370, %v2370
  %v2435 = vpack.c.bf16 %v2371, %v2371
  %v2436 = vpack.c.bf16 %v2372, %v2372
  %v2437 = vpack.c.bf16 %v2373, %v2373
  %v2438 = vpack.c.bf16 %v2374, %v2374
  %v2439 = vpack.c.bf16 %v2375, %v2375
  %v2440 = vpack.c.bf16 %v2376, %v2376
  %v2441 = vpack.c.bf16 %v2377, %v2377
  %v2442 = vpack.c.bf16 %v2378, %v2378
  %v2443 = vpack.c.bf16 %v2379, %v2379
  %v2444 = vpack.c.bf16 %v2380, %v2380
  %v2445 = vpack.c.bf16 %v2381, %v2381
  %v2446 = vpack.c.bf16 %v2382, %v2382
  %v2447 = vpack.c.bf16 %v2383, %v2383
  %v2448 = vpack.c.bf16 %v2384, %v2384
  %v2449 = vpack.c.bf16 %v2385, %v2385
  %v2450 = vpack.c.bf16 %v2386, %v2386
  %v2451 = vpack.c.bf16 %v2387, %v2387
  %v2452 = vpack.c.bf16 %v2388, %v2388
  %v2453 = vpack.c.bf16 %v2389, %v2389
  %v2454 = vpack.c.bf16 %v2390, %v2390
  %v2455 = vpack.c.bf16 %v2391, %v2391
  %v2456 = vpack.c.bf16 %v2392, %v2392
  %v2457 = vpack.c.bf16 %v2393, %v2393
  %v2458 = vpack.c.bf16 %v2394, %v2394
  %v2459 = vpack.c.bf16 %v2395, %v2395
  %v2460 = vpack.c.bf16 %v2396, %v2396
  %v2461 = vpack.c.bf16 %v2397, %v2397
  %v2462 = vpack.c.bf16 %v2398, %v2398
  %v2463 = vpack.c.bf16 %v2399, %v2399
  %v2464 = vpack.c.bf16 %v2400, %v2400
  %v2465 = vpack.c.bf16 %v2401, %v2401
  %v2466 = vpack.c.bf16 %v2402, %v2402
  %v2467 = vpack.c.bf16 %v2403, %v2403
  %v2468 = vpack.c.bf16 %v2404, %v2404
  %v2469 = vpack.c.bf16 %v2405, %v2405
  %v2470 = vpack.c.bf16 %v2406, %v2406
  %v2471 = vpack.c.bf16 %v2407, %v2407
  %v2472 = vpack.c.bf16 %v2408, %v2408
  %v2473 = vpack.c.bf16 %v2409, %v2409
  %v2474 = vpack.c.bf16 %v2410, %v2410
  %v2475 = vpack.c.bf16 %v2411, %v2411
  %v2476 = vpack.c.bf16 %v2412, %v2412
  %v2477 = vpack.c.bf16 %v2413, %v2413
  %v2478 = vpack.c.bf16 %v2414, %v2414
  %v2479 = vpack.c.bf16 %v2415, %v2415
  %v2480 = vpack.c.bf16 %v2416, %v2416
  %v2481 = vpack.c.bf16 %v2417, %v2417
  %2483 = vset.pattern.permute.xlu0 28
  %2484 = vperm.xlu0 %2483, %v2418
  %v2485 = vpop.permute.xlu0 %2484
  %v2488 = vunpack.c.l.s4 839922192
  %v2489 = vunpack.c.0.s8 %v2488
  %v2490 = vperm.slane %v2485, %v2489
  %2492 = vset.pattern.permute.xlu0 28
  %2493 = vperm.xlu0 %2492, %v2419
  %v2494 = vpop.permute.xlu0 %2493
  %v2497 = vunpack.c.l.s4 839922192
  %v2498 = vunpack.c.0.s8 %v2497
  %v2499 = vperm.slane %v2494, %v2498
  %2501 = vset.pattern.permute.xlu0 28
  %2502 = vperm.xlu0 %2501, %v2420
  %v2503 = vpop.permute.xlu0 %2502
  %v2506 = vunpack.c.l.s4 839922192
  %v2507 = vunpack.c.0.s8 %v2506
  %v2508 = vperm.slane %v2503, %v2507
  %2510 = vset.pattern.permute.xlu0 28
  %2511 = vperm.xlu0 %2510, %v2421
  %v2512 = vpop.permute.xlu0 %2511
  %v2515 = vunpack.c.l.s4 839922192
  %v2516 = vunpack.c.0.s8 %v2515
  %v2517 = vperm.slane %v2512, %v2516
  %2519 = vset.pattern.permute.xlu0 28
  %2520 = vperm.xlu0 %2519, %v2422
  %v2521 = vpop.permute.xlu0 %2520
  %v2524 = vunpack.c.l.s4 839922192
  %v2525 = vunpack.c.0.s8 %v2524
  %v2526 = vperm.slane %v2521, %v2525
  %2528 = vset.pattern.permute.xlu0 28
  %2529 = vperm.xlu0 %2528, %v2423
  %v2530 = vpop.permute.xlu0 %2529
  %v2533 = vunpack.c.l.s4 839922192
  %v2534 = vunpack.c.0.s8 %v2533
  %v2535 = vperm.slane %v2530, %v2534
  %2537 = vset.pattern.permute.xlu0 28
  %2538 = vperm.xlu0 %2537, %v2424
  %v2539 = vpop.permute.xlu0 %2538
  %v2542 = vunpack.c.l.s4 839922192
  %v2543 = vunpack.c.0.s8 %v2542
  %v2544 = vperm.slane %v2539, %v2543
  %2546 = vset.pattern.permute.xlu0 28
  %2547 = vperm.xlu0 %2546, %v2425
  %v2548 = vpop.permute.xlu0 %2547
  %v2551 = vunpack.c.l.s4 839922192
  %v2552 = vunpack.c.0.s8 %v2551
  %v2553 = vperm.slane %v2548, %v2552
  %2555 = vset.pattern.permute.xlu0 28
  %2556 = vperm.xlu0 %2555, %v2426
  %v2557 = vpop.permute.xlu0 %2556
  %v2560 = vunpack.c.l.s4 839922192
  %v2561 = vunpack.c.0.s8 %v2560
  %v2562 = vperm.slane %v2557, %v2561
  %2564 = vset.pattern.permute.xlu0 28
  %2565 = vperm.xlu0 %2564, %v2427
  %v2566 = vpop.permute.xlu0 %2565
  %v2569 = vunpack.c.l.s4 839922192
  %v2570 = vunpack.c.0.s8 %v2569
  %v2571 = vperm.slane %v2566, %v2570
  %2573 = vset.pattern.permute.xlu0 28
  %2574 = vperm.xlu0 %2573, %v2428
  %v2575 = vpop.permute.xlu0 %2574
  %v2578 = vunpack.c.l.s4 839922192
  %v2579 = vunpack.c.0.s8 %v2578
  %v2580 = vperm.slane %v2575, %v2579
  %2582 = vset.pattern.permute.xlu0 28
  %2583 = vperm.xlu0 %2582, %v2429
  %v2584 = vpop.permute.xlu0 %2583
  %v2587 = vunpack.c.l.s4 839922192
  %v2588 = vunpack.c.0.s8 %v2587
  %v2589 = vperm.slane %v2584, %v2588
  %2591 = vset.pattern.permute.xlu0 28
  %2592 = vperm.xlu0 %2591, %v2430
  %v2593 = vpop.permute.xlu0 %2592
  %v2596 = vunpack.c.l.s4 839922192
  %v2597 = vunpack.c.0.s8 %v2596
  %v2598 = vperm.slane %v2593, %v2597
  %2600 = vset.pattern.permute.xlu0 28
  %2601 = vperm.xlu0 %2600, %v2431
  %v2602 = vpop.permute.xlu0 %2601
  %v2605 = vunpack.c.l.s4 839922192
  %v2606 = vunpack.c.0.s8 %v2605
  %v2607 = vperm.slane %v2602, %v2606
  %2609 = vset.pattern.permute.xlu0 28
  %2610 = vperm.xlu0 %2609, %v2432
  %v2611 = vpop.permute.xlu0 %2610
  %v2614 = vunpack.c.l.s4 839922192
  %v2615 = vunpack.c.0.s8 %v2614
  %v2616 = vperm.slane %v2611, %v2615
  %2618 = vset.pattern.permute.xlu0 28
  %2619 = vperm.xlu0 %2618, %v2433
  %v2620 = vpop.permute.xlu0 %2619
  %v2623 = vunpack.c.l.s4 839922192
  %v2624 = vunpack.c.0.s8 %v2623
  %v2625 = vperm.slane %v2620, %v2624
  %2627 = vset.pattern.permute.xlu0 28
  %2628 = vperm.xlu0 %2627, %v2434
  %v2629 = vpop.permute.xlu0 %2628
  %v2632 = vunpack.c.l.s4 839922192
  %v2633 = vunpack.c.0.s8 %v2632
  %v2634 = vperm.slane %v2629, %v2633
  %2636 = vset.pattern.permute.xlu0 28
  %2637 = vperm.xlu0 %2636, %v2435
  %v2638 = vpop.permute.xlu0 %2637
  %v2641 = vunpack.c.l.s4 839922192
  %v2642 = vunpack.c.0.s8 %v2641
  %v2643 = vperm.slane %v2638, %v2642
  %2645 = vset.pattern.permute.xlu0 28
  %2646 = vperm.xlu0 %2645, %v2436
  %v2647 = vpop.permute.xlu0 %2646
  %v2650 = vunpack.c.l.s4 839922192
  %v2651 = vunpack.c.0.s8 %v2650
  %v2652 = vperm.slane %v2647, %v2651
  %2654 = vset.pattern.permute.xlu0 28
  %2655 = vperm.xlu0 %2654, %v2437
  %v2656 = vpop.permute.xlu0 %2655
  %v2659 = vunpack.c.l.s4 839922192
  %v2660 = vunpack.c.0.s8 %v2659
  %v2661 = vperm.slane %v2656, %v2660
  %2663 = vset.pattern.permute.xlu0 28
  %2664 = vperm.xlu0 %2663, %v2438
  %v2665 = vpop.permute.xlu0 %2664
  %v2668 = vunpack.c.l.s4 839922192
  %v2669 = vunpack.c.0.s8 %v2668
  %v2670 = vperm.slane %v2665, %v2669
  %2672 = vset.pattern.permute.xlu0 28
  %2673 = vperm.xlu0 %2672, %v2439
  %v2674 = vpop.permute.xlu0 %2673
  %v2677 = vunpack.c.l.s4 839922192
  %v2678 = vunpack.c.0.s8 %v2677
  %v2679 = vperm.slane %v2674, %v2678
  %2681 = vset.pattern.permute.xlu0 28
  %2682 = vperm.xlu0 %2681, %v2440
  %v2683 = vpop.permute.xlu0 %2682
  %v2686 = vunpack.c.l.s4 839922192
  %v2687 = vunpack.c.0.s8 %v2686
  %v2688 = vperm.slane %v2683, %v2687
  %2690 = vset.pattern.permute.xlu0 28
  %2691 = vperm.xlu0 %2690, %v2441
  %v2692 = vpop.permute.xlu0 %2691
  %v2695 = vunpack.c.l.s4 839922192
  %v2696 = vunpack.c.0.s8 %v2695
  %v2697 = vperm.slane %v2692, %v2696
  %2699 = vset.pattern.permute.xlu0 28
  %2700 = vperm.xlu0 %2699, %v2442
  %v2701 = vpop.permute.xlu0 %2700
  %v2704 = vunpack.c.l.s4 839922192
  %v2705 = vunpack.c.0.s8 %v2704
  %v2706 = vperm.slane %v2701, %v2705
  %2708 = vset.pattern.permute.xlu0 28
  %2709 = vperm.xlu0 %2708, %v2443
  %v2710 = vpop.permute.xlu0 %2709
  %v2713 = vunpack.c.l.s4 839922192
  %v2714 = vunpack.c.0.s8 %v2713
  %v2715 = vperm.slane %v2710, %v2714
  %2717 = vset.pattern.permute.xlu0 28
  %2718 = vperm.xlu0 %2717, %v2444
  %v2719 = vpop.permute.xlu0 %2718
  %v2722 = vunpack.c.l.s4 839922192
  %v2723 = vunpack.c.0.s8 %v2722
  %v2724 = vperm.slane %v2719, %v2723
  %2726 = vset.pattern.permute.xlu0 28
  %2727 = vperm.xlu0 %2726, %v2445
  %v2728 = vpop.permute.xlu0 %2727
  %v2731 = vunpack.c.l.s4 839922192
  %v2732 = vunpack.c.0.s8 %v2731
  %v2733 = vperm.slane %v2728, %v2732
  %2735 = vset.pattern.permute.xlu0 28
  %2736 = vperm.xlu0 %2735, %v2446
  %v2737 = vpop.permute.xlu0 %2736
  %v2740 = vunpack.c.l.s4 839922192
  %v2741 = vunpack.c.0.s8 %v2740
  %v2742 = vperm.slane %v2737, %v2741
  %2744 = vset.pattern.permute.xlu0 28
  %2745 = vperm.xlu0 %2744, %v2447
  %v2746 = vpop.permute.xlu0 %2745
  %v2749 = vunpack.c.l.s4 839922192
  %v2750 = vunpack.c.0.s8 %v2749
  %v2751 = vperm.slane %v2746, %v2750
  %2753 = vset.pattern.permute.xlu0 28
  %2754 = vperm.xlu0 %2753, %v2448
  %v2755 = vpop.permute.xlu0 %2754
  %v2758 = vunpack.c.l.s4 839922192
  %v2759 = vunpack.c.0.s8 %v2758
  %v2760 = vperm.slane %v2755, %v2759
  %2762 = vset.pattern.permute.xlu0 28
  %2763 = vperm.xlu0 %2762, %v2449
  %v2764 = vpop.permute.xlu0 %2763
  %v2767 = vunpack.c.l.s4 839922192
  %v2768 = vunpack.c.0.s8 %v2767
  %v2769 = vperm.slane %v2764, %v2768
  %2771 = vset.pattern.permute.xlu0 28
  %2772 = vperm.xlu0 %2771, %v2450
  %v2773 = vpop.permute.xlu0 %2772
  %v2776 = vunpack.c.l.s4 839922192
  %v2777 = vunpack.c.0.s8 %v2776
  %v2778 = vperm.slane %v2773, %v2777
  %2780 = vset.pattern.permute.xlu0 28
  %2781 = vperm.xlu0 %2780, %v2451
  %v2782 = vpop.permute.xlu0 %2781
  %v2785 = vunpack.c.l.s4 839922192
  %v2786 = vunpack.c.0.s8 %v2785
  %v2787 = vperm.slane %v2782, %v2786
  %2789 = vset.pattern.permute.xlu0 28
  %2790 = vperm.xlu0 %2789, %v2452
  %v2791 = vpop.permute.xlu0 %2790
  %v2794 = vunpack.c.l.s4 839922192
  %v2795 = vunpack.c.0.s8 %v2794
  %v2796 = vperm.slane %v2791, %v2795
  %2798 = vset.pattern.permute.xlu0 28
  %2799 = vperm.xlu0 %2798, %v2453
  %v2800 = vpop.permute.xlu0 %2799
  %v2803 = vunpack.c.l.s4 839922192
  %v2804 = vunpack.c.0.s8 %v2803
  %v2805 = vperm.slane %v2800, %v2804
  %2807 = vset.pattern.permute.xlu0 28
  %2808 = vperm.xlu0 %2807, %v2454
  %v2809 = vpop.permute.xlu0 %2808
  %v2812 = vunpack.c.l.s4 839922192
  %v2813 = vunpack.c.0.s8 %v2812
  %v2814 = vperm.slane %v2809, %v2813
  %2816 = vset.pattern.permute.xlu0 28
  %2817 = vperm.xlu0 %2816, %v2455
  %v2818 = vpop.permute.xlu0 %2817
  %v2821 = vunpack.c.l.s4 839922192
  %v2822 = vunpack.c.0.s8 %v2821
  %v2823 = vperm.slane %v2818, %v2822
  %2825 = vset.pattern.permute.xlu0 28
  %2826 = vperm.xlu0 %2825, %v2456
  %v2827 = vpop.permute.xlu0 %2826
  %v2830 = vunpack.c.l.s4 839922192
  %v2831 = vunpack.c.0.s8 %v2830
  %v2832 = vperm.slane %v2827, %v2831
  %2834 = vset.pattern.permute.xlu0 28
  %2835 = vperm.xlu0 %2834, %v2457
  %v2836 = vpop.permute.xlu0 %2835
  %v2839 = vunpack.c.l.s4 839922192
  %v2840 = vunpack.c.0.s8 %v2839
  %v2841 = vperm.slane %v2836, %v2840
  %2843 = vset.pattern.permute.xlu0 28
  %2844 = vperm.xlu0 %2843, %v2458
  %v2845 = vpop.permute.xlu0 %2844
  %v2848 = vunpack.c.l.s4 839922192
  %v2849 = vunpack.c.0.s8 %v2848
  %v2850 = vperm.slane %v2845, %v2849
  %2852 = vset.pattern.permute.xlu0 28
  %2853 = vperm.xlu0 %2852, %v2459
  %v2854 = vpop.permute.xlu0 %2853
  %v2857 = vunpack.c.l.s4 839922192
  %v2858 = vunpack.c.0.s8 %v2857
  %v2859 = vperm.slane %v2854, %v2858
  %2861 = vset.pattern.permute.xlu0 28
  %2862 = vperm.xlu0 %2861, %v2460
  %v2863 = vpop.permute.xlu0 %2862
  %v2866 = vunpack.c.l.s4 839922192
  %v2867 = vunpack.c.0.s8 %v2866
  %v2868 = vperm.slane %v2863, %v2867
  %2870 = vset.pattern.permute.xlu0 28
  %2871 = vperm.xlu0 %2870, %v2461
  %v2872 = vpop.permute.xlu0 %2871
  %v2875 = vunpack.c.l.s4 839922192
  %v2876 = vunpack.c.0.s8 %v2875
  %v2877 = vperm.slane %v2872, %v2876
  %2879 = vset.pattern.permute.xlu0 28
  %2880 = vperm.xlu0 %2879, %v2462
  %v2881 = vpop.permute.xlu0 %2880
  %v2884 = vunpack.c.l.s4 839922192
  %v2885 = vunpack.c.0.s8 %v2884
  %v2886 = vperm.slane %v2881, %v2885
  %2888 = vset.pattern.permute.xlu0 28
  %2889 = vperm.xlu0 %2888, %v2463
  %v2890 = vpop.permute.xlu0 %2889
  %v2893 = vunpack.c.l.s4 839922192
  %v2894 = vunpack.c.0.s8 %v2893
  %v2895 = vperm.slane %v2890, %v2894
  %2897 = vset.pattern.permute.xlu0 28
  %2898 = vperm.xlu0 %2897, %v2464
  %v2899 = vpop.permute.xlu0 %2898
  %v2902 = vunpack.c.l.s4 839922192
  %v2903 = vunpack.c.0.s8 %v2902
  %v2904 = vperm.slane %v2899, %v2903
  %2906 = vset.pattern.permute.xlu0 28
  %2907 = vperm.xlu0 %2906, %v2465
  %v2908 = vpop.permute.xlu0 %2907
  %v2911 = vunpack.c.l.s4 839922192
  %v2912 = vunpack.c.0.s8 %v2911
  %v2913 = vperm.slane %v2908, %v2912
  %2915 = vset.pattern.permute.xlu0 28
  %2916 = vperm.xlu0 %2915, %v2466
  %v2917 = vpop.permute.xlu0 %2916
  %v2920 = vunpack.c.l.s4 839922192
  %v2921 = vunpack.c.0.s8 %v2920
  %v2922 = vperm.slane %v2917, %v2921
  %2924 = vset.pattern.permute.xlu0 28
  %2925 = vperm.xlu0 %2924, %v2467
  %v2926 = vpop.permute.xlu0 %2925
  %v2929 = vunpack.c.l.s4 839922192
  %v2930 = vunpack.c.0.s8 %v2929
  %v2931 = vperm.slane %v2926, %v2930
  %2933 = vset.pattern.permute.xlu0 28
  %2934 = vperm.xlu0 %2933, %v2468
  %v2935 = vpop.permute.xlu0 %2934
  %v2938 = vunpack.c.l.s4 839922192
  %v2939 = vunpack.c.0.s8 %v2938
  %v2940 = vperm.slane %v2935, %v2939
  %2942 = vset.pattern.permute.xlu0 28
  %2943 = vperm.xlu0 %2942, %v2469
  %v2944 = vpop.permute.xlu0 %2943
  %v2947 = vunpack.c.l.s4 839922192
  %v2948 = vunpack.c.0.s8 %v2947
  %v2949 = vperm.slane %v2944, %v2948
  %2951 = vset.pattern.permute.xlu0 28
  %2952 = vperm.xlu0 %2951, %v2470
  %v2953 = vpop.permute.xlu0 %2952
  %v2956 = vunpack.c.l.s4 839922192
  %v2957 = vunpack.c.0.s8 %v2956
  %v2958 = vperm.slane %v2953, %v2957
  %2960 = vset.pattern.permute.xlu0 28
  %2961 = vperm.xlu0 %2960, %v2471
  %v2962 = vpop.permute.xlu0 %2961
  %v2965 = vunpack.c.l.s4 839922192
  %v2966 = vunpack.c.0.s8 %v2965
  %v2967 = vperm.slane %v2962, %v2966
  %2969 = vset.pattern.permute.xlu0 28
  %2970 = vperm.xlu0 %2969, %v2472
  %v2971 = vpop.permute.xlu0 %2970
  %v2974 = vunpack.c.l.s4 839922192
  %v2975 = vunpack.c.0.s8 %v2974
  %v2976 = vperm.slane %v2971, %v2975
  %2978 = vset.pattern.permute.xlu0 28
  %2979 = vperm.xlu0 %2978, %v2473
  %v2980 = vpop.permute.xlu0 %2979
  %v2983 = vunpack.c.l.s4 839922192
  %v2984 = vunpack.c.0.s8 %v2983
  %v2985 = vperm.slane %v2980, %v2984
  %2987 = vset.pattern.permute.xlu0 28
  %2988 = vperm.xlu0 %2987, %v2474
  %v2989 = vpop.permute.xlu0 %2988
  %v2992 = vunpack.c.l.s4 839922192
  %v2993 = vunpack.c.0.s8 %v2992
  %v2994 = vperm.slane %v2989, %v2993
  %2996 = vset.pattern.permute.xlu0 28
  %2997 = vperm.xlu0 %2996, %v2475
  %v2998 = vpop.permute.xlu0 %2997
  %v3001 = vunpack.c.l.s4 839922192
  %v3002 = vunpack.c.0.s8 %v3001
  %v3003 = vperm.slane %v2998, %v3002
  %3005 = vset.pattern.permute.xlu0 28
  %3006 = vperm.xlu0 %3005, %v2476
  %v3007 = vpop.permute.xlu0 %3006
  %v3010 = vunpack.c.l.s4 839922192
  %v3011 = vunpack.c.0.s8 %v3010
  %v3012 = vperm.slane %v3007, %v3011
  %3014 = vset.pattern.permute.xlu0 28
  %3015 = vperm.xlu0 %3014, %v2477
  %v3016 = vpop.permute.xlu0 %3015
  %v3019 = vunpack.c.l.s4 839922192
  %v3020 = vunpack.c.0.s8 %v3019
  %v3021 = vperm.slane %v3016, %v3020
  %3023 = vset.pattern.permute.xlu0 28
  %3024 = vperm.xlu0 %3023, %v2478
  %v3025 = vpop.permute.xlu0 %3024
  %v3028 = vunpack.c.l.s4 839922192
  %v3029 = vunpack.c.0.s8 %v3028
  %v3030 = vperm.slane %v3025, %v3029
  %3032 = vset.pattern.permute.xlu0 28
  %3033 = vperm.xlu0 %3032, %v2479
  %v3034 = vpop.permute.xlu0 %3033
  %v3037 = vunpack.c.l.s4 839922192
  %v3038 = vunpack.c.0.s8 %v3037
  %v3039 = vperm.slane %v3034, %v3038
  %3041 = vset.pattern.permute.xlu0 28
  %3042 = vperm.xlu0 %3041, %v2480
  %v3043 = vpop.permute.xlu0 %3042
  %v3046 = vunpack.c.l.s4 839922192
  %v3047 = vunpack.c.0.s8 %v3046
  %v3048 = vperm.slane %v3043, %v3047
  %3050 = vset.pattern.permute.xlu0 28
  %3051 = vperm.xlu0 %3050, %v2481
  %v3052 = vpop.permute.xlu0 %3051
  %v3055 = vunpack.c.l.s4 839922192
  %v3056 = vunpack.c.0.s8 %v3055
  %v3057 = vperm.slane %v3052, %v3056
  %v3058 = vunpack.c.l.bf16 %v1519
  %v3059 = vunpack.c.h.bf16 %v1519
  %v3060 = vunpack.c.l.bf16 %v1520
  %v3061 = vunpack.c.h.bf16 %v1520
  %v3062 = vunpack.c.l.bf16 %v1521
  %v3063 = vunpack.c.h.bf16 %v1521
  %v3064 = vunpack.c.l.bf16 %v1522
  %v3065 = vunpack.c.h.bf16 %v1522
  %v3066 = vunpack.c.l.bf16 %v1523
  %v3067 = vunpack.c.h.bf16 %v1523
  %v3068 = vunpack.c.l.bf16 %v1524
  %v3069 = vunpack.c.h.bf16 %v1524
  %v3070 = vunpack.c.l.bf16 %v1525
  %v3071 = vunpack.c.h.bf16 %v1525
  %v3072 = vunpack.c.l.bf16 %v1526
  %v3073 = vunpack.c.h.bf16 %v1526
  %v3074 = vunpack.c.l.bf16 %v1527
  %v3075 = vunpack.c.h.bf16 %v1527
  %v3076 = vunpack.c.l.bf16 %v1528
  %v3077 = vunpack.c.h.bf16 %v1528
  %v3078 = vunpack.c.l.bf16 %v1529
  %v3079 = vunpack.c.h.bf16 %v1529
  %v3080 = vunpack.c.l.bf16 %v1530
  %v3081 = vunpack.c.h.bf16 %v1530
  %v3082 = vunpack.c.l.bf16 %v1531
  %v3083 = vunpack.c.h.bf16 %v1531
  %v3084 = vunpack.c.l.bf16 %v1532
  %v3085 = vunpack.c.h.bf16 %v1532
  %v3086 = vunpack.c.l.bf16 %v1533
  %v3087 = vunpack.c.h.bf16 %v1533
  %v3088 = vunpack.c.l.bf16 %v1534
  %v3089 = vunpack.c.h.bf16 %v1534
  %v3090 = vunpack.c.l.bf16 %v1535
  %v3091 = vunpack.c.h.bf16 %v1535
  %v3092 = vunpack.c.l.bf16 %v1536
  %v3093 = vunpack.c.h.bf16 %v1536
  %v3094 = vunpack.c.l.bf16 %v1537
  %v3095 = vunpack.c.h.bf16 %v1537
  %v3096 = vunpack.c.l.bf16 %v1538
  %v3097 = vunpack.c.h.bf16 %v1538
  %v3098 = vunpack.c.l.bf16 %v1539
  %v3099 = vunpack.c.h.bf16 %v1539
  %v3100 = vunpack.c.l.bf16 %v1540
  %v3101 = vunpack.c.h.bf16 %v1540
  %v3102 = vunpack.c.l.bf16 %v1541
  %v3103 = vunpack.c.h.bf16 %v1541
  %v3104 = vunpack.c.l.bf16 %v1542
  %v3105 = vunpack.c.h.bf16 %v1542
  %v3106 = vunpack.c.l.bf16 %v1543
  %v3107 = vunpack.c.h.bf16 %v1543
  %v3108 = vunpack.c.l.bf16 %v1544
  %v3109 = vunpack.c.h.bf16 %v1544
  %v3110 = vunpack.c.l.bf16 %v1545
  %v3111 = vunpack.c.h.bf16 %v1545
  %v3112 = vunpack.c.l.bf16 %v1546
  %v3113 = vunpack.c.h.bf16 %v1546
  %v3114 = vunpack.c.l.bf16 %v1547
  %v3115 = vunpack.c.h.bf16 %v1547
  %v3116 = vunpack.c.l.bf16 %v1548
  %v3117 = vunpack.c.h.bf16 %v1548
  %v3118 = vunpack.c.l.bf16 %v1549
  %v3119 = vunpack.c.h.bf16 %v1549
  %v3120 = vunpack.c.l.bf16 %v1550
  %v3121 = vunpack.c.h.bf16 %v1550
  %v3122 = vunpack.c.l.bf16 %v1551
  %v3123 = vunpack.c.h.bf16 %v1551
  %v3124 = vunpack.c.l.bf16 %v1552
  %v3125 = vunpack.c.h.bf16 %v1552
  %v3126 = vunpack.c.l.bf16 %v1553
  %v3127 = vunpack.c.h.bf16 %v1553
  %v3128 = vunpack.c.l.bf16 %v1554
  %v3129 = vunpack.c.h.bf16 %v1554
  %v3130 = vunpack.c.l.bf16 %v1555
  %v3131 = vunpack.c.h.bf16 %v1555
  %v3132 = vunpack.c.l.bf16 %v1556
  %v3133 = vunpack.c.h.bf16 %v1556
  %v3134 = vunpack.c.l.bf16 %v1557
  %v3135 = vunpack.c.h.bf16 %v1557
  %v3136 = vunpack.c.l.bf16 %v1558
  %v3137 = vunpack.c.h.bf16 %v1558
  %v3138 = vunpack.c.l.bf16 %v1559
  %v3139 = vunpack.c.h.bf16 %v1559
  %v3140 = vunpack.c.l.bf16 %v1560
  %v3141 = vunpack.c.h.bf16 %v1560
  %v3142 = vunpack.c.l.bf16 %v1561
  %v3143 = vunpack.c.h.bf16 %v1561
  %v3144 = vunpack.c.l.bf16 %v1562
  %v3145 = vunpack.c.h.bf16 %v1562
  %v3146 = vunpack.c.l.bf16 %v1563
  %v3147 = vunpack.c.h.bf16 %v1563
  %v3148 = vunpack.c.l.bf16 %v1564
  %v3149 = vunpack.c.h.bf16 %v1564
  %v3150 = vunpack.c.l.bf16 %v1565
  %v3151 = vunpack.c.h.bf16 %v1565
  %v3152 = vunpack.c.l.bf16 %v1566
  %v3153 = vunpack.c.h.bf16 %v1566
  %v3154 = vunpack.c.l.bf16 %v1567
  %v3155 = vunpack.c.h.bf16 %v1567
  %v3156 = vunpack.c.l.bf16 %v1568
  %v3157 = vunpack.c.h.bf16 %v1568
  %v3158 = vunpack.c.l.bf16 %v1569
  %v3159 = vunpack.c.h.bf16 %v1569
  %v3160 = vunpack.c.l.bf16 %v1570
  %v3161 = vunpack.c.h.bf16 %v1570
  %v3162 = vunpack.c.l.bf16 %v1571
  %v3163 = vunpack.c.h.bf16 %v1571
  %v3164 = vunpack.c.l.bf16 %v1572
  %v3165 = vunpack.c.h.bf16 %v1572
  %v3166 = vunpack.c.l.bf16 %v1573
  %v3167 = vunpack.c.h.bf16 %v1573
  %v3168 = vunpack.c.l.bf16 %v1574
  %v3169 = vunpack.c.h.bf16 %v1574
  %v3170 = vunpack.c.l.bf16 %v1575
  %v3171 = vunpack.c.h.bf16 %v1575
  %v3172 = vunpack.c.l.bf16 %v1576
  %v3173 = vunpack.c.h.bf16 %v1576
  %v3174 = vunpack.c.l.bf16 %v1577
  %v3175 = vunpack.c.h.bf16 %v1577
  %v3176 = vunpack.c.l.bf16 %v1578
  %v3177 = vunpack.c.h.bf16 %v1578
  %v3178 = vunpack.c.l.bf16 %v1579
  %v3179 = vunpack.c.h.bf16 %v1579
  %v3180 = vunpack.c.l.bf16 %v1580
  %v3181 = vunpack.c.h.bf16 %v1580
  %v3182 = vunpack.c.l.bf16 %v1581
  %v3183 = vunpack.c.h.bf16 %v1581
  %v3184 = vunpack.c.l.bf16 %v1582
  %v3185 = vunpack.c.h.bf16 %v1582
  %v3186 = vunpack.c.l.bf16 %v2490
  %v3187 = vunpack.c.l.bf16 %v2499
  %v3188 = vunpack.c.l.bf16 %v2508
  %v3189 = vunpack.c.l.bf16 %v2517
  %v3190 = vunpack.c.l.bf16 %v2526
  %v3191 = vunpack.c.l.bf16 %v2535
  %v3192 = vunpack.c.l.bf16 %v2544
  %v3193 = vunpack.c.l.bf16 %v2553
  %v3194 = vunpack.c.l.bf16 %v2562
  %v3195 = vunpack.c.l.bf16 %v2571
  %v3196 = vunpack.c.l.bf16 %v2580
  %v3197 = vunpack.c.l.bf16 %v2589
  %v3198 = vunpack.c.l.bf16 %v2598
  %v3199 = vunpack.c.l.bf16 %v2607
  %v3200 = vunpack.c.l.bf16 %v2616
  %v3201 = vunpack.c.l.bf16 %v2625
  %v3202 = vunpack.c.l.bf16 %v2634
  %v3203 = vunpack.c.l.bf16 %v2643
  %v3204 = vunpack.c.l.bf16 %v2652
  %v3205 = vunpack.c.l.bf16 %v2661
  %v3206 = vunpack.c.l.bf16 %v2670
  %v3207 = vunpack.c.l.bf16 %v2679
  %v3208 = vunpack.c.l.bf16 %v2688
  %v3209 = vunpack.c.l.bf16 %v2697
  %v3210 = vunpack.c.l.bf16 %v2706
  %v3211 = vunpack.c.l.bf16 %v2715
  %v3212 = vunpack.c.l.bf16 %v2724
  %v3213 = vunpack.c.l.bf16 %v2733
  %v3214 = vunpack.c.l.bf16 %v2742
  %v3215 = vunpack.c.l.bf16 %v2751
  %v3216 = vunpack.c.l.bf16 %v2760
  %v3217 = vunpack.c.l.bf16 %v2769
  %v3218 = vunpack.c.l.bf16 %v2778
  %v3219 = vunpack.c.l.bf16 %v2787
  %v3220 = vunpack.c.l.bf16 %v2796
  %v3221 = vunpack.c.l.bf16 %v2805
  %v3222 = vunpack.c.l.bf16 %v2814
  %v3223 = vunpack.c.l.bf16 %v2823
  %v3224 = vunpack.c.l.bf16 %v2832
  %v3225 = vunpack.c.l.bf16 %v2841
  %v3226 = vunpack.c.l.bf16 %v2850
  %v3227 = vunpack.c.l.bf16 %v2859
  %v3228 = vunpack.c.l.bf16 %v2868
  %v3229 = vunpack.c.l.bf16 %v2877
  %v3230 = vunpack.c.l.bf16 %v2886
  %v3231 = vunpack.c.l.bf16 %v2895
  %v3232 = vunpack.c.l.bf16 %v2904
  %v3233 = vunpack.c.l.bf16 %v2913
  %v3234 = vunpack.c.l.bf16 %v2922
  %v3235 = vunpack.c.l.bf16 %v2931
  %v3236 = vunpack.c.l.bf16 %v2940
  %v3237 = vunpack.c.l.bf16 %v2949
  %v3238 = vunpack.c.l.bf16 %v2958
  %v3239 = vunpack.c.l.bf16 %v2967
  %v3240 = vunpack.c.l.bf16 %v2976
  %v3241 = vunpack.c.l.bf16 %v2985
  %v3242 = vunpack.c.l.bf16 %v2994
  %v3243 = vunpack.c.l.bf16 %v3003
  %v3244 = vunpack.c.l.bf16 %v3012
  %v3245 = vunpack.c.l.bf16 %v3021
  %v3246 = vunpack.c.l.bf16 %v3030
  %v3247 = vunpack.c.l.bf16 %v3039
  %v3248 = vunpack.c.l.bf16 %v3048
  %v3249 = vunpack.c.l.bf16 %v3057
  %v3250 = vadd.f32 %v3058, %v3186
  %v3251 = vadd.f32 %v3059, %v3186
  %v3252 = vadd.f32 %v3060, %v3187
  %v3253 = vadd.f32 %v3061, %v3187
  %v3254 = vadd.f32 %v3062, %v3188
  %v3255 = vadd.f32 %v3063, %v3188
  %v3256 = vadd.f32 %v3064, %v3189
  %v3257 = vadd.f32 %v3065, %v3189
  %v3258 = vadd.f32 %v3066, %v3190
  %v3259 = vadd.f32 %v3067, %v3190
  %v3260 = vadd.f32 %v3068, %v3191
  %v3261 = vadd.f32 %v3069, %v3191
  %v3262 = vadd.f32 %v3070, %v3192
  %v3263 = vadd.f32 %v3071, %v3192
  %v3264 = vadd.f32 %v3072, %v3193
  %v3265 = vadd.f32 %v3073, %v3193
  %v3266 = vadd.f32 %v3074, %v3194
  %v3267 = vadd.f32 %v3075, %v3194
  %v3268 = vadd.f32 %v3076, %v3195
  %v3269 = vadd.f32 %v3077, %v3195
  %v3270 = vadd.f32 %v3078, %v3196
  %v3271 = vadd.f32 %v3079, %v3196
  %v3272 = vadd.f32 %v3080, %v3197
  %v3273 = vadd.f32 %v3081, %v3197
  %v3274 = vadd.f32 %v3082, %v3198
  %v3275 = vadd.f32 %v3083, %v3198
  %v3276 = vadd.f32 %v3084, %v3199
  %v3277 = vadd.f32 %v3085, %v3199
  %v3278 = vadd.f32 %v3086, %v3200
  %v3279 = vadd.f32 %v3087, %v3200
  %v3280 = vadd.f32 %v3088, %v3201
  %v3281 = vadd.f32 %v3089, %v3201
  %v3282 = vadd.f32 %v3090, %v3202
  %v3283 = vadd.f32 %v3091, %v3202
  %v3284 = vadd.f32 %v3092, %v3203
  %v3285 = vadd.f32 %v3093, %v3203
  %v3286 = vadd.f32 %v3094, %v3204
  %v3287 = vadd.f32 %v3095, %v3204
  %v3288 = vadd.f32 %v3096, %v3205
  %v3289 = vadd.f32 %v3097, %v3205
  %v3290 = vadd.f32 %v3098, %v3206
  %v3291 = vadd.f32 %v3099, %v3206
  %v3292 = vadd.f32 %v3100, %v3207
  %v3293 = vadd.f32 %v3101, %v3207
  %v3294 = vadd.f32 %v3102, %v3208
  %v3295 = vadd.f32 %v3103, %v3208
  %v3296 = vadd.f32 %v3104, %v3209
  %v3297 = vadd.f32 %v3105, %v3209
  %v3298 = vadd.f32 %v3106, %v3210
  %v3299 = vadd.f32 %v3107, %v3210
  %v3300 = vadd.f32 %v3108, %v3211
  %v3301 = vadd.f32 %v3109, %v3211
  %v3302 = vadd.f32 %v3110, %v3212
  %v3303 = vadd.f32 %v3111, %v3212
  %v3304 = vadd.f32 %v3112, %v3213
  %v3305 = vadd.f32 %v3113, %v3213
  %v3306 = vadd.f32 %v3114, %v3214
  %v3307 = vadd.f32 %v3115, %v3214
  %v3308 = vadd.f32 %v3116, %v3215
  %v3309 = vadd.f32 %v3117, %v3215
  %v3310 = vadd.f32 %v3118, %v3216
  %v3311 = vadd.f32 %v3119, %v3216
  %v3312 = vadd.f32 %v3120, %v3217
  %v3313 = vadd.f32 %v3121, %v3217
  %v3314 = vadd.f32 %v3122, %v3218
  %v3315 = vadd.f32 %v3123, %v3218
  %v3316 = vadd.f32 %v3124, %v3219
  %v3317 = vadd.f32 %v3125, %v3219
  %v3318 = vadd.f32 %v3126, %v3220
  %v3319 = vadd.f32 %v3127, %v3220
  %v3320 = vadd.f32 %v3128, %v3221
  %v3321 = vadd.f32 %v3129, %v3221
  %v3322 = vadd.f32 %v3130, %v3222
  %v3323 = vadd.f32 %v3131, %v3222
  %v3324 = vadd.f32 %v3132, %v3223
  %v3325 = vadd.f32 %v3133, %v3223
  %v3326 = vadd.f32 %v3134, %v3224
  %v3327 = vadd.f32 %v3135, %v3224
  %v3328 = vadd.f32 %v3136, %v3225
  %v3329 = vadd.f32 %v3137, %v3225
  %v3330 = vadd.f32 %v3138, %v3226
  %v3331 = vadd.f32 %v3139, %v3226
  %v3332 = vadd.f32 %v3140, %v3227
  %v3333 = vadd.f32 %v3141, %v3227
  %v3334 = vadd.f32 %v3142, %v3228
  %v3335 = vadd.f32 %v3143, %v3228
  %v3336 = vadd.f32 %v3144, %v3229
  %v3337 = vadd.f32 %v3145, %v3229
  %v3338 = vadd.f32 %v3146, %v3230
  %v3339 = vadd.f32 %v3147, %v3230
  %v3340 = vadd.f32 %v3148, %v3231
  %v3341 = vadd.f32 %v3149, %v3231
  %v3342 = vadd.f32 %v3150, %v3232
  %v3343 = vadd.f32 %v3151, %v3232
  %v3344 = vadd.f32 %v3152, %v3233
  %v3345 = vadd.f32 %v3153, %v3233
  %v3346 = vadd.f32 %v3154, %v3234
  %v3347 = vadd.f32 %v3155, %v3234
  %v3348 = vadd.f32 %v3156, %v3235
  %v3349 = vadd.f32 %v3157, %v3235
  %v3350 = vadd.f32 %v3158, %v3236
  %v3351 = vadd.f32 %v3159, %v3236
  %v3352 = vadd.f32 %v3160, %v3237
  %v3353 = vadd.f32 %v3161, %v3237
  %v3354 = vadd.f32 %v3162, %v3238
  %v3355 = vadd.f32 %v3163, %v3238
  %v3356 = vadd.f32 %v3164, %v3239
  %v3357 = vadd.f32 %v3165, %v3239
  %v3358 = vadd.f32 %v3166, %v3240
  %v3359 = vadd.f32 %v3167, %v3240
  %v3360 = vadd.f32 %v3168, %v3241
  %v3361 = vadd.f32 %v3169, %v3241
  %v3362 = vadd.f32 %v3170, %v3242
  %v3363 = vadd.f32 %v3171, %v3242
  %v3364 = vadd.f32 %v3172, %v3243
  %v3365 = vadd.f32 %v3173, %v3243
  %v3366 = vadd.f32 %v3174, %v3244
  %v3367 = vadd.f32 %v3175, %v3244
  %v3368 = vadd.f32 %v3176, %v3245
  %v3369 = vadd.f32 %v3177, %v3245
  %v3370 = vadd.f32 %v3178, %v3246
  %v3371 = vadd.f32 %v3179, %v3246
  %v3372 = vadd.f32 %v3180, %v3247
  %v3373 = vadd.f32 %v3181, %v3247
  %v3374 = vadd.f32 %v3182, %v3248
  %v3375 = vadd.f32 %v3183, %v3248
  %v3376 = vadd.f32 %v3184, %v3249
  %v3377 = vadd.f32 %v3185, %v3249
  %v3378 = vpack.c.bf16 %v3251, %v3250
  %v3379 = vpack.c.bf16 %v3253, %v3252
  %v3380 = vpack.c.bf16 %v3255, %v3254
  %v3381 = vpack.c.bf16 %v3257, %v3256
  %v3382 = vpack.c.bf16 %v3259, %v3258
  %v3383 = vpack.c.bf16 %v3261, %v3260
  %v3384 = vpack.c.bf16 %v3263, %v3262
  %v3385 = vpack.c.bf16 %v3265, %v3264
  %v3386 = vpack.c.bf16 %v3267, %v3266
  %v3387 = vpack.c.bf16 %v3269, %v3268
  %v3388 = vpack.c.bf16 %v3271, %v3270
  %v3389 = vpack.c.bf16 %v3273, %v3272
  %v3390 = vpack.c.bf16 %v3275, %v3274
  %v3391 = vpack.c.bf16 %v3277, %v3276
  %v3392 = vpack.c.bf16 %v3279, %v3278
  %v3393 = vpack.c.bf16 %v3281, %v3280
  %v3394 = vpack.c.bf16 %v3283, %v3282
  %v3395 = vpack.c.bf16 %v3285, %v3284
  %v3396 = vpack.c.bf16 %v3287, %v3286
  %v3397 = vpack.c.bf16 %v3289, %v3288
  %v3398 = vpack.c.bf16 %v3291, %v3290
  %v3399 = vpack.c.bf16 %v3293, %v3292
  %v3400 = vpack.c.bf16 %v3295, %v3294
  %v3401 = vpack.c.bf16 %v3297, %v3296
  %v3402 = vpack.c.bf16 %v3299, %v3298
  %v3403 = vpack.c.bf16 %v3301, %v3300
  %v3404 = vpack.c.bf16 %v3303, %v3302
  %v3405 = vpack.c.bf16 %v3305, %v3304
  %v3406 = vpack.c.bf16 %v3307, %v3306
  %v3407 = vpack.c.bf16 %v3309, %v3308
  %v3408 = vpack.c.bf16 %v3311, %v3310
  %v3409 = vpack.c.bf16 %v3313, %v3312
  %v3410 = vpack.c.bf16 %v3315, %v3314
  %v3411 = vpack.c.bf16 %v3317, %v3316
  %v3412 = vpack.c.bf16 %v3319, %v3318
  %v3413 = vpack.c.bf16 %v3321, %v3320
  %v3414 = vpack.c.bf16 %v3323, %v3322
  %v3415 = vpack.c.bf16 %v3325, %v3324
  %v3416 = vpack.c.bf16 %v3327, %v3326
  %v3417 = vpack.c.bf16 %v3329, %v3328
  %v3418 = vpack.c.bf16 %v3331, %v3330
  %v3419 = vpack.c.bf16 %v3333, %v3332
  %v3420 = vpack.c.bf16 %v3335, %v3334
  %v3421 = vpack.c.bf16 %v3337, %v3336
  %v3422 = vpack.c.bf16 %v3339, %v3338
  %v3423 = vpack.c.bf16 %v3341, %v3340
  %v3424 = vpack.c.bf16 %v3343, %v3342
  %v3425 = vpack.c.bf16 %v3345, %v3344
  %v3426 = vpack.c.bf16 %v3347, %v3346
  %v3427 = vpack.c.bf16 %v3349, %v3348
  %v3428 = vpack.c.bf16 %v3351, %v3350
  %v3429 = vpack.c.bf16 %v3353, %v3352
  %v3430 = vpack.c.bf16 %v3355, %v3354
  %v3431 = vpack.c.bf16 %v3357, %v3356
  %v3432 = vpack.c.bf16 %v3359, %v3358
  %v3433 = vpack.c.bf16 %v3361, %v3360
  %v3434 = vpack.c.bf16 %v3363, %v3362
  %v3435 = vpack.c.bf16 %v3365, %v3364
  %v3436 = vpack.c.bf16 %v3367, %v3366
  %v3437 = vpack.c.bf16 %v3369, %v3368
  %v3438 = vpack.c.bf16 %v3371, %v3370
  %v3439 = vpack.c.bf16 %v3373, %v3372
  %v3440 = vpack.c.bf16 %v3375, %v3374
  %v3441 = vpack.c.bf16 %v3377, %v3376
  %v3442 = vunpack.c.l.bf16 %v3378
  %v3443 = vunpack.c.h.bf16 %v3378
  %v3444 = vunpack.c.l.bf16 %v3379
  %v3445 = vunpack.c.h.bf16 %v3379
  %v3446 = vunpack.c.l.bf16 %v3380
  %v3447 = vunpack.c.h.bf16 %v3380
  %v3448 = vunpack.c.l.bf16 %v3381
  %v3449 = vunpack.c.h.bf16 %v3381
  %v3450 = vunpack.c.l.bf16 %v3382
  %v3451 = vunpack.c.h.bf16 %v3382
  %v3452 = vunpack.c.l.bf16 %v3383
  %v3453 = vunpack.c.h.bf16 %v3383
  %v3454 = vunpack.c.l.bf16 %v3384
  %v3455 = vunpack.c.h.bf16 %v3384
  %v3456 = vunpack.c.l.bf16 %v3385
  %v3457 = vunpack.c.h.bf16 %v3385
  %v3458 = vunpack.c.l.bf16 %v3386
  %v3459 = vunpack.c.h.bf16 %v3386
  %v3460 = vunpack.c.l.bf16 %v3387
  %v3461 = vunpack.c.h.bf16 %v3387
  %v3462 = vunpack.c.l.bf16 %v3388
  %v3463 = vunpack.c.h.bf16 %v3388
  %v3464 = vunpack.c.l.bf16 %v3389
  %v3465 = vunpack.c.h.bf16 %v3389
  %v3466 = vunpack.c.l.bf16 %v3390
  %v3467 = vunpack.c.h.bf16 %v3390
  %v3468 = vunpack.c.l.bf16 %v3391
  %v3469 = vunpack.c.h.bf16 %v3391
  %v3470 = vunpack.c.l.bf16 %v3392
  %v3471 = vunpack.c.h.bf16 %v3392
  %v3472 = vunpack.c.l.bf16 %v3393
  %v3473 = vunpack.c.h.bf16 %v3393
  %v3474 = vunpack.c.l.bf16 %v3394
  %v3475 = vunpack.c.h.bf16 %v3394
  %v3476 = vunpack.c.l.bf16 %v3395
  %v3477 = vunpack.c.h.bf16 %v3395
  %v3478 = vunpack.c.l.bf16 %v3396
  %v3479 = vunpack.c.h.bf16 %v3396
  %v3480 = vunpack.c.l.bf16 %v3397
  %v3481 = vunpack.c.h.bf16 %v3397
  %v3482 = vunpack.c.l.bf16 %v3398
  %v3483 = vunpack.c.h.bf16 %v3398
  %v3484 = vunpack.c.l.bf16 %v3399
  %v3485 = vunpack.c.h.bf16 %v3399
  %v3486 = vunpack.c.l.bf16 %v3400
  %v3487 = vunpack.c.h.bf16 %v3400
  %v3488 = vunpack.c.l.bf16 %v3401
  %v3489 = vunpack.c.h.bf16 %v3401
  %v3490 = vunpack.c.l.bf16 %v3402
  %v3491 = vunpack.c.h.bf16 %v3402
  %v3492 = vunpack.c.l.bf16 %v3403
  %v3493 = vunpack.c.h.bf16 %v3403
  %v3494 = vunpack.c.l.bf16 %v3404
  %v3495 = vunpack.c.h.bf16 %v3404
  %v3496 = vunpack.c.l.bf16 %v3405
  %v3497 = vunpack.c.h.bf16 %v3405
  %v3498 = vunpack.c.l.bf16 %v3406
  %v3499 = vunpack.c.h.bf16 %v3406
  %v3500 = vunpack.c.l.bf16 %v3407
  %v3501 = vunpack.c.h.bf16 %v3407
  %v3502 = vunpack.c.l.bf16 %v3408
  %v3503 = vunpack.c.h.bf16 %v3408
  %v3504 = vunpack.c.l.bf16 %v3409
  %v3505 = vunpack.c.h.bf16 %v3409
  %v3506 = vunpack.c.l.bf16 %v3410
  %v3507 = vunpack.c.h.bf16 %v3410
  %v3508 = vunpack.c.l.bf16 %v3411
  %v3509 = vunpack.c.h.bf16 %v3411
  %v3510 = vunpack.c.l.bf16 %v3412
  %v3511 = vunpack.c.h.bf16 %v3412
  %v3512 = vunpack.c.l.bf16 %v3413
  %v3513 = vunpack.c.h.bf16 %v3413
  %v3514 = vunpack.c.l.bf16 %v3414
  %v3515 = vunpack.c.h.bf16 %v3414
  %v3516 = vunpack.c.l.bf16 %v3415
  %v3517 = vunpack.c.h.bf16 %v3415
  %v3518 = vunpack.c.l.bf16 %v3416
  %v3519 = vunpack.c.h.bf16 %v3416
  %v3520 = vunpack.c.l.bf16 %v3417
  %v3521 = vunpack.c.h.bf16 %v3417
  %v3522 = vunpack.c.l.bf16 %v3418
  %v3523 = vunpack.c.h.bf16 %v3418
  %v3524 = vunpack.c.l.bf16 %v3419
  %v3525 = vunpack.c.h.bf16 %v3419
  %v3526 = vunpack.c.l.bf16 %v3420
  %v3527 = vunpack.c.h.bf16 %v3420
  %v3528 = vunpack.c.l.bf16 %v3421
  %v3529 = vunpack.c.h.bf16 %v3421
  %v3530 = vunpack.c.l.bf16 %v3422
  %v3531 = vunpack.c.h.bf16 %v3422
  %v3532 = vunpack.c.l.bf16 %v3423
  %v3533 = vunpack.c.h.bf16 %v3423
  %v3534 = vunpack.c.l.bf16 %v3424
  %v3535 = vunpack.c.h.bf16 %v3424
  %v3536 = vunpack.c.l.bf16 %v3425
  %v3537 = vunpack.c.h.bf16 %v3425
  %v3538 = vunpack.c.l.bf16 %v3426
  %v3539 = vunpack.c.h.bf16 %v3426
  %v3540 = vunpack.c.l.bf16 %v3427
  %v3541 = vunpack.c.h.bf16 %v3427
  %v3542 = vunpack.c.l.bf16 %v3428
  %v3543 = vunpack.c.h.bf16 %v3428
  %v3544 = vunpack.c.l.bf16 %v3429
  %v3545 = vunpack.c.h.bf16 %v3429
  %v3546 = vunpack.c.l.bf16 %v3430
  %v3547 = vunpack.c.h.bf16 %v3430
  %v3548 = vunpack.c.l.bf16 %v3431
  %v3549 = vunpack.c.h.bf16 %v3431
  %v3550 = vunpack.c.l.bf16 %v3432
  %v3551 = vunpack.c.h.bf16 %v3432
  %v3552 = vunpack.c.l.bf16 %v3433
  %v3553 = vunpack.c.h.bf16 %v3433
  %v3554 = vunpack.c.l.bf16 %v3434
  %v3555 = vunpack.c.h.bf16 %v3434
  %v3556 = vunpack.c.l.bf16 %v3435
  %v3557 = vunpack.c.h.bf16 %v3435
  %v3558 = vunpack.c.l.bf16 %v3436
  %v3559 = vunpack.c.h.bf16 %v3436
  %v3560 = vunpack.c.l.bf16 %v3437
  %v3561 = vunpack.c.h.bf16 %v3437
  %v3562 = vunpack.c.l.bf16 %v3438
  %v3563 = vunpack.c.h.bf16 %v3438
  %v3564 = vunpack.c.l.bf16 %v3439
  %v3565 = vunpack.c.h.bf16 %v3439
  %v3566 = vunpack.c.l.bf16 %v3440
  %v3567 = vunpack.c.h.bf16 %v3440
  %v3568 = vunpack.c.l.bf16 %v3441
  %v3569 = vunpack.c.h.bf16 %v3441
  %v3570 = vmax.f32 %v3442, 0.0
  %v3571 = vmax.f32 %v3443, 0.0
  %v3572 = vmax.f32 %v3444, 0.0
  %v3573 = vmax.f32 %v3445, 0.0
  %v3574 = vmax.f32 %v3446, 0.0
  %v3575 = vmax.f32 %v3447, 0.0
  %v3576 = vmax.f32 %v3448, 0.0
  %v3577 = vmax.f32 %v3449, 0.0
  %v3578 = vmax.f32 %v3450, 0.0
  %v3579 = vmax.f32 %v3451, 0.0
  %v3580 = vmax.f32 %v3452, 0.0
  %v3581 = vmax.f32 %v3453, 0.0
  %v3582 = vmax.f32 %v3454, 0.0
  %v3583 = vmax.f32 %v3455, 0.0
  %v3584 = vmax.f32 %v3456, 0.0
  %v3585 = vmax.f32 %v3457, 0.0
  %v3586 = vmax.f32 %v3458, 0.0
  %v3587 = vmax.f32 %v3459, 0.0
  %v3588 = vmax.f32 %v3460, 0.0
  %v3589 = vmax.f32 %v3461, 0.0
  %v3590 = vmax.f32 %v3462, 0.0
  %v3591 = vmax.f32 %v3463, 0.0
  %v3592 = vmax.f32 %v3464, 0.0
  %v3593 = vmax.f32 %v3465, 0.0
  %v3594 = vmax.f32 %v3466, 0.0
  %v3595 = vmax.f32 %v3467, 0.0
  %v3596 = vmax.f32 %v3468, 0.0
  %v3597 = vmax.f32 %v3469, 0.0
  %v3598 = vmax.f32 %v3470, 0.0
  %v3599 = vmax.f32 %v3471, 0.0
  %v3600 = vmax.f32 %v3472, 0.0
  %v3601 = vmax.f32 %v3473, 0.0
  %v3602 = vmax.f32 %v3474, 0.0
  %v3603 = vmax.f32 %v3475, 0.0
  %v3604 = vmax.f32 %v3476, 0.0
  %v3605 = vmax.f32 %v3477, 0.0
  %v3606 = vmax.f32 %v3478, 0.0
  %v3607 = vmax.f32 %v3479, 0.0
  %v3608 = vmax.f32 %v3480, 0.0
  %v3609 = vmax.f32 %v3481, 0.0
  %v3610 = vmax.f32 %v3482, 0.0
  %v3611 = vmax.f32 %v3483, 0.0
  %v3612 = vmax.f32 %v3484, 0.0
  %v3613 = vmax.f32 %v3485, 0.0
  %v3614 = vmax.f32 %v3486, 0.0
  %v3615 = vmax.f32 %v3487, 0.0
  %v3616 = vmax.f32 %v3488, 0.0
  %v3617 = vmax.f32 %v3489, 0.0
  %v3618 = vmax.f32 %v3490, 0.0
  %v3619 = vmax.f32 %v3491, 0.0
  %v3620 = vmax.f32 %v3492, 0.0
  %v3621 = vmax.f32 %v3493, 0.0
  %v3622 = vmax.f32 %v3494, 0.0
  %v3623 = vmax.f32 %v3495, 0.0
  %v3624 = vmax.f32 %v3496, 0.0
  %v3625 = vmax.f32 %v3497, 0.0
  %v3626 = vmax.f32 %v3498, 0.0
  %v3627 = vmax.f32 %v3499, 0.0
  %v3628 = vmax.f32 %v3500, 0.0
  %v3629 = vmax.f32 %v3501, 0.0
  %v3630 = vmax.f32 %v3502, 0.0
  %v3631 = vmax.f32 %v3503, 0.0
  %v3632 = vmax.f32 %v3504, 0.0
  %v3633 = vmax.f32 %v3505, 0.0
  %v3634 = vmax.f32 %v3506, 0.0
  %v3635 = vmax.f32 %v3507, 0.0
  %v3636 = vmax.f32 %v3508, 0.0
  %v3637 = vmax.f32 %v3509, 0.0
  %v3638 = vmax.f32 %v3510, 0.0
  %v3639 = vmax.f32 %v3511, 0.0
  %v3640 = vmax.f32 %v3512, 0.0
  %v3641 = vmax.f32 %v3513, 0.0
  %v3642 = vmax.f32 %v3514, 0.0
  %v3643 = vmax.f32 %v3515, 0.0
  %v3644 = vmax.f32 %v3516, 0.0
  %v3645 = vmax.f32 %v3517, 0.0
  %v3646 = vmax.f32 %v3518, 0.0
  %v3647 = vmax.f32 %v3519, 0.0
  %v3648 = vmax.f32 %v3520, 0.0
  %v3649 = vmax.f32 %v3521, 0.0
  %v3650 = vmax.f32 %v3522, 0.0
  %v3651 = vmax.f32 %v3523, 0.0
  %v3652 = vmax.f32 %v3524, 0.0
  %v3653 = vmax.f32 %v3525, 0.0
  %v3654 = vmax.f32 %v3526, 0.0
  %v3655 = vmax.f32 %v3527, 0.0
  %v3656 = vmax.f32 %v3528, 0.0
  %v3657 = vmax.f32 %v3529, 0.0
  %v3658 = vmax.f32 %v3530, 0.0
  %v3659 = vmax.f32 %v3531, 0.0
  %v3660 = vmax.f32 %v3532, 0.0
  %v3661 = vmax.f32 %v3533, 0.0
  %v3662 = vmax.f32 %v3534, 0.0
  %v3663 = vmax.f32 %v3535, 0.0
  %v3664 = vmax.f32 %v3536, 0.0
  %v3665 = vmax.f32 %v3537, 0.0
  %v3666 = vmax.f32 %v3538, 0.0
  %v3667 = vmax.f32 %v3539, 0.0
  %v3668 = vmax.f32 %v3540, 0.0
  %v3669 = vmax.f32 %v3541, 0.0
  %v3670 = vmax.f32 %v3542, 0.0
  %v3671 = vmax.f32 %v3543, 0.0
  %v3672 = vmax.f32 %v3544, 0.0
  %v3673 = vmax.f32 %v3545, 0.0
  %v3674 = vmax.f32 %v3546, 0.0
  %v3675 = vmax.f32 %v3547, 0.0
  %v3676 = vmax.f32 %v3548, 0.0
  %v3677 = vmax.f32 %v3549, 0.0
  %v3678 = vmax.f32 %v3550, 0.0
  %v3679 = vmax.f32 %v3551, 0.0
  %v3680 = vmax.f32 %v3552, 0.0
  %v3681 = vmax.f32 %v3553, 0.0
  %v3682 = vmax.f32 %v3554, 0.0
  %v3683 = vmax.f32 %v3555, 0.0
  %v3684 = vmax.f32 %v3556, 0.0
  %v3685 = vmax.f32 %v3557, 0.0
  %v3686 = vmax.f32 %v3558, 0.0
  %v3687 = vmax.f32 %v3559, 0.0
  %v3688 = vmax.f32 %v3560, 0.0
  %v3689 = vmax.f32 %v3561, 0.0
  %v3690 = vmax.f32 %v3562, 0.0
  %v3691 = vmax.f32 %v3563, 0.0
  %v3692 = vmax.f32 %v3564, 0.0
  %v3693 = vmax.f32 %v3565, 0.0
  %v3694 = vmax.f32 %v3566, 0.0
  %v3695 = vmax.f32 %v3567, 0.0
  %v3696 = vmax.f32 %v3568, 0.0
  %v3697 = vmax.f32 %v3569, 0.0
  %v3698 = vpack.c.bf16 %v3571, %v3570
  %v3699 = vpack.c.bf16 %v3573, %v3572
  %v3700 = vpack.c.bf16 %v3575, %v3574
  %v3701 = vpack.c.bf16 %v3577, %v3576
  %v3702 = vpack.c.bf16 %v3579, %v3578
  %v3703 = vpack.c.bf16 %v3581, %v3580
  %v3704 = vpack.c.bf16 %v3583, %v3582
  %v3705 = vpack.c.bf16 %v3585, %v3584
  %v3706 = vpack.c.bf16 %v3587, %v3586
  %v3707 = vpack.c.bf16 %v3589, %v3588
  %v3708 = vpack.c.bf16 %v3591, %v3590
  %v3709 = vpack.c.bf16 %v3593, %v3592
  %v3710 = vpack.c.bf16 %v3595, %v3594
  %v3711 = vpack.c.bf16 %v3597, %v3596
  %v3712 = vpack.c.bf16 %v3599, %v3598
  %v3713 = vpack.c.bf16 %v3601, %v3600
  %v3714 = vpack.c.bf16 %v3603, %v3602
  %v3715 = vpack.c.bf16 %v3605, %v3604
  %v3716 = vpack.c.bf16 %v3607, %v3606
  %v3717 = vpack.c.bf16 %v3609, %v3608
  %v3718 = vpack.c.bf16 %v3611, %v3610
  %v3719 = vpack.c.bf16 %v3613, %v3612
  %v3720 = vpack.c.bf16 %v3615, %v3614
  %v3721 = vpack.c.bf16 %v3617, %v3616
  %v3722 = vpack.c.bf16 %v3619, %v3618
  %v3723 = vpack.c.bf16 %v3621, %v3620
  %v3724 = vpack.c.bf16 %v3623, %v3622
  %v3725 = vpack.c.bf16 %v3625, %v3624
  %v3726 = vpack.c.bf16 %v3627, %v3626
  %v3727 = vpack.c.bf16 %v3629, %v3628
  %v3728 = vpack.c.bf16 %v3631, %v3630
  %v3729 = vpack.c.bf16 %v3633, %v3632
  %v3730 = vpack.c.bf16 %v3635, %v3634
  %v3731 = vpack.c.bf16 %v3637, %v3636
  %v3732 = vpack.c.bf16 %v3639, %v3638
  %v3733 = vpack.c.bf16 %v3641, %v3640
  %v3734 = vpack.c.bf16 %v3643, %v3642
  %v3735 = vpack.c.bf16 %v3645, %v3644
  %v3736 = vpack.c.bf16 %v3647, %v3646
  %v3737 = vpack.c.bf16 %v3649, %v3648
  %v3738 = vpack.c.bf16 %v3651, %v3650
  %v3739 = vpack.c.bf16 %v3653, %v3652
  %v3740 = vpack.c.bf16 %v3655, %v3654
  %v3741 = vpack.c.bf16 %v3657, %v3656
  %v3742 = vpack.c.bf16 %v3659, %v3658
  %v3743 = vpack.c.bf16 %v3661, %v3660
  %v3744 = vpack.c.bf16 %v3663, %v3662
  %v3745 = vpack.c.bf16 %v3665, %v3664
  %v3746 = vpack.c.bf16 %v3667, %v3666
  %v3747 = vpack.c.bf16 %v3669, %v3668
  %v3748 = vpack.c.bf16 %v3671, %v3670
  %v3749 = vpack.c.bf16 %v3673, %v3672
  %v3750 = vpack.c.bf16 %v3675, %v3674
  %v3751 = vpack.c.bf16 %v3677, %v3676
  %v3752 = vpack.c.bf16 %v3679, %v3678
  %v3753 = vpack.c.bf16 %v3681, %v3680
  %v3754 = vpack.c.bf16 %v3683, %v3682
  %v3755 = vpack.c.bf16 %v3685, %v3684
  %v3756 = vpack.c.bf16 %v3687, %v3686
  %v3757 = vpack.c.bf16 %v3689, %v3688
  %v3758 = vpack.c.bf16 %v3691, %v3690
  %v3759 = vpack.c.bf16 %v3693, %v3692
  %v3760 = vpack.c.bf16 %v3695, %v3694
  %v3761 = vpack.c.bf16 %v3697, %v3696
  %vm3762 = vcmask 1043456
  %vm3763 = vcmask 556036
  %vm3764 = vmor %vm3763, %vm3762
  %3765 = vst.msk [vmem:[#allocation2] sm:$0xff] %vm3764, %v3698
  %3766 = vst.msk [vmem:[#allocation2 + $0x20] sm:$0xff] %vm3764, %v3699
  %3767 = vst.msk [vmem:[#allocation2 + $0x40] sm:$0xff] %vm3764, %v3700
  %3768 = vst.msk [vmem:[#allocation2 + $0x60] sm:$0xff] %vm3764, %v3701
  %3769 = vst.msk [vmem:[#allocation2 + $0x80] sm:$0xff] %vm3764, %v3702
  %3770 = vst.msk [vmem:[#allocation2 + $0xa0] sm:$0xff] %vm3764, %v3703
  %3771 = vst.msk [vmem:[#allocation2 + $0xc0] sm:$0xff] %vm3764, %v3704
  %3772 = vst.msk [vmem:[#allocation2 + $0xe0] sm:$0xff] %vm3764, %v3705
  %3773 = vst.msk [vmem:[#allocation2 + $0x100] sm:$0xff] %vm3764, %v3706
  %3774 = vst.msk [vmem:[#allocation2 + $0x120] sm:$0xff] %vm3764, %v3707
  %3775 = vst.msk [vmem:[#allocation2 + $0x140] sm:$0xff] %vm3764, %v3708
  %3776 = vst.msk [vmem:[#allocation2 + $0x160] sm:$0xff] %vm3764, %v3709
  %3777 = vst.msk [vmem:[#allocation2 + $0x180] sm:$0xff] %vm3764, %v3710
  %3778 = vst.msk [vmem:[#allocation2 + $0x1a0] sm:$0xff] %vm3764, %v3711
  %3779 = vst.msk [vmem:[#allocation2 + $0x1c0] sm:$0xff] %vm3764, %v3712
  %3780 = vst.msk [vmem:[#allocation2 + $0x1e0] sm:$0xff] %vm3764, %v3713
  %3781 = vst.msk [vmem:[#allocation2 + $0x200] sm:$0xff] %vm3764, %v3714
  %3782 = vst.msk [vmem:[#allocation2 + $0x220] sm:$0xff] %vm3764, %v3715
  %3783 = vst.msk [vmem:[#allocation2 + $0x240] sm:$0xff] %vm3764, %v3716
  %3784 = vst.msk [vmem:[#allocation2 + $0x260] sm:$0xff] %vm3764, %v3717
  %3785 = vst.msk [vmem:[#allocation2 + $0x280] sm:$0xff] %vm3764, %v3718
  %3786 = vst.msk [vmem:[#allocation2 + $0x2a0] sm:$0xff] %vm3764, %v3719
  %3787 = vst.msk [vmem:[#allocation2 + $0x2c0] sm:$0xff] %vm3764, %v3720
  %3788 = vst.msk [vmem:[#allocation2 + $0x2e0] sm:$0xff] %vm3764, %v3721
  %3789 = vst.msk [vmem:[#allocation2 + $0x300] sm:$0xff] %vm3764, %v3722
  %3790 = vst.msk [vmem:[#allocation2 + $0x320] sm:$0xff] %vm3764, %v3723
  %3791 = vst.msk [vmem:[#allocation2 + $0x340] sm:$0xff] %vm3764, %v3724
  %3792 = vst.msk [vmem:[#allocation2 + $0x360] sm:$0xff] %vm3764, %v3725
  %3793 = vst.msk [vmem:[#allocation2 + $0x380] sm:$0xff] %vm3764, %v3726
  %3794 = vst.msk [vmem:[#allocation2 + $0x3a0] sm:$0xff] %vm3764, %v3727
  %3795 = vst.msk [vmem:[#allocation2 + $0x3c0] sm:$0xff] %vm3764, %v3728
  %3796 = vst.msk [vmem:[#allocation2 + $0x3e0] sm:$0xff] %vm3764, %v3729
  %3797 = vst.msk [vmem:[#allocation2 + $0x400] sm:$0xff] %vm3764, %v3730
  %3798 = vst.msk [vmem:[#allocation2 + $0x420] sm:$0xff] %vm3764, %v3731
  %3799 = vst.msk [vmem:[#allocation2 + $0x440] sm:$0xff] %vm3764, %v3732
  %3800 = vst.msk [vmem:[#allocation2 + $0x460] sm:$0xff] %vm3764, %v3733
  %3801 = vst.msk [vmem:[#allocation2 + $0x480] sm:$0xff] %vm3764, %v3734
  %3802 = vst.msk [vmem:[#allocation2 + $0x4a0] sm:$0xff] %vm3764, %v3735
  %3803 = vst.msk [vmem:[#allocation2 + $0x4c0] sm:$0xff] %vm3764, %v3736
  %3804 = vst.msk [vmem:[#allocation2 + $0x4e0] sm:$0xff] %vm3764, %v3737
  %3805 = vst.msk [vmem:[#allocation2 + $0x500] sm:$0xff] %vm3764, %v3738
  %3806 = vst.msk [vmem:[#allocation2 + $0x520] sm:$0xff] %vm3764, %v3739
  %3807 = vst.msk [vmem:[#allocation2 + $0x540] sm:$0xff] %vm3764, %v3740
  %3808 = vst.msk [vmem:[#allocation2 + $0x560] sm:$0xff] %vm3764, %v3741
  %3809 = vst.msk [vmem:[#allocation2 + $0x580] sm:$0xff] %vm3764, %v3742
  %3810 = vst.msk [vmem:[#allocation2 + $0x5a0] sm:$0xff] %vm3764, %v3743
  %3811 = vst.msk [vmem:[#allocation2 + $0x5c0] sm:$0xff] %vm3764, %v3744
  %3812 = vst.msk [vmem:[#allocation2 + $0x5e0] sm:$0xff] %vm3764, %v3745
  %3813 = vst.msk [vmem:[#allocation2 + $0x600] sm:$0xff] %vm3764, %v3746
  %3814 = vst.msk [vmem:[#allocation2 + $0x620] sm:$0xff] %vm3764, %v3747
  %3815 = vst.msk [vmem:[#allocation2 + $0x640] sm:$0xff] %vm3764, %v3748
  %3816 = vst.msk [vmem:[#allocation2 + $0x660] sm:$0xff] %vm3764, %v3749
  %3817 = vst.msk [vmem:[#allocation2 + $0x680] sm:$0xff] %vm3764, %v3750
  %3818 = vst.msk [vmem:[#allocation2 + $0x6a0] sm:$0xff] %vm3764, %v3751
  %3819 = vst.msk [vmem:[#allocation2 + $0x6c0] sm:$0xff] %vm3764, %v3752
  %3820 = vst.msk [vmem:[#allocation2 + $0x6e0] sm:$0xff] %vm3764, %v3753
  %3821 = vst.msk [vmem:[#allocation2 + $0x700] sm:$0xff] %vm3764, %v3754
  %3822 = vst.msk [vmem:[#allocation2 + $0x720] sm:$0xff] %vm3764, %v3755
  %3823 = vst.msk [vmem:[#allocation2 + $0x740] sm:$0xff] %vm3764, %v3756
  %3824 = vst.msk [vmem:[#allocation2 + $0x760] sm:$0xff] %vm3764, %v3757
  %3825 = vst.msk [vmem:[#allocation2 + $0x780] sm:$0xff] %vm3764, %v3758
  %3826 = vst.msk [vmem:[#allocation2 + $0x7a0] sm:$0xff] %vm3764, %v3759
  %3827 = vst.msk [vmem:[#allocation2 + $0x7c0] sm:$0xff] %vm3764, %v3760
  %3828 = vst.msk [vmem:[#allocation2 + $0x7e0] sm:$0xff] %vm3764, %v3761
  %3829 = vset.pattern.permute.xlu0 29
  %3830 = vperm.xlu0 %3829, %v2418
  %v3831 = vpop.permute.xlu0 %3830
  %v3834 = vunpack.c.l.s4 839922192
  %v3835 = vunpack.c.0.s8 %v3834
  %v3836 = vperm.slane %v3831, %v3835
  %3837 = vset.pattern.permute.xlu0 29
  %3838 = vperm.xlu0 %3837, %v2419
  %v3839 = vpop.permute.xlu0 %3838
  %v3842 = vunpack.c.l.s4 839922192
  %v3843 = vunpack.c.0.s8 %v3842
  %v3844 = vperm.slane %v3839, %v3843
  %3845 = vset.pattern.permute.xlu0 29
  %3846 = vperm.xlu0 %3845, %v2420
  %v3847 = vpop.permute.xlu0 %3846
  %v3850 = vunpack.c.l.s4 839922192
  %v3851 = vunpack.c.0.s8 %v3850
  %v3852 = vperm.slane %v3847, %v3851
  %3853 = vset.pattern.permute.xlu0 29
  %3854 = vperm.xlu0 %3853, %v2421
  %v3855 = vpop.permute.xlu0 %3854
  %v3858 = vunpack.c.l.s4 839922192
  %v3859 = vunpack.c.0.s8 %v3858
  %v3860 = vperm.slane %v3855, %v3859
  %3861 = vset.pattern.permute.xlu0 29
  %3862 = vperm.xlu0 %3861, %v2422
  %v3863 = vpop.permute.xlu0 %3862
  %v3866 = vunpack.c.l.s4 839922192
  %v3867 = vunpack.c.0.s8 %v3866
  %v3868 = vperm.slane %v3863, %v3867
  %3869 = vset.pattern.permute.xlu0 29
  %3870 = vperm.xlu0 %3869, %v2423
  %v3871 = vpop.permute.xlu0 %3870
  %v3874 = vunpack.c.l.s4 839922192
  %v3875 = vunpack.c.0.s8 %v3874
  %v3876 = vperm.slane %v3871, %v3875
  %3877 = vset.pattern.permute.xlu0 29
  %3878 = vperm.xlu0 %3877, %v2424
  %v3879 = vpop.permute.xlu0 %3878
  %v3882 = vunpack.c.l.s4 839922192
  %v3883 = vunpack.c.0.s8 %v3882
  %v3884 = vperm.slane %v3879, %v3883
  %3885 = vset.pattern.permute.xlu0 29
  %3886 = vperm.xlu0 %3885, %v2425
  %v3887 = vpop.permute.xlu0 %3886
  %v3890 = vunpack.c.l.s4 839922192
  %v3891 = vunpack.c.0.s8 %v3890
  %v3892 = vperm.slane %v3887, %v3891
  %3893 = vset.pattern.permute.xlu0 29
  %3894 = vperm.xlu0 %3893, %v2426
  %v3895 = vpop.permute.xlu0 %3894
  %v3898 = vunpack.c.l.s4 839922192
  %v3899 = vunpack.c.0.s8 %v3898
  %v3900 = vperm.slane %v3895, %v3899
  %3901 = vset.pattern.permute.xlu0 29
  %3902 = vperm.xlu0 %3901, %v2427
  %v3903 = vpop.permute.xlu0 %3902
  %v3906 = vunpack.c.l.s4 839922192
  %v3907 = vunpack.c.0.s8 %v3906
  %v3908 = vperm.slane %v3903, %v3907
  %3909 = vset.pattern.permute.xlu0 29
  %3910 = vperm.xlu0 %3909, %v2428
  %v3911 = vpop.permute.xlu0 %3910
  %v3914 = vunpack.c.l.s4 839922192
  %v3915 = vunpack.c.0.s8 %v3914
  %v3916 = vperm.slane %v3911, %v3915
  %3917 = vset.pattern.permute.xlu0 29
  %3918 = vperm.xlu0 %3917, %v2429
  %v3919 = vpop.permute.xlu0 %3918
  %v3922 = vunpack.c.l.s4 839922192
  %v3923 = vunpack.c.0.s8 %v3922
  %v3924 = vperm.slane %v3919, %v3923
  %3925 = vset.pattern.permute.xlu0 29
  %3926 = vperm.xlu0 %3925, %v2430
  %v3927 = vpop.permute.xlu0 %3926
  %v3930 = vunpack.c.l.s4 839922192
  %v3931 = vunpack.c.0.s8 %v3930
  %v3932 = vperm.slane %v3927, %v3931
  %3933 = vset.pattern.permute.xlu0 29
  %3934 = vperm.xlu0 %3933, %v2431
  %v3935 = vpop.permute.xlu0 %3934
  %v3938 = vunpack.c.l.s4 839922192
  %v3939 = vunpack.c.0.s8 %v3938
  %v3940 = vperm.slane %v3935, %v3939
  %3941 = vset.pattern.permute.xlu0 29
  %3942 = vperm.xlu0 %3941, %v2432
  %v3943 = vpop.permute.xlu0 %3942
  %v3946 = vunpack.c.l.s4 839922192
  %v3947 = vunpack.c.0.s8 %v3946
  %v3948 = vperm.slane %v3943, %v3947
  %3949 = vset.pattern.permute.xlu0 29
  %3950 = vperm.xlu0 %3949, %v2433
  %v3951 = vpop.permute.xlu0 %3950
  %v3954 = vunpack.c.l.s4 839922192
  %v3955 = vunpack.c.0.s8 %v3954
  %v3956 = vperm.slane %v3951, %v3955
  %3957 = vset.pattern.permute.xlu0 29
  %3958 = vperm.xlu0 %3957, %v2434
  %v3959 = vpop.permute.xlu0 %3958
  %v3962 = vunpack.c.l.s4 839922192
  %v3963 = vunpack.c.0.s8 %v3962
  %v3964 = vperm.slane %v3959, %v3963
  %3965 = vset.pattern.permute.xlu0 29
  %3966 = vperm.xlu0 %3965, %v2435
  %v3967 = vpop.permute.xlu0 %3966
  %v3970 = vunpack.c.l.s4 839922192
  %v3971 = vunpack.c.0.s8 %v3970
  %v3972 = vperm.slane %v3967, %v3971
  %3973 = vset.pattern.permute.xlu0 29
  %3974 = vperm.xlu0 %3973, %v2436
  %v3975 = vpop.permute.xlu0 %3974
  %v3978 = vunpack.c.l.s4 839922192
  %v3979 = vunpack.c.0.s8 %v3978
  %v3980 = vperm.slane %v3975, %v3979
  %3981 = vset.pattern.permute.xlu0 29
  %3982 = vperm.xlu0 %3981, %v2437
  %v3983 = vpop.permute.xlu0 %3982
  %v3986 = vunpack.c.l.s4 839922192
  %v3987 = vunpack.c.0.s8 %v3986
  %v3988 = vperm.slane %v3983, %v3987
  %3989 = vset.pattern.permute.xlu0 29
  %3990 = vperm.xlu0 %3989, %v2438
  %v3991 = vpop.permute.xlu0 %3990
  %v3994 = vunpack.c.l.s4 839922192
  %v3995 = vunpack.c.0.s8 %v3994
  %v3996 = vperm.slane %v3991, %v3995
  %3997 = vset.pattern.permute.xlu0 29
  %3998 = vperm.xlu0 %3997, %v2439
  %v3999 = vpop.permute.xlu0 %3998
  %v4002 = vunpack.c.l.s4 839922192
  %v4003 = vunpack.c.0.s8 %v4002
  %v4004 = vperm.slane %v3999, %v4003
  %4005 = vset.pattern.permute.xlu0 29
  %4006 = vperm.xlu0 %4005, %v2440
  %v4007 = vpop.permute.xlu0 %4006
  %v4010 = vunpack.c.l.s4 839922192
  %v4011 = vunpack.c.0.s8 %v4010
  %v4012 = vperm.slane %v4007, %v4011
  %4013 = vset.pattern.permute.xlu0 29
  %4014 = vperm.xlu0 %4013, %v2441
  %v4015 = vpop.permute.xlu0 %4014
  %v4018 = vunpack.c.l.s4 839922192
  %v4019 = vunpack.c.0.s8 %v4018
  %v4020 = vperm.slane %v4015, %v4019
  %4021 = vset.pattern.permute.xlu0 29
  %4022 = vperm.xlu0 %4021, %v2442
  %v4023 = vpop.permute.xlu0 %4022
  %v4026 = vunpack.c.l.s4 839922192
  %v4027 = vunpack.c.0.s8 %v4026
  %v4028 = vperm.slane %v4023, %v4027
  %4029 = vset.pattern.permute.xlu0 29
  %4030 = vperm.xlu0 %4029, %v2443
  %v4031 = vpop.permute.xlu0 %4030
  %v4034 = vunpack.c.l.s4 839922192
  %v4035 = vunpack.c.0.s8 %v4034
  %v4036 = vperm.slane %v4031, %v4035
  %4037 = vset.pattern.permute.xlu0 29
  %4038 = vperm.xlu0 %4037, %v2444
  %v4039 = vpop.permute.xlu0 %4038
  %v4042 = vunpack.c.l.s4 839922192
  %v4043 = vunpack.c.0.s8 %v4042
  %v4044 = vperm.slane %v4039, %v4043
  %4045 = vset.pattern.permute.xlu0 29
  %4046 = vperm.xlu0 %4045, %v2445
  %v4047 = vpop.permute.xlu0 %4046
  %v4050 = vunpack.c.l.s4 839922192
  %v4051 = vunpack.c.0.s8 %v4050
  %v4052 = vperm.slane %v4047, %v4051
  %4053 = vset.pattern.permute.xlu0 29
  %4054 = vperm.xlu0 %4053, %v2446
  %v4055 = vpop.permute.xlu0 %4054
  %v4058 = vunpack.c.l.s4 839922192
  %v4059 = vunpack.c.0.s8 %v4058
  %v4060 = vperm.slane %v4055, %v4059
  %4061 = vset.pattern.permute.xlu0 29
  %4062 = vperm.xlu0 %4061, %v2447
  %v4063 = vpop.permute.xlu0 %4062
  %v4066 = vunpack.c.l.s4 839922192
  %v4067 = vunpack.c.0.s8 %v4066
  %v4068 = vperm.slane %v4063, %v4067
  %4069 = vset.pattern.permute.xlu0 29
  %4070 = vperm.xlu0 %4069, %v2448
  %v4071 = vpop.permute.xlu0 %4070
  %v4074 = vunpack.c.l.s4 839922192
  %v4075 = vunpack.c.0.s8 %v4074
  %v4076 = vperm.slane %v4071, %v4075
  %4077 = vset.pattern.permute.xlu0 29
  %4078 = vperm.xlu0 %4077, %v2449
  %v4079 = vpop.permute.xlu0 %4078
  %v4082 = vunpack.c.l.s4 839922192
  %v4083 = vunpack.c.0.s8 %v4082
  %v4084 = vperm.slane %v4079, %v4083
  %4085 = vset.pattern.permute.xlu0 29
  %4086 = vperm.xlu0 %4085, %v2450
  %v4087 = vpop.permute.xlu0 %4086
  %v4090 = vunpack.c.l.s4 839922192
  %v4091 = vunpack.c.0.s8 %v4090
  %v4092 = vperm.slane %v4087, %v4091
  %4093 = vset.pattern.permute.xlu0 29
  %4094 = vperm.xlu0 %4093, %v2451
  %v4095 = vpop.permute.xlu0 %4094
  %v4098 = vunpack.c.l.s4 839922192
  %v4099 = vunpack.c.0.s8 %v4098
  %v4100 = vperm.slane %v4095, %v4099
  %4101 = vset.pattern.permute.xlu0 29
  %4102 = vperm.xlu0 %4101, %v2452
  %v4103 = vpop.permute.xlu0 %4102
  %v4106 = vunpack.c.l.s4 839922192
  %v4107 = vunpack.c.0.s8 %v4106
  %v4108 = vperm.slane %v4103, %v4107
  %4109 = vset.pattern.permute.xlu0 29
  %4110 = vperm.xlu0 %4109, %v2453
  %v4111 = vpop.permute.xlu0 %4110
  %v4114 = vunpack.c.l.s4 839922192
  %v4115 = vunpack.c.0.s8 %v4114
  %v4116 = vperm.slane %v4111, %v4115
  %4117 = vset.pattern.permute.xlu0 29
  %4118 = vperm.xlu0 %4117, %v2454
  %v4119 = vpop.permute.xlu0 %4118
  %v4122 = vunpack.c.l.s4 839922192
  %v4123 = vunpack.c.0.s8 %v4122
  %v4124 = vperm.slane %v4119, %v4123
  %4125 = vset.pattern.permute.xlu0 29
  %4126 = vperm.xlu0 %4125, %v2455
  %v4127 = vpop.permute.xlu0 %4126
  %v4130 = vunpack.c.l.s4 839922192
  %v4131 = vunpack.c.0.s8 %v4130
  %v4132 = vperm.slane %v4127, %v4131
  %4133 = vset.pattern.permute.xlu0 29
  %4134 = vperm.xlu0 %4133, %v2456
  %v4135 = vpop.permute.xlu0 %4134
  %v4138 = vunpack.c.l.s4 839922192
  %v4139 = vunpack.c.0.s8 %v4138
  %v4140 = vperm.slane %v4135, %v4139
  %4141 = vset.pattern.permute.xlu0 29
  %4142 = vperm.xlu0 %4141, %v2457
  %v4143 = vpop.permute.xlu0 %4142
  %v4146 = vunpack.c.l.s4 839922192
  %v4147 = vunpack.c.0.s8 %v4146
  %v4148 = vperm.slane %v4143, %v4147
  %4149 = vset.pattern.permute.xlu0 29
  %4150 = vperm.xlu0 %4149, %v2458
  %v4151 = vpop.permute.xlu0 %4150
  %v4154 = vunpack.c.l.s4 839922192
  %v4155 = vunpack.c.0.s8 %v4154
  %v4156 = vperm.slane %v4151, %v4155
  %4157 = vset.pattern.permute.xlu0 29
  %4158 = vperm.xlu0 %4157, %v2459
  %v4159 = vpop.permute.xlu0 %4158
  %v4162 = vunpack.c.l.s4 839922192
  %v4163 = vunpack.c.0.s8 %v4162
  %v4164 = vperm.slane %v4159, %v4163
  %4165 = vset.pattern.permute.xlu0 29
  %4166 = vperm.xlu0 %4165, %v2460
  %v4167 = vpop.permute.xlu0 %4166
  %v4170 = vunpack.c.l.s4 839922192
  %v4171 = vunpack.c.0.s8 %v4170
  %v4172 = vperm.slane %v4167, %v4171
  %4173 = vset.pattern.permute.xlu0 29
  %4174 = vperm.xlu0 %4173, %v2461
  %v4175 = vpop.permute.xlu0 %4174
  %v4178 = vunpack.c.l.s4 839922192
  %v4179 = vunpack.c.0.s8 %v4178
  %v4180 = vperm.slane %v4175, %v4179
  %4181 = vset.pattern.permute.xlu0 29
  %4182 = vperm.xlu0 %4181, %v2462
  %v4183 = vpop.permute.xlu0 %4182
  %v4186 = vunpack.c.l.s4 839922192
  %v4187 = vunpack.c.0.s8 %v4186
  %v4188 = vperm.slane %v4183, %v4187
  %4189 = vset.pattern.permute.xlu0 29
  %4190 = vperm.xlu0 %4189, %v2463
  %v4191 = vpop.permute.xlu0 %4190
  %v4194 = vunpack.c.l.s4 839922192
  %v4195 = vunpack.c.0.s8 %v4194
  %v4196 = vperm.slane %v4191, %v4195
  %4197 = vset.pattern.permute.xlu0 29
  %4198 = vperm.xlu0 %4197, %v2464
  %v4199 = vpop.permute.xlu0 %4198
  %v4202 = vunpack.c.l.s4 839922192
  %v4203 = vunpack.c.0.s8 %v4202
  %v4204 = vperm.slane %v4199, %v4203
  %4205 = vset.pattern.permute.xlu0 29
  %4206 = vperm.xlu0 %4205, %v2465
  %v4207 = vpop.permute.xlu0 %4206
  %v4210 = vunpack.c.l.s4 839922192
  %v4211 = vunpack.c.0.s8 %v4210
  %v4212 = vperm.slane %v4207, %v4211
  %4213 = vset.pattern.permute.xlu0 29
  %4214 = vperm.xlu0 %4213, %v2466
  %v4215 = vpop.permute.xlu0 %4214
  %v4218 = vunpack.c.l.s4 839922192
  %v4219 = vunpack.c.0.s8 %v4218
  %v4220 = vperm.slane %v4215, %v4219
  %4221 = vset.pattern.permute.xlu0 29
  %4222 = vperm.xlu0 %4221, %v2467
  %v4223 = vpop.permute.xlu0 %4222
  %v4226 = vunpack.c.l.s4 839922192
  %v4227 = vunpack.c.0.s8 %v4226
  %v4228 = vperm.slane %v4223, %v4227
  %4229 = vset.pattern.permute.xlu0 29
  %4230 = vperm.xlu0 %4229, %v2468
  %v4231 = vpop.permute.xlu0 %4230
  %v4234 = vunpack.c.l.s4 839922192
  %v4235 = vunpack.c.0.s8 %v4234
  %v4236 = vperm.slane %v4231, %v4235
  %4237 = vset.pattern.permute.xlu0 29
  %4238 = vperm.xlu0 %4237, %v2469
  %v4239 = vpop.permute.xlu0 %4238
  %v4242 = vunpack.c.l.s4 839922192
  %v4243 = vunpack.c.0.s8 %v4242
  %v4244 = vperm.slane %v4239, %v4243
  %4245 = vset.pattern.permute.xlu0 29
  %4246 = vperm.xlu0 %4245, %v2470
  %v4247 = vpop.permute.xlu0 %4246
  %v4250 = vunpack.c.l.s4 839922192
  %v4251 = vunpack.c.0.s8 %v4250
  %v4252 = vperm.slane %v4247, %v4251
  %4253 = vset.pattern.permute.xlu0 29
  %4254 = vperm.xlu0 %4253, %v2471
  %v4255 = vpop.permute.xlu0 %4254
  %v4258 = vunpack.c.l.s4 839922192
  %v4259 = vunpack.c.0.s8 %v4258
  %v4260 = vperm.slane %v4255, %v4259
  %4261 = vset.pattern.permute.xlu0 29
  %4262 = vperm.xlu0 %4261, %v2472
  %v4263 = vpop.permute.xlu0 %4262
  %v4266 = vunpack.c.l.s4 839922192
  %v4267 = vunpack.c.0.s8 %v4266
  %v4268 = vperm.slane %v4263, %v4267
  %4269 = vset.pattern.permute.xlu0 29
  %4270 = vperm.xlu0 %4269, %v2473
  %v4271 = vpop.permute.xlu0 %4270
  %v4274 = vunpack.c.l.s4 839922192
  %v4275 = vunpack.c.0.s8 %v4274
  %v4276 = vperm.slane %v4271, %v4275
  %4277 = vset.pattern.permute.xlu0 29
  %4278 = vperm.xlu0 %4277, %v2474
  %v4279 = vpop.permute.xlu0 %4278
  %v4282 = vunpack.c.l.s4 839922192
  %v4283 = vunpack.c.0.s8 %v4282
  %v4284 = vperm.slane %v4279, %v4283
  %4285 = vset.pattern.permute.xlu0 29
  %4286 = vperm.xlu0 %4285, %v2475
  %v4287 = vpop.permute.xlu0 %4286
  %v4290 = vunpack.c.l.s4 839922192
  %v4291 = vunpack.c.0.s8 %v4290
  %v4292 = vperm.slane %v4287, %v4291
  %4293 = vset.pattern.permute.xlu0 29
  %4294 = vperm.xlu0 %4293, %v2476
  %v4295 = vpop.permute.xlu0 %4294
  %v4298 = vunpack.c.l.s4 839922192
  %v4299 = vunpack.c.0.s8 %v4298
  %v4300 = vperm.slane %v4295, %v4299
  %4301 = vset.pattern.permute.xlu0 29
  %4302 = vperm.xlu0 %4301, %v2477
  %v4303 = vpop.permute.xlu0 %4302
  %v4306 = vunpack.c.l.s4 839922192
  %v4307 = vunpack.c.0.s8 %v4306
  %v4308 = vperm.slane %v4303, %v4307
  %4309 = vset.pattern.permute.xlu0 29
  %4310 = vperm.xlu0 %4309, %v2478
  %v4311 = vpop.permute.xlu0 %4310
  %v4314 = vunpack.c.l.s4 839922192
  %v4315 = vunpack.c.0.s8 %v4314
  %v4316 = vperm.slane %v4311, %v4315
  %4317 = vset.pattern.permute.xlu0 29
  %4318 = vperm.xlu0 %4317, %v2479
  %v4319 = vpop.permute.xlu0 %4318
  %v4322 = vunpack.c.l.s4 839922192
  %v4323 = vunpack.c.0.s8 %v4322
  %v4324 = vperm.slane %v4319, %v4323
  %4325 = vset.pattern.permute.xlu0 29
  %4326 = vperm.xlu0 %4325, %v2480
  %v4327 = vpop.permute.xlu0 %4326
  %v4330 = vunpack.c.l.s4 839922192
  %v4331 = vunpack.c.0.s8 %v4330
  %v4332 = vperm.slane %v4327, %v4331
  %4333 = vset.pattern.permute.xlu0 29
  %4334 = vperm.xlu0 %4333, %v2481
  %v4335 = vpop.permute.xlu0 %4334
  %v4338 = vunpack.c.l.s4 839922192
  %v4339 = vunpack.c.0.s8 %v4338
  %v4340 = vperm.slane %v4335, %v4339
  %v4341 = vunpack.c.l.bf16 %v3836
  %v4342 = vunpack.c.l.bf16 %v3844
  %v4343 = vunpack.c.l.bf16 %v3852
  %v4344 = vunpack.c.l.bf16 %v3860
  %v4345 = vunpack.c.l.bf16 %v3868
  %v4346 = vunpack.c.l.bf16 %v3876
  %v4347 = vunpack.c.l.bf16 %v3884
  %v4348 = vunpack.c.l.bf16 %v3892
  %v4349 = vunpack.c.l.bf16 %v3900
  %v4350 = vunpack.c.l.bf16 %v3908
  %v4351 = vunpack.c.l.bf16 %v3916
  %v4352 = vunpack.c.l.bf16 %v3924
  %v4353 = vunpack.c.l.bf16 %v3932
  %v4354 = vunpack.c.l.bf16 %v3940
  %v4355 = vunpack.c.l.bf16 %v3948
  %v4356 = vunpack.c.l.bf16 %v3956
  %v4357 = vunpack.c.l.bf16 %v3964
  %v4358 = vunpack.c.l.bf16 %v3972
  %v4359 = vunpack.c.l.bf16 %v3980
  %v4360 = vunpack.c.l.bf16 %v3988
  %v4361 = vunpack.c.l.bf16 %v3996
  %v4362 = vunpack.c.l.bf16 %v4004
  %v4363 = vunpack.c.l.bf16 %v4012
  %v4364 = vunpack.c.l.bf16 %v4020
  %v4365 = vunpack.c.l.bf16 %v4028
  %v4366 = vunpack.c.l.bf16 %v4036
  %v4367 = vunpack.c.l.bf16 %v4044
  %v4368 = vunpack.c.l.bf16 %v4052
  %v4369 = vunpack.c.l.bf16 %v4060
  %v4370 = vunpack.c.l.bf16 %v4068
  %v4371 = vunpack.c.l.bf16 %v4076
  %v4372 = vunpack.c.l.bf16 %v4084
  %v4373 = vunpack.c.l.bf16 %v4092
  %v4374 = vunpack.c.l.bf16 %v4100
  %v4375 = vunpack.c.l.bf16 %v4108
  %v4376 = vunpack.c.l.bf16 %v4116
  %v4377 = vunpack.c.l.bf16 %v4124
  %v4378 = vunpack.c.l.bf16 %v4132
  %v4379 = vunpack.c.l.bf16 %v4140
  %v4380 = vunpack.c.l.bf16 %v4148
  %v4381 = vunpack.c.l.bf16 %v4156
  %v4382 = vunpack.c.l.bf16 %v4164
  %v4383 = vunpack.c.l.bf16 %v4172
  %v4384 = vunpack.c.l.bf16 %v4180
  %v4385 = vunpack.c.l.bf16 %v4188
  %v4386 = vunpack.c.l.bf16 %v4196
  %v4387 = vunpack.c.l.bf16 %v4204
  %v4388 = vunpack.c.l.bf16 %v4212
  %v4389 = vunpack.c.l.bf16 %v4220
  %v4390 = vunpack.c.l.bf16 %v4228
  %v4391 = vunpack.c.l.bf16 %v4236
  %v4392 = vunpack.c.l.bf16 %v4244
  %v4393 = vunpack.c.l.bf16 %v4252
  %v4394 = vunpack.c.l.bf16 %v4260
  %v4395 = vunpack.c.l.bf16 %v4268
  %v4396 = vunpack.c.l.bf16 %v4276
  %v4397 = vunpack.c.l.bf16 %v4284
  %v4398 = vunpack.c.l.bf16 %v4292
  %v4399 = vunpack.c.l.bf16 %v4300
  %v4400 = vunpack.c.l.bf16 %v4308
  %v4401 = vunpack.c.l.bf16 %v4316
  %v4402 = vunpack.c.l.bf16 %v4324
  %v4403 = vunpack.c.l.bf16 %v4332
  %v4404 = vunpack.c.l.bf16 %v4340
  %v4405 = vadd.f32 %v3058, %v4341
  %v4406 = vadd.f32 %v3059, %v4341
  %v4407 = vadd.f32 %v3060, %v4342
  %v4408 = vadd.f32 %v3061, %v4342
  %v4409 = vadd.f32 %v3062, %v4343
  %v4410 = vadd.f32 %v3063, %v4343
  %v4411 = vadd.f32 %v3064, %v4344
  %v4412 = vadd.f32 %v3065, %v4344
  %v4413 = vadd.f32 %v3066, %v4345
  %v4414 = vadd.f32 %v3067, %v4345
  %v4415 = vadd.f32 %v3068, %v4346
  %v4416 = vadd.f32 %v3069, %v4346
  %v4417 = vadd.f32 %v3070, %v4347
  %v4418 = vadd.f32 %v3071, %v4347
  %v4419 = vadd.f32 %v3072, %v4348
  %v4420 = vadd.f32 %v3073, %v4348
  %v4421 = vadd.f32 %v3074, %v4349
  %v4422 = vadd.f32 %v3075, %v4349
  %v4423 = vadd.f32 %v3076, %v4350
  %v4424 = vadd.f32 %v3077, %v4350
  %v4425 = vadd.f32 %v3078, %v4351
  %v4426 = vadd.f32 %v3079, %v4351
  %v4427 = vadd.f32 %v3080, %v4352
  %v4428 = vadd.f32 %v3081, %v4352
  %v4429 = vadd.f32 %v3082, %v4353
  %v4430 = vadd.f32 %v3083, %v4353
  %v4431 = vadd.f32 %v3084, %v4354
  %v4432 = vadd.f32 %v3085, %v4354
  %v4433 = vadd.f32 %v3086, %v4355
  %v4434 = vadd.f32 %v3087, %v4355
  %v4435 = vadd.f32 %v3088, %v4356
  %v4436 = vadd.f32 %v3089, %v4356
  %v4437 = vadd.f32 %v3090, %v4357
  %v4438 = vadd.f32 %v3091, %v4357
  %v4439 = vadd.f32 %v3092, %v4358
  %v4440 = vadd.f32 %v3093, %v4358
  %v4441 = vadd.f32 %v3094, %v4359
  %v4442 = vadd.f32 %v3095, %v4359
  %v4443 = vadd.f32 %v3096, %v4360
  %v4444 = vadd.f32 %v3097, %v4360
  %v4445 = vadd.f32 %v3098, %v4361
  %v4446 = vadd.f32 %v3099, %v4361
  %v4447 = vadd.f32 %v3100, %v4362
  %v4448 = vadd.f32 %v3101, %v4362
  %v4449 = vadd.f32 %v3102, %v4363
  %v4450 = vadd.f32 %v3103, %v4363
  %v4451 = vadd.f32 %v3104, %v4364
  %v4452 = vadd.f32 %v3105, %v4364
  %v4453 = vadd.f32 %v3106, %v4365
  %v4454 = vadd.f32 %v3107, %v4365
  %v4455 = vadd.f32 %v3108, %v4366
  %v4456 = vadd.f32 %v3109, %v4366
  %v4457 = vadd.f32 %v3110, %v4367
  %v4458 = vadd.f32 %v3111, %v4367
  %v4459 = vadd.f32 %v3112, %v4368
  %v4460 = vadd.f32 %v3113, %v4368
  %v4461 = vadd.f32 %v3114, %v4369
  %v4462 = vadd.f32 %v3115, %v4369
  %v4463 = vadd.f32 %v3116, %v4370
  %v4464 = vadd.f32 %v3117, %v4370
  %v4465 = vadd.f32 %v3118, %v4371
  %v4466 = vadd.f32 %v3119, %v4371
  %v4467 = vadd.f32 %v3120, %v4372
  %v4468 = vadd.f32 %v3121, %v4372
  %v4469 = vadd.f32 %v3122, %v4373
  %v4470 = vadd.f32 %v3123, %v4373
  %v4471 = vadd.f32 %v3124, %v4374
  %v4472 = vadd.f32 %v3125, %v4374
  %v4473 = vadd.f32 %v3126, %v4375
  %v4474 = vadd.f32 %v3127, %v4375
  %v4475 = vadd.f32 %v3128, %v4376
  %v4476 = vadd.f32 %v3129, %v4376
  %v4477 = vadd.f32 %v3130, %v4377
  %v4478 = vadd.f32 %v3131, %v4377
  %v4479 = vadd.f32 %v3132, %v4378
  %v4480 = vadd.f32 %v3133, %v4378
  %v4481 = vadd.f32 %v3134, %v4379
  %v4482 = vadd.f32 %v3135, %v4379
  %v4483 = vadd.f32 %v3136, %v4380
  %v4484 = vadd.f32 %v3137, %v4380
  %v4485 = vadd.f32 %v3138, %v4381
  %v4486 = vadd.f32 %v3139, %v4381
  %v4487 = vadd.f32 %v3140, %v4382
  %v4488 = vadd.f32 %v3141, %v4382
  %v4489 = vadd.f32 %v3142, %v4383
  %v4490 = vadd.f32 %v3143, %v4383
  %v4491 = vadd.f32 %v3144, %v4384
  %v4492 = vadd.f32 %v3145, %v4384
  %v4493 = vadd.f32 %v3146, %v4385
  %v4494 = vadd.f32 %v3147, %v4385
  %v4495 = vadd.f32 %v3148, %v4386
  %v4496 = vadd.f32 %v3149, %v4386
  %v4497 = vadd.f32 %v3150, %v4387
  %v4498 = vadd.f32 %v3151, %v4387
  %v4499 = vadd.f32 %v3152, %v4388
  %v4500 = vadd.f32 %v3153, %v4388
  %v4501 = vadd.f32 %v3154, %v4389
  %v4502 = vadd.f32 %v3155, %v4389
  %v4503 = vadd.f32 %v3156, %v4390
  %v4504 = vadd.f32 %v3157, %v4390
  %v4505 = vadd.f32 %v3158, %v4391
  %v4506 = vadd.f32 %v3159, %v4391
  %v4507 = vadd.f32 %v3160, %v4392
  %v4508 = vadd.f32 %v3161, %v4392
  %v4509 = vadd.f32 %v3162, %v4393
  %v4510 = vadd.f32 %v3163, %v4393
  %v4511 = vadd.f32 %v3164, %v4394
  %v4512 = vadd.f32 %v3165, %v4394
  %v4513 = vadd.f32 %v3166, %v4395
  %v4514 = vadd.f32 %v3167, %v4395
  %v4515 = vadd.f32 %v3168, %v4396
  %v4516 = vadd.f32 %v3169, %v4396
  %v4517 = vadd.f32 %v3170, %v4397
  %v4518 = vadd.f32 %v3171, %v4397
  %v4519 = vadd.f32 %v3172, %v4398
  %v4520 = vadd.f32 %v3173, %v4398
  %v4521 = vadd.f32 %v3174, %v4399
  %v4522 = vadd.f32 %v3175, %v4399
  %v4523 = vadd.f32 %v3176, %v4400
  %v4524 = vadd.f32 %v3177, %v4400
  %v4525 = vadd.f32 %v3178, %v4401
  %v4526 = vadd.f32 %v3179, %v4401
  %v4527 = vadd.f32 %v3180, %v4402
  %v4528 = vadd.f32 %v3181, %v4402
  %v4529 = vadd.f32 %v3182, %v4403
  %v4530 = vadd.f32 %v3183, %v4403
  %v4531 = vadd.f32 %v3184, %v4404
  %v4532 = vadd.f32 %v3185, %v4404
  %v4533 = vpack.c.bf16 %v4406, %v4405
  %v4534 = vpack.c.bf16 %v4408, %v4407
  %v4535 = vpack.c.bf16 %v4410, %v4409
  %v4536 = vpack.c.bf16 %v4412, %v4411
  %v4537 = vpack.c.bf16 %v4414, %v4413
  %v4538 = vpack.c.bf16 %v4416, %v4415
  %v4539 = vpack.c.bf16 %v4418, %v4417
  %v4540 = vpack.c.bf16 %v4420, %v4419
  %v4541 = vpack.c.bf16 %v4422, %v4421
  %v4542 = vpack.c.bf16 %v4424, %v4423
  %v4543 = vpack.c.bf16 %v4426, %v4425
  %v4544 = vpack.c.bf16 %v4428, %v4427
  %v4545 = vpack.c.bf16 %v4430, %v4429
  %v4546 = vpack.c.bf16 %v4432, %v4431
  %v4547 = vpack.c.bf16 %v4434, %v4433
  %v4548 = vpack.c.bf16 %v4436, %v4435
  %v4549 = vpack.c.bf16 %v4438, %v4437
  %v4550 = vpack.c.bf16 %v4440, %v4439
  %v4551 = vpack.c.bf16 %v4442, %v4441
  %v4552 = vpack.c.bf16 %v4444, %v4443
  %v4553 = vpack.c.bf16 %v4446, %v4445
  %v4554 = vpack.c.bf16 %v4448, %v4447
  %v4555 = vpack.c.bf16 %v4450, %v4449
  %v4556 = vpack.c.bf16 %v4452, %v4451
  %v4557 = vpack.c.bf16 %v4454, %v4453
  %v4558 = vpack.c.bf16 %v4456, %v4455
  %v4559 = vpack.c.bf16 %v4458, %v4457
  %v4560 = vpack.c.bf16 %v4460, %v4459
  %v4561 = vpack.c.bf16 %v4462, %v4461
  %v4562 = vpack.c.bf16 %v4464, %v4463
  %v4563 = vpack.c.bf16 %v4466, %v4465
  %v4564 = vpack.c.bf16 %v4468, %v4467
  %v4565 = vpack.c.bf16 %v4470, %v4469
  %v4566 = vpack.c.bf16 %v4472, %v4471
  %v4567 = vpack.c.bf16 %v4474, %v4473
  %v4568 = vpack.c.bf16 %v4476, %v4475
  %v4569 = vpack.c.bf16 %v4478, %v4477
  %v4570 = vpack.c.bf16 %v4480, %v4479
  %v4571 = vpack.c.bf16 %v4482, %v4481
  %v4572 = vpack.c.bf16 %v4484, %v4483
  %v4573 = vpack.c.bf16 %v4486, %v4485
  %v4574 = vpack.c.bf16 %v4488, %v4487
  %v4575 = vpack.c.bf16 %v4490, %v4489
  %v4576 = vpack.c.bf16 %v4492, %v4491
  %v4577 = vpack.c.bf16 %v4494, %v4493
  %v4578 = vpack.c.bf16 %v4496, %v4495
  %v4579 = vpack.c.bf16 %v4498, %v4497
  %v4580 = vpack.c.bf16 %v4500, %v4499
  %v4581 = vpack.c.bf16 %v4502, %v4501
  %v4582 = vpack.c.bf16 %v4504, %v4503
  %v4583 = vpack.c.bf16 %v4506, %v4505
  %v4584 = vpack.c.bf16 %v4508, %v4507
  %v4585 = vpack.c.bf16 %v4510, %v4509
  %v4586 = vpack.c.bf16 %v4512, %v4511
  %v4587 = vpack.c.bf16 %v4514, %v4513
  %v4588 = vpack.c.bf16 %v4516, %v4515
  %v4589 = vpack.c.bf16 %v4518, %v4517
  %v4590 = vpack.c.bf16 %v4520, %v4519
  %v4591 = vpack.c.bf16 %v4522, %v4521
  %v4592 = vpack.c.bf16 %v4524, %v4523
  %v4593 = vpack.c.bf16 %v4526, %v4525
  %v4594 = vpack.c.bf16 %v4528, %v4527
  %v4595 = vpack.c.bf16 %v4530, %v4529
  %v4596 = vpack.c.bf16 %v4532, %v4531
  %v4597 = vunpack.c.l.bf16 %v4533
  %v4598 = vunpack.c.h.bf16 %v4533
  %v4599 = vunpack.c.l.bf16 %v4534
  %v4600 = vunpack.c.h.bf16 %v4534
  %v4601 = vunpack.c.l.bf16 %v4535
  %v4602 = vunpack.c.h.bf16 %v4535
  %v4603 = vunpack.c.l.bf16 %v4536
  %v4604 = vunpack.c.h.bf16 %v4536
  %v4605 = vunpack.c.l.bf16 %v4537
  %v4606 = vunpack.c.h.bf16 %v4537
  %v4607 = vunpack.c.l.bf16 %v4538
  %v4608 = vunpack.c.h.bf16 %v4538
  %v4609 = vunpack.c.l.bf16 %v4539
  %v4610 = vunpack.c.h.bf16 %v4539
  %v4611 = vunpack.c.l.bf16 %v4540
  %v4612 = vunpack.c.h.bf16 %v4540
  %v4613 = vunpack.c.l.bf16 %v4541
  %v4614 = vunpack.c.h.bf16 %v4541
  %v4615 = vunpack.c.l.bf16 %v4542
  %v4616 = vunpack.c.h.bf16 %v4542
  %v4617 = vunpack.c.l.bf16 %v4543
  %v4618 = vunpack.c.h.bf16 %v4543
  %v4619 = vunpack.c.l.bf16 %v4544
  %v4620 = vunpack.c.h.bf16 %v4544
  %v4621 = vunpack.c.l.bf16 %v4545
  %v4622 = vunpack.c.h.bf16 %v4545
  %v4623 = vunpack.c.l.bf16 %v4546
  %v4624 = vunpack.c.h.bf16 %v4546
  %v4625 = vunpack.c.l.bf16 %v4547
  %v4626 = vunpack.c.h.bf16 %v4547
  %v4627 = vunpack.c.l.bf16 %v4548
  %v4628 = vunpack.c.h.bf16 %v4548
  %v4629 = vunpack.c.l.bf16 %v4549
  %v4630 = vunpack.c.h.bf16 %v4549
  %v4631 = vunpack.c.l.bf16 %v4550
  %v4632 = vunpack.c.h.bf16 %v4550
  %v4633 = vunpack.c.l.bf16 %v4551
  %v4634 = vunpack.c.h.bf16 %v4551
  %v4635 = vunpack.c.l.bf16 %v4552
  %v4636 = vunpack.c.h.bf16 %v4552
  %v4637 = vunpack.c.l.bf16 %v4553
  %v4638 = vunpack.c.h.bf16 %v4553
  %v4639 = vunpack.c.l.bf16 %v4554
  %v4640 = vunpack.c.h.bf16 %v4554
  %v4641 = vunpack.c.l.bf16 %v4555
  %v4642 = vunpack.c.h.bf16 %v4555
  %v4643 = vunpack.c.l.bf16 %v4556
  %v4644 = vunpack.c.h.bf16 %v4556
  %v4645 = vunpack.c.l.bf16 %v4557
  %v4646 = vunpack.c.h.bf16 %v4557
  %v4647 = vunpack.c.l.bf16 %v4558
  %v4648 = vunpack.c.h.bf16 %v4558
  %v4649 = vunpack.c.l.bf16 %v4559
  %v4650 = vunpack.c.h.bf16 %v4559
  %v4651 = vunpack.c.l.bf16 %v4560
  %v4652 = vunpack.c.h.bf16 %v4560
  %v4653 = vunpack.c.l.bf16 %v4561
  %v4654 = vunpack.c.h.bf16 %v4561
  %v4655 = vunpack.c.l.bf16 %v4562
  %v4656 = vunpack.c.h.bf16 %v4562
  %v4657 = vunpack.c.l.bf16 %v4563
  %v4658 = vunpack.c.h.bf16 %v4563
  %v4659 = vunpack.c.l.bf16 %v4564
  %v4660 = vunpack.c.h.bf16 %v4564
  %v4661 = vunpack.c.l.bf16 %v4565
  %v4662 = vunpack.c.h.bf16 %v4565
  %v4663 = vunpack.c.l.bf16 %v4566
  %v4664 = vunpack.c.h.bf16 %v4566
  %v4665 = vunpack.c.l.bf16 %v4567
  %v4666 = vunpack.c.h.bf16 %v4567
  %v4667 = vunpack.c.l.bf16 %v4568
  %v4668 = vunpack.c.h.bf16 %v4568
  %v4669 = vunpack.c.l.bf16 %v4569
  %v4670 = vunpack.c.h.bf16 %v4569
  %v4671 = vunpack.c.l.bf16 %v4570
  %v4672 = vunpack.c.h.bf16 %v4570
  %v4673 = vunpack.c.l.bf16 %v4571
  %v4674 = vunpack.c.h.bf16 %v4571
  %v4675 = vunpack.c.l.bf16 %v4572
  %v4676 = vunpack.c.h.bf16 %v4572
  %v4677 = vunpack.c.l.bf16 %v4573
  %v4678 = vunpack.c.h.bf16 %v4573
  %v4679 = vunpack.c.l.bf16 %v4574
  %v4680 = vunpack.c.h.bf16 %v4574
  %v4681 = vunpack.c.l.bf16 %v4575
  %v4682 = vunpack.c.h.bf16 %v4575
  %v4683 = vunpack.c.l.bf16 %v4576
  %v4684 = vunpack.c.h.bf16 %v4576
  %v4685 = vunpack.c.l.bf16 %v4577
  %v4686 = vunpack.c.h.bf16 %v4577
  %v4687 = vunpack.c.l.bf16 %v4578
  %v4688 = vunpack.c.h.bf16 %v4578
  %v4689 = vunpack.c.l.bf16 %v4579
  %v4690 = vunpack.c.h.bf16 %v4579
  %v4691 = vunpack.c.l.bf16 %v4580
  %v4692 = vunpack.c.h.bf16 %v4580
  %v4693 = vunpack.c.l.bf16 %v4581
  %v4694 = vunpack.c.h.bf16 %v4581
  %v4695 = vunpack.c.l.bf16 %v4582
  %v4696 = vunpack.c.h.bf16 %v4582
  %v4697 = vunpack.c.l.bf16 %v4583
  %v4698 = vunpack.c.h.bf16 %v4583
  %v4699 = vunpack.c.l.bf16 %v4584
  %v4700 = vunpack.c.h.bf16 %v4584
  %v4701 = vunpack.c.l.bf16 %v4585
  %v4702 = vunpack.c.h.bf16 %v4585
  %v4703 = vunpack.c.l.bf16 %v4586
  %v4704 = vunpack.c.h.bf16 %v4586
  %v4705 = vunpack.c.l.bf16 %v4587
  %v4706 = vunpack.c.h.bf16 %v4587
  %v4707 = vunpack.c.l.bf16 %v4588
  %v4708 = vunpack.c.h.bf16 %v4588
  %v4709 = vunpack.c.l.bf16 %v4589
  %v4710 = vunpack.c.h.bf16 %v4589
  %v4711 = vunpack.c.l.bf16 %v4590
  %v4712 = vunpack.c.h.bf16 %v4590
  %v4713 = vunpack.c.l.bf16 %v4591
  %v4714 = vunpack.c.h.bf16 %v4591
  %v4715 = vunpack.c.l.bf16 %v4592
  %v4716 = vunpack.c.h.bf16 %v4592
  %v4717 = vunpack.c.l.bf16 %v4593
  %v4718 = vunpack.c.h.bf16 %v4593
  %v4719 = vunpack.c.l.bf16 %v4594
  %v4720 = vunpack.c.h.bf16 %v4594
  %v4721 = vunpack.c.l.bf16 %v4595
  %v4722 = vunpack.c.h.bf16 %v4595
  %v4723 = vunpack.c.l.bf16 %v4596
  %v4724 = vunpack.c.h.bf16 %v4596
  %v4725 = vmax.f32 %v4597, 0.0
  %v4726 = vmax.f32 %v4598, 0.0
  %v4727 = vmax.f32 %v4599, 0.0
  %v4728 = vmax.f32 %v4600, 0.0
  %v4729 = vmax.f32 %v4601, 0.0
  %v4730 = vmax.f32 %v4602, 0.0
  %v4731 = vmax.f32 %v4603, 0.0
  %v4732 = vmax.f32 %v4604, 0.0
  %v4733 = vmax.f32 %v4605, 0.0
  %v4734 = vmax.f32 %v4606, 0.0
  %v4735 = vmax.f32 %v4607, 0.0
  %v4736 = vmax.f32 %v4608, 0.0
  %v4737 = vmax.f32 %v4609, 0.0
  %v4738 = vmax.f32 %v4610, 0.0
  %v4739 = vmax.f32 %v4611, 0.0
  %v4740 = vmax.f32 %v4612, 0.0
  %v4741 = vmax.f32 %v4613, 0.0
  %v4742 = vmax.f32 %v4614, 0.0
  %v4743 = vmax.f32 %v4615, 0.0
  %v4744 = vmax.f32 %v4616, 0.0
  %v4745 = vmax.f32 %v4617, 0.0
  %v4746 = vmax.f32 %v4618, 0.0
  %v4747 = vmax.f32 %v4619, 0.0
  %v4748 = vmax.f32 %v4620, 0.0
  %v4749 = vmax.f32 %v4621, 0.0
  %v4750 = vmax.f32 %v4622, 0.0
  %v4751 = vmax.f32 %v4623, 0.0
  %v4752 = vmax.f32 %v4624, 0.0
  %v4753 = vmax.f32 %v4625, 0.0
  %v4754 = vmax.f32 %v4626, 0.0
  %v4755 = vmax.f32 %v4627, 0.0
  %v4756 = vmax.f32 %v4628, 0.0
  %v4757 = vmax.f32 %v4629, 0.0
  %v4758 = vmax.f32 %v4630, 0.0
  %v4759 = vmax.f32 %v4631, 0.0
  %v4760 = vmax.f32 %v4632, 0.0
  %v4761 = vmax.f32 %v4633, 0.0
  %v4762 = vmax.f32 %v4634, 0.0
  %v4763 = vmax.f32 %v4635, 0.0
  %v4764 = vmax.f32 %v4636, 0.0
  %v4765 = vmax.f32 %v4637, 0.0
  %v4766 = vmax.f32 %v4638, 0.0
  %v4767 = vmax.f32 %v4639, 0.0
  %v4768 = vmax.f32 %v4640, 0.0
  %v4769 = vmax.f32 %v4641, 0.0
  %v4770 = vmax.f32 %v4642, 0.0
  %v4771 = vmax.f32 %v4643, 0.0
  %v4772 = vmax.f32 %v4644, 0.0
  %v4773 = vmax.f32 %v4645, 0.0
  %v4774 = vmax.f32 %v4646, 0.0
  %v4775 = vmax.f32 %v4647, 0.0
  %v4776 = vmax.f32 %v4648, 0.0
  %v4777 = vmax.f32 %v4649, 0.0
  %v4778 = vmax.f32 %v4650, 0.0
  %v4779 = vmax.f32 %v4651, 0.0
  %v4780 = vmax.f32 %v4652, 0.0
  %v4781 = vmax.f32 %v4653, 0.0
  %v4782 = vmax.f32 %v4654, 0.0
  %v4783 = vmax.f32 %v4655, 0.0
  %v4784 = vmax.f32 %v4656, 0.0
  %v4785 = vmax.f32 %v4657, 0.0
  %v4786 = vmax.f32 %v4658, 0.0
  %v4787 = vmax.f32 %v4659, 0.0
  %v4788 = vmax.f32 %v4660, 0.0
  %v4789 = vmax.f32 %v4661, 0.0
  %v4790 = vmax.f32 %v4662, 0.0
  %v4791 = vmax.f32 %v4663, 0.0
  %v4792 = vmax.f32 %v4664, 0.0
  %v4793 = vmax.f32 %v4665, 0.0
  %v4794 = vmax.f32 %v4666, 0.0
  %v4795 = vmax.f32 %v4667, 0.0
  %v4796 = vmax.f32 %v4668, 0.0
  %v4797 = vmax.f32 %v4669, 0.0
  %v4798 = vmax.f32 %v4670, 0.0
  %v4799 = vmax.f32 %v4671, 0.0
  %v4800 = vmax.f32 %v4672, 0.0
  %v4801 = vmax.f32 %v4673, 0.0
  %v4802 = vmax.f32 %v4674, 0.0
  %v4803 = vmax.f32 %v4675, 0.0
  %v4804 = vmax.f32 %v4676, 0.0
  %v4805 = vmax.f32 %v4677, 0.0
  %v4806 = vmax.f32 %v4678, 0.0
  %v4807 = vmax.f32 %v4679, 0.0
  %v4808 = vmax.f32 %v4680, 0.0
  %v4809 = vmax.f32 %v4681, 0.0
  %v4810 = vmax.f32 %v4682, 0.0
  %v4811 = vmax.f32 %v4683, 0.0
  %v4812 = vmax.f32 %v4684, 0.0
  %v4813 = vmax.f32 %v4685, 0.0
  %v4814 = vmax.f32 %v4686, 0.0
  %v4815 = vmax.f32 %v4687, 0.0
  %v4816 = vmax.f32 %v4688, 0.0
  %v4817 = vmax.f32 %v4689, 0.0
  %v4818 = vmax.f32 %v4690, 0.0
  %v4819 = vmax.f32 %v4691, 0.0
  %v4820 = vmax.f32 %v4692, 0.0
  %v4821 = vmax.f32 %v4693, 0.0
  %v4822 = vmax.f32 %v4694, 0.0
  %v4823 = vmax.f32 %v4695, 0.0
  %v4824 = vmax.f32 %v4696, 0.0
  %v4825 = vmax.f32 %v4697, 0.0
  %v4826 = vmax.f32 %v4698, 0.0
  %v4827 = vmax.f32 %v4699, 0.0
  %v4828 = vmax.f32 %v4700, 0.0
  %v4829 = vmax.f32 %v4701, 0.0
  %v4830 = vmax.f32 %v4702, 0.0
  %v4831 = vmax.f32 %v4703, 0.0
  %v4832 = vmax.f32 %v4704, 0.0
  %v4833 = vmax.f32 %v4705, 0.0
  %v4834 = vmax.f32 %v4706, 0.0
  %v4835 = vmax.f32 %v4707, 0.0
  %v4836 = vmax.f32 %v4708, 0.0
  %v4837 = vmax.f32 %v4709, 0.0
  %v4838 = vmax.f32 %v4710, 0.0
  %v4839 = vmax.f32 %v4711, 0.0
  %v4840 = vmax.f32 %v4712, 0.0
  %v4841 = vmax.f32 %v4713, 0.0
  %v4842 = vmax.f32 %v4714, 0.0
  %v4843 = vmax.f32 %v4715, 0.0
  %v4844 = vmax.f32 %v4716, 0.0
  %v4845 = vmax.f32 %v4717, 0.0
  %v4846 = vmax.f32 %v4718, 0.0
  %v4847 = vmax.f32 %v4719, 0.0
  %v4848 = vmax.f32 %v4720, 0.0
  %v4849 = vmax.f32 %v4721, 0.0
  %v4850 = vmax.f32 %v4722, 0.0
  %v4851 = vmax.f32 %v4723, 0.0
  %v4852 = vmax.f32 %v4724, 0.0
  %v4853 = vpack.c.bf16 %v4726, %v4725
  %v4854 = vpack.c.bf16 %v4728, %v4727
  %v4855 = vpack.c.bf16 %v4730, %v4729
  %v4856 = vpack.c.bf16 %v4732, %v4731
  %v4857 = vpack.c.bf16 %v4734, %v4733
  %v4858 = vpack.c.bf16 %v4736, %v4735
  %v4859 = vpack.c.bf16 %v4738, %v4737
  %v4860 = vpack.c.bf16 %v4740, %v4739
  %v4861 = vpack.c.bf16 %v4742, %v4741
  %v4862 = vpack.c.bf16 %v4744, %v4743
  %v4863 = vpack.c.bf16 %v4746, %v4745
  %v4864 = vpack.c.bf16 %v4748, %v4747
  %v4865 = vpack.c.bf16 %v4750, %v4749
  %v4866 = vpack.c.bf16 %v4752, %v4751
  %v4867 = vpack.c.bf16 %v4754, %v4753
  %v4868 = vpack.c.bf16 %v4756, %v4755
  %v4869 = vpack.c.bf16 %v4758, %v4757
  %v4870 = vpack.c.bf16 %v4760, %v4759
  %v4871 = vpack.c.bf16 %v4762, %v4761
  %v4872 = vpack.c.bf16 %v4764, %v4763
  %v4873 = vpack.c.bf16 %v4766, %v4765
  %v4874 = vpack.c.bf16 %v4768, %v4767
  %v4875 = vpack.c.bf16 %v4770, %v4769
  %v4876 = vpack.c.bf16 %v4772, %v4771
  %v4877 = vpack.c.bf16 %v4774, %v4773
  %v4878 = vpack.c.bf16 %v4776, %v4775
  %v4879 = vpack.c.bf16 %v4778, %v4777
  %v4880 = vpack.c.bf16 %v4780, %v4779
  %v4881 = vpack.c.bf16 %v4782, %v4781
  %v4882 = vpack.c.bf16 %v4784, %v4783
  %v4883 = vpack.c.bf16 %v4786, %v4785
  %v4884 = vpack.c.bf16 %v4788, %v4787
  %v4885 = vpack.c.bf16 %v4790, %v4789
  %v4886 = vpack.c.bf16 %v4792, %v4791
  %v4887 = vpack.c.bf16 %v4794, %v4793
  %v4888 = vpack.c.bf16 %v4796, %v4795
  %v4889 = vpack.c.bf16 %v4798, %v4797
  %v4890 = vpack.c.bf16 %v4800, %v4799
  %v4891 = vpack.c.bf16 %v4802, %v4801
  %v4892 = vpack.c.bf16 %v4804, %v4803
  %v4893 = vpack.c.bf16 %v4806, %v4805
  %v4894 = vpack.c.bf16 %v4808, %v4807
  %v4895 = vpack.c.bf16 %v4810, %v4809
  %v4896 = vpack.c.bf16 %v4812, %v4811
  %v4897 = vpack.c.bf16 %v4814, %v4813
  %v4898 = vpack.c.bf16 %v4816, %v4815
  %v4899 = vpack.c.bf16 %v4818, %v4817
  %v4900 = vpack.c.bf16 %v4820, %v4819
  %v4901 = vpack.c.bf16 %v4822, %v4821
  %v4902 = vpack.c.bf16 %v4824, %v4823
  %v4903 = vpack.c.bf16 %v4826, %v4825
  %v4904 = vpack.c.bf16 %v4828, %v4827
  %v4905 = vpack.c.bf16 %v4830, %v4829
  %v4906 = vpack.c.bf16 %v4832, %v4831
  %v4907 = vpack.c.bf16 %v4834, %v4833
  %v4908 = vpack.c.bf16 %v4836, %v4835
  %v4909 = vpack.c.bf16 %v4838, %v4837
  %v4910 = vpack.c.bf16 %v4840, %v4839
  %v4911 = vpack.c.bf16 %v4842, %v4841
  %v4912 = vpack.c.bf16 %v4844, %v4843
  %v4913 = vpack.c.bf16 %v4846, %v4845
  %v4914 = vpack.c.bf16 %v4848, %v4847
  %v4915 = vpack.c.bf16 %v4850, %v4849
  %v4916 = vpack.c.bf16 %v4852, %v4851
  %4917 = vst.msk [vmem:[#allocation2 + $0x8] sm:$0xff] %vm3764, %v4853
  %4918 = vst.msk [vmem:[#allocation2 + $0x28] sm:$0xff] %vm3764, %v4854
  %4919 = vst.msk [vmem:[#allocation2 + $0x48] sm:$0xff] %vm3764, %v4855
  %4920 = vst.msk [vmem:[#allocation2 + $0x68] sm:$0xff] %vm3764, %v4856
  %4921 = vst.msk [vmem:[#allocation2 + $0x88] sm:$0xff] %vm3764, %v4857
  %4922 = vst.msk [vmem:[#allocation2 + $0xa8] sm:$0xff] %vm3764, %v4858
  %4923 = vst.msk [vmem:[#allocation2 + $0xc8] sm:$0xff] %vm3764, %v4859
  %4924 = vst.msk [vmem:[#allocation2 + $0xe8] sm:$0xff] %vm3764, %v4860
  %4925 = vst.msk [vmem:[#allocation2 + $0x108] sm:$0xff] %vm3764, %v4861
  %4926 = vst.msk [vmem:[#allocation2 + $0x128] sm:$0xff] %vm3764, %v4862
  %4927 = vst.msk [vmem:[#allocation2 + $0x148] sm:$0xff] %vm3764, %v4863
  %4928 = vst.msk [vmem:[#allocation2 + $0x168] sm:$0xff] %vm3764, %v4864
  %4929 = vst.msk [vmem:[#allocation2 + $0x188] sm:$0xff] %vm3764, %v4865
  %4930 = vst.msk [vmem:[#allocation2 + $0x1a8] sm:$0xff] %vm3764, %v4866
  %4931 = vst.msk [vmem:[#allocation2 + $0x1c8] sm:$0xff] %vm3764, %v4867
  %4932 = vst.msk [vmem:[#allocation2 + $0x1e8] sm:$0xff] %vm3764, %v4868
  %4933 = vst.msk [vmem:[#allocation2 + $0x208] sm:$0xff] %vm3764, %v4869
  %4934 = vst.msk [vmem:[#allocation2 + $0x228] sm:$0xff] %vm3764, %v4870
  %4935 = vst.msk [vmem:[#allocation2 + $0x248] sm:$0xff] %vm3764, %v4871
  %4936 = vst.msk [vmem:[#allocation2 + $0x268] sm:$0xff] %vm3764, %v4872
  %4937 = vst.msk [vmem:[#allocation2 + $0x288] sm:$0xff] %vm3764, %v4873
  %4938 = vst.msk [vmem:[#allocation2 + $0x2a8] sm:$0xff] %vm3764, %v4874
  %4939 = vst.msk [vmem:[#allocation2 + $0x2c8] sm:$0xff] %vm3764, %v4875
  %4940 = vst.msk [vmem:[#allocation2 + $0x2e8] sm:$0xff] %vm3764, %v4876
  %4941 = vst.msk [vmem:[#allocation2 + $0x308] sm:$0xff] %vm3764, %v4877
  %4942 = vst.msk [vmem:[#allocation2 + $0x328] sm:$0xff] %vm3764, %v4878
  %4943 = vst.msk [vmem:[#allocation2 + $0x348] sm:$0xff] %vm3764, %v4879
  %4944 = vst.msk [vmem:[#allocation2 + $0x368] sm:$0xff] %vm3764, %v4880
  %4945 = vst.msk [vmem:[#allocation2 + $0x388] sm:$0xff] %vm3764, %v4881
  %4946 = vst.msk [vmem:[#allocation2 + $0x3a8] sm:$0xff] %vm3764, %v4882
  %4947 = vst.msk [vmem:[#allocation2 + $0x3c8] sm:$0xff] %vm3764, %v4883
  %4948 = vst.msk [vmem:[#allocation2 + $0x3e8] sm:$0xff] %vm3764, %v4884
  %4949 = vst.msk [vmem:[#allocation2 + $0x408] sm:$0xff] %vm3764, %v4885
  %4950 = vst.msk [vmem:[#allocation2 + $0x428] sm:$0xff] %vm3764, %v4886
  %4951 = vst.msk [vmem:[#allocation2 + $0x448] sm:$0xff] %vm3764, %v4887
  %4952 = vst.msk [vmem:[#allocation2 + $0x468] sm:$0xff] %vm3764, %v4888
  %4953 = vst.msk [vmem:[#allocation2 + $0x488] sm:$0xff] %vm3764, %v4889
  %4954 = vst.msk [vmem:[#allocation2 + $0x4a8] sm:$0xff] %vm3764, %v4890
  %4955 = vst.msk [vmem:[#allocation2 + $0x4c8] sm:$0xff] %vm3764, %v4891
  %4956 = vst.msk [vmem:[#allocation2 + $0x4e8] sm:$0xff] %vm3764, %v4892
  %4957 = vst.msk [vmem:[#allocation2 + $0x508] sm:$0xff] %vm3764, %v4893
  %4958 = vst.msk [vmem:[#allocation2 + $0x528] sm:$0xff] %vm3764, %v4894
  %4959 = vst.msk [vmem:[#allocation2 + $0x548] sm:$0xff] %vm3764, %v4895
  %4960 = vst.msk [vmem:[#allocation2 + $0x568] sm:$0xff] %vm3764, %v4896
  %4961 = vst.msk [vmem:[#allocation2 + $0x588] sm:$0xff] %vm3764, %v4897
  %4962 = vst.msk [vmem:[#allocation2 + $0x5a8] sm:$0xff] %vm3764, %v4898
  %4963 = vst.msk [vmem:[#allocation2 + $0x5c8] sm:$0xff] %vm3764, %v4899
  %4964 = vst.msk [vmem:[#allocation2 + $0x5e8] sm:$0xff] %vm3764, %v4900
  %4965 = vst.msk [vmem:[#allocation2 + $0x608] sm:$0xff] %vm3764, %v4901
  %4966 = vst.msk [vmem:[#allocation2 + $0x628] sm:$0xff] %vm3764, %v4902
  %4967 = vst.msk [vmem:[#allocation2 + $0x648] sm:$0xff] %vm3764, %v4903
  %4968 = vst.msk [vmem:[#allocation2 + $0x668] sm:$0xff] %vm3764, %v4904
  %4969 = vst.msk [vmem:[#allocation2 + $0x688] sm:$0xff] %vm3764, %v4905
  %4970 = vst.msk [vmem:[#allocation2 + $0x6a8] sm:$0xff] %vm3764, %v4906
  %4971 = vst.msk [vmem:[#allocation2 + $0x6c8] sm:$0xff] %vm3764, %v4907
  %4972 = vst.msk [vmem:[#allocation2 + $0x6e8] sm:$0xff] %vm3764, %v4908
  %4973 = vst.msk [vmem:[#allocation2 + $0x708] sm:$0xff] %vm3764, %v4909
  %4974 = vst.msk [vmem:[#allocation2 + $0x728] sm:$0xff] %vm3764, %v4910
  %4975 = vst.msk [vmem:[#allocation2 + $0x748] sm:$0xff] %vm3764, %v4911
  %4976 = vst.msk [vmem:[#allocation2 + $0x768] sm:$0xff] %vm3764, %v4912
  %4977 = vst.msk [vmem:[#allocation2 + $0x788] sm:$0xff] %vm3764, %v4913
  %4978 = vst.msk [vmem:[#allocation2 + $0x7a8] sm:$0xff] %vm3764, %v4914
  %4979 = vst.msk [vmem:[#allocation2 + $0x7c8] sm:$0xff] %vm3764, %v4915
  %4980 = vst.msk [vmem:[#allocation2 + $0x7e8] sm:$0xff] %vm3764, %v4916
  %4981 = vset.pattern.permute.xlu0 30
  %4982 = vperm.xlu0 %4981, %v2418
  %v4983 = vpop.permute.xlu0 %4982
  %v4986 = vunpack.c.l.s4 839922192
  %v4987 = vunpack.c.0.s8 %v4986
  %v4988 = vperm.slane %v4983, %v4987
  %4989 = vset.pattern.permute.xlu0 30
  %4990 = vperm.xlu0 %4989, %v2419
  %v4991 = vpop.permute.xlu0 %4990
  %v4994 = vunpack.c.l.s4 839922192
  %v4995 = vunpack.c.0.s8 %v4994
  %v4996 = vperm.slane %v4991, %v4995
  %4997 = vset.pattern.permute.xlu0 30
  %4998 = vperm.xlu0 %4997, %v2420
  %v4999 = vpop.permute.xlu0 %4998
  %v5002 = vunpack.c.l.s4 839922192
  %v5003 = vunpack.c.0.s8 %v5002
  %v5004 = vperm.slane %v4999, %v5003
  %5005 = vset.pattern.permute.xlu0 30
  %5006 = vperm.xlu0 %5005, %v2421
  %v5007 = vpop.permute.xlu0 %5006
  %v5010 = vunpack.c.l.s4 839922192
  %v5011 = vunpack.c.0.s8 %v5010
  %v5012 = vperm.slane %v5007, %v5011
  %5013 = vset.pattern.permute.xlu0 30
  %5014 = vperm.xlu0 %5013, %v2422
  %v5015 = vpop.permute.xlu0 %5014
  %v5018 = vunpack.c.l.s4 839922192
  %v5019 = vunpack.c.0.s8 %v5018
  %v5020 = vperm.slane %v5015, %v5019
  %5021 = vset.pattern.permute.xlu0 30
  %5022 = vperm.xlu0 %5021, %v2423
  %v5023 = vpop.permute.xlu0 %5022
  %v5026 = vunpack.c.l.s4 839922192
  %v5027 = vunpack.c.0.s8 %v5026
  %v5028 = vperm.slane %v5023, %v5027
  %5029 = vset.pattern.permute.xlu0 30
  %5030 = vperm.xlu0 %5029, %v2424
  %v5031 = vpop.permute.xlu0 %5030
  %v5034 = vunpack.c.l.s4 839922192
  %v5035 = vunpack.c.0.s8 %v5034
  %v5036 = vperm.slane %v5031, %v5035
  %5037 = vset.pattern.permute.xlu0 30
  %5038 = vperm.xlu0 %5037, %v2425
  %v5039 = vpop.permute.xlu0 %5038
  %v5042 = vunpack.c.l.s4 839922192
  %v5043 = vunpack.c.0.s8 %v5042
  %v5044 = vperm.slane %v5039, %v5043
  %5045 = vset.pattern.permute.xlu0 30
  %5046 = vperm.xlu0 %5045, %v2426
  %v5047 = vpop.permute.xlu0 %5046
  %v5050 = vunpack.c.l.s4 839922192
  %v5051 = vunpack.c.0.s8 %v5050
  %v5052 = vperm.slane %v5047, %v5051
  %5053 = vset.pattern.permute.xlu0 30
  %5054 = vperm.xlu0 %5053, %v2427
  %v5055 = vpop.permute.xlu0 %5054
  %v5058 = vunpack.c.l.s4 839922192
  %v5059 = vunpack.c.0.s8 %v5058
  %v5060 = vperm.slane %v5055, %v5059
  %5061 = vset.pattern.permute.xlu0 30
  %5062 = vperm.xlu0 %5061, %v2428
  %v5063 = vpop.permute.xlu0 %5062
  %v5066 = vunpack.c.l.s4 839922192
  %v5067 = vunpack.c.0.s8 %v5066
  %v5068 = vperm.slane %v5063, %v5067
  %5069 = vset.pattern.permute.xlu0 30
  %5070 = vperm.xlu0 %5069, %v2429
  %v5071 = vpop.permute.xlu0 %5070
  %v5074 = vunpack.c.l.s4 839922192
  %v5075 = vunpack.c.0.s8 %v5074
  %v5076 = vperm.slane %v5071, %v5075
  %5077 = vset.pattern.permute.xlu0 30
  %5078 = vperm.xlu0 %5077, %v2430
  %v5079 = vpop.permute.xlu0 %5078
  %v5082 = vunpack.c.l.s4 839922192
  %v5083 = vunpack.c.0.s8 %v5082
  %v5084 = vperm.slane %v5079, %v5083
  %5085 = vset.pattern.permute.xlu0 30
  %5086 = vperm.xlu0 %5085, %v2431
  %v5087 = vpop.permute.xlu0 %5086
  %v5090 = vunpack.c.l.s4 839922192
  %v5091 = vunpack.c.0.s8 %v5090
  %v5092 = vperm.slane %v5087, %v5091
  %5093 = vset.pattern.permute.xlu0 30
  %5094 = vperm.xlu0 %5093, %v2432
  %v5095 = vpop.permute.xlu0 %5094
  %v5098 = vunpack.c.l.s4 839922192
  %v5099 = vunpack.c.0.s8 %v5098
  %v5100 = vperm.slane %v5095, %v5099
  %5101 = vset.pattern.permute.xlu0 30
  %5102 = vperm.xlu0 %5101, %v2433
  %v5103 = vpop.permute.xlu0 %5102
  %v5106 = vunpack.c.l.s4 839922192
  %v5107 = vunpack.c.0.s8 %v5106
  %v5108 = vperm.slane %v5103, %v5107
  %5109 = vset.pattern.permute.xlu0 30
  %5110 = vperm.xlu0 %5109, %v2434
  %v5111 = vpop.permute.xlu0 %5110
  %v5114 = vunpack.c.l.s4 839922192
  %v5115 = vunpack.c.0.s8 %v5114
  %v5116 = vperm.slane %v5111, %v5115
  %5117 = vset.pattern.permute.xlu0 30
  %5118 = vperm.xlu0 %5117, %v2435
  %v5119 = vpop.permute.xlu0 %5118
  %v5122 = vunpack.c.l.s4 839922192
  %v5123 = vunpack.c.0.s8 %v5122
  %v5124 = vperm.slane %v5119, %v5123
  %5125 = vset.pattern.permute.xlu0 30
  %5126 = vperm.xlu0 %5125, %v2436
  %v5127 = vpop.permute.xlu0 %5126
  %v5130 = vunpack.c.l.s4 839922192
  %v5131 = vunpack.c.0.s8 %v5130
  %v5132 = vperm.slane %v5127, %v5131
  %5133 = vset.pattern.permute.xlu0 30
  %5134 = vperm.xlu0 %5133, %v2437
  %v5135 = vpop.permute.xlu0 %5134
  %v5138 = vunpack.c.l.s4 839922192
  %v5139 = vunpack.c.0.s8 %v5138
  %v5140 = vperm.slane %v5135, %v5139
  %5141 = vset.pattern.permute.xlu0 30
  %5142 = vperm.xlu0 %5141, %v2438
  %v5143 = vpop.permute.xlu0 %5142
  %v5146 = vunpack.c.l.s4 839922192
  %v5147 = vunpack.c.0.s8 %v5146
  %v5148 = vperm.slane %v5143, %v5147
  %5149 = vset.pattern.permute.xlu0 30
  %5150 = vperm.xlu0 %5149, %v2439
  %v5151 = vpop.permute.xlu0 %5150
  %v5154 = vunpack.c.l.s4 839922192
  %v5155 = vunpack.c.0.s8 %v5154
  %v5156 = vperm.slane %v5151, %v5155
  %5157 = vset.pattern.permute.xlu0 30
  %5158 = vperm.xlu0 %5157, %v2440
  %v5159 = vpop.permute.xlu0 %5158
  %v5162 = vunpack.c.l.s4 839922192
  %v5163 = vunpack.c.0.s8 %v5162
  %v5164 = vperm.slane %v5159, %v5163
  %5165 = vset.pattern.permute.xlu0 30
  %5166 = vperm.xlu0 %5165, %v2441
  %v5167 = vpop.permute.xlu0 %5166
  %v5170 = vunpack.c.l.s4 839922192
  %v5171 = vunpack.c.0.s8 %v5170
  %v5172 = vperm.slane %v5167, %v5171
  %5173 = vset.pattern.permute.xlu0 30
  %5174 = vperm.xlu0 %5173, %v2442
  %v5175 = vpop.permute.xlu0 %5174
  %v5178 = vunpack.c.l.s4 839922192
  %v5179 = vunpack.c.0.s8 %v5178
  %v5180 = vperm.slane %v5175, %v5179
  %5181 = vset.pattern.permute.xlu0 30
  %5182 = vperm.xlu0 %5181, %v2443
  %v5183 = vpop.permute.xlu0 %5182
  %v5186 = vunpack.c.l.s4 839922192
  %v5187 = vunpack.c.0.s8 %v5186
  %v5188 = vperm.slane %v5183, %v5187
  %5189 = vset.pattern.permute.xlu0 30
  %5190 = vperm.xlu0 %5189, %v2444
  %v5191 = vpop.permute.xlu0 %5190
  %v5194 = vunpack.c.l.s4 839922192
  %v5195 = vunpack.c.0.s8 %v5194
  %v5196 = vperm.slane %v5191, %v5195
  %5197 = vset.pattern.permute.xlu0 30
  %5198 = vperm.xlu0 %5197, %v2445
  %v5199 = vpop.permute.xlu0 %5198
  %v5202 = vunpack.c.l.s4 839922192
  %v5203 = vunpack.c.0.s8 %v5202
  %v5204 = vperm.slane %v5199, %v5203
  %5205 = vset.pattern.permute.xlu0 30
  %5206 = vperm.xlu0 %5205, %v2446
  %v5207 = vpop.permute.xlu0 %5206
  %v5210 = vunpack.c.l.s4 839922192
  %v5211 = vunpack.c.0.s8 %v5210
  %v5212 = vperm.slane %v5207, %v5211
  %5213 = vset.pattern.permute.xlu0 30
  %5214 = vperm.xlu0 %5213, %v2447
  %v5215 = vpop.permute.xlu0 %5214
  %v5218 = vunpack.c.l.s4 839922192
  %v5219 = vunpack.c.0.s8 %v5218
  %v5220 = vperm.slane %v5215, %v5219
  %5221 = vset.pattern.permute.xlu0 30
  %5222 = vperm.xlu0 %5221, %v2448
  %v5223 = vpop.permute.xlu0 %5222
  %v5226 = vunpack.c.l.s4 839922192
  %v5227 = vunpack.c.0.s8 %v5226
  %v5228 = vperm.slane %v5223, %v5227
  %5229 = vset.pattern.permute.xlu0 30
  %5230 = vperm.xlu0 %5229, %v2449
  %v5231 = vpop.permute.xlu0 %5230
  %v5234 = vunpack.c.l.s4 839922192
  %v5235 = vunpack.c.0.s8 %v5234
  %v5236 = vperm.slane %v5231, %v5235
  %5237 = vset.pattern.permute.xlu0 30
  %5238 = vperm.xlu0 %5237, %v2450
  %v5239 = vpop.permute.xlu0 %5238
  %v5242 = vunpack.c.l.s4 839922192
  %v5243 = vunpack.c.0.s8 %v5242
  %v5244 = vperm.slane %v5239, %v5243
  %5245 = vset.pattern.permute.xlu0 30
  %5246 = vperm.xlu0 %5245, %v2451
  %v5247 = vpop.permute.xlu0 %5246
  %v5250 = vunpack.c.l.s4 839922192
  %v5251 = vunpack.c.0.s8 %v5250
  %v5252 = vperm.slane %v5247, %v5251
  %5253 = vset.pattern.permute.xlu0 30
  %5254 = vperm.xlu0 %5253, %v2452
  %v5255 = vpop.permute.xlu0 %5254
  %v5258 = vunpack.c.l.s4 839922192
  %v5259 = vunpack.c.0.s8 %v5258
  %v5260 = vperm.slane %v5255, %v5259
  %5261 = vset.pattern.permute.xlu0 30
  %5262 = vperm.xlu0 %5261, %v2453
  %v5263 = vpop.permute.xlu0 %5262
  %v5266 = vunpack.c.l.s4 839922192
  %v5267 = vunpack.c.0.s8 %v5266
  %v5268 = vperm.slane %v5263, %v5267
  %5269 = vset.pattern.permute.xlu0 30
  %5270 = vperm.xlu0 %5269, %v2454
  %v5271 = vpop.permute.xlu0 %5270
  %v5274 = vunpack.c.l.s4 839922192
  %v5275 = vunpack.c.0.s8 %v5274
  %v5276 = vperm.slane %v5271, %v5275
  %5277 = vset.pattern.permute.xlu0 30
  %5278 = vperm.xlu0 %5277, %v2455
  %v5279 = vpop.permute.xlu0 %5278
  %v5282 = vunpack.c.l.s4 839922192
  %v5283 = vunpack.c.0.s8 %v5282
  %v5284 = vperm.slane %v5279, %v5283
  %5285 = vset.pattern.permute.xlu0 30
  %5286 = vperm.xlu0 %5285, %v2456
  %v5287 = vpop.permute.xlu0 %5286
  %v5290 = vunpack.c.l.s4 839922192
  %v5291 = vunpack.c.0.s8 %v5290
  %v5292 = vperm.slane %v5287, %v5291
  %5293 = vset.pattern.permute.xlu0 30
  %5294 = vperm.xlu0 %5293, %v2457
  %v5295 = vpop.permute.xlu0 %5294
  %v5298 = vunpack.c.l.s4 839922192
  %v5299 = vunpack.c.0.s8 %v5298
  %v5300 = vperm.slane %v5295, %v5299
  %5301 = vset.pattern.permute.xlu0 30
  %5302 = vperm.xlu0 %5301, %v2458
  %v5303 = vpop.permute.xlu0 %5302
  %v5306 = vunpack.c.l.s4 839922192
  %v5307 = vunpack.c.0.s8 %v5306
  %v5308 = vperm.slane %v5303, %v5307
  %5309 = vset.pattern.permute.xlu0 30
  %5310 = vperm.xlu0 %5309, %v2459
  %v5311 = vpop.permute.xlu0 %5310
  %v5314 = vunpack.c.l.s4 839922192
  %v5315 = vunpack.c.0.s8 %v5314
  %v5316 = vperm.slane %v5311, %v5315
  %5317 = vset.pattern.permute.xlu0 30
  %5318 = vperm.xlu0 %5317, %v2460
  %v5319 = vpop.permute.xlu0 %5318
  %v5322 = vunpack.c.l.s4 839922192
  %v5323 = vunpack.c.0.s8 %v5322
  %v5324 = vperm.slane %v5319, %v5323
  %5325 = vset.pattern.permute.xlu0 30
  %5326 = vperm.xlu0 %5325, %v2461
  %v5327 = vpop.permute.xlu0 %5326
  %v5330 = vunpack.c.l.s4 839922192
  %v5331 = vunpack.c.0.s8 %v5330
  %v5332 = vperm.slane %v5327, %v5331
  %5333 = vset.pattern.permute.xlu0 30
  %5334 = vperm.xlu0 %5333, %v2462
  %v5335 = vpop.permute.xlu0 %5334
  %v5338 = vunpack.c.l.s4 839922192
  %v5339 = vunpack.c.0.s8 %v5338
  %v5340 = vperm.slane %v5335, %v5339
  %5341 = vset.pattern.permute.xlu0 30
  %5342 = vperm.xlu0 %5341, %v2463
  %v5343 = vpop.permute.xlu0 %5342
  %v5346 = vunpack.c.l.s4 839922192
  %v5347 = vunpack.c.0.s8 %v5346
  %v5348 = vperm.slane %v5343, %v5347
  %5349 = vset.pattern.permute.xlu0 30
  %5350 = vperm.xlu0 %5349, %v2464
  %v5351 = vpop.permute.xlu0 %5350
  %v5354 = vunpack.c.l.s4 839922192
  %v5355 = vunpack.c.0.s8 %v5354
  %v5356 = vperm.slane %v5351, %v5355
  %5357 = vset.pattern.permute.xlu0 30
  %5358 = vperm.xlu0 %5357, %v2465
  %v5359 = vpop.permute.xlu0 %5358
  %v5362 = vunpack.c.l.s4 839922192
  %v5363 = vunpack.c.0.s8 %v5362
  %v5364 = vperm.slane %v5359, %v5363
  %5365 = vset.pattern.permute.xlu0 30
  %5366 = vperm.xlu0 %5365, %v2466
  %v5367 = vpop.permute.xlu0 %5366
  %v5370 = vunpack.c.l.s4 839922192
  %v5371 = vunpack.c.0.s8 %v5370
  %v5372 = vperm.slane %v5367, %v5371
  %5373 = vset.pattern.permute.xlu0 30
  %5374 = vperm.xlu0 %5373, %v2467
  %v5375 = vpop.permute.xlu0 %5374
  %v5378 = vunpack.c.l.s4 839922192
  %v5379 = vunpack.c.0.s8 %v5378
  %v5380 = vperm.slane %v5375, %v5379
  %5381 = vset.pattern.permute.xlu0 30
  %5382 = vperm.xlu0 %5381, %v2468
  %v5383 = vpop.permute.xlu0 %5382
  %v5386 = vunpack.c.l.s4 839922192
  %v5387 = vunpack.c.0.s8 %v5386
  %v5388 = vperm.slane %v5383, %v5387
  %5389 = vset.pattern.permute.xlu0 30
  %5390 = vperm.xlu0 %5389, %v2469
  %v5391 = vpop.permute.xlu0 %5390
  %v5394 = vunpack.c.l.s4 839922192
  %v5395 = vunpack.c.0.s8 %v5394
  %v5396 = vperm.slane %v5391, %v5395
  %5397 = vset.pattern.permute.xlu0 30
  %5398 = vperm.xlu0 %5397, %v2470
  %v5399 = vpop.permute.xlu0 %5398
  %v5402 = vunpack.c.l.s4 839922192
  %v5403 = vunpack.c.0.s8 %v5402
  %v5404 = vperm.slane %v5399, %v5403
  %5405 = vset.pattern.permute.xlu0 30
  %5406 = vperm.xlu0 %5405, %v2471
  %v5407 = vpop.permute.xlu0 %5406
  %v5410 = vunpack.c.l.s4 839922192
  %v5411 = vunpack.c.0.s8 %v5410
  %v5412 = vperm.slane %v5407, %v5411
  %5413 = vset.pattern.permute.xlu0 30
  %5414 = vperm.xlu0 %5413, %v2472
  %v5415 = vpop.permute.xlu0 %5414
  %v5418 = vunpack.c.l.s4 839922192
  %v5419 = vunpack.c.0.s8 %v5418
  %v5420 = vperm.slane %v5415, %v5419
  %5421 = vset.pattern.permute.xlu0 30
  %5422 = vperm.xlu0 %5421, %v2473
  %v5423 = vpop.permute.xlu0 %5422
  %v5426 = vunpack.c.l.s4 839922192
  %v5427 = vunpack.c.0.s8 %v5426
  %v5428 = vperm.slane %v5423, %v5427
  %5429 = vset.pattern.permute.xlu0 30
  %5430 = vperm.xlu0 %5429, %v2474
  %v5431 = vpop.permute.xlu0 %5430
  %v5434 = vunpack.c.l.s4 839922192
  %v5435 = vunpack.c.0.s8 %v5434
  %v5436 = vperm.slane %v5431, %v5435
  %5437 = vset.pattern.permute.xlu0 30
  %5438 = vperm.xlu0 %5437, %v2475
  %v5439 = vpop.permute.xlu0 %5438
  %v5442 = vunpack.c.l.s4 839922192
  %v5443 = vunpack.c.0.s8 %v5442
  %v5444 = vperm.slane %v5439, %v5443
  %5445 = vset.pattern.permute.xlu0 30
  %5446 = vperm.xlu0 %5445, %v2476
  %v5447 = vpop.permute.xlu0 %5446
  %v5450 = vunpack.c.l.s4 839922192
  %v5451 = vunpack.c.0.s8 %v5450
  %v5452 = vperm.slane %v5447, %v5451
  %5453 = vset.pattern.permute.xlu0 30
  %5454 = vperm.xlu0 %5453, %v2477
  %v5455 = vpop.permute.xlu0 %5454
  %v5458 = vunpack.c.l.s4 839922192
  %v5459 = vunpack.c.0.s8 %v5458
  %v5460 = vperm.slane %v5455, %v5459
  %5461 = vset.pattern.permute.xlu0 30
  %5462 = vperm.xlu0 %5461, %v2478
  %v5463 = vpop.permute.xlu0 %5462
  %v5466 = vunpack.c.l.s4 839922192
  %v5467 = vunpack.c.0.s8 %v5466
  %v5468 = vperm.slane %v5463, %v5467
  %5469 = vset.pattern.permute.xlu0 30
  %5470 = vperm.xlu0 %5469, %v2479
  %v5471 = vpop.permute.xlu0 %5470
  %v5474 = vunpack.c.l.s4 839922192
  %v5475 = vunpack.c.0.s8 %v5474
  %v5476 = vperm.slane %v5471, %v5475
  %5477 = vset.pattern.permute.xlu0 30
  %5478 = vperm.xlu0 %5477, %v2480
  %v5479 = vpop.permute.xlu0 %5478
  %v5482 = vunpack.c.l.s4 839922192
  %v5483 = vunpack.c.0.s8 %v5482
  %v5484 = vperm.slane %v5479, %v5483
  %5485 = vset.pattern.permute.xlu0 30
  %5486 = vperm.xlu0 %5485, %v2481
  %v5487 = vpop.permute.xlu0 %5486
  %v5490 = vunpack.c.l.s4 839922192
  %v5491 = vunpack.c.0.s8 %v5490
  %v5492 = vperm.slane %v5487, %v5491
  %v5493 = vunpack.c.l.bf16 %v4988
  %v5494 = vunpack.c.l.bf16 %v4996
  %v5495 = vunpack.c.l.bf16 %v5004
  %v5496 = vunpack.c.l.bf16 %v5012
  %v5497 = vunpack.c.l.bf16 %v5020
  %v5498 = vunpack.c.l.bf16 %v5028
  %v5499 = vunpack.c.l.bf16 %v5036
  %v5500 = vunpack.c.l.bf16 %v5044
  %v5501 = vunpack.c.l.bf16 %v5052
  %v5502 = vunpack.c.l.bf16 %v5060
  %v5503 = vunpack.c.l.bf16 %v5068
  %v5504 = vunpack.c.l.bf16 %v5076
  %v5505 = vunpack.c.l.bf16 %v5084
  %v5506 = vunpack.c.l.bf16 %v5092
  %v5507 = vunpack.c.l.bf16 %v5100
  %v5508 = vunpack.c.l.bf16 %v5108
  %v5509 = vunpack.c.l.bf16 %v5116
  %v5510 = vunpack.c.l.bf16 %v5124
  %v5511 = vunpack.c.l.bf16 %v5132
  %v5512 = vunpack.c.l.bf16 %v5140
  %v5513 = vunpack.c.l.bf16 %v5148
  %v5514 = vunpack.c.l.bf16 %v5156
  %v5515 = vunpack.c.l.bf16 %v5164
  %v5516 = vunpack.c.l.bf16 %v5172
  %v5517 = vunpack.c.l.bf16 %v5180
  %v5518 = vunpack.c.l.bf16 %v5188
  %v5519 = vunpack.c.l.bf16 %v5196
  %v5520 = vunpack.c.l.bf16 %v5204
  %v5521 = vunpack.c.l.bf16 %v5212
  %v5522 = vunpack.c.l.bf16 %v5220
  %v5523 = vunpack.c.l.bf16 %v5228
  %v5524 = vunpack.c.l.bf16 %v5236
  %v5525 = vunpack.c.l.bf16 %v5244
  %v5526 = vunpack.c.l.bf16 %v5252
  %v5527 = vunpack.c.l.bf16 %v5260
  %v5528 = vunpack.c.l.bf16 %v5268
  %v5529 = vunpack.c.l.bf16 %v5276
  %v5530 = vunpack.c.l.bf16 %v5284
  %v5531 = vunpack.c.l.bf16 %v5292
  %v5532 = vunpack.c.l.bf16 %v5300
  %v5533 = vunpack.c.l.bf16 %v5308
  %v5534 = vunpack.c.l.bf16 %v5316
  %v5535 = vunpack.c.l.bf16 %v5324
  %v5536 = vunpack.c.l.bf16 %v5332
  %v5537 = vunpack.c.l.bf16 %v5340
  %v5538 = vunpack.c.l.bf16 %v5348
  %v5539 = vunpack.c.l.bf16 %v5356
  %v5540 = vunpack.c.l.bf16 %v5364
  %v5541 = vunpack.c.l.bf16 %v5372
  %v5542 = vunpack.c.l.bf16 %v5380
  %v5543 = vunpack.c.l.bf16 %v5388
  %v5544 = vunpack.c.l.bf16 %v5396
  %v5545 = vunpack.c.l.bf16 %v5404
  %v5546 = vunpack.c.l.bf16 %v5412
  %v5547 = vunpack.c.l.bf16 %v5420
  %v5548 = vunpack.c.l.bf16 %v5428
  %v5549 = vunpack.c.l.bf16 %v5436
  %v5550 = vunpack.c.l.bf16 %v5444
  %v5551 = vunpack.c.l.bf16 %v5452
  %v5552 = vunpack.c.l.bf16 %v5460
  %v5553 = vunpack.c.l.bf16 %v5468
  %v5554 = vunpack.c.l.bf16 %v5476
  %v5555 = vunpack.c.l.bf16 %v5484
  %v5556 = vunpack.c.l.bf16 %v5492
  %v5557 = vadd.f32 %v3058, %v5493
  %v5558 = vadd.f32 %v3059, %v5493
  %v5559 = vadd.f32 %v3060, %v5494
  %v5560 = vadd.f32 %v3061, %v5494
  %v5561 = vadd.f32 %v3062, %v5495
  %v5562 = vadd.f32 %v3063, %v5495
  %v5563 = vadd.f32 %v3064, %v5496
  %v5564 = vadd.f32 %v3065, %v5496
  %v5565 = vadd.f32 %v3066, %v5497
  %v5566 = vadd.f32 %v3067, %v5497
  %v5567 = vadd.f32 %v3068, %v5498
  %v5568 = vadd.f32 %v3069, %v5498
  %v5569 = vadd.f32 %v3070, %v5499
  %v5570 = vadd.f32 %v3071, %v5499
  %v5571 = vadd.f32 %v3072, %v5500
  %v5572 = vadd.f32 %v3073, %v5500
  %v5573 = vadd.f32 %v3074, %v5501
  %v5574 = vadd.f32 %v3075, %v5501
  %v5575 = vadd.f32 %v3076, %v5502
  %v5576 = vadd.f32 %v3077, %v5502
  %v5577 = vadd.f32 %v3078, %v5503
  %v5578 = vadd.f32 %v3079, %v5503
  %v5579 = vadd.f32 %v3080, %v5504
  %v5580 = vadd.f32 %v3081, %v5504
  %v5581 = vadd.f32 %v3082, %v5505
  %v5582 = vadd.f32 %v3083, %v5505
  %v5583 = vadd.f32 %v3084, %v5506
  %v5584 = vadd.f32 %v3085, %v5506
  %v5585 = vadd.f32 %v3086, %v5507
  %v5586 = vadd.f32 %v3087, %v5507
  %v5587 = vadd.f32 %v3088, %v5508
  %v5588 = vadd.f32 %v3089, %v5508
  %v5589 = vadd.f32 %v3090, %v5509
  %v5590 = vadd.f32 %v3091, %v5509
  %v5591 = vadd.f32 %v3092, %v5510
  %v5592 = vadd.f32 %v3093, %v5510
  %v5593 = vadd.f32 %v3094, %v5511
  %v5594 = vadd.f32 %v3095, %v5511
  %v5595 = vadd.f32 %v3096, %v5512
  %v5596 = vadd.f32 %v3097, %v5512
  %v5597 = vadd.f32 %v3098, %v5513
  %v5598 = vadd.f32 %v3099, %v5513
  %v5599 = vadd.f32 %v3100, %v5514
  %v5600 = vadd.f32 %v3101, %v5514
  %v5601 = vadd.f32 %v3102, %v5515
  %v5602 = vadd.f32 %v3103, %v5515
  %v5603 = vadd.f32 %v3104, %v5516
  %v5604 = vadd.f32 %v3105, %v5516
  %v5605 = vadd.f32 %v3106, %v5517
  %v5606 = vadd.f32 %v3107, %v5517
  %v5607 = vadd.f32 %v3108, %v5518
  %v5608 = vadd.f32 %v3109, %v5518
  %v5609 = vadd.f32 %v3110, %v5519
  %v5610 = vadd.f32 %v3111, %v5519
  %v5611 = vadd.f32 %v3112, %v5520
  %v5612 = vadd.f32 %v3113, %v5520
  %v5613 = vadd.f32 %v3114, %v5521
  %v5614 = vadd.f32 %v3115, %v5521
  %v5615 = vadd.f32 %v3116, %v5522
  %v5616 = vadd.f32 %v3117, %v5522
  %v5617 = vadd.f32 %v3118, %v5523
  %v5618 = vadd.f32 %v3119, %v5523
  %v5619 = vadd.f32 %v3120, %v5524
  %v5620 = vadd.f32 %v3121, %v5524
  %v5621 = vadd.f32 %v3122, %v5525
  %v5622 = vadd.f32 %v3123, %v5525
  %v5623 = vadd.f32 %v3124, %v5526
  %v5624 = vadd.f32 %v3125, %v5526
  %v5625 = vadd.f32 %v3126, %v5527
  %v5626 = vadd.f32 %v3127, %v5527
  %v5627 = vadd.f32 %v3128, %v5528
  %v5628 = vadd.f32 %v3129, %v5528
  %v5629 = vadd.f32 %v3130, %v5529
  %v5630 = vadd.f32 %v3131, %v5529
  %v5631 = vadd.f32 %v3132, %v5530
  %v5632 = vadd.f32 %v3133, %v5530
  %v5633 = vadd.f32 %v3134, %v5531
  %v5634 = vadd.f32 %v3135, %v5531
  %v5635 = vadd.f32 %v3136, %v5532
  %v5636 = vadd.f32 %v3137, %v5532
  %v5637 = vadd.f32 %v3138, %v5533
  %v5638 = vadd.f32 %v3139, %v5533
  %v5639 = vadd.f32 %v3140, %v5534
  %v5640 = vadd.f32 %v3141, %v5534
  %v5641 = vadd.f32 %v3142, %v5535
  %v5642 = vadd.f32 %v3143, %v5535
  %v5643 = vadd.f32 %v3144, %v5536
  %v5644 = vadd.f32 %v3145, %v5536
  %v5645 = vadd.f32 %v3146, %v5537
  %v5646 = vadd.f32 %v3147, %v5537
  %v5647 = vadd.f32 %v3148, %v5538
  %v5648 = vadd.f32 %v3149, %v5538
  %v5649 = vadd.f32 %v3150, %v5539
  %v5650 = vadd.f32 %v3151, %v5539
  %v5651 = vadd.f32 %v3152, %v5540
  %v5652 = vadd.f32 %v3153, %v5540
  %v5653 = vadd.f32 %v3154, %v5541
  %v5654 = vadd.f32 %v3155, %v5541
  %v5655 = vadd.f32 %v3156, %v5542
  %v5656 = vadd.f32 %v3157, %v5542
  %v5657 = vadd.f32 %v3158, %v5543
  %v5658 = vadd.f32 %v3159, %v5543
  %v5659 = vadd.f32 %v3160, %v5544
  %v5660 = vadd.f32 %v3161, %v5544
  %v5661 = vadd.f32 %v3162, %v5545
  %v5662 = vadd.f32 %v3163, %v5545
  %v5663 = vadd.f32 %v3164, %v5546
  %v5664 = vadd.f32 %v3165, %v5546
  %v5665 = vadd.f32 %v3166, %v5547
  %v5666 = vadd.f32 %v3167, %v5547
  %v5667 = vadd.f32 %v3168, %v5548
  %v5668 = vadd.f32 %v3169, %v5548
  %v5669 = vadd.f32 %v3170, %v5549
  %v5670 = vadd.f32 %v3171, %v5549
  %v5671 = vadd.f32 %v3172, %v5550
  %v5672 = vadd.f32 %v3173, %v5550
  %v5673 = vadd.f32 %v3174, %v5551
  %v5674 = vadd.f32 %v3175, %v5551
  %v5675 = vadd.f32 %v3176, %v5552
  %v5676 = vadd.f32 %v3177, %v5552
  %v5677 = vadd.f32 %v3178, %v5553
  %v5678 = vadd.f32 %v3179, %v5553
  %v5679 = vadd.f32 %v3180, %v5554
  %v5680 = vadd.f32 %v3181, %v5554
  %v5681 = vadd.f32 %v3182, %v5555
  %v5682 = vadd.f32 %v3183, %v5555
  %v5683 = vadd.f32 %v3184, %v5556
  %v5684 = vadd.f32 %v3185, %v5556
  %v5685 = vpack.c.bf16 %v5558, %v5557
  %v5686 = vpack.c.bf16 %v5560, %v5559
  %v5687 = vpack.c.bf16 %v5562, %v5561
  %v5688 = vpack.c.bf16 %v5564, %v5563
  %v5689 = vpack.c.bf16 %v5566, %v5565
  %v5690 = vpack.c.bf16 %v5568, %v5567
  %v5691 = vpack.c.bf16 %v5570, %v5569
  %v5692 = vpack.c.bf16 %v5572, %v5571
  %v5693 = vpack.c.bf16 %v5574, %v5573
  %v5694 = vpack.c.bf16 %v5576, %v5575
  %v5695 = vpack.c.bf16 %v5578, %v5577
  %v5696 = vpack.c.bf16 %v5580, %v5579
  %v5697 = vpack.c.bf16 %v5582, %v5581
  %v5698 = vpack.c.bf16 %v5584, %v5583
  %v5699 = vpack.c.bf16 %v5586, %v5585
  %v5700 = vpack.c.bf16 %v5588, %v5587
  %v5701 = vpack.c.bf16 %v5590, %v5589
  %v5702 = vpack.c.bf16 %v5592, %v5591
  %v5703 = vpack.c.bf16 %v5594, %v5593
  %v5704 = vpack.c.bf16 %v5596, %v5595
  %v5705 = vpack.c.bf16 %v5598, %v5597
  %v5706 = vpack.c.bf16 %v5600, %v5599
  %v5707 = vpack.c.bf16 %v5602, %v5601
  %v5708 = vpack.c.bf16 %v5604, %v5603
  %v5709 = vpack.c.bf16 %v5606, %v5605
  %v5710 = vpack.c.bf16 %v5608, %v5607
  %v5711 = vpack.c.bf16 %v5610, %v5609
  %v5712 = vpack.c.bf16 %v5612, %v5611
  %v5713 = vpack.c.bf16 %v5614, %v5613
  %v5714 = vpack.c.bf16 %v5616, %v5615
  %v5715 = vpack.c.bf16 %v5618, %v5617
  %v5716 = vpack.c.bf16 %v5620, %v5619
  %v5717 = vpack.c.bf16 %v5622, %v5621
  %v5718 = vpack.c.bf16 %v5624, %v5623
  %v5719 = vpack.c.bf16 %v5626, %v5625
  %v5720 = vpack.c.bf16 %v5628, %v5627
  %v5721 = vpack.c.bf16 %v5630, %v5629
  %v5722 = vpack.c.bf16 %v5632, %v5631
  %v5723 = vpack.c.bf16 %v5634, %v5633
  %v5724 = vpack.c.bf16 %v5636, %v5635
  %v5725 = vpack.c.bf16 %v5638, %v5637
  %v5726 = vpack.c.bf16 %v5640, %v5639
  %v5727 = vpack.c.bf16 %v5642, %v5641
  %v5728 = vpack.c.bf16 %v5644, %v5643
  %v5729 = vpack.c.bf16 %v5646, %v5645
  %v5730 = vpack.c.bf16 %v5648, %v5647
  %v5731 = vpack.c.bf16 %v5650, %v5649
  %v5732 = vpack.c.bf16 %v5652, %v5651
  %v5733 = vpack.c.bf16 %v5654, %v5653
  %v5734 = vpack.c.bf16 %v5656, %v5655
  %v5735 = vpack.c.bf16 %v5658, %v5657
  %v5736 = vpack.c.bf16 %v5660, %v5659
  %v5737 = vpack.c.bf16 %v5662, %v5661
  %v5738 = vpack.c.bf16 %v5664, %v5663
  %v5739 = vpack.c.bf16 %v5666, %v5665
  %v5740 = vpack.c.bf16 %v5668, %v5667
  %v5741 = vpack.c.bf16 %v5670, %v5669
  %v5742 = vpack.c.bf16 %v5672, %v5671
  %v5743 = vpack.c.bf16 %v5674, %v5673
  %v5744 = vpack.c.bf16 %v5676, %v5675
  %v5745 = vpack.c.bf16 %v5678, %v5677
  %v5746 = vpack.c.bf16 %v5680, %v5679
  %v5747 = vpack.c.bf16 %v5682, %v5681
  %v5748 = vpack.c.bf16 %v5684, %v5683
  %v5749 = vunpack.c.l.bf16 %v5685
  %v5750 = vunpack.c.h.bf16 %v5685
  %v5751 = vunpack.c.l.bf16 %v5686
  %v5752 = vunpack.c.h.bf16 %v5686
  %v5753 = vunpack.c.l.bf16 %v5687
  %v5754 = vunpack.c.h.bf16 %v5687
  %v5755 = vunpack.c.l.bf16 %v5688
  %v5756 = vunpack.c.h.bf16 %v5688
  %v5757 = vunpack.c.l.bf16 %v5689
  %v5758 = vunpack.c.h.bf16 %v5689
  %v5759 = vunpack.c.l.bf16 %v5690
  %v5760 = vunpack.c.h.bf16 %v5690
  %v5761 = vunpack.c.l.bf16 %v5691
  %v5762 = vunpack.c.h.bf16 %v5691
  %v5763 = vunpack.c.l.bf16 %v5692
  %v5764 = vunpack.c.h.bf16 %v5692
  %v5765 = vunpack.c.l.bf16 %v5693
  %v5766 = vunpack.c.h.bf16 %v5693
  %v5767 = vunpack.c.l.bf16 %v5694
  %v5768 = vunpack.c.h.bf16 %v5694
  %v5769 = vunpack.c.l.bf16 %v5695
  %v5770 = vunpack.c.h.bf16 %v5695
  %v5771 = vunpack.c.l.bf16 %v5696
  %v5772 = vunpack.c.h.bf16 %v5696
  %v5773 = vunpack.c.l.bf16 %v5697
  %v5774 = vunpack.c.h.bf16 %v5697
  %v5775 = vunpack.c.l.bf16 %v5698
  %v5776 = vunpack.c.h.bf16 %v5698
  %v5777 = vunpack.c.l.bf16 %v5699
  %v5778 = vunpack.c.h.bf16 %v5699
  %v5779 = vunpack.c.l.bf16 %v5700
  %v5780 = vunpack.c.h.bf16 %v5700
  %v5781 = vunpack.c.l.bf16 %v5701
  %v5782 = vunpack.c.h.bf16 %v5701
  %v5783 = vunpack.c.l.bf16 %v5702
  %v5784 = vunpack.c.h.bf16 %v5702
  %v5785 = vunpack.c.l.bf16 %v5703
  %v5786 = vunpack.c.h.bf16 %v5703
  %v5787 = vunpack.c.l.bf16 %v5704
  %v5788 = vunpack.c.h.bf16 %v5704
  %v5789 = vunpack.c.l.bf16 %v5705
  %v5790 = vunpack.c.h.bf16 %v5705
  %v5791 = vunpack.c.l.bf16 %v5706
  %v5792 = vunpack.c.h.bf16 %v5706
  %v5793 = vunpack.c.l.bf16 %v5707
  %v5794 = vunpack.c.h.bf16 %v5707
  %v5795 = vunpack.c.l.bf16 %v5708
  %v5796 = vunpack.c.h.bf16 %v5708
  %v5797 = vunpack.c.l.bf16 %v5709
  %v5798 = vunpack.c.h.bf16 %v5709
  %v5799 = vunpack.c.l.bf16 %v5710
  %v5800 = vunpack.c.h.bf16 %v5710
  %v5801 = vunpack.c.l.bf16 %v5711
  %v5802 = vunpack.c.h.bf16 %v5711
  %v5803 = vunpack.c.l.bf16 %v5712
  %v5804 = vunpack.c.h.bf16 %v5712
  %v5805 = vunpack.c.l.bf16 %v5713
  %v5806 = vunpack.c.h.bf16 %v5713
  %v5807 = vunpack.c.l.bf16 %v5714
  %v5808 = vunpack.c.h.bf16 %v5714
  %v5809 = vunpack.c.l.bf16 %v5715
  %v5810 = vunpack.c.h.bf16 %v5715
  %v5811 = vunpack.c.l.bf16 %v5716
  %v5812 = vunpack.c.h.bf16 %v5716
  %v5813 = vunpack.c.l.bf16 %v5717
  %v5814 = vunpack.c.h.bf16 %v5717
  %v5815 = vunpack.c.l.bf16 %v5718
  %v5816 = vunpack.c.h.bf16 %v5718
  %v5817 = vunpack.c.l.bf16 %v5719
  %v5818 = vunpack.c.h.bf16 %v5719
  %v5819 = vunpack.c.l.bf16 %v5720
  %v5820 = vunpack.c.h.bf16 %v5720
  %v5821 = vunpack.c.l.bf16 %v5721
  %v5822 = vunpack.c.h.bf16 %v5721
  %v5823 = vunpack.c.l.bf16 %v5722
  %v5824 = vunpack.c.h.bf16 %v5722
  %v5825 = vunpack.c.l.bf16 %v5723
  %v5826 = vunpack.c.h.bf16 %v5723
  %v5827 = vunpack.c.l.bf16 %v5724
  %v5828 = vunpack.c.h.bf16 %v5724
  %v5829 = vunpack.c.l.bf16 %v5725
  %v5830 = vunpack.c.h.bf16 %v5725
  %v5831 = vunpack.c.l.bf16 %v5726
  %v5832 = vunpack.c.h.bf16 %v5726
  %v5833 = vunpack.c.l.bf16 %v5727
  %v5834 = vunpack.c.h.bf16 %v5727
  %v5835 = vunpack.c.l.bf16 %v5728
  %v5836 = vunpack.c.h.bf16 %v5728
  %v5837 = vunpack.c.l.bf16 %v5729
  %v5838 = vunpack.c.h.bf16 %v5729
  %v5839 = vunpack.c.l.bf16 %v5730
  %v5840 = vunpack.c.h.bf16 %v5730
  %v5841 = vunpack.c.l.bf16 %v5731
  %v5842 = vunpack.c.h.bf16 %v5731
  %v5843 = vunpack.c.l.bf16 %v5732
  %v5844 = vunpack.c.h.bf16 %v5732
  %v5845 = vunpack.c.l.bf16 %v5733
  %v5846 = vunpack.c.h.bf16 %v5733
  %v5847 = vunpack.c.l.bf16 %v5734
  %v5848 = vunpack.c.h.bf16 %v5734
  %v5849 = vunpack.c.l.bf16 %v5735
  %v5850 = vunpack.c.h.bf16 %v5735
  %v5851 = vunpack.c.l.bf16 %v5736
  %v5852 = vunpack.c.h.bf16 %v5736
  %v5853 = vunpack.c.l.bf16 %v5737
  %v5854 = vunpack.c.h.bf16 %v5737
  %v5855 = vunpack.c.l.bf16 %v5738
  %v5856 = vunpack.c.h.bf16 %v5738
  %v5857 = vunpack.c.l.bf16 %v5739
  %v5858 = vunpack.c.h.bf16 %v5739
  %v5859 = vunpack.c.l.bf16 %v5740
  %v5860 = vunpack.c.h.bf16 %v5740
  %v5861 = vunpack.c.l.bf16 %v5741
  %v5862 = vunpack.c.h.bf16 %v5741
  %v5863 = vunpack.c.l.bf16 %v5742
  %v5864 = vunpack.c.h.bf16 %v5742
  %v5865 = vunpack.c.l.bf16 %v5743
  %v5866 = vunpack.c.h.bf16 %v5743
  %v5867 = vunpack.c.l.bf16 %v5744
  %v5868 = vunpack.c.h.bf16 %v5744
  %v5869 = vunpack.c.l.bf16 %v5745
  %v5870 = vunpack.c.h.bf16 %v5745
  %v5871 = vunpack.c.l.bf16 %v5746
  %v5872 = vunpack.c.h.bf16 %v5746
  %v5873 = vunpack.c.l.bf16 %v5747
  %v5874 = vunpack.c.h.bf16 %v5747
  %v5875 = vunpack.c.l.bf16 %v5748
  %v5876 = vunpack.c.h.bf16 %v5748
  %v5877 = vmax.f32 %v5749, 0.0
  %v5878 = vmax.f32 %v5750, 0.0
  %v5879 = vmax.f32 %v5751, 0.0
  %v5880 = vmax.f32 %v5752, 0.0
  %v5881 = vmax.f32 %v5753, 0.0
  %v5882 = vmax.f32 %v5754, 0.0
  %v5883 = vmax.f32 %v5755, 0.0
  %v5884 = vmax.f32 %v5756, 0.0
  %v5885 = vmax.f32 %v5757, 0.0
  %v5886 = vmax.f32 %v5758, 0.0
  %v5887 = vmax.f32 %v5759, 0.0
  %v5888 = vmax.f32 %v5760, 0.0
  %v5889 = vmax.f32 %v5761, 0.0
  %v5890 = vmax.f32 %v5762, 0.0
  %v5891 = vmax.f32 %v5763, 0.0
  %v5892 = vmax.f32 %v5764, 0.0
  %v5893 = vmax.f32 %v5765, 0.0
  %v5894 = vmax.f32 %v5766, 0.0
  %v5895 = vmax.f32 %v5767, 0.0
  %v5896 = vmax.f32 %v5768, 0.0
  %v5897 = vmax.f32 %v5769, 0.0
  %v5898 = vmax.f32 %v5770, 0.0
  %v5899 = vmax.f32 %v5771, 0.0
  %v5900 = vmax.f32 %v5772, 0.0
  %v5901 = vmax.f32 %v5773, 0.0
  %v5902 = vmax.f32 %v5774, 0.0
  %v5903 = vmax.f32 %v5775, 0.0
  %v5904 = vmax.f32 %v5776, 0.0
  %v5905 = vmax.f32 %v5777, 0.0
  %v5906 = vmax.f32 %v5778, 0.0
  %v5907 = vmax.f32 %v5779, 0.0
  %v5908 = vmax.f32 %v5780, 0.0
  %v5909 = vmax.f32 %v5781, 0.0
  %v5910 = vmax.f32 %v5782, 0.0
  %v5911 = vmax.f32 %v5783, 0.0
  %v5912 = vmax.f32 %v5784, 0.0
  %v5913 = vmax.f32 %v5785, 0.0
  %v5914 = vmax.f32 %v5786, 0.0
  %v5915 = vmax.f32 %v5787, 0.0
  %v5916 = vmax.f32 %v5788, 0.0
  %v5917 = vmax.f32 %v5789, 0.0
  %v5918 = vmax.f32 %v5790, 0.0
  %v5919 = vmax.f32 %v5791, 0.0
  %v5920 = vmax.f32 %v5792, 0.0
  %v5921 = vmax.f32 %v5793, 0.0
  %v5922 = vmax.f32 %v5794, 0.0
  %v5923 = vmax.f32 %v5795, 0.0
  %v5924 = vmax.f32 %v5796, 0.0
  %v5925 = vmax.f32 %v5797, 0.0
  %v5926 = vmax.f32 %v5798, 0.0
  %v5927 = vmax.f32 %v5799, 0.0
  %v5928 = vmax.f32 %v5800, 0.0
  %v5929 = vmax.f32 %v5801, 0.0
  %v5930 = vmax.f32 %v5802, 0.0
  %v5931 = vmax.f32 %v5803, 0.0
  %v5932 = vmax.f32 %v5804, 0.0
  %v5933 = vmax.f32 %v5805, 0.0
  %v5934 = vmax.f32 %v5806, 0.0
  %v5935 = vmax.f32 %v5807, 0.0
  %v5936 = vmax.f32 %v5808, 0.0
  %v5937 = vmax.f32 %v5809, 0.0
  %v5938 = vmax.f32 %v5810, 0.0
  %v5939 = vmax.f32 %v5811, 0.0
  %v5940 = vmax.f32 %v5812, 0.0
  %v5941 = vmax.f32 %v5813, 0.0
  %v5942 = vmax.f32 %v5814, 0.0
  %v5943 = vmax.f32 %v5815, 0.0
  %v5944 = vmax.f32 %v5816, 0.0
  %v5945 = vmax.f32 %v5817, 0.0
  %v5946 = vmax.f32 %v5818, 0.0
  %v5947 = vmax.f32 %v5819, 0.0
  %v5948 = vmax.f32 %v5820, 0.0
  %v5949 = vmax.f32 %v5821, 0.0
  %v5950 = vmax.f32 %v5822, 0.0
  %v5951 = vmax.f32 %v5823, 0.0
  %v5952 = vmax.f32 %v5824, 0.0
  %v5953 = vmax.f32 %v5825, 0.0
  %v5954 = vmax.f32 %v5826, 0.0
  %v5955 = vmax.f32 %v5827, 0.0
  %v5956 = vmax.f32 %v5828, 0.0
  %v5957 = vmax.f32 %v5829, 0.0
  %v5958 = vmax.f32 %v5830, 0.0
  %v5959 = vmax.f32 %v5831, 0.0
  %v5960 = vmax.f32 %v5832, 0.0
  %v5961 = vmax.f32 %v5833, 0.0
  %v5962 = vmax.f32 %v5834, 0.0
  %v5963 = vmax.f32 %v5835, 0.0
  %v5964 = vmax.f32 %v5836, 0.0
  %v5965 = vmax.f32 %v5837, 0.0
  %v5966 = vmax.f32 %v5838, 0.0
  %v5967 = vmax.f32 %v5839, 0.0
  %v5968 = vmax.f32 %v5840, 0.0
  %v5969 = vmax.f32 %v5841, 0.0
  %v5970 = vmax.f32 %v5842, 0.0
  %v5971 = vmax.f32 %v5843, 0.0
  %v5972 = vmax.f32 %v5844, 0.0
  %v5973 = vmax.f32 %v5845, 0.0
  %v5974 = vmax.f32 %v5846, 0.0
  %v5975 = vmax.f32 %v5847, 0.0
  %v5976 = vmax.f32 %v5848, 0.0
  %v5977 = vmax.f32 %v5849, 0.0
  %v5978 = vmax.f32 %v5850, 0.0
  %v5979 = vmax.f32 %v5851, 0.0
  %v5980 = vmax.f32 %v5852, 0.0
  %v5981 = vmax.f32 %v5853, 0.0
  %v5982 = vmax.f32 %v5854, 0.0
  %v5983 = vmax.f32 %v5855, 0.0
  %v5984 = vmax.f32 %v5856, 0.0
  %v5985 = vmax.f32 %v5857, 0.0
  %v5986 = vmax.f32 %v5858, 0.0
  %v5987 = vmax.f32 %v5859, 0.0
  %v5988 = vmax.f32 %v5860, 0.0
  %v5989 = vmax.f32 %v5861, 0.0
  %v5990 = vmax.f32 %v5862, 0.0
  %v5991 = vmax.f32 %v5863, 0.0
  %v5992 = vmax.f32 %v5864, 0.0
  %v5993 = vmax.f32 %v5865, 0.0
  %v5994 = vmax.f32 %v5866, 0.0
  %v5995 = vmax.f32 %v5867, 0.0
  %v5996 = vmax.f32 %v5868, 0.0
  %v5997 = vmax.f32 %v5869, 0.0
  %v5998 = vmax.f32 %v5870, 0.0
  %v5999 = vmax.f32 %v5871, 0.0
  %v6000 = vmax.f32 %v5872, 0.0
  %v6001 = vmax.f32 %v5873, 0.0
  %v6002 = vmax.f32 %v5874, 0.0
  %v6003 = vmax.f32 %v5875, 0.0
  %v6004 = vmax.f32 %v5876, 0.0
  %v6005 = vpack.c.bf16 %v5878, %v5877
  %v6006 = vpack.c.bf16 %v5880, %v5879
  %v6007 = vpack.c.bf16 %v5882, %v5881
  %v6008 = vpack.c.bf16 %v5884, %v5883
  %v6009 = vpack.c.bf16 %v5886, %v5885
  %v6010 = vpack.c.bf16 %v5888, %v5887
  %v6011 = vpack.c.bf16 %v5890, %v5889
  %v6012 = vpack.c.bf16 %v5892, %v5891
  %v6013 = vpack.c.bf16 %v5894, %v5893
  %v6014 = vpack.c.bf16 %v5896, %v5895
  %v6015 = vpack.c.bf16 %v5898, %v5897
  %v6016 = vpack.c.bf16 %v5900, %v5899
  %v6017 = vpack.c.bf16 %v5902, %v5901
  %v6018 = vpack.c.bf16 %v5904, %v5903
  %v6019 = vpack.c.bf16 %v5906, %v5905
  %v6020 = vpack.c.bf16 %v5908, %v5907
  %v6021 = vpack.c.bf16 %v5910, %v5909
  %v6022 = vpack.c.bf16 %v5912, %v5911
  %v6023 = vpack.c.bf16 %v5914, %v5913
  %v6024 = vpack.c.bf16 %v5916, %v5915
  %v6025 = vpack.c.bf16 %v5918, %v5917
  %v6026 = vpack.c.bf16 %v5920, %v5919
  %v6027 = vpack.c.bf16 %v5922, %v5921
  %v6028 = vpack.c.bf16 %v5924, %v5923
  %v6029 = vpack.c.bf16 %v5926, %v5925
  %v6030 = vpack.c.bf16 %v5928, %v5927
  %v6031 = vpack.c.bf16 %v5930, %v5929
  %v6032 = vpack.c.bf16 %v5932, %v5931
  %v6033 = vpack.c.bf16 %v5934, %v5933
  %v6034 = vpack.c.bf16 %v5936, %v5935
  %v6035 = vpack.c.bf16 %v5938, %v5937
  %v6036 = vpack.c.bf16 %v5940, %v5939
  %v6037 = vpack.c.bf16 %v5942, %v5941
  %v6038 = vpack.c.bf16 %v5944, %v5943
  %v6039 = vpack.c.bf16 %v5946, %v5945
  %v6040 = vpack.c.bf16 %v5948, %v5947
  %v6041 = vpack.c.bf16 %v5950, %v5949
  %v6042 = vpack.c.bf16 %v5952, %v5951
  %v6043 = vpack.c.bf16 %v5954, %v5953
  %v6044 = vpack.c.bf16 %v5956, %v5955
  %v6045 = vpack.c.bf16 %v5958, %v5957
  %v6046 = vpack.c.bf16 %v5960, %v5959
  %v6047 = vpack.c.bf16 %v5962, %v5961
  %v6048 = vpack.c.bf16 %v5964, %v5963
  %v6049 = vpack.c.bf16 %v5966, %v5965
  %v6050 = vpack.c.bf16 %v5968, %v5967
  %v6051 = vpack.c.bf16 %v5970, %v5969
  %v6052 = vpack.c.bf16 %v5972, %v5971
  %v6053 = vpack.c.bf16 %v5974, %v5973
  %v6054 = vpack.c.bf16 %v5976, %v5975
  %v6055 = vpack.c.bf16 %v5978, %v5977
  %v6056 = vpack.c.bf16 %v5980, %v5979
  %v6057 = vpack.c.bf16 %v5982, %v5981
  %v6058 = vpack.c.bf16 %v5984, %v5983
  %v6059 = vpack.c.bf16 %v5986, %v5985
  %v6060 = vpack.c.bf16 %v5988, %v5987
  %v6061 = vpack.c.bf16 %v5990, %v5989
  %v6062 = vpack.c.bf16 %v5992, %v5991
  %v6063 = vpack.c.bf16 %v5994, %v5993
  %v6064 = vpack.c.bf16 %v5996, %v5995
  %v6065 = vpack.c.bf16 %v5998, %v5997
  %v6066 = vpack.c.bf16 %v6000, %v5999
  %v6067 = vpack.c.bf16 %v6002, %v6001
  %v6068 = vpack.c.bf16 %v6004, %v6003
  %6069 = vst.msk [vmem:[#allocation2 + $0x10] sm:$0xff] %vm3764, %v6005
  %6070 = vst.msk [vmem:[#allocation2 + $0x30] sm:$0xff] %vm3764, %v6006
  %6071 = vst.msk [vmem:[#allocation2 + $0x50] sm:$0xff] %vm3764, %v6007
  %6072 = vst.msk [vmem:[#allocation2 + $0x70] sm:$0xff] %vm3764, %v6008
  %6073 = vst.msk [vmem:[#allocation2 + $0x90] sm:$0xff] %vm3764, %v6009
  %6074 = vst.msk [vmem:[#allocation2 + $0xb0] sm:$0xff] %vm3764, %v6010
  %6075 = vst.msk [vmem:[#allocation2 + $0xd0] sm:$0xff] %vm3764, %v6011
  %6076 = vst.msk [vmem:[#allocation2 + $0xf0] sm:$0xff] %vm3764, %v6012
  %6077 = vst.msk [vmem:[#allocation2 + $0x110] sm:$0xff] %vm3764, %v6013
  %6078 = vst.msk [vmem:[#allocation2 + $0x130] sm:$0xff] %vm3764, %v6014
  %6079 = vst.msk [vmem:[#allocation2 + $0x150] sm:$0xff] %vm3764, %v6015
  %6080 = vst.msk [vmem:[#allocation2 + $0x170] sm:$0xff] %vm3764, %v6016
  %6081 = vst.msk [vmem:[#allocation2 + $0x190] sm:$0xff] %vm3764, %v6017
  %6082 = vst.msk [vmem:[#allocation2 + $0x1b0] sm:$0xff] %vm3764, %v6018
  %6083 = vst.msk [vmem:[#allocation2 + $0x1d0] sm:$0xff] %vm3764, %v6019
  %6084 = vst.msk [vmem:[#allocation2 + $0x1f0] sm:$0xff] %vm3764, %v6020
  %6085 = vst.msk [vmem:[#allocation2 + $0x210] sm:$0xff] %vm3764, %v6021
  %6086 = vst.msk [vmem:[#allocation2 + $0x230] sm:$0xff] %vm3764, %v6022
  %6087 = vst.msk [vmem:[#allocation2 + $0x250] sm:$0xff] %vm3764, %v6023
  %6088 = vst.msk [vmem:[#allocation2 + $0x270] sm:$0xff] %vm3764, %v6024
  %6089 = vst.msk [vmem:[#allocation2 + $0x290] sm:$0xff] %vm3764, %v6025
  %6090 = vst.msk [vmem:[#allocation2 + $0x2b0] sm:$0xff] %vm3764, %v6026
  %6091 = vst.msk [vmem:[#allocation2 + $0x2d0] sm:$0xff] %vm3764, %v6027
  %6092 = vst.msk [vmem:[#allocation2 + $0x2f0] sm:$0xff] %vm3764, %v6028
  %6093 = vst.msk [vmem:[#allocation2 + $0x310] sm:$0xff] %vm3764, %v6029
  %6094 = vst.msk [vmem:[#allocation2 + $0x330] sm:$0xff] %vm3764, %v6030
  %6095 = vst.msk [vmem:[#allocation2 + $0x350] sm:$0xff] %vm3764, %v6031
  %6096 = vst.msk [vmem:[#allocation2 + $0x370] sm:$0xff] %vm3764, %v6032
  %6097 = vst.msk [vmem:[#allocation2 + $0x390] sm:$0xff] %vm3764, %v6033
  %6098 = vst.msk [vmem:[#allocation2 + $0x3b0] sm:$0xff] %vm3764, %v6034
  %6099 = vst.msk [vmem:[#allocation2 + $0x3d0] sm:$0xff] %vm3764, %v6035
  %6100 = vst.msk [vmem:[#allocation2 + $0x3f0] sm:$0xff] %vm3764, %v6036
  %6101 = vst.msk [vmem:[#allocation2 + $0x410] sm:$0xff] %vm3764, %v6037
  %6102 = vst.msk [vmem:[#allocation2 + $0x430] sm:$0xff] %vm3764, %v6038
  %6103 = vst.msk [vmem:[#allocation2 + $0x450] sm:$0xff] %vm3764, %v6039
  %6104 = vst.msk [vmem:[#allocation2 + $0x470] sm:$0xff] %vm3764, %v6040
  %6105 = vst.msk [vmem:[#allocation2 + $0x490] sm:$0xff] %vm3764, %v6041
  %6106 = vst.msk [vmem:[#allocation2 + $0x4b0] sm:$0xff] %vm3764, %v6042
  %6107 = vst.msk [vmem:[#allocation2 + $0x4d0] sm:$0xff] %vm3764, %v6043
  %6108 = vst.msk [vmem:[#allocation2 + $0x4f0] sm:$0xff] %vm3764, %v6044
  %6109 = vst.msk [vmem:[#allocation2 + $0x510] sm:$0xff] %vm3764, %v6045
  %6110 = vst.msk [vmem:[#allocation2 + $0x530] sm:$0xff] %vm3764, %v6046
  %6111 = vst.msk [vmem:[#allocation2 + $0x550] sm:$0xff] %vm3764, %v6047
  %6112 = vst.msk [vmem:[#allocation2 + $0x570] sm:$0xff] %vm3764, %v6048
  %6113 = vst.msk [vmem:[#allocation2 + $0x590] sm:$0xff] %vm3764, %v6049
  %6114 = vst.msk [vmem:[#allocation2 + $0x5b0] sm:$0xff] %vm3764, %v6050
  %6115 = vst.msk [vmem:[#allocation2 + $0x5d0] sm:$0xff] %vm3764, %v6051
  %6116 = vst.msk [vmem:[#allocation2 + $0x5f0] sm:$0xff] %vm3764, %v6052
  %6117 = vst.msk [vmem:[#allocation2 + $0x610] sm:$0xff] %vm3764, %v6053
  %6118 = vst.msk [vmem:[#allocation2 + $0x630] sm:$0xff] %vm3764, %v6054
  %6119 = vst.msk [vmem:[#allocation2 + $0x650] sm:$0xff] %vm3764, %v6055
  %6120 = vst.msk [vmem:[#allocation2 + $0x670] sm:$0xff] %vm3764, %v6056
  %6121 = vst.msk [vmem:[#allocation2 + $0x690] sm:$0xff] %vm3764, %v6057
  %6122 = vst.msk [vmem:[#allocation2 + $0x6b0] sm:$0xff] %vm3764, %v6058
  %6123 = vst.msk [vmem:[#allocation2 + $0x6d0] sm:$0xff] %vm3764, %v6059
  %6124 = vst.msk [vmem:[#allocation2 + $0x6f0] sm:$0xff] %vm3764, %v6060
  %6125 = vst.msk [vmem:[#allocation2 + $0x710] sm:$0xff] %vm3764, %v6061
  %6126 = vst.msk [vmem:[#allocation2 + $0x730] sm:$0xff] %vm3764, %v6062
  %6127 = vst.msk [vmem:[#allocation2 + $0x750] sm:$0xff] %vm3764, %v6063
  %6128 = vst.msk [vmem:[#allocation2 + $0x770] sm:$0xff] %vm3764, %v6064
  %6129 = vst.msk [vmem:[#allocation2 + $0x790] sm:$0xff] %vm3764, %v6065
  %6130 = vst.msk [vmem:[#allocation2 + $0x7b0] sm:$0xff] %vm3764, %v6066
  %6131 = vst.msk [vmem:[#allocation2 + $0x7d0] sm:$0xff] %vm3764, %v6067
  %6132 = vst.msk [vmem:[#allocation2 + $0x7f0] sm:$0xff] %vm3764, %v6068
  %6133 = vset.pattern.permute.xlu0 31
  %6134 = vperm.xlu0 %6133, %v2418
  %v6135 = vpop.permute.xlu0 %6134
  %v6138 = vunpack.c.l.s4 839922192
  %v6139 = vunpack.c.0.s8 %v6138
  %v6140 = vperm.slane %v6135, %v6139
  %6141 = vset.pattern.permute.xlu0 31
  %6142 = vperm.xlu0 %6141, %v2419
  %v6143 = vpop.permute.xlu0 %6142
  %v6146 = vunpack.c.l.s4 839922192
  %v6147 = vunpack.c.0.s8 %v6146
  %v6148 = vperm.slane %v6143, %v6147
  %6149 = vset.pattern.permute.xlu0 31
  %6150 = vperm.xlu0 %6149, %v2420
  %v6151 = vpop.permute.xlu0 %6150
  %v6154 = vunpack.c.l.s4 839922192
  %v6155 = vunpack.c.0.s8 %v6154
  %v6156 = vperm.slane %v6151, %v6155
  %6157 = vset.pattern.permute.xlu0 31
  %6158 = vperm.xlu0 %6157, %v2421
  %v6159 = vpop.permute.xlu0 %6158
  %v6162 = vunpack.c.l.s4 839922192
  %v6163 = vunpack.c.0.s8 %v6162
  %v6164 = vperm.slane %v6159, %v6163
  %6165 = vset.pattern.permute.xlu0 31
  %6166 = vperm.xlu0 %6165, %v2422
  %v6167 = vpop.permute.xlu0 %6166
  %v6170 = vunpack.c.l.s4 839922192
  %v6171 = vunpack.c.0.s8 %v6170
  %v6172 = vperm.slane %v6167, %v6171
  %6173 = vset.pattern.permute.xlu0 31
  %6174 = vperm.xlu0 %6173, %v2423
  %v6175 = vpop.permute.xlu0 %6174
  %v6178 = vunpack.c.l.s4 839922192
  %v6179 = vunpack.c.0.s8 %v6178
  %v6180 = vperm.slane %v6175, %v6179
  %6181 = vset.pattern.permute.xlu0 31
  %6182 = vperm.xlu0 %6181, %v2424
  %v6183 = vpop.permute.xlu0 %6182
  %v6186 = vunpack.c.l.s4 839922192
  %v6187 = vunpack.c.0.s8 %v6186
  %v6188 = vperm.slane %v6183, %v6187
  %6189 = vset.pattern.permute.xlu0 31
  %6190 = vperm.xlu0 %6189, %v2425
  %v6191 = vpop.permute.xlu0 %6190
  %v6194 = vunpack.c.l.s4 839922192
  %v6195 = vunpack.c.0.s8 %v6194
  %v6196 = vperm.slane %v6191, %v6195
  %6197 = vset.pattern.permute.xlu0 31
  %6198 = vperm.xlu0 %6197, %v2426
  %v6199 = vpop.permute.xlu0 %6198
  %v6202 = vunpack.c.l.s4 839922192
  %v6203 = vunpack.c.0.s8 %v6202
  %v6204 = vperm.slane %v6199, %v6203
  %6205 = vset.pattern.permute.xlu0 31
  %6206 = vperm.xlu0 %6205, %v2427
  %v6207 = vpop.permute.xlu0 %6206
  %v6210 = vunpack.c.l.s4 839922192
  %v6211 = vunpack.c.0.s8 %v6210
  %v6212 = vperm.slane %v6207, %v6211
  %6213 = vset.pattern.permute.xlu0 31
  %6214 = vperm.xlu0 %6213, %v2428
  %v6215 = vpop.permute.xlu0 %6214
  %v6218 = vunpack.c.l.s4 839922192
  %v6219 = vunpack.c.0.s8 %v6218
  %v6220 = vperm.slane %v6215, %v6219
  %6221 = vset.pattern.permute.xlu0 31
  %6222 = vperm.xlu0 %6221, %v2429
  %v6223 = vpop.permute.xlu0 %6222
  %v6226 = vunpack.c.l.s4 839922192
  %v6227 = vunpack.c.0.s8 %v6226
  %v6228 = vperm.slane %v6223, %v6227
  %6229 = vset.pattern.permute.xlu0 31
  %6230 = vperm.xlu0 %6229, %v2430
  %v6231 = vpop.permute.xlu0 %6230
  %v6234 = vunpack.c.l.s4 839922192
  %v6235 = vunpack.c.0.s8 %v6234
  %v6236 = vperm.slane %v6231, %v6235
  %6237 = vset.pattern.permute.xlu0 31
  %6238 = vperm.xlu0 %6237, %v2431
  %v6239 = vpop.permute.xlu0 %6238
  %v6242 = vunpack.c.l.s4 839922192
  %v6243 = vunpack.c.0.s8 %v6242
  %v6244 = vperm.slane %v6239, %v6243
  %6245 = vset.pattern.permute.xlu0 31
  %6246 = vperm.xlu0 %6245, %v2432
  %v6247 = vpop.permute.xlu0 %6246
  %v6250 = vunpack.c.l.s4 839922192
  %v6251 = vunpack.c.0.s8 %v6250
  %v6252 = vperm.slane %v6247, %v6251
  %6253 = vset.pattern.permute.xlu0 31
  %6254 = vperm.xlu0 %6253, %v2433
  %v6255 = vpop.permute.xlu0 %6254
  %v6258 = vunpack.c.l.s4 839922192
  %v6259 = vunpack.c.0.s8 %v6258
  %v6260 = vperm.slane %v6255, %v6259
  %6261 = vset.pattern.permute.xlu0 31
  %6262 = vperm.xlu0 %6261, %v2434
  %v6263 = vpop.permute.xlu0 %6262
  %v6266 = vunpack.c.l.s4 839922192
  %v6267 = vunpack.c.0.s8 %v6266
  %v6268 = vperm.slane %v6263, %v6267
  %6269 = vset.pattern.permute.xlu0 31
  %6270 = vperm.xlu0 %6269, %v2435
  %v6271 = vpop.permute.xlu0 %6270
  %v6274 = vunpack.c.l.s4 839922192
  %v6275 = vunpack.c.0.s8 %v6274
  %v6276 = vperm.slane %v6271, %v6275
  %6277 = vset.pattern.permute.xlu0 31
  %6278 = vperm.xlu0 %6277, %v2436
  %v6279 = vpop.permute.xlu0 %6278
  %v6282 = vunpack.c.l.s4 839922192
  %v6283 = vunpack.c.0.s8 %v6282
  %v6284 = vperm.slane %v6279, %v6283
  %6285 = vset.pattern.permute.xlu0 31
  %6286 = vperm.xlu0 %6285, %v2437
  %v6287 = vpop.permute.xlu0 %6286
  %v6290 = vunpack.c.l.s4 839922192
  %v6291 = vunpack.c.0.s8 %v6290
  %v6292 = vperm.slane %v6287, %v6291
  %6293 = vset.pattern.permute.xlu0 31
  %6294 = vperm.xlu0 %6293, %v2438
  %v6295 = vpop.permute.xlu0 %6294
  %v6298 = vunpack.c.l.s4 839922192
  %v6299 = vunpack.c.0.s8 %v6298
  %v6300 = vperm.slane %v6295, %v6299
  %6301 = vset.pattern.permute.xlu0 31
  %6302 = vperm.xlu0 %6301, %v2439
  %v6303 = vpop.permute.xlu0 %6302
  %v6306 = vunpack.c.l.s4 839922192
  %v6307 = vunpack.c.0.s8 %v6306
  %v6308 = vperm.slane %v6303, %v6307
  %6309 = vset.pattern.permute.xlu0 31
  %6310 = vperm.xlu0 %6309, %v2440
  %v6311 = vpop.permute.xlu0 %6310
  %v6314 = vunpack.c.l.s4 839922192
  %v6315 = vunpack.c.0.s8 %v6314
  %v6316 = vperm.slane %v6311, %v6315
  %6317 = vset.pattern.permute.xlu0 31
  %6318 = vperm.xlu0 %6317, %v2441
  %v6319 = vpop.permute.xlu0 %6318
  %v6322 = vunpack.c.l.s4 839922192
  %v6323 = vunpack.c.0.s8 %v6322
  %v6324 = vperm.slane %v6319, %v6323
  %6325 = vset.pattern.permute.xlu0 31
  %6326 = vperm.xlu0 %6325, %v2442
  %v6327 = vpop.permute.xlu0 %6326
  %v6330 = vunpack.c.l.s4 839922192
  %v6331 = vunpack.c.0.s8 %v6330
  %v6332 = vperm.slane %v6327, %v6331
  %6333 = vset.pattern.permute.xlu0 31
  %6334 = vperm.xlu0 %6333, %v2443
  %v6335 = vpop.permute.xlu0 %6334
  %v6338 = vunpack.c.l.s4 839922192
  %v6339 = vunpack.c.0.s8 %v6338
  %v6340 = vperm.slane %v6335, %v6339
  %6341 = vset.pattern.permute.xlu0 31
  %6342 = vperm.xlu0 %6341, %v2444
  %v6343 = vpop.permute.xlu0 %6342
  %v6346 = vunpack.c.l.s4 839922192
  %v6347 = vunpack.c.0.s8 %v6346
  %v6348 = vperm.slane %v6343, %v6347
  %6349 = vset.pattern.permute.xlu0 31
  %6350 = vperm.xlu0 %6349, %v2445
  %v6351 = vpop.permute.xlu0 %6350
  %v6354 = vunpack.c.l.s4 839922192
  %v6355 = vunpack.c.0.s8 %v6354
  %v6356 = vperm.slane %v6351, %v6355
  %6357 = vset.pattern.permute.xlu0 31
  %6358 = vperm.xlu0 %6357, %v2446
  %v6359 = vpop.permute.xlu0 %6358
  %v6362 = vunpack.c.l.s4 839922192
  %v6363 = vunpack.c.0.s8 %v6362
  %v6364 = vperm.slane %v6359, %v6363
  %6365 = vset.pattern.permute.xlu0 31
  %6366 = vperm.xlu0 %6365, %v2447
  %v6367 = vpop.permute.xlu0 %6366
  %v6370 = vunpack.c.l.s4 839922192
  %v6371 = vunpack.c.0.s8 %v6370
  %v6372 = vperm.slane %v6367, %v6371
  %6373 = vset.pattern.permute.xlu0 31
  %6374 = vperm.xlu0 %6373, %v2448
  %v6375 = vpop.permute.xlu0 %6374
  %v6378 = vunpack.c.l.s4 839922192
  %v6379 = vunpack.c.0.s8 %v6378
  %v6380 = vperm.slane %v6375, %v6379
  %6381 = vset.pattern.permute.xlu0 31
  %6382 = vperm.xlu0 %6381, %v2449
  %v6383 = vpop.permute.xlu0 %6382
  %v6386 = vunpack.c.l.s4 839922192
  %v6387 = vunpack.c.0.s8 %v6386
  %v6388 = vperm.slane %v6383, %v6387
  %6389 = vset.pattern.permute.xlu0 31
  %6390 = vperm.xlu0 %6389, %v2450
  %v6391 = vpop.permute.xlu0 %6390
  %v6394 = vunpack.c.l.s4 839922192
  %v6395 = vunpack.c.0.s8 %v6394
  %v6396 = vperm.slane %v6391, %v6395
  %6397 = vset.pattern.permute.xlu0 31
  %6398 = vperm.xlu0 %6397, %v2451
  %v6399 = vpop.permute.xlu0 %6398
  %v6402 = vunpack.c.l.s4 839922192
  %v6403 = vunpack.c.0.s8 %v6402
  %v6404 = vperm.slane %v6399, %v6403
  %6405 = vset.pattern.permute.xlu0 31
  %6406 = vperm.xlu0 %6405, %v2452
  %v6407 = vpop.permute.xlu0 %6406
  %v6410 = vunpack.c.l.s4 839922192
  %v6411 = vunpack.c.0.s8 %v6410
  %v6412 = vperm.slane %v6407, %v6411
  %6413 = vset.pattern.permute.xlu0 31
  %6414 = vperm.xlu0 %6413, %v2453
  %v6415 = vpop.permute.xlu0 %6414
  %v6418 = vunpack.c.l.s4 839922192
  %v6419 = vunpack.c.0.s8 %v6418
  %v6420 = vperm.slane %v6415, %v6419
  %6421 = vset.pattern.permute.xlu0 31
  %6422 = vperm.xlu0 %6421, %v2454
  %v6423 = vpop.permute.xlu0 %6422
  %v6426 = vunpack.c.l.s4 839922192
  %v6427 = vunpack.c.0.s8 %v6426
  %v6428 = vperm.slane %v6423, %v6427
  %6429 = vset.pattern.permute.xlu0 31
  %6430 = vperm.xlu0 %6429, %v2455
  %v6431 = vpop.permute.xlu0 %6430
  %v6434 = vunpack.c.l.s4 839922192
  %v6435 = vunpack.c.0.s8 %v6434
  %v6436 = vperm.slane %v6431, %v6435
  %6437 = vset.pattern.permute.xlu0 31
  %6438 = vperm.xlu0 %6437, %v2456
  %v6439 = vpop.permute.xlu0 %6438
  %v6442 = vunpack.c.l.s4 839922192
  %v6443 = vunpack.c.0.s8 %v6442
  %v6444 = vperm.slane %v6439, %v6443
  %6445 = vset.pattern.permute.xlu0 31
  %6446 = vperm.xlu0 %6445, %v2457
  %v6447 = vpop.permute.xlu0 %6446
  %v6450 = vunpack.c.l.s4 839922192
  %v6451 = vunpack.c.0.s8 %v6450
  %v6452 = vperm.slane %v6447, %v6451
  %6453 = vset.pattern.permute.xlu0 31
  %6454 = vperm.xlu0 %6453, %v2458
  %v6455 = vpop.permute.xlu0 %6454
  %v6458 = vunpack.c.l.s4 839922192
  %v6459 = vunpack.c.0.s8 %v6458
  %v6460 = vperm.slane %v6455, %v6459
  %6461 = vset.pattern.permute.xlu0 31
  %6462 = vperm.xlu0 %6461, %v2459
  %v6463 = vpop.permute.xlu0 %6462
  %v6466 = vunpack.c.l.s4 839922192
  %v6467 = vunpack.c.0.s8 %v6466
  %v6468 = vperm.slane %v6463, %v6467
  %6469 = vset.pattern.permute.xlu0 31
  %6470 = vperm.xlu0 %6469, %v2460
  %v6471 = vpop.permute.xlu0 %6470
  %v6474 = vunpack.c.l.s4 839922192
  %v6475 = vunpack.c.0.s8 %v6474
  %v6476 = vperm.slane %v6471, %v6475
  %6477 = vset.pattern.permute.xlu0 31
  %6478 = vperm.xlu0 %6477, %v2461
  %v6479 = vpop.permute.xlu0 %6478
  %v6482 = vunpack.c.l.s4 839922192
  %v6483 = vunpack.c.0.s8 %v6482
  %v6484 = vperm.slane %v6479, %v6483
  %6485 = vset.pattern.permute.xlu0 31
  %6486 = vperm.xlu0 %6485, %v2462
  %v6487 = vpop.permute.xlu0 %6486
  %v6490 = vunpack.c.l.s4 839922192
  %v6491 = vunpack.c.0.s8 %v6490
  %v6492 = vperm.slane %v6487, %v6491
  %6493 = vset.pattern.permute.xlu0 31
  %6494 = vperm.xlu0 %6493, %v2463
  %v6495 = vpop.permute.xlu0 %6494
  %v6498 = vunpack.c.l.s4 839922192
  %v6499 = vunpack.c.0.s8 %v6498
  %v6500 = vperm.slane %v6495, %v6499
  %6501 = vset.pattern.permute.xlu0 31
  %6502 = vperm.xlu0 %6501, %v2464
  %v6503 = vpop.permute.xlu0 %6502
  %v6506 = vunpack.c.l.s4 839922192
  %v6507 = vunpack.c.0.s8 %v6506
  %v6508 = vperm.slane %v6503, %v6507
  %6509 = vset.pattern.permute.xlu0 31
  %6510 = vperm.xlu0 %6509, %v2465
  %v6511 = vpop.permute.xlu0 %6510
  %v6514 = vunpack.c.l.s4 839922192
  %v6515 = vunpack.c.0.s8 %v6514
  %v6516 = vperm.slane %v6511, %v6515
  %6517 = vset.pattern.permute.xlu0 31
  %6518 = vperm.xlu0 %6517, %v2466
  %v6519 = vpop.permute.xlu0 %6518
  %v6522 = vunpack.c.l.s4 839922192
  %v6523 = vunpack.c.0.s8 %v6522
  %v6524 = vperm.slane %v6519, %v6523
  %6525 = vset.pattern.permute.xlu0 31
  %6526 = vperm.xlu0 %6525, %v2467
  %v6527 = vpop.permute.xlu0 %6526
  %v6530 = vunpack.c.l.s4 839922192
  %v6531 = vunpack.c.0.s8 %v6530
  %v6532 = vperm.slane %v6527, %v6531
  %6533 = vset.pattern.permute.xlu0 31
  %6534 = vperm.xlu0 %6533, %v2468
  %v6535 = vpop.permute.xlu0 %6534
  %v6538 = vunpack.c.l.s4 839922192
  %v6539 = vunpack.c.0.s8 %v6538
  %v6540 = vperm.slane %v6535, %v6539
  %6541 = vset.pattern.permute.xlu0 31
  %6542 = vperm.xlu0 %6541, %v2469
  %v6543 = vpop.permute.xlu0 %6542
  %v6546 = vunpack.c.l.s4 839922192
  %v6547 = vunpack.c.0.s8 %v6546
  %v6548 = vperm.slane %v6543, %v6547
  %6549 = vset.pattern.permute.xlu0 31
  %6550 = vperm.xlu0 %6549, %v2470
  %v6551 = vpop.permute.xlu0 %6550
  %v6554 = vunpack.c.l.s4 839922192
  %v6555 = vunpack.c.0.s8 %v6554
  %v6556 = vperm.slane %v6551, %v6555
  %6557 = vset.pattern.permute.xlu0 31
  %6558 = vperm.xlu0 %6557, %v2471
  %v6559 = vpop.permute.xlu0 %6558
  %v6562 = vunpack.c.l.s4 839922192
  %v6563 = vunpack.c.0.s8 %v6562
  %v6564 = vperm.slane %v6559, %v6563
  %6565 = vset.pattern.permute.xlu0 31
  %6566 = vperm.xlu0 %6565, %v2472
  %v6567 = vpop.permute.xlu0 %6566
  %v6570 = vunpack.c.l.s4 839922192
  %v6571 = vunpack.c.0.s8 %v6570
  %v6572 = vperm.slane %v6567, %v6571
  %6573 = vset.pattern.permute.xlu0 31
  %6574 = vperm.xlu0 %6573, %v2473
  %v6575 = vpop.permute.xlu0 %6574
  %v6578 = vunpack.c.l.s4 839922192
  %v6579 = vunpack.c.0.s8 %v6578
  %v6580 = vperm.slane %v6575, %v6579
  %6581 = vset.pattern.permute.xlu0 31
  %6582 = vperm.xlu0 %6581, %v2474
  %v6583 = vpop.permute.xlu0 %6582
  %v6586 = vunpack.c.l.s4 839922192
  %v6587 = vunpack.c.0.s8 %v6586
  %v6588 = vperm.slane %v6583, %v6587
  %6589 = vset.pattern.permute.xlu0 31
  %6590 = vperm.xlu0 %6589, %v2475
  %v6591 = vpop.permute.xlu0 %6590
  %v6594 = vunpack.c.l.s4 839922192
  %v6595 = vunpack.c.0.s8 %v6594
  %v6596 = vperm.slane %v6591, %v6595
  %6597 = vset.pattern.permute.xlu0 31
  %6598 = vperm.xlu0 %6597, %v2476
  %v6599 = vpop.permute.xlu0 %6598
  %v6602 = vunpack.c.l.s4 839922192
  %v6603 = vunpack.c.0.s8 %v6602
  %v6604 = vperm.slane %v6599, %v6603
  %6605 = vset.pattern.permute.xlu0 31
  %6606 = vperm.xlu0 %6605, %v2477
  %v6607 = vpop.permute.xlu0 %6606
  %v6610 = vunpack.c.l.s4 839922192
  %v6611 = vunpack.c.0.s8 %v6610
  %v6612 = vperm.slane %v6607, %v6611
  %6613 = vset.pattern.permute.xlu0 31
  %6614 = vperm.xlu0 %6613, %v2478
  %v6615 = vpop.permute.xlu0 %6614
  %v6618 = vunpack.c.l.s4 839922192
  %v6619 = vunpack.c.0.s8 %v6618
  %v6620 = vperm.slane %v6615, %v6619
  %6621 = vset.pattern.permute.xlu0 31
  %6622 = vperm.xlu0 %6621, %v2479
  %v6623 = vpop.permute.xlu0 %6622
  %v6626 = vunpack.c.l.s4 839922192
  %v6627 = vunpack.c.0.s8 %v6626
  %v6628 = vperm.slane %v6623, %v6627
  %6629 = vset.pattern.permute.xlu0 31
  %6630 = vperm.xlu0 %6629, %v2480
  %v6631 = vpop.permute.xlu0 %6630
  %v6634 = vunpack.c.l.s4 839922192
  %v6635 = vunpack.c.0.s8 %v6634
  %v6636 = vperm.slane %v6631, %v6635
  %6637 = vset.pattern.permute.xlu0 31
  %6638 = vperm.xlu0 %6637, %v2481
  %v6639 = vpop.permute.xlu0 %6638
  %v6642 = vunpack.c.l.s4 839922192
  %v6643 = vunpack.c.0.s8 %v6642
  %v6644 = vperm.slane %v6639, %v6643
  %v6645 = vunpack.c.l.bf16 %v6140
  %v6646 = vunpack.c.l.bf16 %v6148
  %v6647 = vunpack.c.l.bf16 %v6156
  %v6648 = vunpack.c.l.bf16 %v6164
  %v6649 = vunpack.c.l.bf16 %v6172
  %v6650 = vunpack.c.l.bf16 %v6180
  %v6651 = vunpack.c.l.bf16 %v6188
  %v6652 = vunpack.c.l.bf16 %v6196
  %v6653 = vunpack.c.l.bf16 %v6204
  %v6654 = vunpack.c.l.bf16 %v6212
  %v6655 = vunpack.c.l.bf16 %v6220
  %v6656 = vunpack.c.l.bf16 %v6228
  %v6657 = vunpack.c.l.bf16 %v6236
  %v6658 = vunpack.c.l.bf16 %v6244
  %v6659 = vunpack.c.l.bf16 %v6252
  %v6660 = vunpack.c.l.bf16 %v6260
  %v6661 = vunpack.c.l.bf16 %v6268
  %v6662 = vunpack.c.l.bf16 %v6276
  %v6663 = vunpack.c.l.bf16 %v6284
  %v6664 = vunpack.c.l.bf16 %v6292
  %v6665 = vunpack.c.l.bf16 %v6300
  %v6666 = vunpack.c.l.bf16 %v6308
  %v6667 = vunpack.c.l.bf16 %v6316
  %v6668 = vunpack.c.l.bf16 %v6324
  %v6669 = vunpack.c.l.bf16 %v6332
  %v6670 = vunpack.c.l.bf16 %v6340
  %v6671 = vunpack.c.l.bf16 %v6348
  %v6672 = vunpack.c.l.bf16 %v6356
  %v6673 = vunpack.c.l.bf16 %v6364
  %v6674 = vunpack.c.l.bf16 %v6372
  %v6675 = vunpack.c.l.bf16 %v6380
  %v6676 = vunpack.c.l.bf16 %v6388
  %v6677 = vunpack.c.l.bf16 %v6396
  %v6678 = vunpack.c.l.bf16 %v6404
  %v6679 = vunpack.c.l.bf16 %v6412
  %v6680 = vunpack.c.l.bf16 %v6420
  %v6681 = vunpack.c.l.bf16 %v6428
  %v6682 = vunpack.c.l.bf16 %v6436
  %v6683 = vunpack.c.l.bf16 %v6444
  %v6684 = vunpack.c.l.bf16 %v6452
  %v6685 = vunpack.c.l.bf16 %v6460
  %v6686 = vunpack.c.l.bf16 %v6468
  %v6687 = vunpack.c.l.bf16 %v6476
  %v6688 = vunpack.c.l.bf16 %v6484
  %v6689 = vunpack.c.l.bf16 %v6492
  %v6690 = vunpack.c.l.bf16 %v6500
  %v6691 = vunpack.c.l.bf16 %v6508
  %v6692 = vunpack.c.l.bf16 %v6516
  %v6693 = vunpack.c.l.bf16 %v6524
  %v6694 = vunpack.c.l.bf16 %v6532
  %v6695 = vunpack.c.l.bf16 %v6540
  %v6696 = vunpack.c.l.bf16 %v6548
  %v6697 = vunpack.c.l.bf16 %v6556
  %v6698 = vunpack.c.l.bf16 %v6564
  %v6699 = vunpack.c.l.bf16 %v6572
  %v6700 = vunpack.c.l.bf16 %v6580
  %v6701 = vunpack.c.l.bf16 %v6588
  %v6702 = vunpack.c.l.bf16 %v6596
  %v6703 = vunpack.c.l.bf16 %v6604
  %v6704 = vunpack.c.l.bf16 %v6612
  %v6705 = vunpack.c.l.bf16 %v6620
  %v6706 = vunpack.c.l.bf16 %v6628
  %v6707 = vunpack.c.l.bf16 %v6636
  %v6708 = vunpack.c.l.bf16 %v6644
  %v6709 = vadd.f32 %v3058, %v6645
  %v6710 = vadd.f32 %v3059, %v6645
  %v6711 = vadd.f32 %v3060, %v6646
  %v6712 = vadd.f32 %v3061, %v6646
  %v6713 = vadd.f32 %v3062, %v6647
  %v6714 = vadd.f32 %v3063, %v6647
  %v6715 = vadd.f32 %v3064, %v6648
  %v6716 = vadd.f32 %v3065, %v6648
  %v6717 = vadd.f32 %v3066, %v6649
  %v6718 = vadd.f32 %v3067, %v6649
  %v6719 = vadd.f32 %v3068, %v6650
  %v6720 = vadd.f32 %v3069, %v6650
  %v6721 = vadd.f32 %v3070, %v6651
  %v6722 = vadd.f32 %v3071, %v6651
  %v6723 = vadd.f32 %v3072, %v6652
  %v6724 = vadd.f32 %v3073, %v6652
  %v6725 = vadd.f32 %v3074, %v6653
  %v6726 = vadd.f32 %v3075, %v6653
  %v6727 = vadd.f32 %v3076, %v6654
  %v6728 = vadd.f32 %v3077, %v6654
  %v6729 = vadd.f32 %v3078, %v6655
  %v6730 = vadd.f32 %v3079, %v6655
  %v6731 = vadd.f32 %v3080, %v6656
  %v6732 = vadd.f32 %v3081, %v6656
  %v6733 = vadd.f32 %v3082, %v6657
  %v6734 = vadd.f32 %v3083, %v6657
  %v6735 = vadd.f32 %v3084, %v6658
  %v6736 = vadd.f32 %v3085, %v6658
  %v6737 = vadd.f32 %v3086, %v6659
  %v6738 = vadd.f32 %v3087, %v6659
  %v6739 = vadd.f32 %v3088, %v6660
  %v6740 = vadd.f32 %v3089, %v6660
  %v6741 = vadd.f32 %v3090, %v6661
  %v6742 = vadd.f32 %v3091, %v6661
  %v6743 = vadd.f32 %v3092, %v6662
  %v6744 = vadd.f32 %v3093, %v6662
  %v6745 = vadd.f32 %v3094, %v6663
  %v6746 = vadd.f32 %v3095, %v6663
  %v6747 = vadd.f32 %v3096, %v6664
  %v6748 = vadd.f32 %v3097, %v6664
  %v6749 = vadd.f32 %v3098, %v6665
  %v6750 = vadd.f32 %v3099, %v6665
  %v6751 = vadd.f32 %v3100, %v6666
  %v6752 = vadd.f32 %v3101, %v6666
  %v6753 = vadd.f32 %v3102, %v6667
  %v6754 = vadd.f32 %v3103, %v6667
  %v6755 = vadd.f32 %v3104, %v6668
  %v6756 = vadd.f32 %v3105, %v6668
  %v6757 = vadd.f32 %v3106, %v6669
  %v6758 = vadd.f32 %v3107, %v6669
  %v6759 = vadd.f32 %v3108, %v6670
  %v6760 = vadd.f32 %v3109, %v6670
  %v6761 = vadd.f32 %v3110, %v6671
  %v6762 = vadd.f32 %v3111, %v6671
  %v6763 = vadd.f32 %v3112, %v6672
  %v6764 = vadd.f32 %v3113, %v6672
  %v6765 = vadd.f32 %v3114, %v6673
  %v6766 = vadd.f32 %v3115, %v6673
  %v6767 = vadd.f32 %v3116, %v6674
  %v6768 = vadd.f32 %v3117, %v6674
  %v6769 = vadd.f32 %v3118, %v6675
  %v6770 = vadd.f32 %v3119, %v6675
  %v6771 = vadd.f32 %v3120, %v6676
  %v6772 = vadd.f32 %v3121, %v6676
  %v6773 = vadd.f32 %v3122, %v6677
  %v6774 = vadd.f32 %v3123, %v6677
  %v6775 = vadd.f32 %v3124, %v6678
  %v6776 = vadd.f32 %v3125, %v6678
  %v6777 = vadd.f32 %v3126, %v6679
  %v6778 = vadd.f32 %v3127, %v6679
  %v6779 = vadd.f32 %v3128, %v6680
  %v6780 = vadd.f32 %v3129, %v6680
  %v6781 = vadd.f32 %v3130, %v6681
  %v6782 = vadd.f32 %v3131, %v6681
  %v6783 = vadd.f32 %v3132, %v6682
  %v6784 = vadd.f32 %v3133, %v6682
  %v6785 = vadd.f32 %v3134, %v6683
  %v6786 = vadd.f32 %v3135, %v6683
  %v6787 = vadd.f32 %v3136, %v6684
  %v6788 = vadd.f32 %v3137, %v6684
  %v6789 = vadd.f32 %v3138, %v6685
  %v6790 = vadd.f32 %v3139, %v6685
  %v6791 = vadd.f32 %v3140, %v6686
  %v6792 = vadd.f32 %v3141, %v6686
  %v6793 = vadd.f32 %v3142, %v6687
  %v6794 = vadd.f32 %v3143, %v6687
  %v6795 = vadd.f32 %v3144, %v6688
  %v6796 = vadd.f32 %v3145, %v6688
  %v6797 = vadd.f32 %v3146, %v6689
  %v6798 = vadd.f32 %v3147, %v6689
  %v6799 = vadd.f32 %v3148, %v6690
  %v6800 = vadd.f32 %v3149, %v6690
  %v6801 = vadd.f32 %v3150, %v6691
  %v6802 = vadd.f32 %v3151, %v6691
  %v6803 = vadd.f32 %v3152, %v6692
  %v6804 = vadd.f32 %v3153, %v6692
  %v6805 = vadd.f32 %v3154, %v6693
  %v6806 = vadd.f32 %v3155, %v6693
  %v6807 = vadd.f32 %v3156, %v6694
  %v6808 = vadd.f32 %v3157, %v6694
  %v6809 = vadd.f32 %v3158, %v6695
  %v6810 = vadd.f32 %v3159, %v6695
  %v6811 = vadd.f32 %v3160, %v6696
  %v6812 = vadd.f32 %v3161, %v6696
  %v6813 = vadd.f32 %v3162, %v6697
  %v6814 = vadd.f32 %v3163, %v6697
  %v6815 = vadd.f32 %v3164, %v6698
  %v6816 = vadd.f32 %v3165, %v6698
  %v6817 = vadd.f32 %v3166, %v6699
  %v6818 = vadd.f32 %v3167, %v6699
  %v6819 = vadd.f32 %v3168, %v6700
  %v6820 = vadd.f32 %v3169, %v6700
  %v6821 = vadd.f32 %v3170, %v6701
  %v6822 = vadd.f32 %v3171, %v6701
  %v6823 = vadd.f32 %v3172, %v6702
  %v6824 = vadd.f32 %v3173, %v6702
  %v6825 = vadd.f32 %v3174, %v6703
  %v6826 = vadd.f32 %v3175, %v6703
  %v6827 = vadd.f32 %v3176, %v6704
  %v6828 = vadd.f32 %v3177, %v6704
  %v6829 = vadd.f32 %v3178, %v6705
  %v6830 = vadd.f32 %v3179, %v6705
  %v6831 = vadd.f32 %v3180, %v6706
  %v6832 = vadd.f32 %v3181, %v6706
  %v6833 = vadd.f32 %v3182, %v6707
  %v6834 = vadd.f32 %v3183, %v6707
  %v6835 = vadd.f32 %v3184, %v6708
  %v6836 = vadd.f32 %v3185, %v6708
  %v6837 = vpack.c.bf16 %v6710, %v6709
  %v6838 = vpack.c.bf16 %v6712, %v6711
  %v6839 = vpack.c.bf16 %v6714, %v6713
  %v6840 = vpack.c.bf16 %v6716, %v6715
  %v6841 = vpack.c.bf16 %v6718, %v6717
  %v6842 = vpack.c.bf16 %v6720, %v6719
  %v6843 = vpack.c.bf16 %v6722, %v6721
  %v6844 = vpack.c.bf16 %v6724, %v6723
  %v6845 = vpack.c.bf16 %v6726, %v6725
  %v6846 = vpack.c.bf16 %v6728, %v6727
  %v6847 = vpack.c.bf16 %v6730, %v6729
  %v6848 = vpack.c.bf16 %v6732, %v6731
  %v6849 = vpack.c.bf16 %v6734, %v6733
  %v6850 = vpack.c.bf16 %v6736, %v6735
  %v6851 = vpack.c.bf16 %v6738, %v6737
  %v6852 = vpack.c.bf16 %v6740, %v6739
  %v6853 = vpack.c.bf16 %v6742, %v6741
  %v6854 = vpack.c.bf16 %v6744, %v6743
  %v6855 = vpack.c.bf16 %v6746, %v6745
  %v6856 = vpack.c.bf16 %v6748, %v6747
  %v6857 = vpack.c.bf16 %v6750, %v6749
  %v6858 = vpack.c.bf16 %v6752, %v6751
  %v6859 = vpack.c.bf16 %v6754, %v6753
  %v6860 = vpack.c.bf16 %v6756, %v6755
  %v6861 = vpack.c.bf16 %v6758, %v6757
  %v6862 = vpack.c.bf16 %v6760, %v6759
  %v6863 = vpack.c.bf16 %v6762, %v6761
  %v6864 = vpack.c.bf16 %v6764, %v6763
  %v6865 = vpack.c.bf16 %v6766, %v6765
  %v6866 = vpack.c.bf16 %v6768, %v6767
  %v6867 = vpack.c.bf16 %v6770, %v6769
  %v6868 = vpack.c.bf16 %v6772, %v6771
  %v6869 = vpack.c.bf16 %v6774, %v6773
  %v6870 = vpack.c.bf16 %v6776, %v6775
  %v6871 = vpack.c.bf16 %v6778, %v6777
  %v6872 = vpack.c.bf16 %v6780, %v6779
  %v6873 = vpack.c.bf16 %v6782, %v6781
  %v6874 = vpack.c.bf16 %v6784, %v6783
  %v6875 = vpack.c.bf16 %v6786, %v6785
  %v6876 = vpack.c.bf16 %v6788, %v6787
  %v6877 = vpack.c.bf16 %v6790, %v6789
  %v6878 = vpack.c.bf16 %v6792, %v6791
  %v6879 = vpack.c.bf16 %v6794, %v6793
  %v6880 = vpack.c.bf16 %v6796, %v6795
  %v6881 = vpack.c.bf16 %v6798, %v6797
  %v6882 = vpack.c.bf16 %v6800, %v6799
  %v6883 = vpack.c.bf16 %v6802, %v6801
  %v6884 = vpack.c.bf16 %v6804, %v6803
  %v6885 = vpack.c.bf16 %v6806, %v6805
  %v6886 = vpack.c.bf16 %v6808, %v6807
  %v6887 = vpack.c.bf16 %v6810, %v6809
  %v6888 = vpack.c.bf16 %v6812, %v6811
  %v6889 = vpack.c.bf16 %v6814, %v6813
  %v6890 = vpack.c.bf16 %v6816, %v6815
  %v6891 = vpack.c.bf16 %v6818, %v6817
  %v6892 = vpack.c.bf16 %v6820, %v6819
  %v6893 = vpack.c.bf16 %v6822, %v6821
  %v6894 = vpack.c.bf16 %v6824, %v6823
  %v6895 = vpack.c.bf16 %v6826, %v6825
  %v6896 = vpack.c.bf16 %v6828, %v6827
  %v6897 = vpack.c.bf16 %v6830, %v6829
  %v6898 = vpack.c.bf16 %v6832, %v6831
  %v6899 = vpack.c.bf16 %v6834, %v6833
  %v6900 = vpack.c.bf16 %v6836, %v6835
  %v6901 = vunpack.c.l.bf16 %v6837
  %v6902 = vunpack.c.h.bf16 %v6837
  %v6903 = vunpack.c.l.bf16 %v6838
  %v6904 = vunpack.c.h.bf16 %v6838
  %v6905 = vunpack.c.l.bf16 %v6839
  %v6906 = vunpack.c.h.bf16 %v6839
  %v6907 = vunpack.c.l.bf16 %v6840
  %v6908 = vunpack.c.h.bf16 %v6840
  %v6909 = vunpack.c.l.bf16 %v6841
  %v6910 = vunpack.c.h.bf16 %v6841
  %v6911 = vunpack.c.l.bf16 %v6842
  %v6912 = vunpack.c.h.bf16 %v6842
  %v6913 = vunpack.c.l.bf16 %v6843
  %v6914 = vunpack.c.h.bf16 %v6843
  %v6915 = vunpack.c.l.bf16 %v6844
  %v6916 = vunpack.c.h.bf16 %v6844
  %v6917 = vunpack.c.l.bf16 %v6845
  %v6918 = vunpack.c.h.bf16 %v6845
  %v6919 = vunpack.c.l.bf16 %v6846
  %v6920 = vunpack.c.h.bf16 %v6846
  %v6921 = vunpack.c.l.bf16 %v6847
  %v6922 = vunpack.c.h.bf16 %v6847
  %v6923 = vunpack.c.l.bf16 %v6848
  %v6924 = vunpack.c.h.bf16 %v6848
  %v6925 = vunpack.c.l.bf16 %v6849
  %v6926 = vunpack.c.h.bf16 %v6849
  %v6927 = vunpack.c.l.bf16 %v6850
  %v6928 = vunpack.c.h.bf16 %v6850
  %v6929 = vunpack.c.l.bf16 %v6851
  %v6930 = vunpack.c.h.bf16 %v6851
  %v6931 = vunpack.c.l.bf16 %v6852
  %v6932 = vunpack.c.h.bf16 %v6852
  %v6933 = vunpack.c.l.bf16 %v6853
  %v6934 = vunpack.c.h.bf16 %v6853
  %v6935 = vunpack.c.l.bf16 %v6854
  %v6936 = vunpack.c.h.bf16 %v6854
  %v6937 = vunpack.c.l.bf16 %v6855
  %v6938 = vunpack.c.h.bf16 %v6855
  %v6939 = vunpack.c.l.bf16 %v6856
  %v6940 = vunpack.c.h.bf16 %v6856
  %v6941 = vunpack.c.l.bf16 %v6857
  %v6942 = vunpack.c.h.bf16 %v6857
  %v6943 = vunpack.c.l.bf16 %v6858
  %v6944 = vunpack.c.h.bf16 %v6858
  %v6945 = vunpack.c.l.bf16 %v6859
  %v6946 = vunpack.c.h.bf16 %v6859
  %v6947 = vunpack.c.l.bf16 %v6860
  %v6948 = vunpack.c.h.bf16 %v6860
  %v6949 = vunpack.c.l.bf16 %v6861
  %v6950 = vunpack.c.h.bf16 %v6861
  %v6951 = vunpack.c.l.bf16 %v6862
  %v6952 = vunpack.c.h.bf16 %v6862
  %v6953 = vunpack.c.l.bf16 %v6863
  %v6954 = vunpack.c.h.bf16 %v6863
  %v6955 = vunpack.c.l.bf16 %v6864
  %v6956 = vunpack.c.h.bf16 %v6864
  %v6957 = vunpack.c.l.bf16 %v6865
  %v6958 = vunpack.c.h.bf16 %v6865
  %v6959 = vunpack.c.l.bf16 %v6866
  %v6960 = vunpack.c.h.bf16 %v6866
  %v6961 = vunpack.c.l.bf16 %v6867
  %v6962 = vunpack.c.h.bf16 %v6867
  %v6963 = vunpack.c.l.bf16 %v6868
  %v6964 = vunpack.c.h.bf16 %v6868
  %v6965 = vunpack.c.l.bf16 %v6869
  %v6966 = vunpack.c.h.bf16 %v6869
  %v6967 = vunpack.c.l.bf16 %v6870
  %v6968 = vunpack.c.h.bf16 %v6870
  %v6969 = vunpack.c.l.bf16 %v6871
  %v6970 = vunpack.c.h.bf16 %v6871
  %v6971 = vunpack.c.l.bf16 %v6872
  %v6972 = vunpack.c.h.bf16 %v6872
  %v6973 = vunpack.c.l.bf16 %v6873
  %v6974 = vunpack.c.h.bf16 %v6873
  %v6975 = vunpack.c.l.bf16 %v6874
  %v6976 = vunpack.c.h.bf16 %v6874
  %v6977 = vunpack.c.l.bf16 %v6875
  %v6978 = vunpack.c.h.bf16 %v6875
  %v6979 = vunpack.c.l.bf16 %v6876
  %v6980 = vunpack.c.h.bf16 %v6876
  %v6981 = vunpack.c.l.bf16 %v6877
  %v6982 = vunpack.c.h.bf16 %v6877
  %v6983 = vunpack.c.l.bf16 %v6878
  %v6984 = vunpack.c.h.bf16 %v6878
  %v6985 = vunpack.c.l.bf16 %v6879
  %v6986 = vunpack.c.h.bf16 %v6879
  %v6987 = vunpack.c.l.bf16 %v6880
  %v6988 = vunpack.c.h.bf16 %v6880
  %v6989 = vunpack.c.l.bf16 %v6881
  %v6990 = vunpack.c.h.bf16 %v6881
  %v6991 = vunpack.c.l.bf16 %v6882
  %v6992 = vunpack.c.h.bf16 %v6882
  %v6993 = vunpack.c.l.bf16 %v6883
  %v6994 = vunpack.c.h.bf16 %v6883
  %v6995 = vunpack.c.l.bf16 %v6884
  %v6996 = vunpack.c.h.bf16 %v6884
  %v6997 = vunpack.c.l.bf16 %v6885
  %v6998 = vunpack.c.h.bf16 %v6885
  %v6999 = vunpack.c.l.bf16 %v6886
  %v7000 = vunpack.c.h.bf16 %v6886
  %v7001 = vunpack.c.l.bf16 %v6887
  %v7002 = vunpack.c.h.bf16 %v6887
  %v7003 = vunpack.c.l.bf16 %v6888
  %v7004 = vunpack.c.h.bf16 %v6888
  %v7005 = vunpack.c.l.bf16 %v6889
  %v7006 = vunpack.c.h.bf16 %v6889
  %v7007 = vunpack.c.l.bf16 %v6890
  %v7008 = vunpack.c.h.bf16 %v6890
  %v7009 = vunpack.c.l.bf16 %v6891
  %v7010 = vunpack.c.h.bf16 %v6891
  %v7011 = vunpack.c.l.bf16 %v6892
  %v7012 = vunpack.c.h.bf16 %v6892
  %v7013 = vunpack.c.l.bf16 %v6893
  %v7014 = vunpack.c.h.bf16 %v6893
  %v7015 = vunpack.c.l.bf16 %v6894
  %v7016 = vunpack.c.h.bf16 %v6894
  %v7017 = vunpack.c.l.bf16 %v6895
  %v7018 = vunpack.c.h.bf16 %v6895
  %v7019 = vunpack.c.l.bf16 %v6896
  %v7020 = vunpack.c.h.bf16 %v6896
  %v7021 = vunpack.c.l.bf16 %v6897
  %v7022 = vunpack.c.h.bf16 %v6897
  %v7023 = vunpack.c.l.bf16 %v6898
  %v7024 = vunpack.c.h.bf16 %v6898
  %v7025 = vunpack.c.l.bf16 %v6899
  %v7026 = vunpack.c.h.bf16 %v6899
  %v7027 = vunpack.c.l.bf16 %v6900
  %v7028 = vunpack.c.h.bf16 %v6900
  %v7029 = vmax.f32 %v6901, 0.0
  %v7030 = vmax.f32 %v6902, 0.0
  %v7031 = vmax.f32 %v6903, 0.0
  %v7032 = vmax.f32 %v6904, 0.0
  %v7033 = vmax.f32 %v6905, 0.0
  %v7034 = vmax.f32 %v6906, 0.0
  %v7035 = vmax.f32 %v6907, 0.0
  %v7036 = vmax.f32 %v6908, 0.0
  %v7037 = vmax.f32 %v6909, 0.0
  %v7038 = vmax.f32 %v6910, 0.0
  %v7039 = vmax.f32 %v6911, 0.0
  %v7040 = vmax.f32 %v6912, 0.0
  %v7041 = vmax.f32 %v6913, 0.0
  %v7042 = vmax.f32 %v6914, 0.0
  %v7043 = vmax.f32 %v6915, 0.0
  %v7044 = vmax.f32 %v6916, 0.0
  %v7045 = vmax.f32 %v6917, 0.0
  %v7046 = vmax.f32 %v6918, 0.0
  %v7047 = vmax.f32 %v6919, 0.0
  %v7048 = vmax.f32 %v6920, 0.0
  %v7049 = vmax.f32 %v6921, 0.0
  %v7050 = vmax.f32 %v6922, 0.0
  %v7051 = vmax.f32 %v6923, 0.0
  %v7052 = vmax.f32 %v6924, 0.0
  %v7053 = vmax.f32 %v6925, 0.0
  %v7054 = vmax.f32 %v6926, 0.0
  %v7055 = vmax.f32 %v6927, 0.0
  %v7056 = vmax.f32 %v6928, 0.0
  %v7057 = vmax.f32 %v6929, 0.0
  %v7058 = vmax.f32 %v6930, 0.0
  %v7059 = vmax.f32 %v6931, 0.0
  %v7060 = vmax.f32 %v6932, 0.0
  %v7061 = vmax.f32 %v6933, 0.0
  %v7062 = vmax.f32 %v6934, 0.0
  %v7063 = vmax.f32 %v6935, 0.0
  %v7064 = vmax.f32 %v6936, 0.0
  %v7065 = vmax.f32 %v6937, 0.0
  %v7066 = vmax.f32 %v6938, 0.0
  %v7067 = vmax.f32 %v6939, 0.0
  %v7068 = vmax.f32 %v6940, 0.0
  %v7069 = vmax.f32 %v6941, 0.0
  %v7070 = vmax.f32 %v6942, 0.0
  %v7071 = vmax.f32 %v6943, 0.0
  %v7072 = vmax.f32 %v6944, 0.0
  %v7073 = vmax.f32 %v6945, 0.0
  %v7074 = vmax.f32 %v6946, 0.0
  %v7075 = vmax.f32 %v6947, 0.0
  %v7076 = vmax.f32 %v6948, 0.0
  %v7077 = vmax.f32 %v6949, 0.0
  %v7078 = vmax.f32 %v6950, 0.0
  %v7079 = vmax.f32 %v6951, 0.0
  %v7080 = vmax.f32 %v6952, 0.0
  %v7081 = vmax.f32 %v6953, 0.0
  %v7082 = vmax.f32 %v6954, 0.0
  %v7083 = vmax.f32 %v6955, 0.0
  %v7084 = vmax.f32 %v6956, 0.0
  %v7085 = vmax.f32 %v6957, 0.0
  %v7086 = vmax.f32 %v6958, 0.0
  %v7087 = vmax.f32 %v6959, 0.0
  %v7088 = vmax.f32 %v6960, 0.0
  %v7089 = vmax.f32 %v6961, 0.0
  %v7090 = vmax.f32 %v6962, 0.0
  %v7091 = vmax.f32 %v6963, 0.0
  %v7092 = vmax.f32 %v6964, 0.0
  %v7093 = vmax.f32 %v6965, 0.0
  %v7094 = vmax.f32 %v6966, 0.0
  %v7095 = vmax.f32 %v6967, 0.0
  %v7096 = vmax.f32 %v6968, 0.0
  %v7097 = vmax.f32 %v6969, 0.0
  %v7098 = vmax.f32 %v6970, 0.0
  %v7099 = vmax.f32 %v6971, 0.0
  %v7100 = vmax.f32 %v6972, 0.0
  %v7101 = vmax.f32 %v6973, 0.0
  %v7102 = vmax.f32 %v6974, 0.0
  %v7103 = vmax.f32 %v6975, 0.0
  %v7104 = vmax.f32 %v6976, 0.0
  %v7105 = vmax.f32 %v6977, 0.0
  %v7106 = vmax.f32 %v6978, 0.0
  %v7107 = vmax.f32 %v6979, 0.0
  %v7108 = vmax.f32 %v6980, 0.0
  %v7109 = vmax.f32 %v6981, 0.0
  %v7110 = vmax.f32 %v6982, 0.0
  %v7111 = vmax.f32 %v6983, 0.0
  %v7112 = vmax.f32 %v6984, 0.0
  %v7113 = vmax.f32 %v6985, 0.0
  %v7114 = vmax.f32 %v6986, 0.0
  %v7115 = vmax.f32 %v6987, 0.0
  %v7116 = vmax.f32 %v6988, 0.0
  %v7117 = vmax.f32 %v6989, 0.0
  %v7118 = vmax.f32 %v6990, 0.0
  %v7119 = vmax.f32 %v6991, 0.0
  %v7120 = vmax.f32 %v6992, 0.0
  %v7121 = vmax.f32 %v6993, 0.0
  %v7122 = vmax.f32 %v6994, 0.0
  %v7123 = vmax.f32 %v6995, 0.0
  %v7124 = vmax.f32 %v6996, 0.0
  %v7125 = vmax.f32 %v6997, 0.0
  %v7126 = vmax.f32 %v6998, 0.0
  %v7127 = vmax.f32 %v6999, 0.0
  %v7128 = vmax.f32 %v7000, 0.0
  %v7129 = vmax.f32 %v7001, 0.0
  %v7130 = vmax.f32 %v7002, 0.0
  %v7131 = vmax.f32 %v7003, 0.0
  %v7132 = vmax.f32 %v7004, 0.0
  %v7133 = vmax.f32 %v7005, 0.0
  %v7134 = vmax.f32 %v7006, 0.0
  %v7135 = vmax.f32 %v7007, 0.0
  %v7136 = vmax.f32 %v7008, 0.0
  %v7137 = vmax.f32 %v7009, 0.0
  %v7138 = vmax.f32 %v7010, 0.0
  %v7139 = vmax.f32 %v7011, 0.0
  %v7140 = vmax.f32 %v7012, 0.0
  %v7141 = vmax.f32 %v7013, 0.0
  %v7142 = vmax.f32 %v7014, 0.0
  %v7143 = vmax.f32 %v7015, 0.0
  %v7144 = vmax.f32 %v7016, 0.0
  %v7145 = vmax.f32 %v7017, 0.0
  %v7146 = vmax.f32 %v7018, 0.0
  %v7147 = vmax.f32 %v7019, 0.0
  %v7148 = vmax.f32 %v7020, 0.0
  %v7149 = vmax.f32 %v7021, 0.0
  %v7150 = vmax.f32 %v7022, 0.0
  %v7151 = vmax.f32 %v7023, 0.0
  %v7152 = vmax.f32 %v7024, 0.0
  %v7153 = vmax.f32 %v7025, 0.0
  %v7154 = vmax.f32 %v7026, 0.0
  %v7155 = vmax.f32 %v7027, 0.0
  %v7156 = vmax.f32 %v7028, 0.0
  %v7157 = vpack.c.bf16 %v7030, %v7029
  %v7158 = vpack.c.bf16 %v7032, %v7031
  %v7159 = vpack.c.bf16 %v7034, %v7033
  %v7160 = vpack.c.bf16 %v7036, %v7035
  %v7161 = vpack.c.bf16 %v7038, %v7037
  %v7162 = vpack.c.bf16 %v7040, %v7039
  %v7163 = vpack.c.bf16 %v7042, %v7041
  %v7164 = vpack.c.bf16 %v7044, %v7043
  %v7165 = vpack.c.bf16 %v7046, %v7045
  %v7166 = vpack.c.bf16 %v7048, %v7047
  %v7167 = vpack.c.bf16 %v7050, %v7049
  %v7168 = vpack.c.bf16 %v7052, %v7051
  %v7169 = vpack.c.bf16 %v7054, %v7053
  %v7170 = vpack.c.bf16 %v7056, %v7055
  %v7171 = vpack.c.bf16 %v7058, %v7057
  %v7172 = vpack.c.bf16 %v7060, %v7059
  %v7173 = vpack.c.bf16 %v7062, %v7061
  %v7174 = vpack.c.bf16 %v7064, %v7063
  %v7175 = vpack.c.bf16 %v7066, %v7065
  %v7176 = vpack.c.bf16 %v7068, %v7067
  %v7177 = vpack.c.bf16 %v7070, %v7069
  %v7178 = vpack.c.bf16 %v7072, %v7071
  %v7179 = vpack.c.bf16 %v7074, %v7073
  %v7180 = vpack.c.bf16 %v7076, %v7075
  %v7181 = vpack.c.bf16 %v7078, %v7077
  %v7182 = vpack.c.bf16 %v7080, %v7079
  %v7183 = vpack.c.bf16 %v7082, %v7081
  %v7184 = vpack.c.bf16 %v7084, %v7083
  %v7185 = vpack.c.bf16 %v7086, %v7085
  %v7186 = vpack.c.bf16 %v7088, %v7087
  %v7187 = vpack.c.bf16 %v7090, %v7089
  %v7188 = vpack.c.bf16 %v7092, %v7091
  %v7189 = vpack.c.bf16 %v7094, %v7093
  %v7190 = vpack.c.bf16 %v7096, %v7095
  %v7191 = vpack.c.bf16 %v7098, %v7097
  %v7192 = vpack.c.bf16 %v7100, %v7099
  %v7193 = vpack.c.bf16 %v7102, %v7101
  %v7194 = vpack.c.bf16 %v7104, %v7103
  %v7195 = vpack.c.bf16 %v7106, %v7105
  %v7196 = vpack.c.bf16 %v7108, %v7107
  %v7197 = vpack.c.bf16 %v7110, %v7109
  %v7198 = vpack.c.bf16 %v7112, %v7111
  %v7199 = vpack.c.bf16 %v7114, %v7113
  %v7200 = vpack.c.bf16 %v7116, %v7115
  %v7201 = vpack.c.bf16 %v7118, %v7117
  %v7202 = vpack.c.bf16 %v7120, %v7119
  %v7203 = vpack.c.bf16 %v7122, %v7121
  %v7204 = vpack.c.bf16 %v7124, %v7123
  %v7205 = vpack.c.bf16 %v7126, %v7125
  %v7206 = vpack.c.bf16 %v7128, %v7127
  %v7207 = vpack.c.bf16 %v7130, %v7129
  %v7208 = vpack.c.bf16 %v7132, %v7131
  %v7209 = vpack.c.bf16 %v7134, %v7133
  %v7210 = vpack.c.bf16 %v7136, %v7135
  %v7211 = vpack.c.bf16 %v7138, %v7137
  %v7212 = vpack.c.bf16 %v7140, %v7139
  %v7213 = vpack.c.bf16 %v7142, %v7141
  %v7214 = vpack.c.bf16 %v7144, %v7143
  %v7215 = vpack.c.bf16 %v7146, %v7145
  %v7216 = vpack.c.bf16 %v7148, %v7147
  %v7217 = vpack.c.bf16 %v7150, %v7149
  %v7218 = vpack.c.bf16 %v7152, %v7151
  %v7219 = vpack.c.bf16 %v7154, %v7153
  %v7220 = vpack.c.bf16 %v7156, %v7155
  %7221 = vst.msk [vmem:[#allocation2 + $0x18] sm:$0xff] %vm3764, %v7157
  %7222 = vst.msk [vmem:[#allocation2 + $0x38] sm:$0xff] %vm3764, %v7158
  %7223 = vst.msk [vmem:[#allocation2 + $0x58] sm:$0xff] %vm3764, %v7159
  %7224 = vst.msk [vmem:[#allocation2 + $0x78] sm:$0xff] %vm3764, %v7160
  %7225 = vst.msk [vmem:[#allocation2 + $0x98] sm:$0xff] %vm3764, %v7161
  %7226 = vst.msk [vmem:[#allocation2 + $0xb8] sm:$0xff] %vm3764, %v7162
  %7227 = vst.msk [vmem:[#allocation2 + $0xd8] sm:$0xff] %vm3764, %v7163
  %7228 = vst.msk [vmem:[#allocation2 + $0xf8] sm:$0xff] %vm3764, %v7164
  %7229 = vst.msk [vmem:[#allocation2 + $0x118] sm:$0xff] %vm3764, %v7165
  %7230 = vst.msk [vmem:[#allocation2 + $0x138] sm:$0xff] %vm3764, %v7166
  %7231 = vst.msk [vmem:[#allocation2 + $0x158] sm:$0xff] %vm3764, %v7167
  %7232 = vst.msk [vmem:[#allocation2 + $0x178] sm:$0xff] %vm3764, %v7168
  %7233 = vst.msk [vmem:[#allocation2 + $0x198] sm:$0xff] %vm3764, %v7169
  %7234 = vst.msk [vmem:[#allocation2 + $0x1b8] sm:$0xff] %vm3764, %v7170
  %7235 = vst.msk [vmem:[#allocation2 + $0x1d8] sm:$0xff] %vm3764, %v7171
  %7236 = vst.msk [vmem:[#allocation2 + $0x1f8] sm:$0xff] %vm3764, %v7172
  %7237 = vst.msk [vmem:[#allocation2 + $0x218] sm:$0xff] %vm3764, %v7173
  %7238 = vst.msk [vmem:[#allocation2 + $0x238] sm:$0xff] %vm3764, %v7174
  %7239 = vst.msk [vmem:[#allocation2 + $0x258] sm:$0xff] %vm3764, %v7175
  %7240 = vst.msk [vmem:[#allocation2 + $0x278] sm:$0xff] %vm3764, %v7176
  %7241 = vst.msk [vmem:[#allocation2 + $0x298] sm:$0xff] %vm3764, %v7177
  %7242 = vst.msk [vmem:[#allocation2 + $0x2b8] sm:$0xff] %vm3764, %v7178
  %7243 = vst.msk [vmem:[#allocation2 + $0x2d8] sm:$0xff] %vm3764, %v7179
  %7244 = vst.msk [vmem:[#allocation2 + $0x2f8] sm:$0xff] %vm3764, %v7180
  %7245 = vst.msk [vmem:[#allocation2 + $0x318] sm:$0xff] %vm3764, %v7181
  %7246 = vst.msk [vmem:[#allocation2 + $0x338] sm:$0xff] %vm3764, %v7182
  %7247 = vst.msk [vmem:[#allocation2 + $0x358] sm:$0xff] %vm3764, %v7183
  %7248 = vst.msk [vmem:[#allocation2 + $0x378] sm:$0xff] %vm3764, %v7184
  %7249 = vst.msk [vmem:[#allocation2 + $0x398] sm:$0xff] %vm3764, %v7185
  %7250 = vst.msk [vmem:[#allocation2 + $0x3b8] sm:$0xff] %vm3764, %v7186
  %7251 = vst.msk [vmem:[#allocation2 + $0x3d8] sm:$0xff] %vm3764, %v7187
  %7252 = vst.msk [vmem:[#allocation2 + $0x3f8] sm:$0xff] %vm3764, %v7188
  %7253 = vst.msk [vmem:[#allocation2 + $0x418] sm:$0xff] %vm3764, %v7189
  %7254 = vst.msk [vmem:[#allocation2 + $0x438] sm:$0xff] %vm3764, %v7190
  %7255 = vst.msk [vmem:[#allocation2 + $0x458] sm:$0xff] %vm3764, %v7191
  %7256 = vst.msk [vmem:[#allocation2 + $0x478] sm:$0xff] %vm3764, %v7192
  %7257 = vst.msk [vmem:[#allocation2 + $0x498] sm:$0xff] %vm3764, %v7193
  %7258 = vst.msk [vmem:[#allocation2 + $0x4b8] sm:$0xff] %vm3764, %v7194
  %7259 = vst.msk [vmem:[#allocation2 + $0x4d8] sm:$0xff] %vm3764, %v7195
  %7260 = vst.msk [vmem:[#allocation2 + $0x4f8] sm:$0xff] %vm3764, %v7196
  %7261 = vst.msk [vmem:[#allocation2 + $0x518] sm:$0xff] %vm3764, %v7197
  %7262 = vst.msk [vmem:[#allocation2 + $0x538] sm:$0xff] %vm3764, %v7198
  %7263 = vst.msk [vmem:[#allocation2 + $0x558] sm:$0xff] %vm3764, %v7199
  %7264 = vst.msk [vmem:[#allocation2 + $0x578] sm:$0xff] %vm3764, %v7200
  %7265 = vst.msk [vmem:[#allocation2 + $0x598] sm:$0xff] %vm3764, %v7201
  %7266 = vst.msk [vmem:[#allocation2 + $0x5b8] sm:$0xff] %vm3764, %v7202
  %7267 = vst.msk [vmem:[#allocation2 + $0x5d8] sm:$0xff] %vm3764, %v7203
  %7268 = vst.msk [vmem:[#allocation2 + $0x5f8] sm:$0xff] %vm3764, %v7204
  %7269 = vst.msk [vmem:[#allocation2 + $0x618] sm:$0xff] %vm3764, %v7205
  %7270 = vst.msk [vmem:[#allocation2 + $0x638] sm:$0xff] %vm3764, %v7206
  %7271 = vst.msk [vmem:[#allocation2 + $0x658] sm:$0xff] %vm3764, %v7207
  %7272 = vst.msk [vmem:[#allocation2 + $0x678] sm:$0xff] %vm3764, %v7208
  %7273 = vst.msk [vmem:[#allocation2 + $0x698] sm:$0xff] %vm3764, %v7209
  %7274 = vst.msk [vmem:[#allocation2 + $0x6b8] sm:$0xff] %vm3764, %v7210
  %7275 = vst.msk [vmem:[#allocation2 + $0x6d8] sm:$0xff] %vm3764, %v7211
  %7276 = vst.msk [vmem:[#allocation2 + $0x6f8] sm:$0xff] %vm3764, %v7212
  %7277 = vst.msk [vmem:[#allocation2 + $0x718] sm:$0xff] %vm3764, %v7213
  %7278 = vst.msk [vmem:[#allocation2 + $0x738] sm:$0xff] %vm3764, %v7214
  %7279 = vst.msk [vmem:[#allocation2 + $0x758] sm:$0xff] %vm3764, %v7215
  %7280 = vst.msk [vmem:[#allocation2 + $0x778] sm:$0xff] %vm3764, %v7216
  %7281 = vst.msk [vmem:[#allocation2 + $0x798] sm:$0xff] %vm3764, %v7217
  %7282 = vst.msk [vmem:[#allocation2 + $0x7b8] sm:$0xff] %vm3764, %v7218
  %7283 = vst.msk [vmem:[#allocation2 + $0x7d8] sm:$0xff] %vm3764, %v7219
  %7284 = vst.msk [vmem:[#allocation2 + $0x7f8] sm:$0xff] %vm3764, %v7220
  %v7285 = vld [vmem:[%s5] sm:$0xff]
  %v7286 = vld [vmem:[#allocation2] sm:$0xff]
  %v7287 = vld [vmem:[#allocation2 + $0x8] sm:$0xff]
  %v7288 = vld [vmem:[#allocation2 + $0x10] sm:$0xff]
  %v7289 = vld [vmem:[#allocation2 + $0x18] sm:$0xff]
  %v7290 = vld [vmem:[#allocation2 + $0x20] sm:$0xff]
  %v7291 = vld [vmem:[#allocation2 + $0x28] sm:$0xff]
  %v7292 = vld [vmem:[#allocation2 + $0x30] sm:$0xff]
  %v7293 = vld [vmem:[#allocation2 + $0x38] sm:$0xff]
  %v7294 = vld [vmem:[#allocation2 + $0x40] sm:$0xff]
  %v7295 = vld [vmem:[#allocation2 + $0x48] sm:$0xff]
  %v7296 = vld [vmem:[#allocation2 + $0x50] sm:$0xff]
  %v7297 = vld [vmem:[#allocation2 + $0x58] sm:$0xff]
  %v7298 = vld [vmem:[#allocation2 + $0x60] sm:$0xff]
  %v7299 = vld [vmem:[#allocation2 + $0x68] sm:$0xff]
  %v7300 = vld [vmem:[#allocation2 + $0x70] sm:$0xff]
  %v7301 = vld [vmem:[#allocation2 + $0x78] sm:$0xff]
  %v7302 = vld [vmem:[#allocation2 + $0x80] sm:$0xff]
  %v7303 = vld [vmem:[#allocation2 + $0x88] sm:$0xff]
  %v7304 = vld [vmem:[#allocation2 + $0x90] sm:$0xff]
  %v7305 = vld [vmem:[#allocation2 + $0x98] sm:$0xff]
  %v7306 = vld [vmem:[#allocation2 + $0xa0] sm:$0xff]
  %v7307 = vld [vmem:[#allocation2 + $0xa8] sm:$0xff]
  %v7308 = vld [vmem:[#allocation2 + $0xb0] sm:$0xff]
  %v7309 = vld [vmem:[#allocation2 + $0xb8] sm:$0xff]
  %v7310 = vld [vmem:[#allocation2 + $0xc0] sm:$0xff]
  %v7311 = vld [vmem:[#allocation2 + $0xc8] sm:$0xff]
  %v7312 = vld [vmem:[#allocation2 + $0xd0] sm:$0xff]
  %v7313 = vld [vmem:[#allocation2 + $0xd8] sm:$0xff]
  %v7314 = vld [vmem:[#allocation2 + $0xe0] sm:$0xff]
  %v7315 = vld [vmem:[#allocation2 + $0xe8] sm:$0xff]
  %v7316 = vld [vmem:[#allocation2 + $0xf0] sm:$0xff]
  %v7317 = vld [vmem:[#allocation2 + $0xf8] sm:$0xff]
  %v7318 = vld [vmem:[#allocation2 + $0x100] sm:$0xff]
  %v7319 = vld [vmem:[#allocation2 + $0x108] sm:$0xff]
  %v7320 = vld [vmem:[#allocation2 + $0x110] sm:$0xff]
  %v7321 = vld [vmem:[#allocation2 + $0x118] sm:$0xff]
  %v7322 = vld [vmem:[#allocation2 + $0x120] sm:$0xff]
  %v7323 = vld [vmem:[#allocation2 + $0x128] sm:$0xff]
  %v7324 = vld [vmem:[#allocation2 + $0x130] sm:$0xff]
  %v7325 = vld [vmem:[#allocation2 + $0x138] sm:$0xff]
  %v7326 = vld [vmem:[#allocation2 + $0x140] sm:$0xff]
  %v7327 = vld [vmem:[#allocation2 + $0x148] sm:$0xff]
  %v7328 = vld [vmem:[#allocation2 + $0x150] sm:$0xff]
  %v7329 = vld [vmem:[#allocation2 + $0x158] sm:$0xff]
  %v7330 = vld [vmem:[#allocation2 + $0x160] sm:$0xff]
  %v7331 = vld [vmem:[#allocation2 + $0x168] sm:$0xff]
  %v7332 = vld [vmem:[#allocation2 + $0x170] sm:$0xff]
  %v7333 = vld [vmem:[#allocation2 + $0x178] sm:$0xff]
  %v7334 = vld [vmem:[#allocation2 + $0x180] sm:$0xff]
  %v7335 = vld [vmem:[#allocation2 + $0x188] sm:$0xff]
  %v7336 = vld [vmem:[#allocation2 + $0x190] sm:$0xff]
  %v7337 = vld [vmem:[#allocation2 + $0x198] sm:$0xff]
  %v7338 = vld [vmem:[#allocation2 + $0x1a0] sm:$0xff]
  %v7339 = vld [vmem:[#allocation2 + $0x1a8] sm:$0xff]
  %v7340 = vld [vmem:[#allocation2 + $0x1b0] sm:$0xff]
  %v7341 = vld [vmem:[#allocation2 + $0x1b8] sm:$0xff]
  %v7342 = vld [vmem:[#allocation2 + $0x1c0] sm:$0xff]
  %v7343 = vld [vmem:[#allocation2 + $0x1c8] sm:$0xff]
  %v7344 = vld [vmem:[#allocation2 + $0x1d0] sm:$0xff]
  %v7345 = vld [vmem:[#allocation2 + $0x1d8] sm:$0xff]
  %v7346 = vld [vmem:[#allocation2 + $0x1e0] sm:$0xff]
  %v7347 = vld [vmem:[#allocation2 + $0x1e8] sm:$0xff]
  %v7348 = vld [vmem:[#allocation2 + $0x1f0] sm:$0xff]
  %v7349 = vld [vmem:[#allocation2 + $0x1f8] sm:$0xff]
  %v7350 = vld [vmem:[#allocation2 + $0x200] sm:$0xff]
  %v7351 = vld [vmem:[#allocation2 + $0x208] sm:$0xff]
  %v7352 = vld [vmem:[#allocation2 + $0x210] sm:$0xff]
  %v7353 = vld [vmem:[#allocation2 + $0x218] sm:$0xff]
  %v7354 = vld [vmem:[#allocation2 + $0x220] sm:$0xff]
  %v7355 = vld [vmem:[#allocation2 + $0x228] sm:$0xff]
  %v7356 = vld [vmem:[#allocation2 + $0x230] sm:$0xff]
  %v7357 = vld [vmem:[#allocation2 + $0x238] sm:$0xff]
  %v7358 = vld [vmem:[#allocation2 + $0x240] sm:$0xff]
  %v7359 = vld [vmem:[#allocation2 + $0x248] sm:$0xff]
  %v7360 = vld [vmem:[#allocation2 + $0x250] sm:$0xff]
  %v7361 = vld [vmem:[#allocation2 + $0x258] sm:$0xff]
  %v7362 = vld [vmem:[#allocation2 + $0x260] sm:$0xff]
  %v7363 = vld [vmem:[#allocation2 + $0x268] sm:$0xff]
  %v7364 = vld [vmem:[#allocation2 + $0x270] sm:$0xff]
  %v7365 = vld [vmem:[#allocation2 + $0x278] sm:$0xff]
  %v7366 = vld [vmem:[#allocation2 + $0x280] sm:$0xff]
  %v7367 = vld [vmem:[#allocation2 + $0x288] sm:$0xff]
  %v7368 = vld [vmem:[#allocation2 + $0x290] sm:$0xff]
  %v7369 = vld [vmem:[#allocation2 + $0x298] sm:$0xff]
  %v7370 = vld [vmem:[#allocation2 + $0x2a0] sm:$0xff]
  %v7371 = vld [vmem:[#allocation2 + $0x2a8] sm:$0xff]
  %v7372 = vld [vmem:[#allocation2 + $0x2b0] sm:$0xff]
  %v7373 = vld [vmem:[#allocation2 + $0x2b8] sm:$0xff]
  %v7374 = vld [vmem:[#allocation2 + $0x2c0] sm:$0xff]
  %v7375 = vld [vmem:[#allocation2 + $0x2c8] sm:$0xff]
  %v7376 = vld [vmem:[#allocation2 + $0x2d0] sm:$0xff]
  %v7377 = vld [vmem:[#allocation2 + $0x2d8] sm:$0xff]
  %v7378 = vld [vmem:[#allocation2 + $0x2e0] sm:$0xff]
  %v7379 = vld [vmem:[#allocation2 + $0x2e8] sm:$0xff]
  %v7380 = vld [vmem:[#allocation2 + $0x2f0] sm:$0xff]
  %v7381 = vld [vmem:[#allocation2 + $0x2f8] sm:$0xff]
  %v7382 = vld [vmem:[#allocation2 + $0x300] sm:$0xff]
  %v7383 = vld [vmem:[#allocation2 + $0x308] sm:$0xff]
  %v7384 = vld [vmem:[#allocation2 + $0x310] sm:$0xff]
  %v7385 = vld [vmem:[#allocation2 + $0x318] sm:$0xff]
  %v7386 = vld [vmem:[#allocation2 + $0x320] sm:$0xff]
  %v7387 = vld [vmem:[#allocation2 + $0x328] sm:$0xff]
  %v7388 = vld [vmem:[#allocation2 + $0x330] sm:$0xff]
  %v7389 = vld [vmem:[#allocation2 + $0x338] sm:$0xff]
  %v7390 = vld [vmem:[#allocation2 + $0x340] sm:$0xff]
  %v7391 = vld [vmem:[#allocation2 + $0x348] sm:$0xff]
  %v7392 = vld [vmem:[#allocation2 + $0x350] sm:$0xff]
  %v7393 = vld [vmem:[#allocation2 + $0x358] sm:$0xff]
  %v7394 = vld [vmem:[#allocation2 + $0x360] sm:$0xff]
  %v7395 = vld [vmem:[#allocation2 + $0x368] sm:$0xff]
  %v7396 = vld [vmem:[#allocation2 + $0x370] sm:$0xff]
  %v7397 = vld [vmem:[#allocation2 + $0x378] sm:$0xff]
  %v7398 = vld [vmem:[#allocation2 + $0x380] sm:$0xff]
  %v7399 = vld [vmem:[#allocation2 + $0x388] sm:$0xff]
  %v7400 = vld [vmem:[#allocation2 + $0x390] sm:$0xff]
  %v7401 = vld [vmem:[#allocation2 + $0x398] sm:$0xff]
  %v7402 = vld [vmem:[#allocation2 + $0x3a0] sm:$0xff]
  %v7403 = vld [vmem:[#allocation2 + $0x3a8] sm:$0xff]
  %v7404 = vld [vmem:[#allocation2 + $0x3b0] sm:$0xff]
  %v7405 = vld [vmem:[#allocation2 + $0x3b8] sm:$0xff]
  %v7406 = vld [vmem:[#allocation2 + $0x3c0] sm:$0xff]
  %v7407 = vld [vmem:[#allocation2 + $0x3c8] sm:$0xff]
  %v7408 = vld [vmem:[#allocation2 + $0x3d0] sm:$0xff]
  %v7409 = vld [vmem:[#allocation2 + $0x3d8] sm:$0xff]
  %v7410 = vld [vmem:[#allocation2 + $0x3e0] sm:$0xff]
  %v7411 = vld [vmem:[#allocation2 + $0x3e8] sm:$0xff]
  %v7412 = vld [vmem:[#allocation2 + $0x3f0] sm:$0xff]
  %v7413 = vld [vmem:[#allocation2 + $0x3f8] sm:$0xff]
  %v7414 = vld [vmem:[#allocation2 + $0x400] sm:$0xff]
  %v7415 = vld [vmem:[#allocation2 + $0x408] sm:$0xff]
  %v7416 = vld [vmem:[#allocation2 + $0x410] sm:$0xff]
  %v7417 = vld [vmem:[#allocation2 + $0x418] sm:$0xff]
  %v7418 = vld [vmem:[#allocation2 + $0x420] sm:$0xff]
  %v7419 = vld [vmem:[#allocation2 + $0x428] sm:$0xff]
  %v7420 = vld [vmem:[#allocation2 + $0x430] sm:$0xff]
  %v7421 = vld [vmem:[#allocation2 + $0x438] sm:$0xff]
  %v7422 = vld [vmem:[#allocation2 + $0x440] sm:$0xff]
  %v7423 = vld [vmem:[#allocation2 + $0x448] sm:$0xff]
  %v7424 = vld [vmem:[#allocation2 + $0x450] sm:$0xff]
  %v7425 = vld [vmem:[#allocation2 + $0x458] sm:$0xff]
  %v7426 = vld [vmem:[#allocation2 + $0x460] sm:$0xff]
  %v7427 = vld [vmem:[#allocation2 + $0x468] sm:$0xff]
  %v7428 = vld [vmem:[#allocation2 + $0x470] sm:$0xff]
  %v7429 = vld [vmem:[#allocation2 + $0x478] sm:$0xff]
  %v7430 = vld [vmem:[#allocation2 + $0x480] sm:$0xff]
  %v7431 = vld [vmem:[#allocation2 + $0x488] sm:$0xff]
  %v7432 = vld [vmem:[#allocation2 + $0x490] sm:$0xff]
  %v7433 = vld [vmem:[#allocation2 + $0x498] sm:$0xff]
  %v7434 = vld [vmem:[#allocation2 + $0x4a0] sm:$0xff]
  %v7435 = vld [vmem:[#allocation2 + $0x4a8] sm:$0xff]
  %v7436 = vld [vmem:[#allocation2 + $0x4b0] sm:$0xff]
  %v7437 = vld [vmem:[#allocation2 + $0x4b8] sm:$0xff]
  %v7438 = vld [vmem:[#allocation2 + $0x4c0] sm:$0xff]
  %v7439 = vld [vmem:[#allocation2 + $0x4c8] sm:$0xff]
  %v7440 = vld [vmem:[#allocation2 + $0x4d0] sm:$0xff]
  %v7441 = vld [vmem:[#allocation2 + $0x4d8] sm:$0xff]
  %v7442 = vld [vmem:[#allocation2 + $0x4e0] sm:$0xff]
  %v7443 = vld [vmem:[#allocation2 + $0x4e8] sm:$0xff]
  %v7444 = vld [vmem:[#allocation2 + $0x4f0] sm:$0xff]
  %v7445 = vld [vmem:[#allocation2 + $0x4f8] sm:$0xff]
  %v7446 = vld [vmem:[#allocation2 + $0x500] sm:$0xff]
  %v7447 = vld [vmem:[#allocation2 + $0x508] sm:$0xff]
  %v7448 = vld [vmem:[#allocation2 + $0x510] sm:$0xff]
  %v7449 = vld [vmem:[#allocation2 + $0x518] sm:$0xff]
  %v7450 = vld [vmem:[#allocation2 + $0x520] sm:$0xff]
  %v7451 = vld [vmem:[#allocation2 + $0x528] sm:$0xff]
  %v7452 = vld [vmem:[#allocation2 + $0x530] sm:$0xff]
  %v7453 = vld [vmem:[#allocation2 + $0x538] sm:$0xff]
  %v7454 = vld [vmem:[#allocation2 + $0x540] sm:$0xff]
  %v7455 = vld [vmem:[#allocation2 + $0x548] sm:$0xff]
  %v7456 = vld [vmem:[#allocation2 + $0x550] sm:$0xff]
  %v7457 = vld [vmem:[#allocation2 + $0x558] sm:$0xff]
  %v7458 = vld [vmem:[#allocation2 + $0x560] sm:$0xff]
  %v7459 = vld [vmem:[#allocation2 + $0x568] sm:$0xff]
  %v7460 = vld [vmem:[#allocation2 + $0x570] sm:$0xff]
  %v7461 = vld [vmem:[#allocation2 + $0x578] sm:$0xff]
  %v7462 = vld [vmem:[#allocation2 + $0x580] sm:$0xff]
  %v7463 = vld [vmem:[#allocation2 + $0x588] sm:$0xff]
  %v7464 = vld [vmem:[#allocation2 + $0x590] sm:$0xff]
  %v7465 = vld [vmem:[#allocation2 + $0x598] sm:$0xff]
  %v7466 = vld [vmem:[#allocation2 + $0x5a0] sm:$0xff]
  %v7467 = vld [vmem:[#allocation2 + $0x5a8] sm:$0xff]
  %v7468 = vld [vmem:[#allocation2 + $0x5b0] sm:$0xff]
  %v7469 = vld [vmem:[#allocation2 + $0x5b8] sm:$0xff]
  %v7470 = vld [vmem:[#allocation2 + $0x5c0] sm:$0xff]
  %v7471 = vld [vmem:[#allocation2 + $0x5c8] sm:$0xff]
  %v7472 = vld [vmem:[#allocation2 + $0x5d0] sm:$0xff]
  %v7473 = vld [vmem:[#allocation2 + $0x5d8] sm:$0xff]
  %v7474 = vld [vmem:[#allocation2 + $0x5e0] sm:$0xff]
  %v7475 = vld [vmem:[#allocation2 + $0x5e8] sm:$0xff]
  %v7476 = vld [vmem:[#allocation2 + $0x5f0] sm:$0xff]
  %v7477 = vld [vmem:[#allocation2 + $0x5f8] sm:$0xff]
  %v7478 = vld [vmem:[#allocation2 + $0x600] sm:$0xff]
  %v7479 = vld [vmem:[#allocation2 + $0x608] sm:$0xff]
  %v7480 = vld [vmem:[#allocation2 + $0x610] sm:$0xff]
  %v7481 = vld [vmem:[#allocation2 + $0x618] sm:$0xff]
  %v7482 = vld [vmem:[#allocation2 + $0x620] sm:$0xff]
  %v7483 = vld [vmem:[#allocation2 + $0x628] sm:$0xff]
  %v7484 = vld [vmem:[#allocation2 + $0x630] sm:$0xff]
  %v7485 = vld [vmem:[#allocation2 + $0x638] sm:$0xff]
  %v7486 = vld [vmem:[#allocation2 + $0x640] sm:$0xff]
  %v7487 = vld [vmem:[#allocation2 + $0x648] sm:$0xff]
  %v7488 = vld [vmem:[#allocation2 + $0x650] sm:$0xff]
  %v7489 = vld [vmem:[#allocation2 + $0x658] sm:$0xff]
  %v7490 = vld [vmem:[#allocation2 + $0x660] sm:$0xff]
  %v7491 = vld [vmem:[#allocation2 + $0x668] sm:$0xff]
  %v7492 = vld [vmem:[#allocation2 + $0x670] sm:$0xff]
  %v7493 = vld [vmem:[#allocation2 + $0x678] sm:$0xff]
  %v7494 = vld [vmem:[#allocation2 + $0x680] sm:$0xff]
  %v7495 = vld [vmem:[#allocation2 + $0x688] sm:$0xff]
  %v7496 = vld [vmem:[#allocation2 + $0x690] sm:$0xff]
  %v7497 = vld [vmem:[#allocation2 + $0x698] sm:$0xff]
  %v7498 = vld [vmem:[#allocation2 + $0x6a0] sm:$0xff]
  %v7499 = vld [vmem:[#allocation2 + $0x6a8] sm:$0xff]
  %v7500 = vld [vmem:[#allocation2 + $0x6b0] sm:$0xff]
  %v7501 = vld [vmem:[#allocation2 + $0x6b8] sm:$0xff]
  %v7502 = vld [vmem:[#allocation2 + $0x6c0] sm:$0xff]
  %v7503 = vld [vmem:[#allocation2 + $0x6c8] sm:$0xff]
  %v7504 = vld [vmem:[#allocation2 + $0x6d0] sm:$0xff]
  %v7505 = vld [vmem:[#allocation2 + $0x6d8] sm:$0xff]
  %v7506 = vld [vmem:[#allocation2 + $0x6e0] sm:$0xff]
  %v7507 = vld [vmem:[#allocation2 + $0x6e8] sm:$0xff]
  %v7508 = vld [vmem:[#allocation2 + $0x6f0] sm:$0xff]
  %v7509 = vld [vmem:[#allocation2 + $0x6f8] sm:$0xff]
  %v7510 = vld [vmem:[#allocation2 + $0x700] sm:$0xff]
  %v7511 = vld [vmem:[#allocation2 + $0x708] sm:$0xff]
  %v7512 = vld [vmem:[#allocation2 + $0x710] sm:$0xff]
  %v7513 = vld [vmem:[#allocation2 + $0x718] sm:$0xff]
  %v7514 = vld [vmem:[#allocation2 + $0x720] sm:$0xff]
  %v7515 = vld [vmem:[#allocation2 + $0x728] sm:$0xff]
  %v7516 = vld [vmem:[#allocation2 + $0x730] sm:$0xff]
  %v7517 = vld [vmem:[#allocation2 + $0x738] sm:$0xff]
  %v7518 = vld [vmem:[#allocation2 + $0x740] sm:$0xff]
  %v7519 = vld [vmem:[#allocation2 + $0x748] sm:$0xff]
  %v7520 = vld [vmem:[#allocation2 + $0x750] sm:$0xff]
  %v7521 = vld [vmem:[#allocation2 + $0x758] sm:$0xff]
  %v7522 = vld [vmem:[#allocation2 + $0x760] sm:$0xff]
  %v7523 = vld [vmem:[#allocation2 + $0x768] sm:$0xff]
  %v7524 = vld [vmem:[#allocation2 + $0x770] sm:$0xff]
  %v7525 = vld [vmem:[#allocation2 + $0x778] sm:$0xff]
  %v7526 = vld [vmem:[#allocation2 + $0x780] sm:$0xff]
  %v7527 = vld [vmem:[#allocation2 + $0x788] sm:$0xff]
  %v7528 = vld [vmem:[#allocation2 + $0x790] sm:$0xff]
  %v7529 = vld [vmem:[#allocation2 + $0x798] sm:$0xff]
  %v7530 = vld [vmem:[#allocation2 + $0x7a0] sm:$0xff]
  %v7531 = vld [vmem:[#allocation2 + $0x7a8] sm:$0xff]
  %v7532 = vld [vmem:[#allocation2 + $0x7b0] sm:$0xff]
  %v7533 = vld [vmem:[#allocation2 + $0x7b8] sm:$0xff]
  %v7534 = vld [vmem:[#allocation2 + $0x7c0] sm:$0xff]
  %v7535 = vld [vmem:[#allocation2 + $0x7c8] sm:$0xff]
  %v7536 = vld [vmem:[#allocation2 + $0x7d0] sm:$0xff]
  %v7537 = vld [vmem:[#allocation2 + $0x7d8] sm:$0xff]
  %v7538 = vld [vmem:[#allocation2 + $0x7e0] sm:$0xff]
  %v7539 = vld [vmem:[#allocation2 + $0x7e8] sm:$0xff]
  %v7540 = vld [vmem:[#allocation2 + $0x7f0] sm:$0xff]
  %v7541 = vld [vmem:[#allocation2 + $0x7f8] sm:$0xff]
  %7543 = vset.pattern.permute.xlu0 0
  %7544 = vperm.xlu0 %7543, %v601
  %v7545 = vpop.permute.xlu0 %7544
  %7548 = vst [vmem:[#allocation1] ss:$4 sm:$0xff] %v7285
  %v7549 = vld.sshfl [vmem:[#allocation1] sm:$0xff pattern:$0x73625140]
  %v7550 = vld.sshfl [vmem:[#allocation1 + $0x8] sm:$0xff pattern:$0x73625140]
  %v7551 = vld.sshfl [vmem:[#allocation1 + $0x10] sm:$0xff pattern:$0x73625140]
  %v7552 = vld.sshfl [vmem:[#allocation1 + $0x18] sm:$0xff pattern:$0x73625140]
  %v7813 = vunpack.c.l.b16 %v7286
  %v7814 = vunpack.c.h.b16 %v7286
  %v7815 = vunpack.c.l.b16 %v7287
  %v7816 = vunpack.c.h.b16 %v7287
  %v7817 = vunpack.c.l.b16 %v7288
  %v7818 = vunpack.c.h.b16 %v7288
  %v7819 = vunpack.c.l.b16 %v7289
  %v7820 = vunpack.c.h.b16 %v7289
  %v7821 = vunpack.c.l.b16 %v7290
  %v7822 = vunpack.c.h.b16 %v7290
  %v7823 = vunpack.c.l.b16 %v7291
  %v7824 = vunpack.c.h.b16 %v7291
  %v7825 = vunpack.c.l.b16 %v7292
  %v7826 = vunpack.c.h.b16 %v7292
  %v7827 = vunpack.c.l.b16 %v7293
  %v7828 = vunpack.c.h.b16 %v7293
  %v7829 = vunpack.c.l.b16 %v7294
  %v7830 = vunpack.c.h.b16 %v7294
  %v7831 = vunpack.c.l.b16 %v7295
  %v7832 = vunpack.c.h.b16 %v7295
  %v7833 = vunpack.c.l.b16 %v7296
  %v7834 = vunpack.c.h.b16 %v7296
  %v7835 = vunpack.c.l.b16 %v7297
  %v7836 = vunpack.c.h.b16 %v7297
  %v7837 = vunpack.c.l.b16 %v7298
  %v7838 = vunpack.c.h.b16 %v7298
  %v7839 = vunpack.c.l.b16 %v7299
  %v7840 = vunpack.c.h.b16 %v7299
  %v7841 = vunpack.c.l.b16 %v7300
  %v7842 = vunpack.c.h.b16 %v7300
  %v7843 = vunpack.c.l.b16 %v7301
  %v7844 = vunpack.c.h.b16 %v7301
  %v7845 = vunpack.c.l.b16 %v7302
  %v7846 = vunpack.c.h.b16 %v7302
  %v7847 = vunpack.c.l.b16 %v7303
  %v7848 = vunpack.c.h.b16 %v7303
  %v7849 = vunpack.c.l.b16 %v7304
  %v7850 = vunpack.c.h.b16 %v7304
  %v7851 = vunpack.c.l.b16 %v7305
  %v7852 = vunpack.c.h.b16 %v7305
  %v7853 = vunpack.c.l.b16 %v7306
  %v7854 = vunpack.c.h.b16 %v7306
  %v7855 = vunpack.c.l.b16 %v7307
  %v7856 = vunpack.c.h.b16 %v7307
  %v7857 = vunpack.c.l.b16 %v7308
  %v7858 = vunpack.c.h.b16 %v7308
  %v7859 = vunpack.c.l.b16 %v7309
  %v7860 = vunpack.c.h.b16 %v7309
  %v7861 = vunpack.c.l.b16 %v7310
  %v7862 = vunpack.c.h.b16 %v7310
  %v7863 = vunpack.c.l.b16 %v7311
  %v7864 = vunpack.c.h.b16 %v7311
  %v7865 = vunpack.c.l.b16 %v7312
  %v7866 = vunpack.c.h.b16 %v7312
  %v7867 = vunpack.c.l.b16 %v7313
  %v7868 = vunpack.c.h.b16 %v7313
  %v7869 = vunpack.c.l.b16 %v7314
  %v7870 = vunpack.c.h.b16 %v7314
  %v7871 = vunpack.c.l.b16 %v7315
  %v7872 = vunpack.c.h.b16 %v7315
  %v7873 = vunpack.c.l.b16 %v7316
  %v7874 = vunpack.c.h.b16 %v7316
  %v7875 = vunpack.c.l.b16 %v7317
  %v7876 = vunpack.c.h.b16 %v7317
  %v7877 = vunpack.c.l.b16 %v7318
  %v7878 = vunpack.c.h.b16 %v7318
  %v7879 = vunpack.c.l.b16 %v7319
  %v7880 = vunpack.c.h.b16 %v7319
  %v7881 = vunpack.c.l.b16 %v7320
  %v7882 = vunpack.c.h.b16 %v7320
  %v7883 = vunpack.c.l.b16 %v7321
  %v7884 = vunpack.c.h.b16 %v7321
  %v7885 = vunpack.c.l.b16 %v7322
  %v7886 = vunpack.c.h.b16 %v7322
  %v7887 = vunpack.c.l.b16 %v7323
  %v7888 = vunpack.c.h.b16 %v7323
  %v7889 = vunpack.c.l.b16 %v7324
  %v7890 = vunpack.c.h.b16 %v7324
  %v7891 = vunpack.c.l.b16 %v7325
  %v7892 = vunpack.c.h.b16 %v7325
  %v7893 = vunpack.c.l.b16 %v7326
  %v7894 = vunpack.c.h.b16 %v7326
  %v7895 = vunpack.c.l.b16 %v7327
  %v7896 = vunpack.c.h.b16 %v7327
  %v7897 = vunpack.c.l.b16 %v7328
  %v7898 = vunpack.c.h.b16 %v7328
  %v7899 = vunpack.c.l.b16 %v7329
  %v7900 = vunpack.c.h.b16 %v7329
  %v7901 = vunpack.c.l.b16 %v7330
  %v7902 = vunpack.c.h.b16 %v7330
  %v7903 = vunpack.c.l.b16 %v7331
  %v7904 = vunpack.c.h.b16 %v7331
  %v7905 = vunpack.c.l.b16 %v7332
  %v7906 = vunpack.c.h.b16 %v7332
  %v7907 = vunpack.c.l.b16 %v7333
  %v7908 = vunpack.c.h.b16 %v7333
  %v7909 = vunpack.c.l.b16 %v7334
  %v7910 = vunpack.c.h.b16 %v7334
  %v7911 = vunpack.c.l.b16 %v7335
  %v7912 = vunpack.c.h.b16 %v7335
  %v7913 = vunpack.c.l.b16 %v7336
  %v7914 = vunpack.c.h.b16 %v7336
  %v7915 = vunpack.c.l.b16 %v7337
  %v7916 = vunpack.c.h.b16 %v7337
  %v7917 = vunpack.c.l.b16 %v7338
  %v7918 = vunpack.c.h.b16 %v7338
  %v7919 = vunpack.c.l.b16 %v7339
  %v7920 = vunpack.c.h.b16 %v7339
  %v7921 = vunpack.c.l.b16 %v7340
  %v7922 = vunpack.c.h.b16 %v7340
  %v7923 = vunpack.c.l.b16 %v7341
  %v7924 = vunpack.c.h.b16 %v7341
  %v7925 = vunpack.c.l.b16 %v7342
  %v7926 = vunpack.c.h.b16 %v7342
  %v7927 = vunpack.c.l.b16 %v7343
  %v7928 = vunpack.c.h.b16 %v7343
  %v7929 = vunpack.c.l.b16 %v7344
  %v7930 = vunpack.c.h.b16 %v7344
  %v7931 = vunpack.c.l.b16 %v7345
  %v7932 = vunpack.c.h.b16 %v7345
  %v7933 = vunpack.c.l.b16 %v7346
  %v7934 = vunpack.c.h.b16 %v7346
  %v7935 = vunpack.c.l.b16 %v7347
  %v7936 = vunpack.c.h.b16 %v7347
  %v7937 = vunpack.c.l.b16 %v7348
  %v7938 = vunpack.c.h.b16 %v7348
  %v7939 = vunpack.c.l.b16 %v7349
  %v7940 = vunpack.c.h.b16 %v7349
  %v7941 = vunpack.c.l.b16 %v7350
  %v7942 = vunpack.c.h.b16 %v7350
  %v7943 = vunpack.c.l.b16 %v7351
  %v7944 = vunpack.c.h.b16 %v7351
  %v7945 = vunpack.c.l.b16 %v7352
  %v7946 = vunpack.c.h.b16 %v7352
  %v7947 = vunpack.c.l.b16 %v7353
  %v7948 = vunpack.c.h.b16 %v7353
  %v7949 = vunpack.c.l.b16 %v7354
  %v7950 = vunpack.c.h.b16 %v7354
  %v7951 = vunpack.c.l.b16 %v7355
  %v7952 = vunpack.c.h.b16 %v7355
  %v7953 = vunpack.c.l.b16 %v7356
  %v7954 = vunpack.c.h.b16 %v7356
  %v7955 = vunpack.c.l.b16 %v7357
  %v7956 = vunpack.c.h.b16 %v7357
  %v7957 = vunpack.c.l.b16 %v7358
  %v7958 = vunpack.c.h.b16 %v7358
  %v7959 = vunpack.c.l.b16 %v7359
  %v7960 = vunpack.c.h.b16 %v7359
  %v7961 = vunpack.c.l.b16 %v7360
  %v7962 = vunpack.c.h.b16 %v7360
  %v7963 = vunpack.c.l.b16 %v7361
  %v7964 = vunpack.c.h.b16 %v7361
  %v7965 = vunpack.c.l.b16 %v7362
  %v7966 = vunpack.c.h.b16 %v7362
  %v7967 = vunpack.c.l.b16 %v7363
  %v7968 = vunpack.c.h.b16 %v7363
  %v7969 = vunpack.c.l.b16 %v7364
  %v7970 = vunpack.c.h.b16 %v7364
  %v7971 = vunpack.c.l.b16 %v7365
  %v7972 = vunpack.c.h.b16 %v7365
  %v7973 = vunpack.c.l.b16 %v7366
  %v7974 = vunpack.c.h.b16 %v7366
  %v7975 = vunpack.c.l.b16 %v7367
  %v7976 = vunpack.c.h.b16 %v7367
  %v7977 = vunpack.c.l.b16 %v7368
  %v7978 = vunpack.c.h.b16 %v7368
  %v7979 = vunpack.c.l.b16 %v7369
  %v7980 = vunpack.c.h.b16 %v7369
  %v7981 = vunpack.c.l.b16 %v7370
  %v7982 = vunpack.c.h.b16 %v7370
  %v7983 = vunpack.c.l.b16 %v7371
  %v7984 = vunpack.c.h.b16 %v7371
  %v7985 = vunpack.c.l.b16 %v7372
  %v7986 = vunpack.c.h.b16 %v7372
  %v7987 = vunpack.c.l.b16 %v7373
  %v7988 = vunpack.c.h.b16 %v7373
  %v7989 = vunpack.c.l.b16 %v7374
  %v7990 = vunpack.c.h.b16 %v7374
  %v7991 = vunpack.c.l.b16 %v7375
  %v7992 = vunpack.c.h.b16 %v7375
  %v7993 = vunpack.c.l.b16 %v7376
  %v7994 = vunpack.c.h.b16 %v7376
  %v7995 = vunpack.c.l.b16 %v7377
  %v7996 = vunpack.c.h.b16 %v7377
  %v7997 = vunpack.c.l.b16 %v7378
  %v7998 = vunpack.c.h.b16 %v7378
  %v7999 = vunpack.c.l.b16 %v7379
  %v8000 = vunpack.c.h.b16 %v7379
  %v8001 = vunpack.c.l.b16 %v7380
  %v8002 = vunpack.c.h.b16 %v7380
  %v8003 = vunpack.c.l.b16 %v7381
  %v8004 = vunpack.c.h.b16 %v7381
  %v8005 = vunpack.c.l.b16 %v7382
  %v8006 = vunpack.c.h.b16 %v7382
  %v8007 = vunpack.c.l.b16 %v7383
  %v8008 = vunpack.c.h.b16 %v7383
  %v8009 = vunpack.c.l.b16 %v7384
  %v8010 = vunpack.c.h.b16 %v7384
  %v8011 = vunpack.c.l.b16 %v7385
  %v8012 = vunpack.c.h.b16 %v7385
  %v8013 = vunpack.c.l.b16 %v7386
  %v8014 = vunpack.c.h.b16 %v7386
  %v8015 = vunpack.c.l.b16 %v7387
  %v8016 = vunpack.c.h.b16 %v7387
  %v8017 = vunpack.c.l.b16 %v7388
  %v8018 = vunpack.c.h.b16 %v7388
  %v8019 = vunpack.c.l.b16 %v7389
  %v8020 = vunpack.c.h.b16 %v7389
  %v8021 = vunpack.c.l.b16 %v7390
  %v8022 = vunpack.c.h.b16 %v7390
  %v8023 = vunpack.c.l.b16 %v7391
  %v8024 = vunpack.c.h.b16 %v7391
  %v8025 = vunpack.c.l.b16 %v7392
  %v8026 = vunpack.c.h.b16 %v7392
  %v8027 = vunpack.c.l.b16 %v7393
  %v8028 = vunpack.c.h.b16 %v7393
  %v8029 = vunpack.c.l.b16 %v7394
  %v8030 = vunpack.c.h.b16 %v7394
  %v8031 = vunpack.c.l.b16 %v7395
  %v8032 = vunpack.c.h.b16 %v7395
  %v8033 = vunpack.c.l.b16 %v7396
  %v8034 = vunpack.c.h.b16 %v7396
  %v8035 = vunpack.c.l.b16 %v7397
  %v8036 = vunpack.c.h.b16 %v7397
  %v8037 = vunpack.c.l.b16 %v7398
  %v8038 = vunpack.c.h.b16 %v7398
  %v8039 = vunpack.c.l.b16 %v7399
  %v8040 = vunpack.c.h.b16 %v7399
  %v8041 = vunpack.c.l.b16 %v7400
  %v8042 = vunpack.c.h.b16 %v7400
  %v8043 = vunpack.c.l.b16 %v7401
  %v8044 = vunpack.c.h.b16 %v7401
  %v8045 = vunpack.c.l.b16 %v7402
  %v8046 = vunpack.c.h.b16 %v7402
  %v8047 = vunpack.c.l.b16 %v7403
  %v8048 = vunpack.c.h.b16 %v7403
  %v8049 = vunpack.c.l.b16 %v7404
  %v8050 = vunpack.c.h.b16 %v7404
  %v8051 = vunpack.c.l.b16 %v7405
  %v8052 = vunpack.c.h.b16 %v7405
  %v8053 = vunpack.c.l.b16 %v7406
  %v8054 = vunpack.c.h.b16 %v7406
  %v8055 = vunpack.c.l.b16 %v7407
  %v8056 = vunpack.c.h.b16 %v7407
  %v8057 = vunpack.c.l.b16 %v7408
  %v8058 = vunpack.c.h.b16 %v7408
  %v8059 = vunpack.c.l.b16 %v7409
  %v8060 = vunpack.c.h.b16 %v7409
  %v8061 = vunpack.c.l.b16 %v7410
  %v8062 = vunpack.c.h.b16 %v7410
  %v8063 = vunpack.c.l.b16 %v7411
  %v8064 = vunpack.c.h.b16 %v7411
  %v8065 = vunpack.c.l.b16 %v7412
  %v8066 = vunpack.c.h.b16 %v7412
  %v8067 = vunpack.c.l.b16 %v7413
  %v8068 = vunpack.c.h.b16 %v7413
  %v8069 = vunpack.c.l.b16 %v7414
  %v8070 = vunpack.c.h.b16 %v7414
  %v8071 = vunpack.c.l.b16 %v7415
  %v8072 = vunpack.c.h.b16 %v7415
  %v8073 = vunpack.c.l.b16 %v7416
  %v8074 = vunpack.c.h.b16 %v7416
  %v8075 = vunpack.c.l.b16 %v7417
  %v8076 = vunpack.c.h.b16 %v7417
  %v8077 = vunpack.c.l.b16 %v7418
  %v8078 = vunpack.c.h.b16 %v7418
  %v8079 = vunpack.c.l.b16 %v7419
  %v8080 = vunpack.c.h.b16 %v7419
  %v8081 = vunpack.c.l.b16 %v7420
  %v8082 = vunpack.c.h.b16 %v7420
  %v8083 = vunpack.c.l.b16 %v7421
  %v8084 = vunpack.c.h.b16 %v7421
  %v8085 = vunpack.c.l.b16 %v7422
  %v8086 = vunpack.c.h.b16 %v7422
  %v8087 = vunpack.c.l.b16 %v7423
  %v8088 = vunpack.c.h.b16 %v7423
  %v8089 = vunpack.c.l.b16 %v7424
  %v8090 = vunpack.c.h.b16 %v7424
  %v8091 = vunpack.c.l.b16 %v7425
  %v8092 = vunpack.c.h.b16 %v7425
  %v8093 = vunpack.c.l.b16 %v7426
  %v8094 = vunpack.c.h.b16 %v7426
  %v8095 = vunpack.c.l.b16 %v7427
  %v8096 = vunpack.c.h.b16 %v7427
  %v8097 = vunpack.c.l.b16 %v7428
  %v8098 = vunpack.c.h.b16 %v7428
  %v8099 = vunpack.c.l.b16 %v7429
  %v8100 = vunpack.c.h.b16 %v7429
  %v8101 = vunpack.c.l.b16 %v7430
  %v8102 = vunpack.c.h.b16 %v7430
  %v8103 = vunpack.c.l.b16 %v7431
  %v8104 = vunpack.c.h.b16 %v7431
  %v8105 = vunpack.c.l.b16 %v7432
  %v8106 = vunpack.c.h.b16 %v7432
  %v8107 = vunpack.c.l.b16 %v7433
  %v8108 = vunpack.c.h.b16 %v7433
  %v8109 = vunpack.c.l.b16 %v7434
  %v8110 = vunpack.c.h.b16 %v7434
  %v8111 = vunpack.c.l.b16 %v7435
  %v8112 = vunpack.c.h.b16 %v7435
  %v8113 = vunpack.c.l.b16 %v7436
  %v8114 = vunpack.c.h.b16 %v7436
  %v8115 = vunpack.c.l.b16 %v7437
  %v8116 = vunpack.c.h.b16 %v7437
  %v8117 = vunpack.c.l.b16 %v7438
  %v8118 = vunpack.c.h.b16 %v7438
  %v8119 = vunpack.c.l.b16 %v7439
  %v8120 = vunpack.c.h.b16 %v7439
  %v8121 = vunpack.c.l.b16 %v7440
  %v8122 = vunpack.c.h.b16 %v7440
  %v8123 = vunpack.c.l.b16 %v7441
  %v8124 = vunpack.c.h.b16 %v7441
  %v8125 = vunpack.c.l.b16 %v7442
  %v8126 = vunpack.c.h.b16 %v7442
  %v8127 = vunpack.c.l.b16 %v7443
  %v8128 = vunpack.c.h.b16 %v7443
  %v8129 = vunpack.c.l.b16 %v7444
  %v8130 = vunpack.c.h.b16 %v7444
  %v8131 = vunpack.c.l.b16 %v7445
  %v8132 = vunpack.c.h.b16 %v7445
  %v8133 = vunpack.c.l.b16 %v7446
  %v8134 = vunpack.c.h.b16 %v7446
  %v8135 = vunpack.c.l.b16 %v7447
  %v8136 = vunpack.c.h.b16 %v7447
  %v8137 = vunpack.c.l.b16 %v7448
  %v8138 = vunpack.c.h.b16 %v7448
  %v8139 = vunpack.c.l.b16 %v7449
  %v8140 = vunpack.c.h.b16 %v7449
  %v8141 = vunpack.c.l.b16 %v7450
  %v8142 = vunpack.c.h.b16 %v7450
  %v8143 = vunpack.c.l.b16 %v7451
  %v8144 = vunpack.c.h.b16 %v7451
  %v8145 = vunpack.c.l.b16 %v7452
  %v8146 = vunpack.c.h.b16 %v7452
  %v8147 = vunpack.c.l.b16 %v7453
  %v8148 = vunpack.c.h.b16 %v7453
  %v8149 = vunpack.c.l.b16 %v7454
  %v8150 = vunpack.c.h.b16 %v7454
  %v8151 = vunpack.c.l.b16 %v7455
  %v8152 = vunpack.c.h.b16 %v7455
  %v8153 = vunpack.c.l.b16 %v7456
  %v8154 = vunpack.c.h.b16 %v7456
  %v8155 = vunpack.c.l.b16 %v7457
  %v8156 = vunpack.c.h.b16 %v7457
  %v8157 = vunpack.c.l.b16 %v7458
  %v8158 = vunpack.c.h.b16 %v7458
  %v8159 = vunpack.c.l.b16 %v7459
  %v8160 = vunpack.c.h.b16 %v7459
  %v8161 = vunpack.c.l.b16 %v7460
  %v8162 = vunpack.c.h.b16 %v7460
  %v8163 = vunpack.c.l.b16 %v7461
  %v8164 = vunpack.c.h.b16 %v7461
  %v8165 = vunpack.c.l.b16 %v7462
  %v8166 = vunpack.c.h.b16 %v7462
  %v8167 = vunpack.c.l.b16 %v7463
  %v8168 = vunpack.c.h.b16 %v7463
  %v8169 = vunpack.c.l.b16 %v7464
  %v8170 = vunpack.c.h.b16 %v7464
  %v8171 = vunpack.c.l.b16 %v7465
  %v8172 = vunpack.c.h.b16 %v7465
  %v8173 = vunpack.c.l.b16 %v7466
  %v8174 = vunpack.c.h.b16 %v7466
  %v8175 = vunpack.c.l.b16 %v7467
  %v8176 = vunpack.c.h.b16 %v7467
  %v8177 = vunpack.c.l.b16 %v7468
  %v8178 = vunpack.c.h.b16 %v7468
  %v8179 = vunpack.c.l.b16 %v7469
  %v8180 = vunpack.c.h.b16 %v7469
  %v8181 = vunpack.c.l.b16 %v7470
  %v8182 = vunpack.c.h.b16 %v7470
  %v8183 = vunpack.c.l.b16 %v7471
  %v8184 = vunpack.c.h.b16 %v7471
  %v8185 = vunpack.c.l.b16 %v7472
  %v8186 = vunpack.c.h.b16 %v7472
  %v8187 = vunpack.c.l.b16 %v7473
  %v8188 = vunpack.c.h.b16 %v7473
  %v8189 = vunpack.c.l.b16 %v7474
  %v8190 = vunpack.c.h.b16 %v7474
  %v8191 = vunpack.c.l.b16 %v7475
  %v8192 = vunpack.c.h.b16 %v7475
  %v8193 = vunpack.c.l.b16 %v7476
  %v8194 = vunpack.c.h.b16 %v7476
  %v8195 = vunpack.c.l.b16 %v7477
  %v8196 = vunpack.c.h.b16 %v7477
  %v8197 = vunpack.c.l.b16 %v7478
  %v8198 = vunpack.c.h.b16 %v7478
  %v8199 = vunpack.c.l.b16 %v7479
  %v8200 = vunpack.c.h.b16 %v7479
  %v8201 = vunpack.c.l.b16 %v7480
  %v8202 = vunpack.c.h.b16 %v7480
  %v8203 = vunpack.c.l.b16 %v7481
  %v8204 = vunpack.c.h.b16 %v7481
  %v8205 = vunpack.c.l.b16 %v7482
  %v8206 = vunpack.c.h.b16 %v7482
  %v8207 = vunpack.c.l.b16 %v7483
  %v8208 = vunpack.c.h.b16 %v7483
  %v8209 = vunpack.c.l.b16 %v7484
  %v8210 = vunpack.c.h.b16 %v7484
  %v8211 = vunpack.c.l.b16 %v7485
  %v8212 = vunpack.c.h.b16 %v7485
  %v8213 = vunpack.c.l.b16 %v7486
  %v8214 = vunpack.c.h.b16 %v7486
  %v8215 = vunpack.c.l.b16 %v7487
  %v8216 = vunpack.c.h.b16 %v7487
  %v8217 = vunpack.c.l.b16 %v7488
  %v8218 = vunpack.c.h.b16 %v7488
  %v8219 = vunpack.c.l.b16 %v7489
  %v8220 = vunpack.c.h.b16 %v7489
  %v8221 = vunpack.c.l.b16 %v7490
  %v8222 = vunpack.c.h.b16 %v7490
  %v8223 = vunpack.c.l.b16 %v7491
  %v8224 = vunpack.c.h.b16 %v7491
  %v8225 = vunpack.c.l.b16 %v7492
  %v8226 = vunpack.c.h.b16 %v7492
  %v8227 = vunpack.c.l.b16 %v7493
  %v8228 = vunpack.c.h.b16 %v7493
  %v8229 = vunpack.c.l.b16 %v7494
  %v8230 = vunpack.c.h.b16 %v7494
  %v8231 = vunpack.c.l.b16 %v7495
  %v8232 = vunpack.c.h.b16 %v7495
  %v8233 = vunpack.c.l.b16 %v7496
  %v8234 = vunpack.c.h.b16 %v7496
  %v8235 = vunpack.c.l.b16 %v7497
  %v8236 = vunpack.c.h.b16 %v7497
  %v8237 = vunpack.c.l.b16 %v7498
  %v8238 = vunpack.c.h.b16 %v7498
  %v8239 = vunpack.c.l.b16 %v7499
  %v8240 = vunpack.c.h.b16 %v7499
  %v8241 = vunpack.c.l.b16 %v7500
  %v8242 = vunpack.c.h.b16 %v7500
  %v8243 = vunpack.c.l.b16 %v7501
  %v8244 = vunpack.c.h.b16 %v7501
  %v8245 = vunpack.c.l.b16 %v7502
  %v8246 = vunpack.c.h.b16 %v7502
  %v8247 = vunpack.c.l.b16 %v7503
  %v8248 = vunpack.c.h.b16 %v7503
  %v8249 = vunpack.c.l.b16 %v7504
  %v8250 = vunpack.c.h.b16 %v7504
  %v8251 = vunpack.c.l.b16 %v7505
  %v8252 = vunpack.c.h.b16 %v7505
  %v8253 = vunpack.c.l.b16 %v7506
  %v8254 = vunpack.c.h.b16 %v7506
  %v8255 = vunpack.c.l.b16 %v7507
  %v8256 = vunpack.c.h.b16 %v7507
  %v8257 = vunpack.c.l.b16 %v7508
  %v8258 = vunpack.c.h.b16 %v7508
  %v8259 = vunpack.c.l.b16 %v7509
  %v8260 = vunpack.c.h.b16 %v7509
  %v8261 = vunpack.c.l.b16 %v7510
  %v8262 = vunpack.c.h.b16 %v7510
  %v8263 = vunpack.c.l.b16 %v7511
  %v8264 = vunpack.c.h.b16 %v7511
  %v8265 = vunpack.c.l.b16 %v7512
  %v8266 = vunpack.c.h.b16 %v7512
  %v8267 = vunpack.c.l.b16 %v7513
  %v8268 = vunpack.c.h.b16 %v7513
  %v8269 = vunpack.c.l.b16 %v7514
  %v8270 = vunpack.c.h.b16 %v7514
  %v8271 = vunpack.c.l.b16 %v7515
  %v8272 = vunpack.c.h.b16 %v7515
  %v8273 = vunpack.c.l.b16 %v7516
  %v8274 = vunpack.c.h.b16 %v7516
  %v8275 = vunpack.c.l.b16 %v7517
  %v8276 = vunpack.c.h.b16 %v7517
  %v8277 = vunpack.c.l.b16 %v7518
  %v8278 = vunpack.c.h.b16 %v7518
  %v8279 = vunpack.c.l.b16 %v7519
  %v8280 = vunpack.c.h.b16 %v7519
  %v8281 = vunpack.c.l.b16 %v7520
  %v8282 = vunpack.c.h.b16 %v7520
  %v8283 = vunpack.c.l.b16 %v7521
  %v8284 = vunpack.c.h.b16 %v7521
  %v8285 = vunpack.c.l.b16 %v7522
  %v8286 = vunpack.c.h.b16 %v7522
  %v8287 = vunpack.c.l.b16 %v7523
  %v8288 = vunpack.c.h.b16 %v7523
  %v8289 = vunpack.c.l.b16 %v7524
  %v8290 = vunpack.c.h.b16 %v7524
  %v8291 = vunpack.c.l.b16 %v7525
  %v8292 = vunpack.c.h.b16 %v7525
  %v8293 = vunpack.c.l.b16 %v7526
  %v8294 = vunpack.c.h.b16 %v7526
  %v8295 = vunpack.c.l.b16 %v7527
  %v8296 = vunpack.c.h.b16 %v7527
  %v8297 = vunpack.c.l.b16 %v7528
  %v8298 = vunpack.c.h.b16 %v7528
  %v8299 = vunpack.c.l.b16 %v7529
  %v8300 = vunpack.c.h.b16 %v7529
  %v8301 = vunpack.c.l.b16 %v7530
  %v8302 = vunpack.c.h.b16 %v7530
  %v8303 = vunpack.c.l.b16 %v7531
  %v8304 = vunpack.c.h.b16 %v7531
  %v8305 = vunpack.c.l.b16 %v7532
  %v8306 = vunpack.c.h.b16 %v7532
  %v8307 = vunpack.c.l.b16 %v7533
  %v8308 = vunpack.c.h.b16 %v7533
  %v8309 = vunpack.c.l.b16 %v7534
  %v8310 = vunpack.c.h.b16 %v7534
  %v8311 = vunpack.c.l.b16 %v7535
  %v8312 = vunpack.c.h.b16 %v7535
  %v8313 = vunpack.c.l.b16 %v7536
  %v8314 = vunpack.c.h.b16 %v7536
  %v8315 = vunpack.c.l.b16 %v7537
  %v8316 = vunpack.c.h.b16 %v7537
  %v8317 = vunpack.c.l.b16 %v7538
  %v8318 = vunpack.c.h.b16 %v7538
  %v8319 = vunpack.c.l.b16 %v7539
  %v8320 = vunpack.c.h.b16 %v7539
  %v8321 = vunpack.c.l.b16 %v7540
  %v8322 = vunpack.c.h.b16 %v7540
  %v8323 = vunpack.c.l.b16 %v7541
  %v8324 = vunpack.c.h.b16 %v7541
  %v8325 = vpack.c.b16 %v7821, %v7813
  %v8326 = vpack.c.b16 %v7822, %v7814
  %v8327 = vpack.c.b16 %v7823, %v7815
  %v8328 = vpack.c.b16 %v7824, %v7816
  %v8329 = vpack.c.b16 %v7825, %v7817
  %v8330 = vpack.c.b16 %v7826, %v7818
  %v8331 = vpack.c.b16 %v7827, %v7819
  %v8332 = vpack.c.b16 %v7828, %v7820
  %v8333 = vpack.c.b16 %v7837, %v7829
  %v8334 = vpack.c.b16 %v7838, %v7830
  %v8335 = vpack.c.b16 %v7839, %v7831
  %v8336 = vpack.c.b16 %v7840, %v7832
  %v8337 = vpack.c.b16 %v7841, %v7833
  %v8338 = vpack.c.b16 %v7842, %v7834
  %v8339 = vpack.c.b16 %v7843, %v7835
  %v8340 = vpack.c.b16 %v7844, %v7836
  %v8341 = vpack.c.b16 %v7853, %v7845
  %v8342 = vpack.c.b16 %v7854, %v7846
  %v8343 = vpack.c.b16 %v7855, %v7847
  %v8344 = vpack.c.b16 %v7856, %v7848
  %v8345 = vpack.c.b16 %v7857, %v7849
  %v8346 = vpack.c.b16 %v7858, %v7850
  %v8347 = vpack.c.b16 %v7859, %v7851
  %v8348 = vpack.c.b16 %v7860, %v7852
  %v8349 = vpack.c.b16 %v7869, %v7861
  %v8350 = vpack.c.b16 %v7870, %v7862
  %v8351 = vpack.c.b16 %v7871, %v7863
  %v8352 = vpack.c.b16 %v7872, %v7864
  %v8353 = vpack.c.b16 %v7873, %v7865
  %v8354 = vpack.c.b16 %v7874, %v7866
  %v8355 = vpack.c.b16 %v7875, %v7867
  %v8356 = vpack.c.b16 %v7876, %v7868
  %v8357 = vpack.c.b16 %v7885, %v7877
  %v8358 = vpack.c.b16 %v7886, %v7878
  %v8359 = vpack.c.b16 %v7887, %v7879
  %v8360 = vpack.c.b16 %v7888, %v7880
  %v8361 = vpack.c.b16 %v7889, %v7881
  %v8362 = vpack.c.b16 %v7890, %v7882
  %v8363 = vpack.c.b16 %v7891, %v7883
  %v8364 = vpack.c.b16 %v7892, %v7884
  %v8365 = vpack.c.b16 %v7901, %v7893
  %v8366 = vpack.c.b16 %v7902, %v7894
  %v8367 = vpack.c.b16 %v7903, %v7895
  %v8368 = vpack.c.b16 %v7904, %v7896
  %v8369 = vpack.c.b16 %v7905, %v7897
  %v8370 = vpack.c.b16 %v7906, %v7898
  %v8371 = vpack.c.b16 %v7907, %v7899
  %v8372 = vpack.c.b16 %v7908, %v7900
  %v8373 = vpack.c.b16 %v7917, %v7909
  %v8374 = vpack.c.b16 %v7918, %v7910
  %v8375 = vpack.c.b16 %v7919, %v7911
  %v8376 = vpack.c.b16 %v7920, %v7912
  %v8377 = vpack.c.b16 %v7921, %v7913
  %v8378 = vpack.c.b16 %v7922, %v7914
  %v8379 = vpack.c.b16 %v7923, %v7915
  %v8380 = vpack.c.b16 %v7924, %v7916
  %v8381 = vpack.c.b16 %v7933, %v7925
  %v8382 = vpack.c.b16 %v7934, %v7926
  %v8383 = vpack.c.b16 %v7935, %v7927
  %v8384 = vpack.c.b16 %v7936, %v7928
  %v8385 = vpack.c.b16 %v7937, %v7929
  %v8386 = vpack.c.b16 %v7938, %v7930
  %v8387 = vpack.c.b16 %v7939, %v7931
  %v8388 = vpack.c.b16 %v7940, %v7932
  %v8389 = vpack.c.b16 %v7949, %v7941
  %v8390 = vpack.c.b16 %v7950, %v7942
  %v8391 = vpack.c.b16 %v7951, %v7943
  %v8392 = vpack.c.b16 %v7952, %v7944
  %v8393 = vpack.c.b16 %v7953, %v7945
  %v8394 = vpack.c.b16 %v7954, %v7946
  %v8395 = vpack.c.b16 %v7955, %v7947
  %v8396 = vpack.c.b16 %v7956, %v7948
  %v8397 = vpack.c.b16 %v7965, %v7957
  %v8398 = vpack.c.b16 %v7966, %v7958
  %v8399 = vpack.c.b16 %v7967, %v7959
  %v8400 = vpack.c.b16 %v7968, %v7960
  %v8401 = vpack.c.b16 %v7969, %v7961
  %v8402 = vpack.c.b16 %v7970, %v7962
  %v8403 = vpack.c.b16 %v7971, %v7963
  %v8404 = vpack.c.b16 %v7972, %v7964
  %v8405 = vpack.c.b16 %v7981, %v7973
  %v8406 = vpack.c.b16 %v7982, %v7974
  %v8407 = vpack.c.b16 %v7983, %v7975
  %v8408 = vpack.c.b16 %v7984, %v7976
  %v8409 = vpack.c.b16 %v7985, %v7977
  %v8410 = vpack.c.b16 %v7986, %v7978
  %v8411 = vpack.c.b16 %v7987, %v7979
  %v8412 = vpack.c.b16 %v7988, %v7980
  %v8413 = vpack.c.b16 %v7997, %v7989
  %v8414 = vpack.c.b16 %v7998, %v7990
  %v8415 = vpack.c.b16 %v7999, %v7991
  %v8416 = vpack.c.b16 %v8000, %v7992
  %v8417 = vpack.c.b16 %v8001, %v7993
  %v8418 = vpack.c.b16 %v8002, %v7994
  %v8419 = vpack.c.b16 %v8003, %v7995
  %v8420 = vpack.c.b16 %v8004, %v7996
  %v8421 = vpack.c.b16 %v8013, %v8005
  %v8422 = vpack.c.b16 %v8014, %v8006
  %v8423 = vpack.c.b16 %v8015, %v8007
  %v8424 = vpack.c.b16 %v8016, %v8008
  %v8425 = vpack.c.b16 %v8017, %v8009
  %v8426 = vpack.c.b16 %v8018, %v8010
  %v8427 = vpack.c.b16 %v8019, %v8011
  %v8428 = vpack.c.b16 %v8020, %v8012
  %v8429 = vpack.c.b16 %v8029, %v8021
  %v8430 = vpack.c.b16 %v8030, %v8022
  %v8431 = vpack.c.b16 %v8031, %v8023
  %v8432 = vpack.c.b16 %v8032, %v8024
  %v8433 = vpack.c.b16 %v8033, %v8025
  %v8434 = vpack.c.b16 %v8034, %v8026
  %v8435 = vpack.c.b16 %v8035, %v8027
  %v8436 = vpack.c.b16 %v8036, %v8028
  %v8437 = vpack.c.b16 %v8045, %v8037
  %v8438 = vpack.c.b16 %v8046, %v8038
  %v8439 = vpack.c.b16 %v8047, %v8039
  %v8440 = vpack.c.b16 %v8048, %v8040
  %v8441 = vpack.c.b16 %v8049, %v8041
  %v8442 = vpack.c.b16 %v8050, %v8042
  %v8443 = vpack.c.b16 %v8051, %v8043
  %v8444 = vpack.c.b16 %v8052, %v8044
  %v8445 = vpack.c.b16 %v8061, %v8053
  %v8446 = vpack.c.b16 %v8062, %v8054
  %v8447 = vpack.c.b16 %v8063, %v8055
  %v8448 = vpack.c.b16 %v8064, %v8056
  %v8449 = vpack.c.b16 %v8065, %v8057
  %v8450 = vpack.c.b16 %v8066, %v8058
  %v8451 = vpack.c.b16 %v8067, %v8059
  %v8452 = vpack.c.b16 %v8068, %v8060
  %v8453 = vpack.c.b16 %v8077, %v8069
  %v8454 = vpack.c.b16 %v8078, %v8070
  %v8455 = vpack.c.b16 %v8079, %v8071
  %v8456 = vpack.c.b16 %v8080, %v8072
  %v8457 = vpack.c.b16 %v8081, %v8073
  %v8458 = vpack.c.b16 %v8082, %v8074
  %v8459 = vpack.c.b16 %v8083, %v8075
  %v8460 = vpack.c.b16 %v8084, %v8076
  %v8461 = vpack.c.b16 %v8093, %v8085
  %v8462 = vpack.c.b16 %v8094, %v8086
  %v8463 = vpack.c.b16 %v8095, %v8087
  %v8464 = vpack.c.b16 %v8096, %v8088
  %v8465 = vpack.c.b16 %v8097, %v8089
  %v8466 = vpack.c.b16 %v8098, %v8090
  %v8467 = vpack.c.b16 %v8099, %v8091
  %v8468 = vpack.c.b16 %v8100, %v8092
  %v8469 = vpack.c.b16 %v8109, %v8101
  %v8470 = vpack.c.b16 %v8110, %v8102
  %v8471 = vpack.c.b16 %v8111, %v8103
  %v8472 = vpack.c.b16 %v8112, %v8104
  %v8473 = vpack.c.b16 %v8113, %v8105
  %v8474 = vpack.c.b16 %v8114, %v8106
  %v8475 = vpack.c.b16 %v8115, %v8107
  %v8476 = vpack.c.b16 %v8116, %v8108
  %v8477 = vpack.c.b16 %v8125, %v8117
  %v8478 = vpack.c.b16 %v8126, %v8118
  %v8479 = vpack.c.b16 %v8127, %v8119
  %v8480 = vpack.c.b16 %v8128, %v8120
  %v8481 = vpack.c.b16 %v8129, %v8121
  %v8482 = vpack.c.b16 %v8130, %v8122
  %v8483 = vpack.c.b16 %v8131, %v8123
  %v8484 = vpack.c.b16 %v8132, %v8124
  %v8485 = vpack.c.b16 %v8141, %v8133
  %v8486 = vpack.c.b16 %v8142, %v8134
  %v8487 = vpack.c.b16 %v8143, %v8135
  %v8488 = vpack.c.b16 %v8144, %v8136
  %v8489 = vpack.c.b16 %v8145, %v8137
  %v8490 = vpack.c.b16 %v8146, %v8138
  %v8491 = vpack.c.b16 %v8147, %v8139
  %v8492 = vpack.c.b16 %v8148, %v8140
  %v8493 = vpack.c.b16 %v8157, %v8149
  %v8494 = vpack.c.b16 %v8158, %v8150
  %v8495 = vpack.c.b16 %v8159, %v8151
  %v8496 = vpack.c.b16 %v8160, %v8152
  %v8497 = vpack.c.b16 %v8161, %v8153
  %v8498 = vpack.c.b16 %v8162, %v8154
  %v8499 = vpack.c.b16 %v8163, %v8155
  %v8500 = vpack.c.b16 %v8164, %v8156
  %v8501 = vpack.c.b16 %v8173, %v8165
  %v8502 = vpack.c.b16 %v8174, %v8166
  %v8503 = vpack.c.b16 %v8175, %v8167
  %v8504 = vpack.c.b16 %v8176, %v8168
  %v8505 = vpack.c.b16 %v8177, %v8169
  %v8506 = vpack.c.b16 %v8178, %v8170
  %v8507 = vpack.c.b16 %v8179, %v8171
  %v8508 = vpack.c.b16 %v8180, %v8172
  %v8509 = vpack.c.b16 %v8189, %v8181
  %v8510 = vpack.c.b16 %v8190, %v8182
  %v8511 = vpack.c.b16 %v8191, %v8183
  %v8512 = vpack.c.b16 %v8192, %v8184
  %v8513 = vpack.c.b16 %v8193, %v8185
  %v8514 = vpack.c.b16 %v8194, %v8186
  %v8515 = vpack.c.b16 %v8195, %v8187
  %v8516 = vpack.c.b16 %v8196, %v8188
  %v8517 = vpack.c.b16 %v8205, %v8197
  %v8518 = vpack.c.b16 %v8206, %v8198
  %v8519 = vpack.c.b16 %v8207, %v8199
  %v8520 = vpack.c.b16 %v8208, %v8200
  %v8521 = vpack.c.b16 %v8209, %v8201
  %v8522 = vpack.c.b16 %v8210, %v8202
  %v8523 = vpack.c.b16 %v8211, %v8203
  %v8524 = vpack.c.b16 %v8212, %v8204
  %v8525 = vpack.c.b16 %v8221, %v8213
  %v8526 = vpack.c.b16 %v8222, %v8214
  %v8527 = vpack.c.b16 %v8223, %v8215
  %v8528 = vpack.c.b16 %v8224, %v8216
  %v8529 = vpack.c.b16 %v8225, %v8217
  %v8530 = vpack.c.b16 %v8226, %v8218
  %v8531 = vpack.c.b16 %v8227, %v8219
  %v8532 = vpack.c.b16 %v8228, %v8220
  %v8533 = vpack.c.b16 %v8237, %v8229
  %v8534 = vpack.c.b16 %v8238, %v8230
  %v8535 = vpack.c.b16 %v8239, %v8231
  %v8536 = vpack.c.b16 %v8240, %v8232
  %v8537 = vpack.c.b16 %v8241, %v8233
  %v8538 = vpack.c.b16 %v8242, %v8234
  %v8539 = vpack.c.b16 %v8243, %v8235
  %v8540 = vpack.c.b16 %v8244, %v8236
  %v8541 = vpack.c.b16 %v8253, %v8245
  %v8542 = vpack.c.b16 %v8254, %v8246
  %v8543 = vpack.c.b16 %v8255, %v8247
  %v8544 = vpack.c.b16 %v8256, %v8248
  %v8545 = vpack.c.b16 %v8257, %v8249
  %v8546 = vpack.c.b16 %v8258, %v8250
  %v8547 = vpack.c.b16 %v8259, %v8251
  %v8548 = vpack.c.b16 %v8260, %v8252
  %v8549 = vpack.c.b16 %v8269, %v8261
  %v8550 = vpack.c.b16 %v8270, %v8262
  %v8551 = vpack.c.b16 %v8271, %v8263
  %v8552 = vpack.c.b16 %v8272, %v8264
  %v8553 = vpack.c.b16 %v8273, %v8265
  %v8554 = vpack.c.b16 %v8274, %v8266
  %v8555 = vpack.c.b16 %v8275, %v8267
  %v8556 = vpack.c.b16 %v8276, %v8268
  %v8557 = vpack.c.b16 %v8285, %v8277
  %v8558 = vpack.c.b16 %v8286, %v8278
  %v8559 = vpack.c.b16 %v8287, %v8279
  %v8560 = vpack.c.b16 %v8288, %v8280
  %v8561 = vpack.c.b16 %v8289, %v8281
  %v8562 = vpack.c.b16 %v8290, %v8282
  %v8563 = vpack.c.b16 %v8291, %v8283
  %v8564 = vpack.c.b16 %v8292, %v8284
  %v8565 = vpack.c.b16 %v8301, %v8293
  %v8566 = vpack.c.b16 %v8302, %v8294
  %v8567 = vpack.c.b16 %v8303, %v8295
  %v8568 = vpack.c.b16 %v8304, %v8296
  %v8569 = vpack.c.b16 %v8305, %v8297
  %v8570 = vpack.c.b16 %v8306, %v8298
  %v8571 = vpack.c.b16 %v8307, %v8299
  %v8572 = vpack.c.b16 %v8308, %v8300
  %v8573 = vpack.c.b16 %v8317, %v8309
  %v8574 = vpack.c.b16 %v8318, %v8310
  %v8575 = vpack.c.b16 %v8319, %v8311
  %v8576 = vpack.c.b16 %v8320, %v8312
  %v8577 = vpack.c.b16 %v8321, %v8313
  %v8578 = vpack.c.b16 %v8322, %v8314
  %v8579 = vpack.c.b16 %v8323, %v8315
  %v8580 = vpack.c.b16 %v8324, %v8316
  %8837 = vmatpush.bf16.msra.mxu0 %v8381
  %8838 = vmatpush.bf16.msra.mxu0 %v8373
  %8839 = vmatpush.bf16.msra.mxu0 %v8365
  %8840 = vmatpush.bf16.msra.mxu0 %v8357
  %8841 = vmatpush.bf16.msra.mxu0 %v8349
  %8842 = vmatpush.bf16.msra.mxu0 %v8341
  %8843 = vmatpush.bf16.msra.mxu0 %v8333
  %8844 = vmatpush.bf16.msra.mxu0 %v8325
  %8845 = vmatmul.bf16.gmra.mxu0 %v7549
  %v8846 = vpop.f32.mrf.mxu0
  %v8847 = vadd.f32 %v7545, %v8846
  %v8848 = vpop.f32.mrf.mxu0
  %8849 = vdwg.mxu0
  %8850 = vmatpush.bf16.msra.mxu0 %v8445
  %8851 = vmatpush.bf16.msra.mxu0 %v8437
  %8852 = vmatpush.bf16.msra.mxu0 %v8429
  %8853 = vmatpush.bf16.msra.mxu0 %v8421
  %8854 = vmatpush.bf16.msra.mxu0 %v8413
  %8855 = vmatpush.bf16.msra.mxu0 %v8405
  %8856 = vmatpush.bf16.msra.mxu0 %v8397
  %8857 = vmatpush.bf16.msra.mxu0 %v8389
  %8858 = vmatmul.bf16.gmra.mxu0 %v7550
  %v8859 = vpop.f32.mrf.mxu0
  %v8860 = vadd.f32 %v8847, %v8859
  %v8861 = vpop.f32.mrf.mxu0
  %8862 = vdwg.mxu0
  %8863 = vmatpush.bf16.msra.mxu0 %v8509
  %8864 = vmatpush.bf16.msra.mxu0 %v8501
  %8865 = vmatpush.bf16.msra.mxu0 %v8493
  %8866 = vmatpush.bf16.msra.mxu0 %v8485
  %8867 = vmatpush.bf16.msra.mxu0 %v8477
  %8868 = vmatpush.bf16.msra.mxu0 %v8469
  %8869 = vmatpush.bf16.msra.mxu0 %v8461
  %8870 = vmatpush.bf16.msra.mxu0 %v8453
  %8871 = vmatmul.bf16.gmra.mxu0 %v7551
  %v8872 = vpop.f32.mrf.mxu0
  %v8873 = vadd.f32 %v8860, %v8872
  %v8874 = vpop.f32.mrf.mxu0
  %8875 = vdwg.mxu0
  %8876 = vmatpush.bf16.msra.mxu0 %v8573
  %8877 = vmatpush.bf16.msra.mxu0 %v8565
  %8878 = vmatpush.bf16.msra.mxu0 %v8557
  %8879 = vmatpush.bf16.msra.mxu0 %v8549
  %8880 = vmatpush.bf16.msra.mxu0 %v8541
  %8881 = vmatpush.bf16.msra.mxu0 %v8533
  %8882 = vmatpush.bf16.msra.mxu0 %v8525
  %8883 = vmatpush.bf16.msra.mxu0 %v8517
  %8884 = vmatmul.bf16.gmra.mxu0 %v7552
  %v8885 = vpop.f32.mrf.mxu0
  %v8886 = vadd.f32 %v8873, %v8885
  %v8887 = vpop.f32.mrf.mxu0
  %8888 = vdwg.mxu0
  %8889 = vmatpush.bf16.msra.mxu0 %v8382
  %8890 = vmatpush.bf16.msra.mxu0 %v8374
  %8891 = vmatpush.bf16.msra.mxu0 %v8366
  %8892 = vmatpush.bf16.msra.mxu0 %v8358
  %8893 = vmatpush.bf16.msra.mxu0 %v8350
  %8894 = vmatpush.bf16.msra.mxu0 %v8342
  %8895 = vmatpush.bf16.msra.mxu0 %v8334
  %8896 = vmatpush.bf16.msra.mxu0 %v8326
  %8897 = vmatmul.bf16.gmra.mxu0 %v7549
  %v8898 = vpop.f32.mrf.mxu0
  %v8899 = vadd.f32 %v7545, %v8898
  %v8900 = vpop.f32.mrf.mxu0
  %8901 = vdwg.mxu0
  %8902 = vmatpush.bf16.msra.mxu0 %v8446
  %8903 = vmatpush.bf16.msra.mxu0 %v8438
  %8904 = vmatpush.bf16.msra.mxu0 %v8430
  %8905 = vmatpush.bf16.msra.mxu0 %v8422
  %8906 = vmatpush.bf16.msra.mxu0 %v8414
  %8907 = vmatpush.bf16.msra.mxu0 %v8406
  %8908 = vmatpush.bf16.msra.mxu0 %v8398
  %8909 = vmatpush.bf16.msra.mxu0 %v8390
  %8910 = vmatmul.bf16.gmra.mxu0 %v7550
  %v8911 = vpop.f32.mrf.mxu0
  %v8912 = vadd.f32 %v8899, %v8911
  %v8913 = vpop.f32.mrf.mxu0
  %8914 = vdwg.mxu0
  %8915 = vmatpush.bf16.msra.mxu0 %v8510
  %8916 = vmatpush.bf16.msra.mxu0 %v8502
  %8917 = vmatpush.bf16.msra.mxu0 %v8494
  %8918 = vmatpush.bf16.msra.mxu0 %v8486
  %8919 = vmatpush.bf16.msra.mxu0 %v8478
  %8920 = vmatpush.bf16.msra.mxu0 %v8470
  %8921 = vmatpush.bf16.msra.mxu0 %v8462
  %8922 = vmatpush.bf16.msra.mxu0 %v8454
  %8923 = vmatmul.bf16.gmra.mxu0 %v7551
  %v8924 = vpop.f32.mrf.mxu0
  %v8925 = vadd.f32 %v8912, %v8924
  %v8926 = vpop.f32.mrf.mxu0
  %8927 = vdwg.mxu0
  %8928 = vmatpush.bf16.msra.mxu0 %v8574
  %8929 = vmatpush.bf16.msra.mxu0 %v8566
  %8930 = vmatpush.bf16.msra.mxu0 %v8558
  %8931 = vmatpush.bf16.msra.mxu0 %v8550
  %8932 = vmatpush.bf16.msra.mxu0 %v8542
  %8933 = vmatpush.bf16.msra.mxu0 %v8534
  %8934 = vmatpush.bf16.msra.mxu0 %v8526
  %8935 = vmatpush.bf16.msra.mxu0 %v8518
  %8936 = vmatmul.bf16.gmra.mxu0 %v7552
  %v8937 = vpop.f32.mrf.mxu0
  %v8938 = vadd.f32 %v8925, %v8937
  %v8939 = vpop.f32.mrf.mxu0
  %8940 = vdwg.mxu0
  %8941 = vmatpush.bf16.msra.mxu0 %v8383
  %8942 = vmatpush.bf16.msra.mxu0 %v8375
  %8943 = vmatpush.bf16.msra.mxu0 %v8367
  %8944 = vmatpush.bf16.msra.mxu0 %v8359
  %8945 = vmatpush.bf16.msra.mxu0 %v8351
  %8946 = vmatpush.bf16.msra.mxu0 %v8343
  %8947 = vmatpush.bf16.msra.mxu0 %v8335
  %8948 = vmatpush.bf16.msra.mxu0 %v8327
  %8949 = vmatmul.bf16.gmra.mxu0 %v7549
  %v8950 = vpop.f32.mrf.mxu0
  %v8951 = vadd.f32 %v7545, %v8950
  %v8952 = vpop.f32.mrf.mxu0
  %8953 = vdwg.mxu0
  %8954 = vmatpush.bf16.msra.mxu0 %v8447
  %8955 = vmatpush.bf16.msra.mxu0 %v8439
  %8956 = vmatpush.bf16.msra.mxu0 %v8431
  %8957 = vmatpush.bf16.msra.mxu0 %v8423
  %8958 = vmatpush.bf16.msra.mxu0 %v8415
  %8959 = vmatpush.bf16.msra.mxu0 %v8407
  %8960 = vmatpush.bf16.msra.mxu0 %v8399
  %8961 = vmatpush.bf16.msra.mxu0 %v8391
  %8962 = vmatmul.bf16.gmra.mxu0 %v7550
  %v8963 = vpop.f32.mrf.mxu0
  %v8964 = vadd.f32 %v8951, %v8963
  %v8965 = vpop.f32.mrf.mxu0
  %8966 = vdwg.mxu0
  %8967 = vmatpush.bf16.msra.mxu0 %v8511
  %8968 = vmatpush.bf16.msra.mxu0 %v8503
  %8969 = vmatpush.bf16.msra.mxu0 %v8495
  %8970 = vmatpush.bf16.msra.mxu0 %v8487
  %8971 = vmatpush.bf16.msra.mxu0 %v8479
  %8972 = vmatpush.bf16.msra.mxu0 %v8471
  %8973 = vmatpush.bf16.msra.mxu0 %v8463
  %8974 = vmatpush.bf16.msra.mxu0 %v8455
  %8975 = vmatmul.bf16.gmra.mxu0 %v7551
  %v8976 = vpop.f32.mrf.mxu0
  %v8977 = vadd.f32 %v8964, %v8976
  %v8978 = vpop.f32.mrf.mxu0
  %8979 = vdwg.mxu0
  %8980 = vmatpush.bf16.msra.mxu0 %v8575
  %8981 = vmatpush.bf16.msra.mxu0 %v8567
  %8982 = vmatpush.bf16.msra.mxu0 %v8559
  %8983 = vmatpush.bf16.msra.mxu0 %v8551
  %8984 = vmatpush.bf16.msra.mxu0 %v8543
  %8985 = vmatpush.bf16.msra.mxu0 %v8535
  %8986 = vmatpush.bf16.msra.mxu0 %v8527
  %8987 = vmatpush.bf16.msra.mxu0 %v8519
  %8988 = vmatmul.bf16.gmra.mxu0 %v7552
  %v8989 = vpop.f32.mrf.mxu0
  %v8990 = vadd.f32 %v8977, %v8989
  %v8991 = vpop.f32.mrf.mxu0
  %8992 = vdwg.mxu0
  %8993 = vmatpush.bf16.msra.mxu0 %v8384
  %8994 = vmatpush.bf16.msra.mxu0 %v8376
  %8995 = vmatpush.bf16.msra.mxu0 %v8368
  %8996 = vmatpush.bf16.msra.mxu0 %v8360
  %8997 = vmatpush.bf16.msra.mxu0 %v8352
  %8998 = vmatpush.bf16.msra.mxu0 %v8344
  %8999 = vmatpush.bf16.msra.mxu0 %v8336
  %9000 = vmatpush.bf16.msra.mxu0 %v8328
  %9001 = vmatmul.bf16.gmra.mxu0 %v7549
  %v9002 = vpop.f32.mrf.mxu0
  %v9003 = vadd.f32 %v7545, %v9002
  %v9004 = vpop.f32.mrf.mxu0
  %9005 = vdwg.mxu0
  %9006 = vmatpush.bf16.msra.mxu0 %v8448
  %9007 = vmatpush.bf16.msra.mxu0 %v8440
  %9008 = vmatpush.bf16.msra.mxu0 %v8432
  %9009 = vmatpush.bf16.msra.mxu0 %v8424
  %9010 = vmatpush.bf16.msra.mxu0 %v8416
  %9011 = vmatpush.bf16.msra.mxu0 %v8408
  %9012 = vmatpush.bf16.msra.mxu0 %v8400
  %9013 = vmatpush.bf16.msra.mxu0 %v8392
  %9014 = vmatmul.bf16.gmra.mxu0 %v7550
  %v9015 = vpop.f32.mrf.mxu0
  %v9016 = vadd.f32 %v9003, %v9015
  %v9017 = vpop.f32.mrf.mxu0
  %9018 = vdwg.mxu0
  %9019 = vmatpush.bf16.msra.mxu0 %v8512
  %9020 = vmatpush.bf16.msra.mxu0 %v8504
  %9021 = vmatpush.bf16.msra.mxu0 %v8496
  %9022 = vmatpush.bf16.msra.mxu0 %v8488
  %9023 = vmatpush.bf16.msra.mxu0 %v8480
  %9024 = vmatpush.bf16.msra.mxu0 %v8472
  %9025 = vmatpush.bf16.msra.mxu0 %v8464
  %9026 = vmatpush.bf16.msra.mxu0 %v8456
  %9027 = vmatmul.bf16.gmra.mxu0 %v7551
  %v9028 = vpop.f32.mrf.mxu0
  %v9029 = vadd.f32 %v9016, %v9028
  %v9030 = vpop.f32.mrf.mxu0
  %9031 = vdwg.mxu0
  %9032 = vmatpush.bf16.msra.mxu0 %v8576
  %9033 = vmatpush.bf16.msra.mxu0 %v8568
  %9034 = vmatpush.bf16.msra.mxu0 %v8560
  %9035 = vmatpush.bf16.msra.mxu0 %v8552
  %9036 = vmatpush.bf16.msra.mxu0 %v8544
  %9037 = vmatpush.bf16.msra.mxu0 %v8536
  %9038 = vmatpush.bf16.msra.mxu0 %v8528
  %9039 = vmatpush.bf16.msra.mxu0 %v8520
  %9040 = vmatmul.bf16.gmra.mxu0 %v7552
  %v9041 = vpop.f32.mrf.mxu0
  %v9042 = vadd.f32 %v9029, %v9041
  %v9043 = vpop.f32.mrf.mxu0
  %9044 = vdwg.mxu0
  %9045 = vmatpush.bf16.msra.mxu0 %v8385
  %9046 = vmatpush.bf16.msra.mxu0 %v8377
  %9047 = vmatpush.bf16.msra.mxu0 %v8369
  %9048 = vmatpush.bf16.msra.mxu0 %v8361
  %9049 = vmatpush.bf16.msra.mxu0 %v8353
  %9050 = vmatpush.bf16.msra.mxu0 %v8345
  %9051 = vmatpush.bf16.msra.mxu0 %v8337
  %9052 = vmatpush.bf16.msra.mxu0 %v8329
  %9053 = vmatmul.bf16.gmra.mxu0 %v7549
  %v9054 = vpop.f32.mrf.mxu0
  %v9055 = vadd.f32 %v7545, %v9054
  %v9056 = vpop.f32.mrf.mxu0
  %9057 = vdwg.mxu0
  %9058 = vmatpush.bf16.msra.mxu0 %v8449
  %9059 = vmatpush.bf16.msra.mxu0 %v8441
  %9060 = vmatpush.bf16.msra.mxu0 %v8433
  %9061 = vmatpush.bf16.msra.mxu0 %v8425
  %9062 = vmatpush.bf16.msra.mxu0 %v8417
  %9063 = vmatpush.bf16.msra.mxu0 %v8409
  %9064 = vmatpush.bf16.msra.mxu0 %v8401
  %9065 = vmatpush.bf16.msra.mxu0 %v8393
  %9066 = vmatmul.bf16.gmra.mxu0 %v7550
  %v9067 = vpop.f32.mrf.mxu0
  %v9068 = vadd.f32 %v9055, %v9067
  %v9069 = vpop.f32.mrf.mxu0
  %9070 = vdwg.mxu0
  %9071 = vmatpush.bf16.msra.mxu0 %v8513
  %9072 = vmatpush.bf16.msra.mxu0 %v8505
  %9073 = vmatpush.bf16.msra.mxu0 %v8497
  %9074 = vmatpush.bf16.msra.mxu0 %v8489
  %9075 = vmatpush.bf16.msra.mxu0 %v8481
  %9076 = vmatpush.bf16.msra.mxu0 %v8473
  %9077 = vmatpush.bf16.msra.mxu0 %v8465
  %9078 = vmatpush.bf16.msra.mxu0 %v8457
  %9079 = vmatmul.bf16.gmra.mxu0 %v7551
  %v9080 = vpop.f32.mrf.mxu0
  %v9081 = vadd.f32 %v9068, %v9080
  %v9082 = vpop.f32.mrf.mxu0
  %9083 = vdwg.mxu0
  %9084 = vmatpush.bf16.msra.mxu0 %v8577
  %9085 = vmatpush.bf16.msra.mxu0 %v8569
  %9086 = vmatpush.bf16.msra.mxu0 %v8561
  %9087 = vmatpush.bf16.msra.mxu0 %v8553
  %9088 = vmatpush.bf16.msra.mxu0 %v8545
  %9089 = vmatpush.bf16.msra.mxu0 %v8537
  %9090 = vmatpush.bf16.msra.mxu0 %v8529
  %9091 = vmatpush.bf16.msra.mxu0 %v8521
  %9092 = vmatmul.bf16.gmra.mxu0 %v7552
  %v9093 = vpop.f32.mrf.mxu0
  %v9094 = vadd.f32 %v9081, %v9093
  %v9095 = vpop.f32.mrf.mxu0
  %9096 = vdwg.mxu0
  %9097 = vmatpush.bf16.msra.mxu0 %v8386
  %9098 = vmatpush.bf16.msra.mxu0 %v8378
  %9099 = vmatpush.bf16.msra.mxu0 %v8370
  %9100 = vmatpush.bf16.msra.mxu0 %v8362
  %9101 = vmatpush.bf16.msra.mxu0 %v8354
  %9102 = vmatpush.bf16.msra.mxu0 %v8346
  %9103 = vmatpush.bf16.msra.mxu0 %v8338
  %9104 = vmatpush.bf16.msra.mxu0 %v8330
  %9105 = vmatmul.bf16.gmra.mxu0 %v7549
  %v9106 = vpop.f32.mrf.mxu0
  %v9107 = vadd.f32 %v7545, %v9106
  %v9108 = vpop.f32.mrf.mxu0
  %9109 = vdwg.mxu0
  %9110 = vmatpush.bf16.msra.mxu0 %v8450
  %9111 = vmatpush.bf16.msra.mxu0 %v8442
  %9112 = vmatpush.bf16.msra.mxu0 %v8434
  %9113 = vmatpush.bf16.msra.mxu0 %v8426
  %9114 = vmatpush.bf16.msra.mxu0 %v8418
  %9115 = vmatpush.bf16.msra.mxu0 %v8410
  %9116 = vmatpush.bf16.msra.mxu0 %v8402
  %9117 = vmatpush.bf16.msra.mxu0 %v8394
  %9118 = vmatmul.bf16.gmra.mxu0 %v7550
  %v9119 = vpop.f32.mrf.mxu0
  %v9120 = vadd.f32 %v9107, %v9119
  %v9121 = vpop.f32.mrf.mxu0
  %9122 = vdwg.mxu0
  %9123 = vmatpush.bf16.msra.mxu0 %v8514
  %9124 = vmatpush.bf16.msra.mxu0 %v8506
  %9125 = vmatpush.bf16.msra.mxu0 %v8498
  %9126 = vmatpush.bf16.msra.mxu0 %v8490
  %9127 = vmatpush.bf16.msra.mxu0 %v8482
  %9128 = vmatpush.bf16.msra.mxu0 %v8474
  %9129 = vmatpush.bf16.msra.mxu0 %v8466
  %9130 = vmatpush.bf16.msra.mxu0 %v8458
  %9131 = vmatmul.bf16.gmra.mxu0 %v7551
  %v9132 = vpop.f32.mrf.mxu0
  %v9133 = vadd.f32 %v9120, %v9132
  %v9134 = vpop.f32.mrf.mxu0
  %9135 = vdwg.mxu0
  %9136 = vmatpush.bf16.msra.mxu0 %v8578
  %9137 = vmatpush.bf16.msra.mxu0 %v8570
  %9138 = vmatpush.bf16.msra.mxu0 %v8562
  %9139 = vmatpush.bf16.msra.mxu0 %v8554
  %9140 = vmatpush.bf16.msra.mxu0 %v8546
  %9141 = vmatpush.bf16.msra.mxu0 %v8538
  %9142 = vmatpush.bf16.msra.mxu0 %v8530
  %9143 = vmatpush.bf16.msra.mxu0 %v8522
  %9144 = vmatmul.bf16.gmra.mxu0 %v7552
  %v9145 = vpop.f32.mrf.mxu0
  %v9146 = vadd.f32 %v9133, %v9145
  %v9147 = vpop.f32.mrf.mxu0
  %9148 = vdwg.mxu0
  %9149 = vmatpush.bf16.msra.mxu0 %v8387
  %9150 = vmatpush.bf16.msra.mxu0 %v8379
  %9151 = vmatpush.bf16.msra.mxu0 %v8371
  %9152 = vmatpush.bf16.msra.mxu0 %v8363
  %9153 = vmatpush.bf16.msra.mxu0 %v8355
  %9154 = vmatpush.bf16.msra.mxu0 %v8347
  %9155 = vmatpush.bf16.msra.mxu0 %v8339
  %9156 = vmatpush.bf16.msra.mxu0 %v8331
  %9157 = vmatmul.bf16.gmra.mxu0 %v7549
  %v9158 = vpop.f32.mrf.mxu0
  %v9159 = vadd.f32 %v7545, %v9158
  %v9160 = vpop.f32.mrf.mxu0
  %9161 = vdwg.mxu0
  %9162 = vmatpush.bf16.msra.mxu0 %v8451
  %9163 = vmatpush.bf16.msra.mxu0 %v8443
  %9164 = vmatpush.bf16.msra.mxu0 %v8435
  %9165 = vmatpush.bf16.msra.mxu0 %v8427
  %9166 = vmatpush.bf16.msra.mxu0 %v8419
  %9167 = vmatpush.bf16.msra.mxu0 %v8411
  %9168 = vmatpush.bf16.msra.mxu0 %v8403
  %9169 = vmatpush.bf16.msra.mxu0 %v8395
  %9170 = vmatmul.bf16.gmra.mxu0 %v7550
  %v9171 = vpop.f32.mrf.mxu0
  %v9172 = vadd.f32 %v9159, %v9171
  %v9173 = vpop.f32.mrf.mxu0
  %9174 = vdwg.mxu0
  %9175 = vmatpush.bf16.msra.mxu0 %v8515
  %9176 = vmatpush.bf16.msra.mxu0 %v8507
  %9177 = vmatpush.bf16.msra.mxu0 %v8499
  %9178 = vmatpush.bf16.msra.mxu0 %v8491
  %9179 = vmatpush.bf16.msra.mxu0 %v8483
  %9180 = vmatpush.bf16.msra.mxu0 %v8475
  %9181 = vmatpush.bf16.msra.mxu0 %v8467
  %9182 = vmatpush.bf16.msra.mxu0 %v8459
  %9183 = vmatmul.bf16.gmra.mxu0 %v7551
  %v9184 = vpop.f32.mrf.mxu0
  %v9185 = vadd.f32 %v9172, %v9184
  %v9186 = vpop.f32.mrf.mxu0
  %9187 = vdwg.mxu0
  %9188 = vmatpush.bf16.msra.mxu0 %v8579
  %9189 = vmatpush.bf16.msra.mxu0 %v8571
  %9190 = vmatpush.bf16.msra.mxu0 %v8563
  %9191 = vmatpush.bf16.msra.mxu0 %v8555
  %9192 = vmatpush.bf16.msra.mxu0 %v8547
  %9193 = vmatpush.bf16.msra.mxu0 %v8539
  %9194 = vmatpush.bf16.msra.mxu0 %v8531
  %9195 = vmatpush.bf16.msra.mxu0 %v8523
  %9196 = vmatmul.bf16.gmra.mxu0 %v7552
  %v9197 = vpop.f32.mrf.mxu0
  %v9198 = vadd.f32 %v9185, %v9197
  %v9199 = vpop.f32.mrf.mxu0
  %9200 = vdwg.mxu0
  %9201 = vmatpush.bf16.msra.mxu0 %v8388
  %9202 = vmatpush.bf16.msra.mxu0 %v8380
  %9203 = vmatpush.bf16.msra.mxu0 %v8372
  %9204 = vmatpush.bf16.msra.mxu0 %v8364
  %9205 = vmatpush.bf16.msra.mxu0 %v8356
  %9206 = vmatpush.bf16.msra.mxu0 %v8348
  %9207 = vmatpush.bf16.msra.mxu0 %v8340
  %9208 = vmatpush.bf16.msra.mxu0 %v8332
  %9209 = vmatmul.bf16.gmra.mxu0 %v7549
  %v9210 = vpop.f32.mrf.mxu0
  %v9211 = vadd.f32 %v7545, %v9210
  %v9212 = vpop.f32.mrf.mxu0
  %9213 = vdwg.mxu0
  %9214 = vmatpush.bf16.msra.mxu0 %v8452
  %9215 = vmatpush.bf16.msra.mxu0 %v8444
  %9216 = vmatpush.bf16.msra.mxu0 %v8436
  %9217 = vmatpush.bf16.msra.mxu0 %v8428
  %9218 = vmatpush.bf16.msra.mxu0 %v8420
  %9219 = vmatpush.bf16.msra.mxu0 %v8412
  %9220 = vmatpush.bf16.msra.mxu0 %v8404
  %9221 = vmatpush.bf16.msra.mxu0 %v8396
  %9222 = vmatmul.bf16.gmra.mxu0 %v7550
  %v9223 = vpop.f32.mrf.mxu0
  %v9224 = vadd.f32 %v9211, %v9223
  %v9225 = vpop.f32.mrf.mxu0
  %9226 = vdwg.mxu0
  %9227 = vmatpush.bf16.msra.mxu0 %v8516
  %9228 = vmatpush.bf16.msra.mxu0 %v8508
  %9229 = vmatpush.bf16.msra.mxu0 %v8500
  %9230 = vmatpush.bf16.msra.mxu0 %v8492
  %9231 = vmatpush.bf16.msra.mxu0 %v8484
  %9232 = vmatpush.bf16.msra.mxu0 %v8476
  %9233 = vmatpush.bf16.msra.mxu0 %v8468
  %9234 = vmatpush.bf16.msra.mxu0 %v8460
  %9235 = vmatmul.bf16.gmra.mxu0 %v7551
  %v9236 = vpop.f32.mrf.mxu0
  %v9237 = vadd.f32 %v9224, %v9236
  %v9238 = vpop.f32.mrf.mxu0
  %9239 = vdwg.mxu0
  %9240 = vmatpush.bf16.msra.mxu0 %v8580
  %9241 = vmatpush.bf16.msra.mxu0 %v8572
  %9242 = vmatpush.bf16.msra.mxu0 %v8564
  %9243 = vmatpush.bf16.msra.mxu0 %v8556
  %9244 = vmatpush.bf16.msra.mxu0 %v8548
  %9245 = vmatpush.bf16.msra.mxu0 %v8540
  %9246 = vmatpush.bf16.msra.mxu0 %v8532
  %9247 = vmatpush.bf16.msra.mxu0 %v8524
  %9248 = vmatmul.bf16.gmra.mxu0 %v7552
  %v9249 = vpop.f32.mrf.mxu0
  %v9250 = vadd.f32 %v9237, %v9249
  %v9251 = vpop.f32.mrf.mxu0
  %9252 = vdwg.mxu0
  %v9253 = vmax.f32 %v8886, 0.0
  %v9254 = vmax.f32 %v8938, 0.0
  %v9255 = vmax.f32 %v8990, 0.0
  %v9256 = vmax.f32 %v9042, 0.0
  %v9257 = vmax.f32 %v9094, 0.0
  %v9258 = vmax.f32 %v9146, 0.0
  %v9259 = vmax.f32 %v9198, 0.0
  %v9260 = vmax.f32 %v9250, 0.0
  %v9263 = vrot.slane %v9255, 7
  %v9264 = vrot.slane %v9256, 7
  %v9269 = vrot.slane %v9257, 6
  %v9270 = vrot.slane %v9258, 6
  %v9275 = vrot.slane %v9259, 5
  %v9276 = vrot.slane %v9260, 5
  %vm9279 = vcmask 1040384
  %v9280 = vsel %vm9279, %v9253, %v9263
  %v9281 = vsel %vm9279, %v9254, %v9264
  %vm9282 = vcmask 1041408
  %v9283 = vsel %vm9282, %v9280, %v9269
  %v9284 = vsel %vm9282, %v9281, %v9270
  %vm9285 = vcmask 1042432
  %v9286 = vsel %vm9285, %v9283, %v9275
  %v9287 = vsel %vm9285, %v9284, %v9276
  %v9290 = vrot.slane %v9253, 1
  %v9291 = vrot.slane %v9254, 1
  %v9294 = vrot.slane %v9257, 7
  %v9295 = vrot.slane %v9258, 7
  %v9298 = vrot.slane %v9259, 6
  %v9299 = vrot.slane %v9260, 6
  %v9302 = vsel %vm9279, %v9290, %v9255
  %v9303 = vsel %vm9279, %v9291, %v9256
  %v9304 = vsel %vm9282, %v9302, %v9294
  %v9305 = vsel %vm9282, %v9303, %v9295
  %v9306 = vsel %vm9285, %v9304, %v9298
  %v9307 = vsel %vm9285, %v9305, %v9299
  %v9308 = vrot.slane %v9253, 2
  %v9309 = vrot.slane %v9254, 2
  %v9312 = vrot.slane %v9255, 1
  %v9313 = vrot.slane %v9256, 1
  %v9316 = vrot.slane %v9259, 7
  %v9317 = vrot.slane %v9260, 7
  %v9320 = vsel %vm9279, %v9308, %v9312
  %v9321 = vsel %vm9279, %v9309, %v9313
  %v9322 = vsel %vm9282, %v9320, %v9257
  %v9323 = vsel %vm9282, %v9321, %v9258
  %v9324 = vsel %vm9285, %v9322, %v9316
  %v9325 = vsel %vm9285, %v9323, %v9317
  %s9326 = scalar_lea.vmem %s8, 64
  %v9327 = vld [vmem:[%s9326] ss:$8 sm:$0x3]
  %v9328 = vpack.c.bf16 %v9286, %v9286
  %v9329 = vpack.c.bf16 %v9287, %v9287
  %v9330 = vld [vmem:[%s6] sm:$0xff]
  %v9331 = vld [vmem:[%s6 + $0x8] sm:$0xff]
  %v9332 = vld [vmem:[%s6 + $0x10] sm:$0xff]
  %v9333 = vld [vmem:[%s6 + $0x18] sm:$0xff]
  %v9334 = vld [vmem:[%s6 + $0x20] sm:$0xff]
  %v9335 = vld [vmem:[%s6 + $0x28] sm:$0xff]
  %v9336 = vld [vmem:[%s6 + $0x30] sm:$0xff]
  %v9337 = vld [vmem:[%s6 + $0x38] sm:$0xff]
  %v9338 = vld [vmem:[%s6 + $0x40] sm:$0xff]
  %v9339 = vld [vmem:[%s6 + $0x48] sm:$0xff]
  %v9340 = vld [vmem:[%s6 + $0x50] sm:$0xff]
  %v9341 = vld [vmem:[%s6 + $0x58] sm:$0xff]
  %v9342 = vld [vmem:[%s6 + $0x60] sm:$0xff]
  %v9343 = vld [vmem:[%s6 + $0x68] sm:$0xff]
  %v9344 = vld [vmem:[%s6 + $0x70] sm:$0xff]
  %v9345 = vld [vmem:[%s6 + $0x78] sm:$0xff]
  %v9346 = vld [vmem:[%s6 + $0x80] sm:$0xff]
  %v9347 = vld [vmem:[%s6 + $0x88] sm:$0xff]
  %v9348 = vld [vmem:[%s6 + $0x90] sm:$0xff]
  %v9349 = vld [vmem:[%s6 + $0x98] sm:$0xff]
  %v9350 = vld [vmem:[%s6 + $0xa0] sm:$0xff]
  %v9351 = vld [vmem:[%s6 + $0xa8] sm:$0xff]
  %v9352 = vld [vmem:[%s6 + $0xb0] sm:$0xff]
  %v9353 = vld [vmem:[%s6 + $0xb8] sm:$0xff]
  %v9354 = vld [vmem:[%s6 + $0xc0] sm:$0x33]
  %v9380 = vunpack.c.l.b16 %v9330
  %v9381 = vunpack.c.h.b16 %v9330
  %v9382 = vunpack.c.l.b16 %v9331
  %v9383 = vunpack.c.h.b16 %v9331
  %v9384 = vunpack.c.l.b16 %v9332
  %v9385 = vunpack.c.h.b16 %v9332
  %v9386 = vunpack.c.l.b16 %v9333
  %v9387 = vunpack.c.h.b16 %v9333
  %v9388 = vunpack.c.l.b16 %v9334
  %v9389 = vunpack.c.h.b16 %v9334
  %v9390 = vunpack.c.l.b16 %v9335
  %v9391 = vunpack.c.h.b16 %v9335
  %v9392 = vunpack.c.l.b16 %v9336
  %v9393 = vunpack.c.h.b16 %v9336
  %v9394 = vunpack.c.l.b16 %v9337
  %v9395 = vunpack.c.h.b16 %v9337
  %v9396 = vunpack.c.l.b16 %v9338
  %v9397 = vunpack.c.h.b16 %v9338
  %v9398 = vunpack.c.l.b16 %v9339
  %v9399 = vunpack.c.h.b16 %v9339
  %v9400 = vunpack.c.l.b16 %v9340
  %v9401 = vunpack.c.h.b16 %v9340
  %v9402 = vunpack.c.l.b16 %v9341
  %v9403 = vunpack.c.h.b16 %v9341
  %v9404 = vunpack.c.l.b16 %v9342
  %v9405 = vunpack.c.h.b16 %v9342
  %v9406 = vunpack.c.l.b16 %v9343
  %v9407 = vunpack.c.h.b16 %v9343
  %v9408 = vunpack.c.l.b16 %v9344
  %v9409 = vunpack.c.h.b16 %v9344
  %v9410 = vunpack.c.l.b16 %v9345
  %v9411 = vunpack.c.h.b16 %v9345
  %v9412 = vunpack.c.l.b16 %v9346
  %v9413 = vunpack.c.h.b16 %v9346
  %v9414 = vunpack.c.l.b16 %v9347
  %v9415 = vunpack.c.h.b16 %v9347
  %v9416 = vunpack.c.l.b16 %v9348
  %v9417 = vunpack.c.h.b16 %v9348
  %v9418 = vunpack.c.l.b16 %v9349
  %v9419 = vunpack.c.h.b16 %v9349
  %v9420 = vunpack.c.l.b16 %v9350
  %v9421 = vunpack.c.h.b16 %v9350
  %v9422 = vunpack.c.l.b16 %v9351
  %v9423 = vunpack.c.h.b16 %v9351
  %v9424 = vunpack.c.l.b16 %v9352
  %v9425 = vunpack.c.h.b16 %v9352
  %v9426 = vunpack.c.l.b16 %v9353
  %v9427 = vunpack.c.h.b16 %v9353
  %v9428 = vunpack.c.l.b16 %v9354
  %v9429 = vunpack.c.h.b16 %v9354
  %v9430 = vpack.c.b16 %v9382, %v9380
  %v9431 = vpack.c.b16 %v9383, %v9381
  %v9432 = vpack.c.b16 %v9386, %v9384
  %v9433 = vpack.c.b16 %v9387, %v9385
  %v9434 = vpack.c.b16 %v9390, %v9388
  %v9435 = vpack.c.b16 %v9391, %v9389
  %v9436 = vpack.c.b16 %v9394, %v9392
  %v9437 = vpack.c.b16 %v9395, %v9393
  %v9438 = vpack.c.b16 %v9398, %v9396
  %v9439 = vpack.c.b16 %v9399, %v9397
  %v9440 = vpack.c.b16 %v9402, %v9400
  %v9441 = vpack.c.b16 %v9403, %v9401
  %v9442 = vpack.c.b16 %v9406, %v9404
  %v9443 = vpack.c.b16 %v9407, %v9405
  %v9444 = vpack.c.b16 %v9410, %v9408
  %v9445 = vpack.c.b16 %v9411, %v9409
  %v9446 = vpack.c.b16 %v9414, %v9412
  %v9447 = vpack.c.b16 %v9415, %v9413
  %v9448 = vpack.c.b16 %v9418, %v9416
  %v9449 = vpack.c.b16 %v9419, %v9417
  %v9450 = vpack.c.b16 %v9422, %v9420
  %v9451 = vpack.c.b16 %v9423, %v9421
  %v9452 = vpack.c.b16 %v9426, %v9424
  %v9453 = vpack.c.b16 %v9427, %v9425
  %v9454 = vpack.c.b16 %v9428, %v9428
  %v9455 = vpack.c.b16 %v9429, %v9429
  %vm9480 = vcmask 556032
  %v9482 = vsel %vm9480, %v9329, 0
  %v9485 = vsel %vm9282, %v9454, 0
  %v9488 = vsel %vm9282, %v9455, 0
  %9490 = vmatpush.bf16.msra.mxu0 %v9444
  %9491 = vmatpush.bf16.msra.mxu0 %v9442
  %9492 = vmatpush.bf16.msra.mxu0 %v9440
  %9493 = vmatpush.bf16.msra.mxu0 %v9438
  %9494 = vmatpush.bf16.msra.mxu0 %v9436
  %9495 = vmatpush.bf16.msra.mxu0 %v9434
  %9496 = vmatpush.bf16.msra.mxu0 %v9432
  %9497 = vmatpush.bf16.msra.mxu0 %v9430
  %9498 = vmatmul.bf16.gmra.mxu0 %v9328
  %v9499 = vpop.f32.mrf.mxu0
  %v9500 = vadd.f32 0.0, %v9499
  %v9501 = vpop.f32.mrf.mxu0
  %9502 = vdwg.mxu0
  %9503 = vmatpush.bf16.msra.mxu0 0
  %9504 = vmatpush.bf16.msra.mxu0 0
  %9505 = vmatpush.bf16.msra.mxu0 0
  %9506 = vmatpush.bf16.msra.mxu0 %v9485
  %9507 = vmatpush.bf16.msra.mxu0 %v9452
  %9508 = vmatpush.bf16.msra.mxu0 %v9450
  %9509 = vmatpush.bf16.msra.mxu0 %v9448
  %9510 = vmatpush.bf16.msra.mxu0 %v9446
  %9511 = vmatmul.bf16.gmra.mxu0 %v9482
  %v9512 = vpop.f32.mrf.mxu0
  %v9513 = vadd.f32 %v9500, %v9512
  %v9514 = vpop.f32.mrf.mxu0
  %9515 = vdwg.mxu0
  %9516 = vmatpush.bf16.msra.mxu0 %v9445
  %9517 = vmatpush.bf16.msra.mxu0 %v9443
  %9518 = vmatpush.bf16.msra.mxu0 %v9441
  %9519 = vmatpush.bf16.msra.mxu0 %v9439
  %9520 = vmatpush.bf16.msra.mxu0 %v9437
  %9521 = vmatpush.bf16.msra.mxu0 %v9435
  %9522 = vmatpush.bf16.msra.mxu0 %v9433
  %9523 = vmatpush.bf16.msra.mxu0 %v9431
  %9524 = vmatmul.bf16.gmra.mxu0 %v9328
  %v9525 = vpop.f32.mrf.mxu0
  %v9526 = vadd.f32 0.0, %v9525
  %v9527 = vpop.f32.mrf.mxu0
  %9528 = vdwg.mxu0
  %9529 = vmatpush.bf16.msra.mxu0 0
  %9530 = vmatpush.bf16.msra.mxu0 0
  %9531 = vmatpush.bf16.msra.mxu0 0
  %9532 = vmatpush.bf16.msra.mxu0 %v9488
  %9533 = vmatpush.bf16.msra.mxu0 %v9453
  %9534 = vmatpush.bf16.msra.mxu0 %v9451
  %9535 = vmatpush.bf16.msra.mxu0 %v9449
  %9536 = vmatpush.bf16.msra.mxu0 %v9447
  %9537 = vmatmul.bf16.gmra.mxu0 %v9482
  %v9538 = vpop.f32.mrf.mxu0
  %v9539 = vadd.f32 %v9526, %v9538
  %v9540 = vpop.f32.mrf.mxu0
  %9541 = vdwg.mxu0
  %v9543 = vperm.slane %v9327, 0
  %v9544 = vperm.slane %v9327, 1
  %v9547 = vadd.f32 %v9543, %v9513
  %v9548 = vadd.f32 %v9544, %v9539
  %v9549 = vpack.c.bf16 %v9306, %v9306
  %v9550 = vpack.c.bf16 %v9307, %v9307
  %s9551 = scalar_lea.vmem %s6, 200
  %v9552 = vld [vmem:[%s9551] sm:$0xff]
  %v9553 = vld [vmem:[%s9551 + $0x8] sm:$0xff]
  %v9554 = vld [vmem:[%s9551 + $0x10] sm:$0xff]
  %v9555 = vld [vmem:[%s9551 + $0x18] sm:$0xff]
  %v9556 = vld [vmem:[%s9551 + $0x20] sm:$0xff]
  %v9557 = vld [vmem:[%s9551 + $0x28] sm:$0xff]
  %v9558 = vld [vmem:[%s9551 + $0x30] sm:$0xff]
  %v9559 = vld [vmem:[%s9551 + $0x38] sm:$0xff]
  %v9560 = vld [vmem:[%s9551 + $0x40] sm:$0xff]
  %v9561 = vld [vmem:[%s9551 + $0x48] sm:$0xff]
  %v9562 = vld [vmem:[%s9551 + $0x50] sm:$0xff]
  %v9563 = vld [vmem:[%s9551 + $0x58] sm:$0xff]
  %v9564 = vld [vmem:[%s9551 + $0x60] sm:$0xff]
  %v9565 = vld [vmem:[%s9551 + $0x68] sm:$0xff]
  %v9566 = vld [vmem:[%s9551 + $0x70] sm:$0xff]
  %v9567 = vld [vmem:[%s9551 + $0x78] sm:$0xff]
  %v9568 = vld [vmem:[%s9551 + $0x80] sm:$0xff]
  %v9569 = vld [vmem:[%s9551 + $0x88] sm:$0xff]
  %v9570 = vld [vmem:[%s9551 + $0x90] sm:$0xff]
  %v9571 = vld [vmem:[%s9551 + $0x98] sm:$0xff]
  %v9572 = vld [vmem:[%s9551 + $0xa0] sm:$0xff]
  %v9573 = vld [vmem:[%s9551 + $0xa8] sm:$0xff]
  %v9574 = vld [vmem:[%s9551 + $0xb0] sm:$0xff]
  %v9575 = vld [vmem:[%s9551 + $0xb8] sm:$0xff]
  %v9576 = vld [vmem:[%s9551 + $0xc0] sm:$0x33]
  %v9602 = vunpack.c.l.b16 %v9552
  %v9603 = vunpack.c.h.b16 %v9552
  %v9604 = vunpack.c.l.b16 %v9553
  %v9605 = vunpack.c.h.b16 %v9553
  %v9606 = vunpack.c.l.b16 %v9554
  %v9607 = vunpack.c.h.b16 %v9554
  %v9608 = vunpack.c.l.b16 %v9555
  %v9609 = vunpack.c.h.b16 %v9555
  %v9610 = vunpack.c.l.b16 %v9556
  %v9611 = vunpack.c.h.b16 %v9556
  %v9612 = vunpack.c.l.b16 %v9557
  %v9613 = vunpack.c.h.b16 %v9557
  %v9614 = vunpack.c.l.b16 %v9558
  %v9615 = vunpack.c.h.b16 %v9558
  %v9616 = vunpack.c.l.b16 %v9559
  %v9617 = vunpack.c.h.b16 %v9559
  %v9618 = vunpack.c.l.b16 %v9560
  %v9619 = vunpack.c.h.b16 %v9560
  %v9620 = vunpack.c.l.b16 %v9561
  %v9621 = vunpack.c.h.b16 %v9561
  %v9622 = vunpack.c.l.b16 %v9562
  %v9623 = vunpack.c.h.b16 %v9562
  %v9624 = vunpack.c.l.b16 %v9563
  %v9625 = vunpack.c.h.b16 %v9563
  %v9626 = vunpack.c.l.b16 %v9564
  %v9627 = vunpack.c.h.b16 %v9564
  %v9628 = vunpack.c.l.b16 %v9565
  %v9629 = vunpack.c.h.b16 %v9565
  %v9630 = vunpack.c.l.b16 %v9566
  %v9631 = vunpack.c.h.b16 %v9566
  %v9632 = vunpack.c.l.b16 %v9567
  %v9633 = vunpack.c.h.b16 %v9567
  %v9634 = vunpack.c.l.b16 %v9568
  %v9635 = vunpack.c.h.b16 %v9568
  %v9636 = vunpack.c.l.b16 %v9569
  %v9637 = vunpack.c.h.b16 %v9569
  %v9638 = vunpack.c.l.b16 %v9570
  %v9639 = vunpack.c.h.b16 %v9570
  %v9640 = vunpack.c.l.b16 %v9571
  %v9641 = vunpack.c.h.b16 %v9571
  %v9642 = vunpack.c.l.b16 %v9572
  %v9643 = vunpack.c.h.b16 %v9572
  %v9644 = vunpack.c.l.b16 %v9573
  %v9645 = vunpack.c.h.b16 %v9573
  %v9646 = vunpack.c.l.b16 %v9574
  %v9647 = vunpack.c.h.b16 %v9574
  %v9648 = vunpack.c.l.b16 %v9575
  %v9649 = vunpack.c.h.b16 %v9575
  %v9650 = vunpack.c.l.b16 %v9576
  %v9651 = vunpack.c.h.b16 %v9576
  %v9652 = vpack.c.b16 %v9604, %v9602
  %v9653 = vpack.c.b16 %v9605, %v9603
  %v9654 = vpack.c.b16 %v9608, %v9606
  %v9655 = vpack.c.b16 %v9609, %v9607
  %v9656 = vpack.c.b16 %v9612, %v9610
  %v9657 = vpack.c.b16 %v9613, %v9611
  %v9658 = vpack.c.b16 %v9616, %v9614
  %v9659 = vpack.c.b16 %v9617, %v9615
  %v9660 = vpack.c.b16 %v9620, %v9618
  %v9661 = vpack.c.b16 %v9621, %v9619
  %v9662 = vpack.c.b16 %v9624, %v9622
  %v9663 = vpack.c.b16 %v9625, %v9623
  %v9664 = vpack.c.b16 %v9628, %v9626
  %v9665 = vpack.c.b16 %v9629, %v9627
  %v9666 = vpack.c.b16 %v9632, %v9630
  %v9667 = vpack.c.b16 %v9633, %v9631
  %v9668 = vpack.c.b16 %v9636, %v9634
  %v9669 = vpack.c.b16 %v9637, %v9635
  %v9670 = vpack.c.b16 %v9640, %v9638
  %v9671 = vpack.c.b16 %v9641, %v9639
  %v9672 = vpack.c.b16 %v9644, %v9642
  %v9673 = vpack.c.b16 %v9645, %v9643
  %v9674 = vpack.c.b16 %v9648, %v9646
  %v9675 = vpack.c.b16 %v9649, %v9647
  %v9676 = vpack.c.b16 %v9650, %v9650
  %v9677 = vpack.c.b16 %v9651, %v9651
  %v9703 = vsel %vm9480, %v9550, 0
  %v9706 = vsel %vm9282, %v9676, 0
  %v9709 = vsel %vm9282, %v9677, 0
  %9711 = vmatpush.bf16.msra.mxu0 %v9666
  %9712 = vmatpush.bf16.msra.mxu0 %v9664
  %9713 = vmatpush.bf16.msra.mxu0 %v9662
  %9714 = vmatpush.bf16.msra.mxu0 %v9660
  %9715 = vmatpush.bf16.msra.mxu0 %v9658
  %9716 = vmatpush.bf16.msra.mxu0 %v9656
  %9717 = vmatpush.bf16.msra.mxu0 %v9654
  %9718 = vmatpush.bf16.msra.mxu0 %v9652
  %9719 = vmatmul.bf16.gmra.mxu0 %v9549
  %v9720 = vpop.f32.mrf.mxu0
  %v9721 = vadd.f32 0.0, %v9720
  %v9722 = vpop.f32.mrf.mxu0
  %9723 = vdwg.mxu0
  %9724 = vmatpush.bf16.msra.mxu0 0
  %9725 = vmatpush.bf16.msra.mxu0 0
  %9726 = vmatpush.bf16.msra.mxu0 0
  %9727 = vmatpush.bf16.msra.mxu0 %v9706
  %9728 = vmatpush.bf16.msra.mxu0 %v9674
  %9729 = vmatpush.bf16.msra.mxu0 %v9672
  %9730 = vmatpush.bf16.msra.mxu0 %v9670
  %9731 = vmatpush.bf16.msra.mxu0 %v9668
  %9732 = vmatmul.bf16.gmra.mxu0 %v9703
  %v9733 = vpop.f32.mrf.mxu0
  %v9734 = vadd.f32 %v9721, %v9733
  %v9735 = vpop.f32.mrf.mxu0
  %9736 = vdwg.mxu0
  %9737 = vmatpush.bf16.msra.mxu0 %v9667
  %9738 = vmatpush.bf16.msra.mxu0 %v9665
  %9739 = vmatpush.bf16.msra.mxu0 %v9663
  %9740 = vmatpush.bf16.msra.mxu0 %v9661
  %9741 = vmatpush.bf16.msra.mxu0 %v9659
  %9742 = vmatpush.bf16.msra.mxu0 %v9657
  %9743 = vmatpush.bf16.msra.mxu0 %v9655
  %9744 = vmatpush.bf16.msra.mxu0 %v9653
  %9745 = vmatmul.bf16.gmra.mxu0 %v9549
  %v9746 = vpop.f32.mrf.mxu0
  %v9747 = vadd.f32 0.0, %v9746
  %v9748 = vpop.f32.mrf.mxu0
  %9749 = vdwg.mxu0
  %9750 = vmatpush.bf16.msra.mxu0 0
  %9751 = vmatpush.bf16.msra.mxu0 0
  %9752 = vmatpush.bf16.msra.mxu0 0
  %9753 = vmatpush.bf16.msra.mxu0 %v9709
  %9754 = vmatpush.bf16.msra.mxu0 %v9675
  %9755 = vmatpush.bf16.msra.mxu0 %v9673
  %9756 = vmatpush.bf16.msra.mxu0 %v9671
  %9757 = vmatpush.bf16.msra.mxu0 %v9669
  %9758 = vmatmul.bf16.gmra.mxu0 %v9703
  %v9759 = vpop.f32.mrf.mxu0
  %v9760 = vadd.f32 %v9747, %v9759
  %v9761 = vpop.f32.mrf.mxu0
  %9762 = vdwg.mxu0
  %v9763 = vadd.f32 %v9547, %v9734
  %v9764 = vadd.f32 %v9548, %v9760
  %v9765 = vpack.c.bf16 %v9324, %v9324
  %v9766 = vpack.c.bf16 %v9325, %v9325
  %s9767 = scalar_lea.vmem %s6, 400
  %v9768 = vld [vmem:[%s9767] sm:$0xff]
  %v9769 = vld [vmem:[%s9767 + $0x8] sm:$0xff]
  %v9770 = vld [vmem:[%s9767 + $0x10] sm:$0xff]
  %v9771 = vld [vmem:[%s9767 + $0x18] sm:$0xff]
  %v9772 = vld [vmem:[%s9767 + $0x20] sm:$0xff]
  %v9773 = vld [vmem:[%s9767 + $0x28] sm:$0xff]
  %v9774 = vld [vmem:[%s9767 + $0x30] sm:$0xff]
  %v9775 = vld [vmem:[%s9767 + $0x38] sm:$0xff]
  %v9776 = vld [vmem:[%s9767 + $0x40] sm:$0xff]
  %v9777 = vld [vmem:[%s9767 + $0x48] sm:$0xff]
  %v9778 = vld [vmem:[%s9767 + $0x50] sm:$0xff]
  %v9779 = vld [vmem:[%s9767 + $0x58] sm:$0xff]
  %v9780 = vld [vmem:[%s9767 + $0x60] sm:$0xff]
  %v9781 = vld [vmem:[%s9767 + $0x68] sm:$0xff]
  %v9782 = vld [vmem:[%s9767 + $0x70] sm:$0xff]
  %v9783 = vld [vmem:[%s9767 + $0x78] sm:$0xff]
  %v9784 = vld [vmem:[%s9767 + $0x80] sm:$0xff]
  %v9785 = vld [vmem:[%s9767 + $0x88] sm:$0xff]
  %v9786 = vld [vmem:[%s9767 + $0x90] sm:$0xff]
  %v9787 = vld [vmem:[%s9767 + $0x98] sm:$0xff]
  %v9788 = vld [vmem:[%s9767 + $0xa0] sm:$0xff]
  %v9789 = vld [vmem:[%s9767 + $0xa8] sm:$0xff]
  %v9790 = vld [vmem:[%s9767 + $0xb0] sm:$0xff]
  %v9791 = vld [vmem:[%s9767 + $0xb8] sm:$0xff]
  %v9792 = vld [vmem:[%s9767 + $0xc0] sm:$0x33]
  %v9818 = vunpack.c.l.b16 %v9768
  %v9819 = vunpack.c.h.b16 %v9768
  %v9820 = vunpack.c.l.b16 %v9769
  %v9821 = vunpack.c.h.b16 %v9769
  %v9822 = vunpack.c.l.b16 %v9770
  %v9823 = vunpack.c.h.b16 %v9770
  %v9824 = vunpack.c.l.b16 %v9771
  %v9825 = vunpack.c.h.b16 %v9771
  %v9826 = vunpack.c.l.b16 %v9772
  %v9827 = vunpack.c.h.b16 %v9772
  %v9828 = vunpack.c.l.b16 %v9773
  %v9829 = vunpack.c.h.b16 %v9773
  %v9830 = vunpack.c.l.b16 %v9774
  %v9831 = vunpack.c.h.b16 %v9774
  %v9832 = vunpack.c.l.b16 %v9775
  %v9833 = vunpack.c.h.b16 %v9775
  %v9834 = vunpack.c.l.b16 %v9776
  %v9835 = vunpack.c.h.b16 %v9776
  %v9836 = vunpack.c.l.b16 %v9777
  %v9837 = vunpack.c.h.b16 %v9777
  %v9838 = vunpack.c.l.b16 %v9778
  %v9839 = vunpack.c.h.b16 %v9778
  %v9840 = vunpack.c.l.b16 %v9779
  %v9841 = vunpack.c.h.b16 %v9779
  %v9842 = vunpack.c.l.b16 %v9780
  %v9843 = vunpack.c.h.b16 %v9780
  %v9844 = vunpack.c.l.b16 %v9781
  %v9845 = vunpack.c.h.b16 %v9781
  %v9846 = vunpack.c.l.b16 %v9782
  %v9847 = vunpack.c.h.b16 %v9782
  %v9848 = vunpack.c.l.b16 %v9783
  %v9849 = vunpack.c.h.b16 %v9783
  %v9850 = vunpack.c.l.b16 %v9784
  %v9851 = vunpack.c.h.b16 %v9784
  %v9852 = vunpack.c.l.b16 %v9785
  %v9853 = vunpack.c.h.b16 %v9785
  %v9854 = vunpack.c.l.b16 %v9786
  %v9855 = vunpack.c.h.b16 %v9786
  %v9856 = vunpack.c.l.b16 %v9787
  %v9857 = vunpack.c.h.b16 %v9787
  %v9858 = vunpack.c.l.b16 %v9788
  %v9859 = vunpack.c.h.b16 %v9788
  %v9860 = vunpack.c.l.b16 %v9789
  %v9861 = vunpack.c.h.b16 %v9789
  %v9862 = vunpack.c.l.b16 %v9790
  %v9863 = vunpack.c.h.b16 %v9790
  %v9864 = vunpack.c.l.b16 %v9791
  %v9865 = vunpack.c.h.b16 %v9791
  %v9866 = vunpack.c.l.b16 %v9792
  %v9867 = vunpack.c.h.b16 %v9792
  %v9868 = vpack.c.b16 %v9820, %v9818
  %v9869 = vpack.c.b16 %v9821, %v9819
  %v9870 = vpack.c.b16 %v9824, %v9822
  %v9871 = vpack.c.b16 %v9825, %v9823
  %v9872 = vpack.c.b16 %v9828, %v9826
  %v9873 = vpack.c.b16 %v9829, %v9827
  %v9874 = vpack.c.b16 %v9832, %v9830
  %v9875 = vpack.c.b16 %v9833, %v9831
  %v9876 = vpack.c.b16 %v9836, %v9834
  %v9877 = vpack.c.b16 %v9837, %v9835
  %v9878 = vpack.c.b16 %v9840, %v9838
  %v9879 = vpack.c.b16 %v9841, %v9839
  %v9880 = vpack.c.b16 %v9844, %v9842
  %v9881 = vpack.c.b16 %v9845, %v9843
  %v9882 = vpack.c.b16 %v9848, %v9846
  %v9883 = vpack.c.b16 %v9849, %v9847
  %v9884 = vpack.c.b16 %v9852, %v9850
  %v9885 = vpack.c.b16 %v9853, %v9851
  %v9886 = vpack.c.b16 %v9856, %v9854
  %v9887 = vpack.c.b16 %v9857, %v9855
  %v9888 = vpack.c.b16 %v9860, %v9858
  %v9889 = vpack.c.b16 %v9861, %v9859
  %v9890 = vpack.c.b16 %v9864, %v9862
  %v9891 = vpack.c.b16 %v9865, %v9863
  %v9892 = vpack.c.b16 %v9866, %v9866
  %v9893 = vpack.c.b16 %v9867, %v9867
  %v9919 = vsel %vm9480, %v9766, 0
  %v9922 = vsel %vm9282, %v9892, 0
  %v9925 = vsel %vm9282, %v9893, 0
  %9927 = vmatpush.bf16.msra.mxu0 %v9882
  %9928 = vmatpush.bf16.msra.mxu0 %v9880
  %9929 = vmatpush.bf16.msra.mxu0 %v9878
  %9930 = vmatpush.bf16.msra.mxu0 %v9876
  %9931 = vmatpush.bf16.msra.mxu0 %v9874
  %9932 = vmatpush.bf16.msra.mxu0 %v9872
  %9933 = vmatpush.bf16.msra.mxu0 %v9870
  %9934 = vmatpush.bf16.msra.mxu0 %v9868
  %9935 = vmatmul.bf16.gmra.mxu0 %v9765
  %v9936 = vpop.f32.mrf.mxu0
  %v9937 = vadd.f32 0.0, %v9936
  %v9938 = vpop.f32.mrf.mxu0
  %9939 = vdwg.mxu0
  %9940 = vmatpush.bf16.msra.mxu0 0
  %9941 = vmatpush.bf16.msra.mxu0 0
  %9942 = vmatpush.bf16.msra.mxu0 0
  %9943 = vmatpush.bf16.msra.mxu0 %v9922
  %9944 = vmatpush.bf16.msra.mxu0 %v9890
  %9945 = vmatpush.bf16.msra.mxu0 %v9888
  %9946 = vmatpush.bf16.msra.mxu0 %v9886
  %9947 = vmatpush.bf16.msra.mxu0 %v9884
  %9948 = vmatmul.bf16.gmra.mxu0 %v9919
  %v9949 = vpop.f32.mrf.mxu0
  %v9950 = vadd.f32 %v9937, %v9949
  %v9951 = vpop.f32.mrf.mxu0
  %9952 = vdwg.mxu0
  %9953 = vmatpush.bf16.msra.mxu0 %v9883
  %9954 = vmatpush.bf16.msra.mxu0 %v9881
  %9955 = vmatpush.bf16.msra.mxu0 %v9879
  %9956 = vmatpush.bf16.msra.mxu0 %v9877
  %9957 = vmatpush.bf16.msra.mxu0 %v9875
  %9958 = vmatpush.bf16.msra.mxu0 %v9873
  %9959 = vmatpush.bf16.msra.mxu0 %v9871
  %9960 = vmatpush.bf16.msra.mxu0 %v9869
  %9961 = vmatmul.bf16.gmra.mxu0 %v9765
  %v9962 = vpop.f32.mrf.mxu0
  %v9963 = vadd.f32 0.0, %v9962
  %v9964 = vpop.f32.mrf.mxu0
  %9965 = vdwg.mxu0
  %9966 = vmatpush.bf16.msra.mxu0 0
  %9967 = vmatpush.bf16.msra.mxu0 0
  %9968 = vmatpush.bf16.msra.mxu0 0
  %9969 = vmatpush.bf16.msra.mxu0 %v9925
  %9970 = vmatpush.bf16.msra.mxu0 %v9891
  %9971 = vmatpush.bf16.msra.mxu0 %v9889
  %9972 = vmatpush.bf16.msra.mxu0 %v9887
  %9973 = vmatpush.bf16.msra.mxu0 %v9885
  %9974 = vmatmul.bf16.gmra.mxu0 %v9919
  %v9975 = vpop.f32.mrf.mxu0
  %v9976 = vadd.f32 %v9963, %v9975
  %v9977 = vpop.f32.mrf.mxu0
  %9978 = vdwg.mxu0
  %v9979 = vadd.f32 %v9763, %v9950
  %v9980 = vadd.f32 %v9764, %v9976
  %v9981 = vsel %vm3762, %v9979, -inf
  %vm9982 = vcmask 551936
  %v9983 = vsel %vm9982, %v9980, -inf
  %v9984 = vmax.f32 %v9981, %v9983
  %9985 = vmax.xlane.f32.xlu0 %v9984
  %v9986 = vpop.xlane.xlu0 %9985
  %v9987 = vsub.f32 %v9979, %v9986
  %v9988 = vsub.f32 %v9980, %v9986
  %v9989 = vmul.f32 %v9987, 1.442695
  %v9990 = vpow.pop %v9989
  %v9991 = vmul.f32 %v9988, 1.442695
  %v9992 = vpow.pop %v9991
  %v9993 = vsel %vm3762, %v9990, 0.0
  %v9994 = vsel %vm9982, %v9992, 0.0
  %v9995 = vadd.f32 %v9993, %v9994
  %9996 = vadd.xlane.f32.xlu0 %v9995
  %v9997 = vpop.xlane.xlu0 %9996
  %v9998 = vrcp.pop %v9997
  %v9999 = vmul.f32 %v9990, %v9998
  %v10000 = vmul.f32 %v9992, %v9998
  %v10001 = vmul.f32 %v9286, %v9999
  %v10002 = vmul.f32 %v9287, %v10000
  %v10003 = vsel %vm3762, %v10001, 0.0
  %v10004 = vsel %vm9982, %v10002, 0.0
  %v10005 = vadd.f32 %v10003, %v10004
  %10006 = vadd.xlane.f32.xlu0 %v10005
  %v10007 = vpop.xlane.xlu0 %10006
  %v10008 = vmul.f32 %v9306, %v9999
  %v10009 = vmul.f32 %v9307, %v10000
  %v10010 = vsel %vm3762, %v10008, 0.0
  %v10011 = vsel %vm9982, %v10009, 0.0
  %v10012 = vadd.f32 %v10010, %v10011
  %10013 = vadd.xlane.f32.xlu0 %v10012
  %v10014 = vpop.xlane.xlu0 %10013
  %v10015 = vmul.f32 %v9324, %v9999
  %v10016 = vmul.f32 %v9325, %v10000
  %v10017 = vsel %vm3762, %v10015, 0.0
  %v10018 = vsel %vm9982, %v10016, 0.0
  %v10019 = vadd.f32 %v10017, %v10018
  %10020 = vadd.xlane.f32.xlu0 %v10019
  %v10021 = vpop.xlane.xlu0 %10020
  %vm10022 = vcmask 7168
  %v10023 = vsel %vm10022, %v10007, %v10014
  %vm10024 = vcmask 15360
  %v10025 = vsel %vm10024, %v10023, %v10021
  %v10026 = vld [vmem:[%s8] sm:$0xff]
  %v10027 = vld [vmem:[%s8 + $0x10] sm:$0xff]
  %v10028 = vld [vmem:[%s8 + $0x20] sm:$0xff]
  %v10029 = vld [vmem:[%s8 + $0x30] sm:$0xff]
  %v10030 = vld [vmem:[%s0] sm:$0x3]
  %10032 = vset.pattern.permute.xlu0 0
  %10033 = vperm.xlu0 %10032, %v10026
  %v10034 = vpop.permute.xlu0 %10033
  %10037 = vset.pattern.permute.xlu0 0
  %10038 = vperm.xlu0 %10037, %v10027
  %v10039 = vpop.permute.xlu0 %10038
  %10042 = vset.pattern.permute.xlu0 0
  %10043 = vperm.xlu0 %10042, %v10028
  %v10044 = vpop.permute.xlu0 %10043
  %10047 = vset.pattern.permute.xlu0 0
  %10048 = vperm.xlu0 %10047, %v10029
  %v10049 = vpop.permute.xlu0 %10048
  %v10051 = vperm.slane %v10030, 0
  %v10052 = vmul.f32 %v10034, %v10051
  %v10053 = vmul.f32 %v10039, %v10051
  %v10054 = vmul.f32 %v10044, %v10051
  %v10055 = vmul.f32 %v10049, %v10051
  %10056 = vset.pattern.permute.xlu0 1
  %10057 = vperm.xlu0 %10056, %v10026
  %v10058 = vpop.permute.xlu0 %10057
  %10060 = vset.pattern.permute.xlu0 1
  %10061 = vperm.xlu0 %10060, %v10027
  %v10062 = vpop.permute.xlu0 %10061
  %10064 = vset.pattern.permute.xlu0 1
  %10065 = vperm.xlu0 %10064, %v10028
  %v10066 = vpop.permute.xlu0 %10065
  %10068 = vset.pattern.permute.xlu0 1
  %10069 = vperm.xlu0 %10068, %v10029
  %v10070 = vpop.permute.xlu0 %10069
  %v10072 = vperm.slane %v10030, 1
  %v10073 = vmul.f32 %v10058, %v10072
  %v10074 = vmul.f32 %v10062, %v10072
  %v10075 = vmul.f32 %v10066, %v10072
  %v10076 = vmul.f32 %v10070, %v10072
  %v10077 = vadd.f32 %v10052, %v10073
  %v10078 = vadd.f32 %v10053, %v10074
  %v10079 = vadd.f32 %v10054, %v10075
  %v10080 = vadd.f32 %v10055, %v10076
  %10081 = vset.pattern.permute.xlu0 5
  %10082 = vperm.xlu0 %10081, %v10026
  %v10083 = vpop.permute.xlu0 %10082
  %10085 = vset.pattern.permute.xlu0 5
  %10086 = vperm.xlu0 %10085, %v10027
  %v10087 = vpop.permute.xlu0 %10086
  %10089 = vset.pattern.permute.xlu0 5
  %10090 = vperm.xlu0 %10089, %v10028
  %v10091 = vpop.permute.xlu0 %10090
  %10093 = vset.pattern.permute.xlu0 5
  %10094 = vperm.xlu0 %10093, %v10029
  %v10095 = vpop.permute.xlu0 %10094
  %v10097 = vadd.f32 %v10077, %v10083
  %v10098 = vadd.f32 %v10078, %v10087
  %v10099 = vadd.f32 %v10079, %v10091
  %v10100 = vadd.f32 %v10080, %v10095
  %10101 = vrot.lane.b32.xlu0 %v10026, 126
  %v10102 = vpop.permute.xlu0 %10101
  %10103 = vrot.lane.b32.xlu0 %v10027, 126
  %v10104 = vpop.permute.xlu0 %10103
  %10105 = vrot.lane.b32.xlu0 %v10028, 126
  %v10106 = vpop.permute.xlu0 %10105
  %10107 = vrot.lane.b32.xlu0 %v10029, 126
  %v10108 = vpop.permute.xlu0 %10107
  %vm10109 = vcmask 23552
  %v10110 = vsel %vm10109, %v10102, 0
  %v10112 = vsel %vm10109, %v10104, 0
  %v10114 = vsel %vm10109, %v10106, 0
  %v10116 = vsel %vm10109, %v10108, 0
  %v10119 = vsel %vm10109, %v10025, 0
  %10121 = vmatpush.xpose.msra.mxu0 0.0
  %10122 = vmatpush.xpose.msra.mxu0 0.0
  %10123 = vmatpush.xpose.msra.mxu0 0.0
  %10124 = vmatpush.xpose.msra.mxu0 0.0
  %10125 = vmatpush.xpose.msra.mxu0 0.0
  %10126 = vmatpush.xpose.msra.mxu0 0.0
  %10127 = vmatpush.xpose.msra.mxu0 0.0
  %10128 = vmatpush.xpose.msra.mxu0 0.0
  %10129 = vmatpush.xpose.msra.mxu0 0.0
  %10130 = vmatpush.xpose.msra.mxu0 0.0
  %10131 = vmatpush.xpose.msra.mxu0 0.0
  %10132 = vmatpush.xpose.msra.mxu0 0.0
  %10133 = vmatpush.xpose.msra.mxu0 0.0
  %10134 = vmatpush.xpose.msra.mxu0 0.0
  %10135 = vmatpush.xpose.msra.mxu0 0.0
  %10136 = vmatpush.xpose.msra.mxu0 %v10119
  %10137 = vmatmul.f32.gmra.mxu0 %v10110
  %v10138 = vpop.f32.mrf.mxu0
  %v10139 = vadd.f32 0.0, %v10138
  %10140 = vmatmul.f32.gmra.mxu0 %v10112
  %v10141 = vpop.f32.mrf.mxu0
  %v10142 = vadd.f32 0.0, %v10141
  %10143 = vmatmul.f32.gmra.mxu0 %v10114
  %v10144 = vpop.f32.mrf.mxu0
  %v10145 = vadd.f32 0.0, %v10144
  %10146 = vmatmul.f32.gmra.mxu0 %v10116
  %v10147 = vpop.f32.mrf.mxu0
  %v10148 = vadd.f32 0.0, %v10147
  %10149 = vdwg.mxu0
  %10154 = vrot.lane.b32.xlu0 %v10139, 4
  %v10155 = vpop.permute.xlu0 %10154
  %10156 = vrot.lane.b32.xlu0 %v10142, 4
  %v10157 = vpop.permute.xlu0 %10156
  %10158 = vrot.lane.b32.xlu0 %v10145, 4
  %v10159 = vpop.permute.xlu0 %10158
  %10160 = vrot.lane.b32.xlu0 %v10148, 4
  %v10161 = vpop.permute.xlu0 %10160
  %10166 = vrot.lane.b32.xlu0 %v10139, 8
  %v10167 = vpop.permute.xlu0 %10166
  %10168 = vrot.lane.b32.xlu0 %v10142, 8
  %v10169 = vpop.permute.xlu0 %10168
  %10170 = vrot.lane.b32.xlu0 %v10145, 8
  %v10171 = vpop.permute.xlu0 %10170
  %10172 = vrot.lane.b32.xlu0 %v10148, 8
  %v10173 = vpop.permute.xlu0 %10172
  %10178 = vrot.lane.b32.xlu0 %v10139, 12
  %v10179 = vpop.permute.xlu0 %10178
  %10180 = vrot.lane.b32.xlu0 %v10142, 12
  %v10181 = vpop.permute.xlu0 %10180
  %10182 = vrot.lane.b32.xlu0 %v10145, 12
  %v10183 = vpop.permute.xlu0 %10182
  %10184 = vrot.lane.b32.xlu0 %v10148, 12
  %v10185 = vpop.permute.xlu0 %10184
  %10190 = vrot.lane.b32.xlu0 %v10139, 16
  %v10191 = vpop.permute.xlu0 %10190
  %10192 = vrot.lane.b32.xlu0 %v10142, 16
  %v10193 = vpop.permute.xlu0 %10192
  %10194 = vrot.lane.b32.xlu0 %v10145, 16
  %v10195 = vpop.permute.xlu0 %10194
  %10196 = vrot.lane.b32.xlu0 %v10148, 16
  %v10197 = vpop.permute.xlu0 %10196
  %10202 = vrot.lane.b32.xlu0 %v10139, 20
  %v10203 = vpop.permute.xlu0 %10202
  %10204 = vrot.lane.b32.xlu0 %v10142, 20
  %v10205 = vpop.permute.xlu0 %10204
  %10206 = vrot.lane.b32.xlu0 %v10145, 20
  %v10207 = vpop.permute.xlu0 %10206
  %10208 = vrot.lane.b32.xlu0 %v10148, 20
  %v10209 = vpop.permute.xlu0 %10208
  %10214 = vrot.lane.b32.xlu0 %v10139, 24
  %v10215 = vpop.permute.xlu0 %10214
  %10216 = vrot.lane.b32.xlu0 %v10142, 24
  %v10217 = vpop.permute.xlu0 %10216
  %10218 = vrot.lane.b32.xlu0 %v10145, 24
  %v10219 = vpop.permute.xlu0 %10218
  %10220 = vrot.lane.b32.xlu0 %v10148, 24
  %v10221 = vpop.permute.xlu0 %10220
  %10226 = vrot.lane.b32.xlu0 %v10139, 28
  %v10227 = vpop.permute.xlu0 %10226
  %10228 = vrot.lane.b32.xlu0 %v10142, 28
  %v10229 = vpop.permute.xlu0 %10228
  %10230 = vrot.lane.b32.xlu0 %v10145, 28
  %v10231 = vpop.permute.xlu0 %10230
  %10232 = vrot.lane.b32.xlu0 %v10148, 28
  %v10233 = vpop.permute.xlu0 %10232
  %vm10238 = vcmask 31744
  %v10239 = vsel %vm10238, %v10139, %v10155
  %v10240 = vsel %vm10238, %v10142, %v10157
  %v10241 = vsel %vm10238, %v10145, %v10159
  %v10242 = vsel %vm10238, %v10148, %v10161
  %vm10243 = vcmask 64512
  %v10244 = vsel %vm10243, %v10239, %v10167
  %v10245 = vsel %vm10243, %v10240, %v10169
  %v10246 = vsel %vm10243, %v10241, %v10171
  %v10247 = vsel %vm10243, %v10242, %v10173
  %vm10248 = vcmask 97280
  %v10249 = vsel %vm10248, %v10244, %v10179
  %v10250 = vsel %vm10248, %v10245, %v10181
  %v10251 = vsel %vm10248, %v10246, %v10183
  %v10252 = vsel %vm10248, %v10247, %v10185
  %v10253 = vsel %vm1084, %v10249, %v10191
  %v10254 = vsel %vm1084, %v10250, %v10193
  %v10255 = vsel %vm1084, %v10251, %v10195
  %v10256 = vsel %vm1084, %v10252, %v10197
  %vm10257 = vcmask 162816
  %v10258 = vsel %vm10257, %v10253, %v10203
  %v10259 = vsel %vm10257, %v10254, %v10205
  %v10260 = vsel %vm10257, %v10255, %v10207
  %v10261 = vsel %vm10257, %v10256, %v10209
  %vm10262 = vcmask 195584
  %v10263 = vsel %vm10262, %v10258, %v10215
  %v10264 = vsel %vm10262, %v10259, %v10217
  %v10265 = vsel %vm10262, %v10260, %v10219
  %v10266 = vsel %vm10262, %v10261, %v10221
  %vm10267 = vcmask 228352
  %v10268 = vsel %vm10267, %v10263, %v10227
  %v10269 = vsel %vm10267, %v10264, %v10229
  %v10270 = vsel %vm10267, %v10265, %v10231
  %v10271 = vsel %vm10267, %v10266, %v10233
  %v10272 = vadd.f32 %v10097, %v10268
  %v10273 = vadd.f32 %v10098, %v10269
  %v10274 = vadd.f32 %v10099, %v10270
  %v10275 = vadd.f32 %v10100, %v10271
  %v10276 = vld [vmem:[%s1] sm:$0xff]
  %v10277 = vld [vmem:[%s1 + $0x8] sm:$0xff]
  %v10278 = vld [vmem:[%s1 + $0x10] sm:$0xff]
  %v10279 = vld [vmem:[%s1 + $0x18] sm:$0xff]
  %vm10280 = vcmask 261120
  %v10282 = vsel %vm10280, %v10272, 0
  %v10285 = vsel %vm10280, %v10273, 0
  %v10288 = vsel %vm10280, %v10274, 0
  %v10291 = vsel %vm10280, %v10275, 0
  %10293 = vmatpush.msra.mxu0 0.0
  %10294 = vmatpush.msra.mxu0 0.0
  %10295 = vmatpush.msra.mxu0 0.0
  %10296 = vmatpush.msra.mxu0 0.0
  %10297 = vmatpush.msra.mxu0 0.0
  %10298 = vmatpush.msra.mxu0 0.0
  %10299 = vmatpush.msra.mxu0 0.0
  %10300 = vmatpush.msra.mxu0 0.0
  %10301 = vmatpush.msra.mxu0 0.0
  %10302 = vmatpush.msra.mxu0 0.0
  %10303 = vmatpush.msra.mxu0 0.0
  %10304 = vmatpush.msra.mxu0 0.0
  %10305 = vmatpush.msra.mxu0 %v10279
  %10306 = vmatpush.msra.mxu0 %v10278
  %10307 = vmatpush.msra.mxu0 %v10277
  %10308 = vmatpush.msra.mxu0 %v10276
  %10309 = vmatmul.f32.gmra.mxu0 %v10282
  %v10310 = vpop.f32.mrf.mxu0
  %v10311 = vadd.f32 0.0, %v10310
  %10312 = vmatmul.f32.gmra.mxu0 %v10285
  %v10313 = vpop.f32.mrf.mxu0
  %v10314 = vadd.f32 0.0, %v10313
  %10315 = vmatmul.f32.gmra.mxu0 %v10288
  %v10316 = vpop.f32.mrf.mxu0
  %v10317 = vadd.f32 0.0, %v10316
  %10318 = vmatmul.f32.gmra.mxu0 %v10291
  %v10319 = vpop.f32.mrf.mxu0
  %v10320 = vadd.f32 0.0, %v10319
  %10321 = vdwg.mxu0
  %10322 = vst.msk [vmem:[%s9] sm:$0xff] %vm10280, %v10311
  %10323 = vst.msk [vmem:[%s9 + $0x8] sm:$0xff] %vm10280, %v10314
  %10324 = vst.msk [vmem:[%s9 + $0x10] sm:$0xff] %vm10280, %v10317
  %10325 = vst.msk [vmem:[%s9 + $0x18] sm:$0xff] %vm10280, %v10320
  // Predicated region
  $region38: #{conv_temporal_graphical_forward.1} parent=0 // pred_check
    _
  $region39: #{conv_temporal_graphical_forward.1} parent=0 // pred_check_branch
    %10327 = sbr.rel (0) target = $region41
  $region40: #{conv_temporal_graphical_forward.1} parent=0 // pred_region
    _
  $region41: #{conv_temporal_graphical_forward.1} parent=0 // pred_fallthru
    _
  // Predicated region
  $region42: #{conv_temporal_graphical_forward.1} parent=0 // pred_check
    _
  $region43: #{conv_temporal_graphical_forward.1} parent=0 // pred_check_branch
    %10329 = sbr.rel (0) target = $region45
  $region44: #{conv_temporal_graphical_forward.1} parent=0 // pred_region
    _
  $region45: #{conv_temporal_graphical_forward.1} parent=0 // pred_fallthru
    _

</llo_original>
